<compile_context>
chip_gen: v7x
topology: tpu7x:2x2x1
jax: 0.10.0
libtpu: 0.0.40
codegen_flags: <defaults>
</compile_context>

<pallas_src>
import jax
import jax.numpy as jnp
from jax.experimental import pallas as pl
from jax.experimental.pallas import tpu as pltpu

F = 100                      # filters per branch (hard-coded in the module)
F_PAD = 128                  # padded filters per branch (lane-aligned)
KS = (2, 3, 4, 5)            # conv kernel heights
SUMK = sum(KS)               # 14
C_TOT = SUMK * F_PAD         # fused conv-weight columns (1792)
FEAT_PAD = len(KS) * F_PAD   # 512 (padded concat feature width)


def _pad_to(n, m):
    return ((n + m - 1) // m) * m


def _make_kernel(TB, L_pad, L, W_pad, OUT_pad):
    offs = []
    o = 0
    for k in KS:
        offs.append(o)
        o += k * F_PAD

    def kernel(x_ref, wf_ref, bconv_ref, wl_ref, bl_ref, o_ref):
        # x_ref: (TB*L_pad, W_pad) bf16 — already flat, no reshape of the input needed.
        s = jnp.dot(x_ref[...], wf_ref[...],
                    preferred_element_type=jnp.float32)       # (TB*L_pad, C_TOT) f32
        s = s.reshape(TB, L_pad, C_TOT)                        # pure leading split (L_pad % 8 == 0)

        # time-index for masking, hoisted once (JAX does not CSE broadcast_in_dim)
        t_idx = jax.lax.broadcasted_iota(jnp.int32, (TB, L_pad, F_PAD), 1)

        feats = []
        for i, k in enumerate(KS):
            Lo = L - k + 1                                     # valid conv outputs along time
            off = offs[i]
            # conv over time == shifted sum; use XLU rolls instead of misaligned sublane slices
            acc = s[:, :, off:off + F_PAD]                     # j = 0 term (lane-aligned slice)
            for j in range(1, k):
                slab = s[:, :, off + j * F_PAD:off + (j + 1) * F_PAD]
                # want shifted[t] = slab[t + j]; pltpu.roll follows jnp.roll => shift = -j mod L_pad
                acc = acc + pltpu.roll(slab, shift=L_pad - j, axis=1)
            # rows t >= Lo hold rolled-in / padded garbage -> kill them before the max
            acc = jnp.where(t_idx < Lo, acc, -jnp.inf)
            pooled = jnp.max(acc, axis=1)                      # MaxPool over time -> (TB, F_PAD)
            b = bconv_ref[:, i * F_PAD:(i + 1) * F_PAD]        # (1, F_PAD)
            # sigmoid is strictly increasing and bias is time-invariant:
            #   max_t sigmoid(conv[t] + b) == sigmoid(max_t conv[t] + b)
            feats.append(jax.nn.sigmoid(pooled + b))

        feat = jnp.concatenate(feats, axis=1)                  # (TB, 4*F_PAD) = (TB, 512)
        out = jnp.dot(feat.astype(jnp.bfloat16), wl_ref[...],
                      preferred_element_type=jnp.float32) + bl_ref[...]   # (TB, OUT_pad)
        o_ref[...] = jax.nn.sigmoid(out)

    return kernel


def pack_params(torch_conv_ws, torch_conv_bs, torch_lin_w, torch_lin_b):
    """Repack PyTorch-layout parameters into the fused, padded, lane-dense kernel layout."""
    W = torch_conv_ws[0].shape[-1]
    W_pad = _pad_to(W, 128)                                    # full MXU K, lane-dense LHS
    cols = []
    for wt, k in zip(torch_conv_ws, KS):
        w = jnp.transpose(wt[:, 0], (1, 0, 2))                 # (k, F, W)
        w = jnp.pad(w, ((0, 0), (0, F_PAD - F), (0, W_pad - W)))   # zero-padded filters & K
        cols.append(w.reshape(k * F_PAD, W_pad))
    w_fused = jnp.concatenate(cols, axis=0).T                  # (W_pad, 14*F_PAD), lane-dense

    conv_b = jnp.concatenate(
        [jnp.pad(b, (0, F_PAD - F)) for b in torch_conv_bs])[None, :]   # (1, 4*F_PAD)

    OUT = torch_lin_w.shape[0]
    OUT_pad = _pad_to(OUT, 128)                                # unmasked vector stores
    lw = torch_lin_w.T                                         # (400, OUT)
    rows = [jnp.pad(lw[i * F:(i + 1) * F], ((0, F_PAD - F), (0, 0))) for i in range(len(KS))]
    lin_w = jnp.concatenate(rows, axis=0)                      # (512, OUT), zero rows at pads
    lin_w = jnp.pad(lin_w, ((0, 0), (0, OUT_pad - OUT)))       # (512, OUT_pad)
    lin_b = jnp.pad(torch_lin_b, (0, OUT_pad - OUT))[None, :]  # (1, OUT_pad)

    return (w_fused.astype(jnp.bfloat16), conv_b.astype(jnp.float32),
            lin_w.astype(jnp.bfloat16), lin_b.astype(jnp.float32))


def text_cnn_forward(x, w_fused, conv_b, lin_w, lin_b, *, tb=32, out_dim=None):
    """x: (B, L, W) float. w_fused: (W_pad, 1792) bf16. conv_b: (1, 512) f32.
    lin_w: (512, OUT_pad) bf16 (padded rows/cols zero). lin_b: (1, OUT_pad) f32.
    tb: examples per grid step (multiple of 8); out_dim: true Linear output width."""
    B, L, W = x.shape
    assert L >= max(KS), "TextCNN needs sequence length >= 5"
    W_pad = w_fused.shape[0]
    OUT_pad = lin_w.shape[1]
    out_dim = OUT_pad if out_dim is None else out_dim

    # tb multiple of 8; keep >= 2 grid steps when B allows so both v7x TCs get a tile.
    tb = max(8, min((tb // 8) * 8, 8 * ((B + 15) // 16)))
    b_pad = ((B + tb - 1) // tb) * tb
    l_pad = _pad_to(L, 8)                                      # reshapes become leading splits

    x = jnp.pad(x, ((0, b_pad - B), (0, l_pad - L), (0, W_pad - W)))
    x = x.astype(jnp.bfloat16).reshape(b_pad * l_pad, W_pad)   # 2-D, lane-dense, no kernel reshape

    kernel = _make_kernel(tb, l_pad, L, W_pad, OUT_pad)

    # grid-invariant operands (constant index map -> fetched once per call)
    inv = lambda shape: pl.BlockSpec(shape, lambda b: (0,) * len(shape))

    # VMEM budget: f32 intermediate s, roll/mask transients, double-buffered I/O + weights.
    s_bytes = tb * l_pad * C_TOT * 4
    tmp_bytes = 3 * tb * l_pad * F_PAD * 4
    io_bytes = 2 * (tb * l_pad * W_pad * 2 + tb * OUT_pad * 4)
    w_bytes = 2 * (W_pad * C_TOT * 2 + FEAT_PAD * OUT_pad * 2 + (FEAT_PAD + OUT_pad) * 4)
    vmem_limit = min(max(2 * s_bytes + tmp_bytes + io_bytes + w_bytes + (4 << 20), 32 << 20),
                     64 << 20)                                 # cap at v7x physical VMEM

    cost = pl.CostEstimate(
        flops=2 * b_pad * l_pad * W_pad * C_TOT + 2 * b_pad * FEAT_PAD * OUT_pad,
        transcendentals=b_pad * (FEAT_PAD + OUT_pad),
        bytes_accessed=(x.size * 2 + w_fused.size * 2 + lin_w.size * 2
                        + conv_b.size * 4 + lin_b.size * 4 + b_pad * OUT_pad * 4),
    )

    out = pl.pallas_call(
        kernel,
        out_shape=jax.ShapeDtypeStruct((b_pad, OUT_pad), jnp.float32),
        grid_spec=pltpu.PrefetchScalarGridSpec(
            num_scalar_prefetch=0,
            grid=(b_pad // tb,),
            in_specs=[pl.BlockSpec((tb * l_pad, W_pad), lambda b: (b, 0)),
                      inv((W_pad, C_TOT)),
                      inv((1, FEAT_PAD)),
                      inv((FEAT_PAD, OUT_pad)),
                      inv((1, OUT_pad))],
            out_specs=pl.BlockSpec((tb, OUT_pad), lambda b: (b, 0)),
        ),
        compiler_params=pltpu.CompilerParams(
            dimension_semantics=("parallel",),
            vmem_limit_bytes=vmem_limit),
        cost_estimate=cost,
    )(x, w_fused, conv_b, lin_w, lin_b)
    return out[:B, :out_dim]


def reference_forward(x, torch_conv_ws, torch_conv_bs, torch_lin_w, torch_lin_b):
    """Pure-JAX f32 reference with PyTorch parameter layouts (for verification)."""
    B, L, W = x.shape
    feats = []
    for (wt, bt), k in zip(zip(torch_conv_ws, torch_conv_bs), KS):
        Lo = L - k + 1
        outs = []
        for t in range(Lo):
            patch = x[:, t:t + k, :]                                 # (B, k, W)
            outs.append(jnp.einsum('bkw,fkw->bf', patch, wt[:, 0]) + bt)
        conv = jnp.stack(outs, axis=2)                               # (B, F, Lo)
        act = jax.nn.sigmoid(conv)
        feats.append(jnp.max(act, axis=2))                           # (B, F)
    feat = jnp.concatenate(feats, axis=1)                            # (B, 4F)
    return jax.nn.sigmoid(feat @ torch_lin_w.T + torch_lin_b)


if __name__ == "__main__":
    # Small but shape-consistent: 100 filters x 4 branches -> Linear(400, OUT).
    # B=64 with tb=32 gives a 2-step "parallel" grid (both v7x TensorCores busy).
    B, L, W, OUT = 64, 16, 32, 128
    key = jax.random.PRNGKey(0)
    keys = jax.random.split(key, 12)

    # Deterministic parameter init (uniform 0..0.001, like the module's uniform init path)
    torch_conv_ws, torch_conv_bs = [], []
    for i, k in enumerate(KS):
        torch_conv_ws.append(jax.random.uniform(keys[i], (F, 1, k, W),
                                                jnp.float32, 0.0, 1e-3))
        torch_conv_bs.append(jax.random.uniform(keys[4 + i], (F,),
                                                jnp.float32, 0.0, 1e-3))
    torch_lin_w = jax.random.uniform(keys[8], (OUT, 4 * F), jnp.float32, 0.0, 1e-3)
    torch_lin_b = jax.random.uniform(keys[9], (OUT,), jnp.float32, 0.0, 1e-3)

    # Input: PyTorch forward takes (B, 1, L, W); drop the singleton channel for the kernel.
    x_nchw = jax.random.normal(keys[10], (B, 1, L, W), jnp.float32)
    x = x_nchw[:, 0]                                               # (B, L, W)

    w_fused, conv_b, lin_w, lin_b = pack_params(
        torch_conv_ws, torch_conv_bs, torch_lin_w, torch_lin_b)

    out = text_cnn_forward(x, w_fused, conv_b, lin_w, lin_b, tb=32, out_dim=OUT)
    out = jax.block_until_ready(out)

    ref = reference_forward(x, torch_conv_ws, torch_conv_bs, torch_lin_w, torch_lin_b)
    assert out.shape == (B, OUT)
    # bf16 matmul operands (f32 accumulate): loosened tolerance vs the f32 reference.
    assert jnp.allclose(out, ref, atol=2e-3, rtol=2e-3), "mismatch vs reference"

    print("KERNEL_OK")
</pallas_src>

<mosaic_0001>
module attributes {stable_mosaic.version = 11 : i64} {
  func.func @kernel(%arg0: i32, %arg1: memref<512x128xbf16, #tpu.memory_space<vmem>>, %arg2: memref<128x1792xbf16, #tpu.memory_space<vmem>>, %arg3: memref<1x512xf32, #tpu.memory_space<vmem>>, %arg4: memref<512x128xbf16, #tpu.memory_space<vmem>>, %arg5: memref<1x128xf32, #tpu.memory_space<vmem>>, %arg6: memref<32x128xf32, #tpu.memory_space<vmem>>) attributes {dimension_semantics = [#tpu.dimension_semantics<parallel>], iteration_bounds = array<i64: 2>, scalar_prefetch = 0 : i64, scratch_operands = 0 : i64, tpu.core_type = #tpu.core_type<tc>, window_params = [{transform_indices = @transform_0, window_bounds = array<i64: 512, 128>}, {pipeline_mode = #tpu.pipeline_mode<synchronous>, transform_indices = @transform_1, window_bounds = array<i64: 128, 1792>}, {pipeline_mode = #tpu.pipeline_mode<synchronous>, transform_indices = @transform_2, window_bounds = array<i64: 1, 512>}, {pipeline_mode = #tpu.pipeline_mode<synchronous>, transform_indices = @transform_3, window_bounds = array<i64: 512, 128>}, {pipeline_mode = #tpu.pipeline_mode<synchronous>, transform_indices = @transform_4, window_bounds = array<i64: 1, 128>}, {transform_indices = @transform_5, window_bounds = array<i64: 32, 128>}]} {
    %c0 = arith.constant 0 : index
    %c0_0 = arith.constant 0 : index
    %0 = vector.load %arg1[%c0, %c0_0] : memref<512x128xbf16, #tpu.memory_space<vmem>>, vector<512x128xbf16>
    %c0_1 = arith.constant 0 : index
    %c0_2 = arith.constant 0 : index
    %1 = vector.load %arg2[%c0_1, %c0_2] : memref<128x1792xbf16, #tpu.memory_space<vmem>>, vector<128x1792xbf16>
    %cst = arith.constant dense<0.000000e+00> : vector<512x1792xf32>
    %2 = tpu.matmul %0, %1, %cst {dimension_numbers = #tpu.dot_dimension_numbers<[1], [0], [0], [1], [0, 0, 1, 1], [], []>} : vector<512x128xbf16>, vector<128x1792xbf16>, vector<512x1792xf32> -> vector<512x1792xf32>
    %3 = vector.shape_cast %2 : vector<512x1792xf32> to vector<32x16x1792xf32>
    %4 = tpu.iota {dimensions = array<i32: 1>} : vector<32x16x128xi32>
    %5 = vector.extract_strided_slice %3 {offsets = [0, 0, 0], sizes = [32, 16, 128], strides = [1, 1, 1]} : vector<32x16x1792xf32> to vector<32x16x128xf32>
    %6 = vector.extract_strided_slice %3 {offsets = [0, 0, 128], sizes = [32, 16, 128], strides = [1, 1, 1]} : vector<32x16x1792xf32> to vector<32x16x128xf32>
    %c15_i32 = arith.constant 15 : i32
    %7 = tpu.dynamic_rotate %6 by %c15_i32 dim 1 : vector<32x16x128xf32>, i32 -> vector<32x16x128xf32>
    %8 = arith.addf %5, %7 : vector<32x16x128xf32>
    %c15_i32_3 = arith.constant 15 : i32
    %9 = vector.broadcast %c15_i32_3 : i32 to vector<32x16x128xi32>
    %10 = arith.cmpi slt, %4, %9 : vector<32x16x128xi32>
    %cst_4 = arith.constant 0xFF800000 : f32
    %11 = vector.broadcast %cst_4 : f32 to vector<32x16x128xf32>
    %12 = arith.select %10, %8, %11 : vector<32x16x128xi1>, vector<32x16x128xf32>
    %cst_5 = arith.constant dense<0xFF800000> : vector<32x128xf32>
    %13 = vector.multi_reduction <maximumf>, %12, %cst_5 [1] : vector<32x16x128xf32> to vector<32x128xf32>
    %c0_6 = arith.constant 0 : index
    %c0_7 = arith.constant 0 : index
    %14 = vector.load %arg3[%c0_6, %c0_7] : memref<1x512xf32, #tpu.memory_space<vmem>>, vector<1x128xf32>
    %15 = vector.broadcast %14 : vector<1x128xf32> to vector<32x128xf32>
    %16 = arith.addf %13, %15 : vector<32x128xf32>
    %17 = arith.negf %16 : vector<32x128xf32>
    %18 = math.exp %17 : vector<32x128xf32>
    %cst_8 = arith.constant 1.000000e+00 : f32
    %19 = vector.broadcast %cst_8 : f32 to vector<32x128xf32>
    %20 = arith.addf %19, %18 : vector<32x128xf32>
    %21 = arith.divf %19, %20 : vector<32x128xf32>
    %22 = vector.extract_strided_slice %3 {offsets = [0, 0, 256], sizes = [32, 16, 128], strides = [1, 1, 1]} : vector<32x16x1792xf32> to vector<32x16x128xf32>
    %23 = vector.extract_strided_slice %3 {offsets = [0, 0, 384], sizes = [32, 16, 128], strides = [1, 1, 1]} : vector<32x16x1792xf32> to vector<32x16x128xf32>
    %c15_i32_9 = arith.constant 15 : i32
    %24 = tpu.dynamic_rotate %23 by %c15_i32_9 dim 1 : vector<32x16x128xf32>, i32 -> vector<32x16x128xf32>
    %25 = arith.addf %22, %24 : vector<32x16x128xf32>
    %26 = vector.extract_strided_slice %3 {offsets = [0, 0, 512], sizes = [32, 16, 128], strides = [1, 1, 1]} : vector<32x16x1792xf32> to vector<32x16x128xf32>
    %c14_i32 = arith.constant 14 : i32
    %27 = tpu.dynamic_rotate %26 by %c14_i32 dim 1 : vector<32x16x128xf32>, i32 -> vector<32x16x128xf32>
    %28 = arith.addf %25, %27 : vector<32x16x128xf32>
    %c14_i32_10 = arith.constant 14 : i32
    %29 = vector.broadcast %c14_i32_10 : i32 to vector<32x16x128xi32>
    %30 = arith.cmpi slt, %4, %29 : vector<32x16x128xi32>
    %cst_11 = arith.constant 0xFF800000 : f32
    %31 = vector.broadcast %cst_11 : f32 to vector<32x16x128xf32>
    %32 = arith.select %30, %28, %31 : vector<32x16x128xi1>, vector<32x16x128xf32>
    %cst_12 = arith.constant dense<0xFF800000> : vector<32x128xf32>
    %33 = vector.multi_reduction <maximumf>, %32, %cst_12 [1] : vector<32x16x128xf32> to vector<32x128xf32>
    %c0_13 = arith.constant 0 : index
    %c128 = arith.constant 128 : index
    %34 = vector.load %arg3[%c0_13, %c128] : memref<1x512xf32, #tpu.memory_space<vmem>>, vector<1x128xf32>
    %35 = vector.broadcast %34 : vector<1x128xf32> to vector<32x128xf32>
    %36 = arith.addf %33, %35 : vector<32x128xf32>
    %37 = arith.negf %36 : vector<32x128xf32>
    %38 = math.exp %37 : vector<32x128xf32>
    %cst_14 = arith.constant 1.000000e+00 : f32
    %39 = vector.broadcast %cst_14 : f32 to vector<32x128xf32>
    %40 = arith.addf %39, %38 : vector<32x128xf32>
    %41 = arith.divf %39, %40 : vector<32x128xf32>
    %42 = vector.extract_strided_slice %3 {offsets = [0, 0, 640], sizes = [32, 16, 128], strides = [1, 1, 1]} : vector<32x16x1792xf32> to vector<32x16x128xf32>
    %43 = vector.extract_strided_slice %3 {offsets = [0, 0, 768], sizes = [32, 16, 128], strides = [1, 1, 1]} : vector<32x16x1792xf32> to vector<32x16x128xf32>
    %c15_i32_15 = arith.constant 15 : i32
    %44 = tpu.dynamic_rotate %43 by %c15_i32_15 dim 1 : vector<32x16x128xf32>, i32 -> vector<32x16x128xf32>
    %45 = arith.addf %42, %44 : vector<32x16x128xf32>
    %46 = vector.extract_strided_slice %3 {offsets = [0, 0, 896], sizes = [32, 16, 128], strides = [1, 1, 1]} : vector<32x16x1792xf32> to vector<32x16x128xf32>
    %c14_i32_16 = arith.constant 14 : i32
    %47 = tpu.dynamic_rotate %46 by %c14_i32_16 dim 1 : vector<32x16x128xf32>, i32 -> vector<32x16x128xf32>
    %48 = arith.addf %45, %47 : vector<32x16x128xf32>
    %49 = vector.extract_strided_slice %3 {offsets = [0, 0, 1024], sizes = [32, 16, 128], strides = [1, 1, 1]} : vector<32x16x1792xf32> to vector<32x16x128xf32>
    %c13_i32 = arith.constant 13 : i32
    %50 = tpu.dynamic_rotate %49 by %c13_i32 dim 1 : vector<32x16x128xf32>, i32 -> vector<32x16x128xf32>
    %51 = arith.addf %48, %50 : vector<32x16x128xf32>
    %c13_i32_17 = arith.constant 13 : i32
    %52 = vector.broadcast %c13_i32_17 : i32 to vector<32x16x128xi32>
    %53 = arith.cmpi slt, %4, %52 : vector<32x16x128xi32>
    %cst_18 = arith.constant 0xFF800000 : f32
    %54 = vector.broadcast %cst_18 : f32 to vector<32x16x128xf32>
    %55 = arith.select %53, %51, %54 : vector<32x16x128xi1>, vector<32x16x128xf32>
    %cst_19 = arith.constant dense<0xFF800000> : vector<32x128xf32>
    %56 = vector.multi_reduction <maximumf>, %55, %cst_19 [1] : vector<32x16x128xf32> to vector<32x128xf32>
    %c0_20 = arith.constant 0 : index
    %c256 = arith.constant 256 : index
    %57 = vector.load %arg3[%c0_20, %c256] : memref<1x512xf32, #tpu.memory_space<vmem>>, vector<1x128xf32>
    %58 = vector.broadcast %57 : vector<1x128xf32> to vector<32x128xf32>
    %59 = arith.addf %56, %58 : vector<32x128xf32>
    %60 = arith.negf %59 : vector<32x128xf32>
    %61 = math.exp %60 : vector<32x128xf32>
    %cst_21 = arith.constant 1.000000e+00 : f32
    %62 = vector.broadcast %cst_21 : f32 to vector<32x128xf32>
    %63 = arith.addf %62, %61 : vector<32x128xf32>
    %64 = arith.divf %62, %63 : vector<32x128xf32>
    %65 = vector.extract_strided_slice %3 {offsets = [0, 0, 1152], sizes = [32, 16, 128], strides = [1, 1, 1]} : vector<32x16x1792xf32> to vector<32x16x128xf32>
    %66 = vector.extract_strided_slice %3 {offsets = [0, 0, 1280], sizes = [32, 16, 128], strides = [1, 1, 1]} : vector<32x16x1792xf32> to vector<32x16x128xf32>
    %c15_i32_22 = arith.constant 15 : i32
    %67 = tpu.dynamic_rotate %66 by %c15_i32_22 dim 1 : vector<32x16x128xf32>, i32 -> vector<32x16x128xf32>
    %68 = arith.addf %65, %67 : vector<32x16x128xf32>
    %69 = vector.extract_strided_slice %3 {offsets = [0, 0, 1408], sizes = [32, 16, 128], strides = [1, 1, 1]} : vector<32x16x1792xf32> to vector<32x16x128xf32>
    %c14_i32_23 = arith.constant 14 : i32
    %70 = tpu.dynamic_rotate %69 by %c14_i32_23 dim 1 : vector<32x16x128xf32>, i32 -> vector<32x16x128xf32>
    %71 = arith.addf %68, %70 : vector<32x16x128xf32>
    %72 = vector.extract_strided_slice %3 {offsets = [0, 0, 1536], sizes = [32, 16, 128], strides = [1, 1, 1]} : vector<32x16x1792xf32> to vector<32x16x128xf32>
    %c13_i32_24 = arith.constant 13 : i32
    %73 = tpu.dynamic_rotate %72 by %c13_i32_24 dim 1 : vector<32x16x128xf32>, i32 -> vector<32x16x128xf32>
    %74 = arith.addf %71, %73 : vector<32x16x128xf32>
    %75 = vector.extract_strided_slice %3 {offsets = [0, 0, 1664], sizes = [32, 16, 128], strides = [1, 1, 1]} : vector<32x16x1792xf32> to vector<32x16x128xf32>
    %c12_i32 = arith.constant 12 : i32
    %76 = tpu.dynamic_rotate %75 by %c12_i32 dim 1 : vector<32x16x128xf32>, i32 -> vector<32x16x128xf32>
    %77 = arith.addf %74, %76 : vector<32x16x128xf32>
    %c12_i32_25 = arith.constant 12 : i32
    %78 = vector.broadcast %c12_i32_25 : i32 to vector<32x16x128xi32>
    %79 = arith.cmpi slt, %4, %78 : vector<32x16x128xi32>
    %cst_26 = arith.constant 0xFF800000 : f32
    %80 = vector.broadcast %cst_26 : f32 to vector<32x16x128xf32>
    %81 = arith.select %79, %77, %80 : vector<32x16x128xi1>, vector<32x16x128xf32>
    %cst_27 = arith.constant dense<0xFF800000> : vector<32x128xf32>
    %82 = vector.multi_reduction <maximumf>, %81, %cst_27 [1] : vector<32x16x128xf32> to vector<32x128xf32>
    %c0_28 = arith.constant 0 : index
    %c384 = arith.constant 384 : index
    %83 = vector.load %arg3[%c0_28, %c384] : memref<1x512xf32, #tpu.memory_space<vmem>>, vector<1x128xf32>
    %84 = vector.broadcast %83 : vector<1x128xf32> to vector<32x128xf32>
    %85 = arith.addf %82, %84 : vector<32x128xf32>
    %86 = arith.negf %85 : vector<32x128xf32>
    %87 = math.exp %86 : vector<32x128xf32>
    %cst_29 = arith.constant 1.000000e+00 : f32
    %88 = vector.broadcast %cst_29 : f32 to vector<32x128xf32>
    %89 = arith.addf %88, %87 : vector<32x128xf32>
    %90 = arith.divf %88, %89 : vector<32x128xf32>
    %91 = tpu.concatenate %21, %41, %64, %90 in 1 : vector<32x128xf32>, vector<32x128xf32>, vector<32x128xf32>, vector<32x128xf32> -> vector<32x512xf32>
    %92 = arith.truncf %91 : vector<32x512xf32> to vector<32x512xbf16>
    %c0_30 = arith.constant 0 : index
    %c0_31 = arith.constant 0 : index
    %93 = vector.load %arg4[%c0_30, %c0_31] : memref<512x128xbf16, #tpu.memory_space<vmem>>, vector<512x128xbf16>
    %cst_32 = arith.constant dense<0.000000e+00> : vector<32x128xf32>
    %94 = tpu.matmul %92, %93, %cst_32 {dimension_numbers = #tpu.dot_dimension_numbers<[1], [0], [0], [1], [0, 0, 1, 1], [], []>} : vector<32x512xbf16>, vector<512x128xbf16>, vector<32x128xf32> -> vector<32x128xf32>
    %c0_33 = arith.constant 0 : index
    %c0_34 = arith.constant 0 : index
    %95 = vector.load %arg5[%c0_33, %c0_34] : memref<1x128xf32, #tpu.memory_space<vmem>>, vector<1x128xf32>
    %96 = vector.broadcast %95 : vector<1x128xf32> to vector<32x128xf32>
    %97 = arith.addf %94, %96 : vector<32x128xf32>
    %98 = arith.negf %97 : vector<32x128xf32>
    %99 = math.exp %98 : vector<32x128xf32>
    %cst_35 = arith.constant 1.000000e+00 : f32
    %100 = vector.broadcast %cst_35 : f32 to vector<32x128xf32>
    %101 = arith.addf %100, %99 : vector<32x128xf32>
    %102 = arith.divf %100, %101 : vector<32x128xf32>
    %c0_36 = arith.constant 0 : index
    %c0_37 = arith.constant 0 : index
    %103 = vector.load %arg6[%c0_36, %c0_37] : memref<32x128xf32, #tpu.memory_space<vmem>>, vector<32x128xf32>
    tpu.vector_store %arg6[%c0_36, %c0_37], %102 {strides = array<i32>} : memref<32x128xf32, #tpu.memory_space<vmem>>, vector<32x128xf32>,
    return
  }
  func.func @transform_0(%arg0: i32) -> (i32, i32) {
    %c0_i32 = arith.constant 0 : i32
    %c0_i32_0 = arith.constant 0 : i32
    return %arg0, %c0_i32 : i32, i32
  }
  func.func @transform_1(%arg0: i32) -> (i32, i32) {
    %c0_i32 = arith.constant 0 : i32
    %c0_i32_0 = arith.constant 0 : i32
    %c0_i32_1 = arith.constant 0 : i32
    return %c0_i32, %c0_i32_0 : i32, i32
  }
  func.func @transform_2(%arg0: i32) -> (i32, i32) {
    %c0_i32 = arith.constant 0 : i32
    %c0_i32_0 = arith.constant 0 : i32
    %c0_i32_1 = arith.constant 0 : i32
    return %c0_i32, %c0_i32_0 : i32, i32
  }
  func.func @transform_3(%arg0: i32) -> (i32, i32) {
    %c0_i32 = arith.constant 0 : i32
    %c0_i32_0 = arith.constant 0 : i32
    %c0_i32_1 = arith.constant 0 : i32
    return %c0_i32, %c0_i32_0 : i32, i32
  }
  func.func @transform_4(%arg0: i32) -> (i32, i32) {
    %c0_i32 = arith.constant 0 : i32
    %c0_i32_0 = arith.constant 0 : i32
    %c0_i32_1 = arith.constant 0 : i32
    return %c0_i32, %c0_i32_0 : i32, i32
  }
  func.func @transform_5(%arg0: i32) -> (i32, i32) {
    %c0_i32 = arith.constant 0 : i32
    %c0_i32_0 = arith.constant 0 : i32
    return %arg0, %c0_i32 : i32, i32
  }
}

</mosaic_0001>

<llo_original>
// kernel: tpu_custom_call.1
$region0: #{tpu_custom_call.1}
  #allocation0 [shape = 'u32[]', space=smem, size = 0x4, offset = 0x4, fixed_abs, tag = 'smem constant byte address 0x4 - core index']
  #allocation1 [shape = 'u32[144,128]{1,0:T(1,128)}', space=vmem, size = 0x12000, scoped, tag = 'internal scratch']
  %s0 = inlined_call_operand.hbm [shape: bf16[1024,128], index: 0, kind: input, shape index: {}]
  %s1 = inlined_call_operand.hbm [shape: bf16[128,1792], index: 1, kind: input, shape index: {}]
  %s2 = inlined_call_operand.vmem [shape: f32[1,512], index: 2, kind: input, shape index: {}]
  %s3 = inlined_call_operand.hbm [shape: bf16[512,128], index: 3, kind: input, shape index: {}]
  %s4 = inlined_call_operand.vmem [shape: f32[1,128], index: 4, kind: input, shape index: {}]
  %s5 = inlined_call_operand.hbm [shape: f32[64,128], index: 5, kind: output, shape index: {}]
  %s6 = sld [smem:[#allocation0]]
  $region65: #{tpu_custom_call.1} parent=0
    _
  %s8 = ssub.s32 1, %s6
  %s9 = scalar_select 0, %s8, %s6
  $region1: #{tpu_custom_call.1} parent=0
    #allocation2 [shape = 'u8[262144]{0}', space=vmem, size = 0x40000, scoped, tag = 'input window, operand 0']
    #allocation3 [shape = 's32[2]{0}', space=sflag, size = 0x8, scoped, tag = 'scoped memory for tpu_custom_call.1']
    #allocation4 [shape = 's32[2]{0}', space=sflag, size = 0x8, scoped, tag = 'scoped memory for tpu_custom_call.1']
    #allocation5 [shape = 'u8[458752]{0}', space=vmem, size = 0x70000, scoped, tag = 'input window, operand 1, single buffered']
    #allocation6 [shape = 's32[1]{0}', space=sflag, size = 0x4, scoped, tag = 'scoped memory for tpu_custom_call.1']
    #allocation7 [shape = 'u8[131072]{0}', space=vmem, size = 0x20000, scoped, tag = 'input window, operand 3, single buffered']
    #allocation8 [shape = 'u8[32768]{0}', space=vmem, size = 0x8000, scoped, tag = 'output window, operand 0']
    %10 = vsyncpa [#allocation3], 0
    %s11 = scalar_lea.sflag [#allocation3], 1
    %12 = vsyncpa %s11, 0
    %13 = vsyncpa [#allocation6], 0
    %14 = vsyncpa [#allocation4], 0
    %s15 = scalar_lea.sflag [#allocation4], 1
    %16 = vsyncpa %s15, 0
    loop: start=0, step=1, limit=4
    $region2: #{tpu_custom_call.1} parent=1 // loop_pre_header
      _
    $region3: #{tpu_custom_call.1} parent=1 // loop_header
      %s18 = sphi 0, %s22
      %p19 = scmp.ge.s32.totalorder %s18, 4
      %s28 = sphi 0, %s30
      %s31 = sphi 0, %s28
      %s32 = sphi 0, %s31
      %s48 = sphi 0, %s32
      %s52 = sphi 0, %s52
      %s54 = sphi 0, %s52
      %s55 = sphi 0, %s54
      %s69 = sphi 0, %s55
      %s73 = sphi 0, %s73
      %s75 = sphi 0, %s73
      %s76 = sphi 0, %s75
      %s90 = sphi 0, %s76
      %s94 = sphi 0, %s94
      %s96 = sphi 0, %s94
      %s97 = sphi 0, %s96
      %s111 = sphi 0, %s97
      %s115 = sphi 0, %s115
      %s117 = sphi 0, %s115
      %s118 = sphi 0, %s117
      %s132 = sphi 0, %s118
      %s138 = sphi 0, %s140
      %s141 = sphi 0, %s138
      %s142 = sphi 0, %s141
      %s158 = sphi 0, %s142
    $region4: #{tpu_custom_call.1} parent=1 // loop_header_branch
      %21 = sbr.rel (%p19) target = $region8
    $region5: #{tpu_custom_call.1} parent=1 // loop_body
      %s23 = ssub.s32 %s18, 1
      %s24 = ssub.s32 %s18, 2
      %s25 = sadd.s32 %s18, 1
      %s26 = ssub.s32 %s18, %s25
      %p27 = scmp.eq.s32.totalorder %s26, 0
      %s29 = sadd.s32 %s28, 1
      %s30 = scalar_select %p27, %s28, %s29
      %p33 = pneg %p27
      %p34 = scmp.eq.s32.totalorder %s18, 1
      %p35 = por %p33, %p34
      %p36 = scmp.ne.s32.totalorder %s28, %s31
      %p37 = scmp.eq.s32.totalorder %s18, 0
      %p38 = por %p36, %p37
      %p39 = scmp.ne.s32.totalorder %s28, %s31
      %p40 = scmp.eq.s32.totalorder %s23, 1
      %p41 = por %p39, %p40
      %p42 = scmp.ne.s32.totalorder %s31, %s32
      %p43 = scmp.eq.s32.totalorder %s23, 0
      %p44 = por %p42, %p43
      %p45 = scmp.ne.s32.totalorder %s31, %s32
      %p46 = scmp.eq.s32.totalorder %s24, 1
      %p47 = por %p45, %p46
      %p49 = scmp.ne.s32.totalorder %s32, %s48
      %p50 = scmp.eq.s32.totalorder %s24, 0
      %p51 = por %p49, %p50
      %s53 = sadd.s32 %s52, 1
      %p56 = scmp.eq.s32.totalorder %s18, 1
      %p57 = scmp.ne.s32.totalorder %s52, %s54
      %p58 = scmp.eq.s32.totalorder %s18, 0
      %p59 = por %p57, %p58
      %p60 = scmp.ne.s32.totalorder %s52, %s54
      %p61 = scmp.eq.s32.totalorder %s23, 1
      %p62 = por %p60, %p61
      %p63 = scmp.ne.s32.totalorder %s54, %s55
      %p64 = scmp.eq.s32.totalorder %s23, 0
      %p65 = por %p63, %p64
      %p66 = scmp.ne.s32.totalorder %s54, %s55
      %p67 = scmp.eq.s32.totalorder %s24, 1
      %p68 = por %p66, %p67
      %p70 = scmp.ne.s32.totalorder %s55, %s69
      %p71 = scmp.eq.s32.totalorder %s24, 0
      %p72 = por %p70, %p71
      %s74 = sadd.s32 %s73, 1
      %p77 = scmp.eq.s32.totalorder %s18, 1
      %p78 = scmp.ne.s32.totalorder %s73, %s75
      %p79 = scmp.eq.s32.totalorder %s18, 0
      %p80 = por %p78, %p79
      %p81 = scmp.ne.s32.totalorder %s73, %s75
      %p82 = scmp.eq.s32.totalorder %s23, 1
      %p83 = por %p81, %p82
      %p84 = scmp.ne.s32.totalorder %s75, %s76
      %p85 = scmp.eq.s32.totalorder %s23, 0
      %p86 = por %p84, %p85
      %p87 = scmp.ne.s32.totalorder %s75, %s76
      %p88 = scmp.eq.s32.totalorder %s24, 1
      %p89 = por %p87, %p88
      %p91 = scmp.ne.s32.totalorder %s76, %s90
      %p92 = scmp.eq.s32.totalorder %s24, 0
      %p93 = por %p91, %p92
      %s95 = sadd.s32 %s94, 1
      %p98 = scmp.eq.s32.totalorder %s18, 1
      %p99 = scmp.ne.s32.totalorder %s94, %s96
      %p100 = scmp.eq.s32.totalorder %s18, 0
      %p101 = por %p99, %p100
      %p102 = scmp.ne.s32.totalorder %s94, %s96
      %p103 = scmp.eq.s32.totalorder %s23, 1
      %p104 = por %p102, %p103
      %p105 = scmp.ne.s32.totalorder %s96, %s97
      %p106 = scmp.eq.s32.totalorder %s23, 0
      %p107 = por %p105, %p106
      %p108 = scmp.ne.s32.totalorder %s96, %s97
      %p109 = scmp.eq.s32.totalorder %s24, 1
      %p110 = por %p108, %p109
      %p112 = scmp.ne.s32.totalorder %s97, %s111
      %p113 = scmp.eq.s32.totalorder %s24, 0
      %p114 = por %p112, %p113
      %s116 = sadd.s32 %s115, 1
      %p119 = scmp.eq.s32.totalorder %s18, 1
      %p120 = scmp.ne.s32.totalorder %s115, %s117
      %p121 = scmp.eq.s32.totalorder %s18, 0
      %p122 = por %p120, %p121
      %p123 = scmp.ne.s32.totalorder %s115, %s117
      %p124 = scmp.eq.s32.totalorder %s23, 1
      %p125 = por %p123, %p124
      %p126 = scmp.ne.s32.totalorder %s117, %s118
      %p127 = scmp.eq.s32.totalorder %s23, 0
      %p128 = por %p126, %p127
      %p129 = scmp.ne.s32.totalorder %s117, %s118
      %p130 = scmp.eq.s32.totalorder %s24, 1
      %p131 = por %p129, %p130
      %p133 = scmp.ne.s32.totalorder %s118, %s132
      %p134 = scmp.eq.s32.totalorder %s24, 0
      %p135 = por %p133, %p134
      %s136 = ssub.s32 %s18, %s25
      %p137 = scmp.eq.s32.totalorder %s136, 0
      %s139 = sadd.s32 %s138, 1
      %s140 = scalar_select %p137, %s138, %s139
      %p143 = pneg %p137
      %p144 = scmp.eq.s32.totalorder %s18, 1
      %p145 = por %p143, %p144
      %p146 = scmp.ne.s32.totalorder %s138, %s141
      %p147 = scmp.eq.s32.totalorder %s18, 0
      %p148 = por %p146, %p147
      %p149 = scmp.ne.s32.totalorder %s138, %s141
      %p150 = scmp.eq.s32.totalorder %s23, 1
      %p151 = por %p149, %p150
      %p152 = scmp.ne.s32.totalorder %s141, %s142
      %p153 = scmp.eq.s32.totalorder %s23, 0
      %p154 = por %p152, %p153
      %p155 = scmp.ne.s32.totalorder %s141, %s142
      %p156 = scmp.eq.s32.totalorder %s24, 1
      %p157 = por %p155, %p156
      %p159 = scmp.ne.s32.totalorder %s142, %s158
      %p160 = scmp.eq.s32.totalorder %s24, 0
      %p161 = por %p159, %p160
      %p162 = scmp.le.s32.totalorder 1, %s18
      %p163 = scmp.lt.s32.totalorder %s18, 3
      %p164 = pnand %p162, %p163
      %p165 = pneg %p164
      // Predicated region
      $region9: #{tpu_custom_call.1} parent=5 // pred_check
        _
      $region10: #{tpu_custom_call.1} parent=5 // pred_check_branch
        %167 = sbr.rel (%p164) target = $region12
      $region11: #{tpu_custom_call.1} parent=5 // pred_region
        %s168 = ssub.s32 %s18, 1
        // Predicated region
        $region13: #{tpu_custom_call.1} parent=11 // pred_check
          %p169 = pneg %p65
        $region14: #{tpu_custom_call.1} parent=11 // pred_check_branch
          %171 = sbr.rel (%p169) target = $region16
        $region15: #{tpu_custom_call.1} parent=11 // pred_region
          %s173 = ssub.s32 14336, 14336
          %174 = vsyncadd [#allocation6], %s173
          %s175 = sshll.u32 [#allocation5], 4
          %s176 = int_to_ptr.vmem [resolvable:$true] %s175
          %181 = dma.hbm_to_vmem [thread:$0]  %s1, 14336, %s176, [#allocation6], 896, 896, 56
        $region16: #{tpu_custom_call.1} parent=11 // pred_fallthru
          _
        // Predicated region
        $region17: #{tpu_custom_call.1} parent=11 // pred_check
          %p182 = pneg %p86
        $region18: #{tpu_custom_call.1} parent=11 // pred_check_branch
          %184 = sbr.rel (%p182) target = $region20
        $region19: #{tpu_custom_call.1} parent=11 // pred_region
          _
        $region20: #{tpu_custom_call.1} parent=11 // pred_fallthru
          _
        // Predicated region
        $region21: #{tpu_custom_call.1} parent=11 // pred_check
          %p185 = pneg %p107
        $region22: #{tpu_custom_call.1} parent=11 // pred_check_branch
          %187 = sbr.rel (%p185) target = $region24
        $region23: #{tpu_custom_call.1} parent=11 // pred_region
          %s189 = ssub.s32 4096, 4096
          %190 = vsyncadd [#allocation6], %s189
          %s191 = sshll.u32 [#allocation7], 4
          %s192 = int_to_ptr.vmem [resolvable:$true] %s191
          %197 = dma.hbm_to_vmem [thread:$0]  %s3, 4096, %s192, [#allocation6], 64, 64, 4
        $region24: #{tpu_custom_call.1} parent=11 // pred_fallthru
          _
        // Predicated region
        $region25: #{tpu_custom_call.1} parent=11 // pred_check
          %p198 = pneg %p128
        $region26: #{tpu_custom_call.1} parent=11 // pred_check_branch
          %200 = sbr.rel (%p198) target = $region28
        $region27: #{tpu_custom_call.1} parent=11 // pred_region
          _
        $region28: #{tpu_custom_call.1} parent=11 // pred_fallthru
          _
      $region12: #{tpu_custom_call.1} parent=5 // pred_fallthru
        _
      %p201 = scmp.lt.s32.totalorder %s18, 2
      // Predicated region
      $region29: #{tpu_custom_call.1} parent=5 // pred_check
        %p202 = pneg %p201
      $region30: #{tpu_custom_call.1} parent=5 // pred_check_branch
        %204 = sbr.rel (%p202) target = $region32
      $region31: #{tpu_custom_call.1} parent=5 // pred_region
        // Predicated region
        $region33: #{tpu_custom_call.1} parent=31 // pred_check
          %p205 = pneg %p38
        $region34: #{tpu_custom_call.1} parent=31 // pred_check_branch
          %207 = sbr.rel (%p205) target = $region36
        $region35: #{tpu_custom_call.1} parent=31 // pred_region
          %s208 = sand.u32 %s28, 1
          %s209 = scalar_lea.sflag [#allocation3], %s208
          %s210 = sand.u32 %s28, 1
          %s211 = smul.addr %s210, 256
          %s212 = scalar_lea.vmem [#allocation2], %s211
          %s213 = smul.u32 64, %s18
          %s215 = ssub.s32 4096, 4096
          %216 = vsyncadd %s209, %s215
          %s217 = smul.addr %s213, 64
          %s218 = scalar_lea.hbm %s0, %s217
          %s219 = sshll.u32 %s212, 4
          %s220 = int_to_ptr.vmem [resolvable:$true] %s219
          %225 = dma.hbm_to_vmem [thread:$0]  %s218, 4096, %s220, %s209, 64, 64, 4
        $region36: #{tpu_custom_call.1} parent=31 // pred_fallthru
          _
      $region32: #{tpu_custom_call.1} parent=5 // pred_fallthru
        _
      %p226 = scmp.le.s32.totalorder 1, %s18
      %p227 = scmp.lt.s32.totalorder %s18, 3
      %p228 = pnand %p226, %p227
      %p229 = pneg %p228
      // Predicated region
      $region37: #{tpu_custom_call.1} parent=5 // pred_check
        _
      $region38: #{tpu_custom_call.1} parent=5 // pred_check_branch
        %231 = sbr.rel (%p228) target = $region40
      $region39: #{tpu_custom_call.1} parent=5 // pred_region
        %s232 = ssub.s32 %s18, 1
        %s233 = sand.u32 %s31, 1
        %s234 = scalar_lea.sflag [#allocation3], %s233
        %s235 = sand.u32 %s31, 1
        %s236 = smul.addr %s235, 256
        %s237 = scalar_lea.vmem [#allocation2], %s236
        // Predicated region
        $region41: #{tpu_custom_call.1} parent=39 // pred_check
          %p238 = pneg %p44
        $region42: #{tpu_custom_call.1} parent=39 // pred_check_branch
          %240 = sbr.rel (%p238) target = $region44
        $region43: #{tpu_custom_call.1} parent=39 // pred_region
          %241 = dma.done %s234, 4096
        $region44: #{tpu_custom_call.1} parent=39 // pred_fallthru
          _
        // Predicated region
        $region45: #{tpu_custom_call.1} parent=39 // pred_check
          %p242 = pneg %p65
        $region46: #{tpu_custom_call.1} parent=39 // pred_check_branch
          %244 = sbr.rel (%p242) target = $region48
        $region47: #{tpu_custom_call.1} parent=39 // pred_region
          %245 = dma.done [#allocation6], 14336
        $region48: #{tpu_custom_call.1} parent=39 // pred_fallthru
          _
        // Predicated region
        $region49: #{tpu_custom_call.1} parent=39 // pred_check
          %p246 = pneg %p107
        $region50: #{tpu_custom_call.1} parent=39 // pred_check_branch
          %248 = sbr.rel (%p246) target = $region52
        $region51: #{tpu_custom_call.1} parent=39 // pred_region
          %249 = dma.done [#allocation6], 4096
        $region52: #{tpu_custom_call.1} parent=39 // pred_fallthru
          _
        %s250 = sand.u32 %s31, 1
        %s251 = scalar_lea.sflag [#allocation3], %s250
        %s252 = sand.u32 %s31, 1
        %s253 = smul.addr %s252, 256
        %s254 = scalar_lea.vmem [#allocation2], %s253
        %p255 = pneg %p44
        %p256 = pneg %p41
        %p257 = pneg %p65
        %p258 = pneg %p62
        %p259 = pneg %p86
        %p260 = pneg %p83
        %p261 = pneg %p107
        %p262 = pneg %p104
        %p263 = pneg %p128
        %p264 = pneg %p125
        %p265 = pneg %p154
        %p266 = pneg %p151
        %s267 = sand.u32 %s141, 1
        %s268 = scalar_lea.sflag [#allocation4], %s267
        %s269 = sand.u32 %s141, 1
        %s270 = smul.addr %s269, 32
        %s271 = scalar_lea.vmem [#allocation8], %s270
        %s272 = smul.u32 64, %s23
        %s273 = smul.u32 4, %s23
        %v275 = vld [vmem:[%s237] sm:$0xf]
        %v276 = vld [vmem:[%s237 + $0x4] sm:$0xf]
        %v277 = vld [vmem:[%s237 + $0x8] sm:$0xf]
        %v278 = vld [vmem:[%s237 + $0xc] sm:$0xf]
        %v279 = vld [vmem:[%s237 + $0x10] sm:$0xf]
        %v280 = vld [vmem:[%s237 + $0x14] sm:$0xf]
        %v281 = vld [vmem:[%s237 + $0x18] sm:$0xf]
        %v282 = vld [vmem:[%s237 + $0x1c] sm:$0xf]
        %v283 = vld [vmem:[%s237 + $0x20] sm:$0xf]
        %v284 = vld [vmem:[%s237 + $0x24] sm:$0xf]
        %v285 = vld [vmem:[%s237 + $0x28] sm:$0xf]
        %v286 = vld [vmem:[%s237 + $0x2c] sm:$0xf]
        %v287 = vld [vmem:[%s237 + $0x30] sm:$0xf]
        %v288 = vld [vmem:[%s237 + $0x34] sm:$0xf]
        %v289 = vld [vmem:[%s237 + $0x38] sm:$0xf]
        %v290 = vld [vmem:[%s237 + $0x3c] sm:$0xf]
        %v291 = vld [vmem:[%s237 + $0x40] sm:$0xf]
        %v292 = vld [vmem:[%s237 + $0x44] sm:$0xf]
        %v293 = vld [vmem:[%s237 + $0x48] sm:$0xf]
        %v294 = vld [vmem:[%s237 + $0x4c] sm:$0xf]
        %v295 = vld [vmem:[%s237 + $0x50] sm:$0xf]
        %v296 = vld [vmem:[%s237 + $0x54] sm:$0xf]
        %v297 = vld [vmem:[%s237 + $0x58] sm:$0xf]
        %v298 = vld [vmem:[%s237 + $0x5c] sm:$0xf]
        %v299 = vld [vmem:[%s237 + $0x60] sm:$0xf]
        %v300 = vld [vmem:[%s237 + $0x64] sm:$0xf]
        %v301 = vld [vmem:[%s237 + $0x68] sm:$0xf]
        %v302 = vld [vmem:[%s237 + $0x6c] sm:$0xf]
        %v303 = vld [vmem:[%s237 + $0x70] sm:$0xf]
        %v304 = vld [vmem:[%s237 + $0x74] sm:$0xf]
        %v305 = vld [vmem:[%s237 + $0x78] sm:$0xf]
        %v306 = vld [vmem:[%s237 + $0x7c] sm:$0xf]
        %v307 = vld [vmem:[%s237 + $0x80] sm:$0xf]
        %v308 = vld [vmem:[%s237 + $0x84] sm:$0xf]
        %v309 = vld [vmem:[%s237 + $0x88] sm:$0xf]
        %v310 = vld [vmem:[%s237 + $0x8c] sm:$0xf]
        %v311 = vld [vmem:[%s237 + $0x90] sm:$0xf]
        %v312 = vld [vmem:[%s237 + $0x94] sm:$0xf]
        %v313 = vld [vmem:[%s237 + $0x98] sm:$0xf]
        %v314 = vld [vmem:[%s237 + $0x9c] sm:$0xf]
        %v315 = vld [vmem:[%s237 + $0xa0] sm:$0xf]
        %v316 = vld [vmem:[%s237 + $0xa4] sm:$0xf]
        %v317 = vld [vmem:[%s237 + $0xa8] sm:$0xf]
        %v318 = vld [vmem:[%s237 + $0xac] sm:$0xf]
        %v319 = vld [vmem:[%s237 + $0xb0] sm:$0xf]
        %v320 = vld [vmem:[%s237 + $0xb4] sm:$0xf]
        %v321 = vld [vmem:[%s237 + $0xb8] sm:$0xf]
        %v322 = vld [vmem:[%s237 + $0xbc] sm:$0xf]
        %v323 = vld [vmem:[%s237 + $0xc0] sm:$0xf]
        %v324 = vld [vmem:[%s237 + $0xc4] sm:$0xf]
        %v325 = vld [vmem:[%s237 + $0xc8] sm:$0xf]
        %v326 = vld [vmem:[%s237 + $0xcc] sm:$0xf]
        %v327 = vld [vmem:[%s237 + $0xd0] sm:$0xf]
        %v328 = vld [vmem:[%s237 + $0xd4] sm:$0xf]
        %v329 = vld [vmem:[%s237 + $0xd8] sm:$0xf]
        %v330 = vld [vmem:[%s237 + $0xdc] sm:$0xf]
        %v331 = vld [vmem:[%s237 + $0xe0] sm:$0xf]
        %v332 = vld [vmem:[%s237 + $0xe4] sm:$0xf]
        %v333 = vld [vmem:[%s237 + $0xe8] sm:$0xf]
        %v334 = vld [vmem:[%s237 + $0xec] sm:$0xf]
        %v335 = vld [vmem:[%s237 + $0xf0] sm:$0xf]
        %v336 = vld [vmem:[%s237 + $0xf4] sm:$0xf]
        %v337 = vld [vmem:[%s237 + $0xf8] sm:$0xf]
        %v338 = vld [vmem:[%s237 + $0xfc] sm:$0xf]
        %v339 = vld [vmem:[#allocation5] sm:$0xff]
        %v340 = vld [vmem:[#allocation5 + $0x8] sm:$0xff]
        %v341 = vld [vmem:[#allocation5 + $0x10] sm:$0xff]
        %v342 = vld [vmem:[#allocation5 + $0x18] sm:$0xff]
        %v343 = vld [vmem:[#allocation5 + $0x20] sm:$0xff]
        %v344 = vld [vmem:[#allocation5 + $0x28] sm:$0xff]
        %v345 = vld [vmem:[#allocation5 + $0x30] sm:$0xff]
        %v346 = vld [vmem:[#allocation5 + $0x38] sm:$0xff]
        %v347 = vld [vmem:[#allocation5 + $0x40] sm:$0xff]
        %v348 = vld [vmem:[#allocation5 + $0x48] sm:$0xff]
        %v349 = vld [vmem:[#allocation5 + $0x50] sm:$0xff]
        %v350 = vld [vmem:[#allocation5 + $0x58] sm:$0xff]
        %v351 = vld [vmem:[#allocation5 + $0x60] sm:$0xff]
        %v352 = vld [vmem:[#allocation5 + $0x68] sm:$0xff]
        %v353 = vld [vmem:[#allocation5 + $0x70] sm:$0xff]
        %v354 = vld [vmem:[#allocation5 + $0x78] sm:$0xff]
        %v355 = vld [vmem:[#allocation5 + $0x80] sm:$0xff]
        %v356 = vld [vmem:[#allocation5 + $0x88] sm:$0xff]
        %v357 = vld [vmem:[#allocation5 + $0x90] sm:$0xff]
        %v358 = vld [vmem:[#allocation5 + $0x98] sm:$0xff]
        %v359 = vld [vmem:[#allocation5 + $0xa0] sm:$0xff]
        %v360 = vld [vmem:[#allocation5 + $0xa8] sm:$0xff]
        %v361 = vld [vmem:[#allocation5 + $0xb0] sm:$0xff]
        %v362 = vld [vmem:[#allocation5 + $0xb8] sm:$0xff]
        %v363 = vld [vmem:[#allocation5 + $0xc0] sm:$0xff]
        %v364 = vld [vmem:[#allocation5 + $0xc8] sm:$0xff]
        %v365 = vld [vmem:[#allocation5 + $0xd0] sm:$0xff]
        %v366 = vld [vmem:[#allocation5 + $0xd8] sm:$0xff]
        %v367 = vld [vmem:[#allocation5 + $0xe0] sm:$0xff]
        %v368 = vld [vmem:[#allocation5 + $0xe8] sm:$0xff]
        %v369 = vld [vmem:[#allocation5 + $0xf0] sm:$0xff]
        %v370 = vld [vmem:[#allocation5 + $0xf8] sm:$0xff]
        %v371 = vld [vmem:[#allocation5 + $0x100] sm:$0xff]
        %v372 = vld [vmem:[#allocation5 + $0x108] sm:$0xff]
        %v373 = vld [vmem:[#allocation5 + $0x110] sm:$0xff]
        %v374 = vld [vmem:[#allocation5 + $0x118] sm:$0xff]
        %v375 = vld [vmem:[#allocation5 + $0x120] sm:$0xff]
        %v376 = vld [vmem:[#allocation5 + $0x128] sm:$0xff]
        %v377 = vld [vmem:[#allocation5 + $0x130] sm:$0xff]
        %v378 = vld [vmem:[#allocation5 + $0x138] sm:$0xff]
        %v379 = vld [vmem:[#allocation5 + $0x140] sm:$0xff]
        %v380 = vld [vmem:[#allocation5 + $0x148] sm:$0xff]
        %v381 = vld [vmem:[#allocation5 + $0x150] sm:$0xff]
        %v382 = vld [vmem:[#allocation5 + $0x158] sm:$0xff]
        %v383 = vld [vmem:[#allocation5 + $0x160] sm:$0xff]
        %v384 = vld [vmem:[#allocation5 + $0x168] sm:$0xff]
        %v385 = vld [vmem:[#allocation5 + $0x170] sm:$0xff]
        %v386 = vld [vmem:[#allocation5 + $0x178] sm:$0xff]
        %v387 = vld [vmem:[#allocation5 + $0x180] sm:$0xff]
        %v388 = vld [vmem:[#allocation5 + $0x188] sm:$0xff]
        %v389 = vld [vmem:[#allocation5 + $0x190] sm:$0xff]
        %v390 = vld [vmem:[#allocation5 + $0x198] sm:$0xff]
        %v391 = vld [vmem:[#allocation5 + $0x1a0] sm:$0xff]
        %v392 = vld [vmem:[#allocation5 + $0x1a8] sm:$0xff]
        %v393 = vld [vmem:[#allocation5 + $0x1b0] sm:$0xff]
        %v394 = vld [vmem:[#allocation5 + $0x1b8] sm:$0xff]
        %v395 = vld [vmem:[#allocation5 + $0x1c0] sm:$0xff]
        %v396 = vld [vmem:[#allocation5 + $0x1c8] sm:$0xff]
        %v397 = vld [vmem:[#allocation5 + $0x1d0] sm:$0xff]
        %v398 = vld [vmem:[#allocation5 + $0x1d8] sm:$0xff]
        %v399 = vld [vmem:[#allocation5 + $0x1e0] sm:$0xff]
        %v400 = vld [vmem:[#allocation5 + $0x1e8] sm:$0xff]
        %v401 = vld [vmem:[#allocation5 + $0x1f0] sm:$0xff]
        %v402 = vld [vmem:[#allocation5 + $0x1f8] sm:$0xff]
        %v403 = vld [vmem:[#allocation5 + $0x200] sm:$0xff]
        %v404 = vld [vmem:[#allocation5 + $0x208] sm:$0xff]
        %v405 = vld [vmem:[#allocation5 + $0x210] sm:$0xff]
        %v406 = vld [vmem:[#allocation5 + $0x218] sm:$0xff]
        %v407 = vld [vmem:[#allocation5 + $0x220] sm:$0xff]
        %v408 = vld [vmem:[#allocation5 + $0x228] sm:$0xff]
        %v409 = vld [vmem:[#allocation5 + $0x230] sm:$0xff]
        %v410 = vld [vmem:[#allocation5 + $0x238] sm:$0xff]
        %v411 = vld [vmem:[#allocation5 + $0x240] sm:$0xff]
        %v412 = vld [vmem:[#allocation5 + $0x248] sm:$0xff]
        %v413 = vld [vmem:[#allocation5 + $0x250] sm:$0xff]
        %v414 = vld [vmem:[#allocation5 + $0x258] sm:$0xff]
        %v415 = vld [vmem:[#allocation5 + $0x260] sm:$0xff]
        %v416 = vld [vmem:[#allocation5 + $0x268] sm:$0xff]
        %v417 = vld [vmem:[#allocation5 + $0x270] sm:$0xff]
        %v418 = vld [vmem:[#allocation5 + $0x278] sm:$0xff]
        %v419 = vld [vmem:[#allocation5 + $0x280] sm:$0xff]
        %v420 = vld [vmem:[#allocation5 + $0x288] sm:$0xff]
        %v421 = vld [vmem:[#allocation5 + $0x290] sm:$0xff]
        %v422 = vld [vmem:[#allocation5 + $0x298] sm:$0xff]
        %v423 = vld [vmem:[#allocation5 + $0x2a0] sm:$0xff]
        %v424 = vld [vmem:[#allocation5 + $0x2a8] sm:$0xff]
        %v425 = vld [vmem:[#allocation5 + $0x2b0] sm:$0xff]
        %v426 = vld [vmem:[#allocation5 + $0x2b8] sm:$0xff]
        %v427 = vld [vmem:[#allocation5 + $0x2c0] sm:$0xff]
        %v428 = vld [vmem:[#allocation5 + $0x2c8] sm:$0xff]
        %v429 = vld [vmem:[#allocation5 + $0x2d0] sm:$0xff]
        %v430 = vld [vmem:[#allocation5 + $0x2d8] sm:$0xff]
        %v431 = vld [vmem:[#allocation5 + $0x2e0] sm:$0xff]
        %v432 = vld [vmem:[#allocation5 + $0x2e8] sm:$0xff]
        %v433 = vld [vmem:[#allocation5 + $0x2f0] sm:$0xff]
        %v434 = vld [vmem:[#allocation5 + $0x2f8] sm:$0xff]
        %v435 = vld [vmem:[#allocation5 + $0x300] sm:$0xff]
        %v436 = vld [vmem:[#allocation5 + $0x308] sm:$0xff]
        %v437 = vld [vmem:[#allocation5 + $0x310] sm:$0xff]
        %v438 = vld [vmem:[#allocation5 + $0x318] sm:$0xff]
        %v439 = vld [vmem:[#allocation5 + $0x320] sm:$0xff]
        %v440 = vld [vmem:[#allocation5 + $0x328] sm:$0xff]
        %v441 = vld [vmem:[#allocation5 + $0x330] sm:$0xff]
        %v442 = vld [vmem:[#allocation5 + $0x338] sm:$0xff]
        %v443 = vld [vmem:[#allocation5 + $0x340] sm:$0xff]
        %v444 = vld [vmem:[#allocation5 + $0x348] sm:$0xff]
        %v445 = vld [vmem:[#allocation5 + $0x350] sm:$0xff]
        %v446 = vld [vmem:[#allocation5 + $0x358] sm:$0xff]
        %v447 = vld [vmem:[#allocation5 + $0x360] sm:$0xff]
        %v448 = vld [vmem:[#allocation5 + $0x368] sm:$0xff]
        %v449 = vld [vmem:[#allocation5 + $0x370] sm:$0xff]
        %v450 = vld [vmem:[#allocation5 + $0x378] sm:$0xff]
        %v515 = vunpack.c.l.b16 %v275
        %v516 = vunpack.c.l.b16 %v276
        %v517 = vunpack.c.l.b16 %v277
        %v518 = vunpack.c.l.b16 %v278
        %v519 = vunpack.c.l.b16 %v279
        %v520 = vunpack.c.l.b16 %v280
        %v521 = vunpack.c.l.b16 %v281
        %v522 = vunpack.c.l.b16 %v282
        %v523 = vunpack.c.l.b16 %v283
        %v524 = vunpack.c.l.b16 %v284
        %v525 = vunpack.c.l.b16 %v285
        %v526 = vunpack.c.l.b16 %v286
        %v527 = vunpack.c.l.b16 %v287
        %v528 = vunpack.c.l.b16 %v288
        %v529 = vunpack.c.l.b16 %v289
        %v530 = vunpack.c.l.b16 %v290
        %v531 = vunpack.c.l.b16 %v291
        %v532 = vunpack.c.l.b16 %v292
        %v533 = vunpack.c.l.b16 %v293
        %v534 = vunpack.c.l.b16 %v294
        %v535 = vunpack.c.l.b16 %v295
        %v536 = vunpack.c.l.b16 %v296
        %v537 = vunpack.c.l.b16 %v297
        %v538 = vunpack.c.l.b16 %v298
        %v539 = vunpack.c.l.b16 %v299
        %v540 = vunpack.c.l.b16 %v300
        %v541 = vunpack.c.l.b16 %v301
        %v542 = vunpack.c.l.b16 %v302
        %v543 = vunpack.c.l.b16 %v303
        %v544 = vunpack.c.l.b16 %v304
        %v545 = vunpack.c.l.b16 %v305
        %v546 = vunpack.c.l.b16 %v306
        %v547 = vunpack.c.l.b16 %v307
        %v548 = vunpack.c.l.b16 %v308
        %v549 = vunpack.c.l.b16 %v309
        %v550 = vunpack.c.l.b16 %v310
        %v551 = vunpack.c.l.b16 %v311
        %v552 = vunpack.c.l.b16 %v312
        %v553 = vunpack.c.l.b16 %v313
        %v554 = vunpack.c.l.b16 %v314
        %v555 = vunpack.c.l.b16 %v315
        %v556 = vunpack.c.l.b16 %v316
        %v557 = vunpack.c.l.b16 %v317
        %v558 = vunpack.c.l.b16 %v318
        %v559 = vunpack.c.l.b16 %v319
        %v560 = vunpack.c.l.b16 %v320
        %v561 = vunpack.c.l.b16 %v321
        %v562 = vunpack.c.l.b16 %v322
        %v563 = vunpack.c.l.b16 %v323
        %v564 = vunpack.c.l.b16 %v324
        %v565 = vunpack.c.l.b16 %v325
        %v566 = vunpack.c.l.b16 %v326
        %v567 = vunpack.c.l.b16 %v327
        %v568 = vunpack.c.l.b16 %v328
        %v569 = vunpack.c.l.b16 %v329
        %v570 = vunpack.c.l.b16 %v330
        %v571 = vunpack.c.l.b16 %v331
        %v572 = vunpack.c.l.b16 %v332
        %v573 = vunpack.c.l.b16 %v333
        %v574 = vunpack.c.l.b16 %v334
        %v575 = vunpack.c.l.b16 %v335
        %v576 = vunpack.c.l.b16 %v336
        %v577 = vunpack.c.l.b16 %v337
        %v578 = vunpack.c.l.b16 %v338
        %v579 = vpack.c.b16 %v516, %v515
        %v580 = vpack.c.b16 %v518, %v517
        %v581 = vpack.c.b16 %v520, %v519
        %v582 = vpack.c.b16 %v522, %v521
        %v583 = vpack.c.b16 %v524, %v523
        %v584 = vpack.c.b16 %v526, %v525
        %v585 = vpack.c.b16 %v528, %v527
        %v586 = vpack.c.b16 %v530, %v529
        %v587 = vpack.c.b16 %v532, %v531
        %v588 = vpack.c.b16 %v534, %v533
        %v589 = vpack.c.b16 %v536, %v535
        %v590 = vpack.c.b16 %v538, %v537
        %v591 = vpack.c.b16 %v540, %v539
        %v592 = vpack.c.b16 %v542, %v541
        %v593 = vpack.c.b16 %v544, %v543
        %v594 = vpack.c.b16 %v546, %v545
        %v595 = vpack.c.b16 %v548, %v547
        %v596 = vpack.c.b16 %v550, %v549
        %v597 = vpack.c.b16 %v552, %v551
        %v598 = vpack.c.b16 %v554, %v553
        %v599 = vpack.c.b16 %v556, %v555
        %v600 = vpack.c.b16 %v558, %v557
        %v601 = vpack.c.b16 %v560, %v559
        %v602 = vpack.c.b16 %v562, %v561
        %v603 = vpack.c.b16 %v564, %v563
        %v604 = vpack.c.b16 %v566, %v565
        %v605 = vpack.c.b16 %v568, %v567
        %v606 = vpack.c.b16 %v570, %v569
        %v607 = vpack.c.b16 %v572, %v571
        %v608 = vpack.c.b16 %v574, %v573
        %v609 = vpack.c.b16 %v576, %v575
        %v610 = vpack.c.b16 %v578, %v577
        %v755 = vunpack.c.l.b16 %v339
        %v756 = vunpack.c.h.b16 %v339
        %v757 = vunpack.c.l.b16 %v340
        %v758 = vunpack.c.h.b16 %v340
        %v759 = vunpack.c.l.b16 %v341
        %v760 = vunpack.c.h.b16 %v341
        %v761 = vunpack.c.l.b16 %v342
        %v762 = vunpack.c.h.b16 %v342
        %v763 = vunpack.c.l.b16 %v343
        %v764 = vunpack.c.h.b16 %v343
        %v765 = vunpack.c.l.b16 %v344
        %v766 = vunpack.c.h.b16 %v344
        %v767 = vunpack.c.l.b16 %v345
        %v768 = vunpack.c.h.b16 %v345
        %v769 = vunpack.c.l.b16 %v346
        %v770 = vunpack.c.h.b16 %v346
        %v771 = vunpack.c.l.b16 %v347
        %v772 = vunpack.c.h.b16 %v347
        %v773 = vunpack.c.l.b16 %v348
        %v774 = vunpack.c.h.b16 %v348
        %v775 = vunpack.c.l.b16 %v349
        %v776 = vunpack.c.h.b16 %v349
        %v777 = vunpack.c.l.b16 %v350
        %v778 = vunpack.c.h.b16 %v350
        %v779 = vunpack.c.l.b16 %v351
        %v780 = vunpack.c.h.b16 %v351
        %v781 = vunpack.c.l.b16 %v352
        %v782 = vunpack.c.h.b16 %v352
        %v783 = vunpack.c.l.b16 %v353
        %v784 = vunpack.c.h.b16 %v353
        %v785 = vunpack.c.l.b16 %v354
        %v786 = vunpack.c.h.b16 %v354
        %v787 = vunpack.c.l.b16 %v355
        %v788 = vunpack.c.h.b16 %v355
        %v789 = vunpack.c.l.b16 %v356
        %v790 = vunpack.c.h.b16 %v356
        %v791 = vunpack.c.l.b16 %v357
        %v792 = vunpack.c.h.b16 %v357
        %v793 = vunpack.c.l.b16 %v358
        %v794 = vunpack.c.h.b16 %v358
        %v795 = vunpack.c.l.b16 %v359
        %v796 = vunpack.c.h.b16 %v359
        %v797 = vunpack.c.l.b16 %v360
        %v798 = vunpack.c.h.b16 %v360
        %v799 = vunpack.c.l.b16 %v361
        %v800 = vunpack.c.h.b16 %v361
        %v801 = vunpack.c.l.b16 %v362
        %v802 = vunpack.c.h.b16 %v362
        %v803 = vunpack.c.l.b16 %v363
        %v804 = vunpack.c.h.b16 %v363
        %v805 = vunpack.c.l.b16 %v364
        %v806 = vunpack.c.h.b16 %v364
        %v807 = vunpack.c.l.b16 %v365
        %v808 = vunpack.c.h.b16 %v365
        %v809 = vunpack.c.l.b16 %v366
        %v810 = vunpack.c.h.b16 %v366
        %v811 = vunpack.c.l.b16 %v367
        %v812 = vunpack.c.h.b16 %v367
        %v813 = vunpack.c.l.b16 %v368
        %v814 = vunpack.c.h.b16 %v368
        %v815 = vunpack.c.l.b16 %v369
        %v816 = vunpack.c.h.b16 %v369
        %v817 = vunpack.c.l.b16 %v370
        %v818 = vunpack.c.h.b16 %v370
        %v819 = vunpack.c.l.b16 %v371
        %v820 = vunpack.c.h.b16 %v371
        %v821 = vunpack.c.l.b16 %v372
        %v822 = vunpack.c.h.b16 %v372
        %v823 = vunpack.c.l.b16 %v373
        %v824 = vunpack.c.h.b16 %v373
        %v825 = vunpack.c.l.b16 %v374
        %v826 = vunpack.c.h.b16 %v374
        %v827 = vunpack.c.l.b16 %v375
        %v828 = vunpack.c.h.b16 %v375
        %v829 = vunpack.c.l.b16 %v376
        %v830 = vunpack.c.h.b16 %v376
        %v831 = vunpack.c.l.b16 %v377
        %v832 = vunpack.c.h.b16 %v377
        %v833 = vunpack.c.l.b16 %v378
        %v834 = vunpack.c.h.b16 %v378
        %v835 = vunpack.c.l.b16 %v379
        %v836 = vunpack.c.h.b16 %v379
        %v837 = vunpack.c.l.b16 %v380
        %v838 = vunpack.c.h.b16 %v380
        %v839 = vunpack.c.l.b16 %v381
        %v840 = vunpack.c.h.b16 %v381
        %v841 = vunpack.c.l.b16 %v382
        %v842 = vunpack.c.h.b16 %v382
        %v843 = vunpack.c.l.b16 %v383
        %v844 = vunpack.c.h.b16 %v383
        %v845 = vunpack.c.l.b16 %v384
        %v846 = vunpack.c.h.b16 %v384
        %v847 = vunpack.c.l.b16 %v385
        %v848 = vunpack.c.h.b16 %v385
        %v849 = vunpack.c.l.b16 %v386
        %v850 = vunpack.c.h.b16 %v386
        %v851 = vunpack.c.l.b16 %v387
        %v852 = vunpack.c.h.b16 %v387
        %v853 = vunpack.c.l.b16 %v388
        %v854 = vunpack.c.h.b16 %v388
        %v855 = vunpack.c.l.b16 %v389
        %v856 = vunpack.c.h.b16 %v389
        %v857 = vunpack.c.l.b16 %v390
        %v858 = vunpack.c.h.b16 %v390
        %v859 = vunpack.c.l.b16 %v391
        %v860 = vunpack.c.h.b16 %v391
        %v861 = vunpack.c.l.b16 %v392
        %v862 = vunpack.c.h.b16 %v392
        %v863 = vunpack.c.l.b16 %v393
        %v864 = vunpack.c.h.b16 %v393
        %v865 = vunpack.c.l.b16 %v394
        %v866 = vunpack.c.h.b16 %v394
        %v867 = vunpack.c.l.b16 %v395
        %v868 = vunpack.c.h.b16 %v395
        %v869 = vunpack.c.l.b16 %v396
        %v870 = vunpack.c.h.b16 %v396
        %v871 = vunpack.c.l.b16 %v397
        %v872 = vunpack.c.h.b16 %v397
        %v873 = vunpack.c.l.b16 %v398
        %v874 = vunpack.c.h.b16 %v398
        %v875 = vunpack.c.l.b16 %v399
        %v876 = vunpack.c.h.b16 %v399
        %v877 = vunpack.c.l.b16 %v400
        %v878 = vunpack.c.h.b16 %v400
        %v879 = vunpack.c.l.b16 %v401
        %v880 = vunpack.c.h.b16 %v401
        %v881 = vunpack.c.l.b16 %v402
        %v882 = vunpack.c.h.b16 %v402
        %v883 = vunpack.c.l.b16 %v403
        %v884 = vunpack.c.h.b16 %v403
        %v885 = vunpack.c.l.b16 %v404
        %v886 = vunpack.c.h.b16 %v404
        %v887 = vunpack.c.l.b16 %v405
        %v888 = vunpack.c.h.b16 %v405
        %v889 = vunpack.c.l.b16 %v406
        %v890 = vunpack.c.h.b16 %v406
        %v891 = vunpack.c.l.b16 %v407
        %v892 = vunpack.c.h.b16 %v407
        %v893 = vunpack.c.l.b16 %v408
        %v894 = vunpack.c.h.b16 %v408
        %v895 = vunpack.c.l.b16 %v409
        %v896 = vunpack.c.h.b16 %v409
        %v897 = vunpack.c.l.b16 %v410
        %v898 = vunpack.c.h.b16 %v410
        %v899 = vunpack.c.l.b16 %v411
        %v900 = vunpack.c.h.b16 %v411
        %v901 = vunpack.c.l.b16 %v412
        %v902 = vunpack.c.h.b16 %v412
        %v903 = vunpack.c.l.b16 %v413
        %v904 = vunpack.c.h.b16 %v413
        %v905 = vunpack.c.l.b16 %v414
        %v906 = vunpack.c.h.b16 %v414
        %v907 = vunpack.c.l.b16 %v415
        %v908 = vunpack.c.h.b16 %v415
        %v909 = vunpack.c.l.b16 %v416
        %v910 = vunpack.c.h.b16 %v416
        %v911 = vunpack.c.l.b16 %v417
        %v912 = vunpack.c.h.b16 %v417
        %v913 = vunpack.c.l.b16 %v418
        %v914 = vunpack.c.h.b16 %v418
        %v915 = vunpack.c.l.b16 %v419
        %v916 = vunpack.c.h.b16 %v419
        %v917 = vunpack.c.l.b16 %v420
        %v918 = vunpack.c.h.b16 %v420
        %v919 = vunpack.c.l.b16 %v421
        %v920 = vunpack.c.h.b16 %v421
        %v921 = vunpack.c.l.b16 %v422
        %v922 = vunpack.c.h.b16 %v422
        %v923 = vunpack.c.l.b16 %v423
        %v924 = vunpack.c.h.b16 %v423
        %v925 = vunpack.c.l.b16 %v424
        %v926 = vunpack.c.h.b16 %v424
        %v927 = vunpack.c.l.b16 %v425
        %v928 = vunpack.c.h.b16 %v425
        %v929 = vunpack.c.l.b16 %v426
        %v930 = vunpack.c.h.b16 %v426
        %v931 = vunpack.c.l.b16 %v427
        %v932 = vunpack.c.h.b16 %v427
        %v933 = vunpack.c.l.b16 %v428
        %v934 = vunpack.c.h.b16 %v428
        %v935 = vunpack.c.l.b16 %v429
        %v936 = vunpack.c.h.b16 %v429
        %v937 = vunpack.c.l.b16 %v430
        %v938 = vunpack.c.h.b16 %v430
        %v939 = vunpack.c.l.b16 %v431
        %v940 = vunpack.c.h.b16 %v431
        %v941 = vunpack.c.l.b16 %v432
        %v942 = vunpack.c.h.b16 %v432
        %v943 = vunpack.c.l.b16 %v433
        %v944 = vunpack.c.h.b16 %v433
        %v945 = vunpack.c.l.b16 %v434
        %v946 = vunpack.c.h.b16 %v434
        %v947 = vunpack.c.l.b16 %v435
        %v948 = vunpack.c.h.b16 %v435
        %v949 = vunpack.c.l.b16 %v436
        %v950 = vunpack.c.h.b16 %v436
        %v951 = vunpack.c.l.b16 %v437
        %v952 = vunpack.c.h.b16 %v437
        %v953 = vunpack.c.l.b16 %v438
        %v954 = vunpack.c.h.b16 %v438
        %v955 = vunpack.c.l.b16 %v439
        %v956 = vunpack.c.h.b16 %v439
        %v957 = vunpack.c.l.b16 %v440
        %v958 = vunpack.c.h.b16 %v440
        %v959 = vunpack.c.l.b16 %v441
        %v960 = vunpack.c.h.b16 %v441
        %v961 = vunpack.c.l.b16 %v442
        %v962 = vunpack.c.h.b16 %v442
        %v963 = vunpack.c.l.b16 %v443
        %v964 = vunpack.c.h.b16 %v443
        %v965 = vunpack.c.l.b16 %v444
        %v966 = vunpack.c.h.b16 %v444
        %v967 = vunpack.c.l.b16 %v445
        %v968 = vunpack.c.h.b16 %v445
        %v969 = vunpack.c.l.b16 %v446
        %v970 = vunpack.c.h.b16 %v446
        %v971 = vunpack.c.l.b16 %v447
        %v972 = vunpack.c.h.b16 %v447
        %v973 = vunpack.c.l.b16 %v448
        %v974 = vunpack.c.h.b16 %v448
        %v975 = vunpack.c.l.b16 %v449
        %v976 = vunpack.c.h.b16 %v449
        %v977 = vunpack.c.l.b16 %v450
        %v978 = vunpack.c.h.b16 %v450
        %v979 = vpack.c.b16 %v769, %v755
        %v980 = vpack.c.b16 %v770, %v756
        %v981 = vpack.c.b16 %v771, %v757
        %v982 = vpack.c.b16 %v772, %v758
        %v983 = vpack.c.b16 %v773, %v759
        %v984 = vpack.c.b16 %v774, %v760
        %v985 = vpack.c.b16 %v775, %v761
        %v986 = vpack.c.b16 %v776, %v762
        %v987 = vpack.c.b16 %v777, %v763
        %v988 = vpack.c.b16 %v778, %v764
        %v989 = vpack.c.b16 %v779, %v765
        %v990 = vpack.c.b16 %v780, %v766
        %v991 = vpack.c.b16 %v781, %v767
        %v992 = vpack.c.b16 %v782, %v768
        %v993 = vpack.c.b16 %v797, %v783
        %v994 = vpack.c.b16 %v798, %v784
        %v995 = vpack.c.b16 %v799, %v785
        %v996 = vpack.c.b16 %v800, %v786
        %v997 = vpack.c.b16 %v801, %v787
        %v998 = vpack.c.b16 %v802, %v788
        %v999 = vpack.c.b16 %v803, %v789
        %v1000 = vpack.c.b16 %v804, %v790
        %v1001 = vpack.c.b16 %v805, %v791
        %v1002 = vpack.c.b16 %v806, %v792
        %v1003 = vpack.c.b16 %v807, %v793
        %v1004 = vpack.c.b16 %v808, %v794
        %v1005 = vpack.c.b16 %v809, %v795
        %v1006 = vpack.c.b16 %v810, %v796
        %v1007 = vpack.c.b16 %v825, %v811
        %v1008 = vpack.c.b16 %v826, %v812
        %v1009 = vpack.c.b16 %v827, %v813
        %v1010 = vpack.c.b16 %v828, %v814
        %v1011 = vpack.c.b16 %v829, %v815
        %v1012 = vpack.c.b16 %v830, %v816
        %v1013 = vpack.c.b16 %v831, %v817
        %v1014 = vpack.c.b16 %v832, %v818
        %v1015 = vpack.c.b16 %v833, %v819
        %v1016 = vpack.c.b16 %v834, %v820
        %v1017 = vpack.c.b16 %v835, %v821
        %v1018 = vpack.c.b16 %v836, %v822
        %v1019 = vpack.c.b16 %v837, %v823
        %v1020 = vpack.c.b16 %v838, %v824
        %v1021 = vpack.c.b16 %v853, %v839
        %v1022 = vpack.c.b16 %v854, %v840
        %v1023 = vpack.c.b16 %v855, %v841
        %v1024 = vpack.c.b16 %v856, %v842
        %v1025 = vpack.c.b16 %v857, %v843
        %v1026 = vpack.c.b16 %v858, %v844
        %v1027 = vpack.c.b16 %v859, %v845
        %v1028 = vpack.c.b16 %v860, %v846
        %v1029 = vpack.c.b16 %v861, %v847
        %v1030 = vpack.c.b16 %v862, %v848
        %v1031 = vpack.c.b16 %v863, %v849
        %v1032 = vpack.c.b16 %v864, %v850
        %v1033 = vpack.c.b16 %v865, %v851
        %v1034 = vpack.c.b16 %v866, %v852
        %v1035 = vpack.c.b16 %v881, %v867
        %v1036 = vpack.c.b16 %v882, %v868
        %v1037 = vpack.c.b16 %v883, %v869
        %v1038 = vpack.c.b16 %v884, %v870
        %v1039 = vpack.c.b16 %v885, %v871
        %v1040 = vpack.c.b16 %v886, %v872
        %v1041 = vpack.c.b16 %v887, %v873
        %v1042 = vpack.c.b16 %v888, %v874
        %v1043 = vpack.c.b16 %v889, %v875
        %v1044 = vpack.c.b16 %v890, %v876
        %v1045 = vpack.c.b16 %v891, %v877
        %v1046 = vpack.c.b16 %v892, %v878
        %v1047 = vpack.c.b16 %v893, %v879
        %v1048 = vpack.c.b16 %v894, %v880
        %v1049 = vpack.c.b16 %v909, %v895
        %v1050 = vpack.c.b16 %v910, %v896
        %v1051 = vpack.c.b16 %v911, %v897
        %v1052 = vpack.c.b16 %v912, %v898
        %v1053 = vpack.c.b16 %v913, %v899
        %v1054 = vpack.c.b16 %v914, %v900
        %v1055 = vpack.c.b16 %v915, %v901
        %v1056 = vpack.c.b16 %v916, %v902
        %v1057 = vpack.c.b16 %v917, %v903
        %v1058 = vpack.c.b16 %v918, %v904
        %v1059 = vpack.c.b16 %v919, %v905
        %v1060 = vpack.c.b16 %v920, %v906
        %v1061 = vpack.c.b16 %v921, %v907
        %v1062 = vpack.c.b16 %v922, %v908
        %v1063 = vpack.c.b16 %v937, %v923
        %v1064 = vpack.c.b16 %v938, %v924
        %v1065 = vpack.c.b16 %v939, %v925
        %v1066 = vpack.c.b16 %v940, %v926
        %v1067 = vpack.c.b16 %v941, %v927
        %v1068 = vpack.c.b16 %v942, %v928
        %v1069 = vpack.c.b16 %v943, %v929
        %v1070 = vpack.c.b16 %v944, %v930
        %v1071 = vpack.c.b16 %v945, %v931
        %v1072 = vpack.c.b16 %v946, %v932
        %v1073 = vpack.c.b16 %v947, %v933
        %v1074 = vpack.c.b16 %v948, %v934
        %v1075 = vpack.c.b16 %v949, %v935
        %v1076 = vpack.c.b16 %v950, %v936
        %v1077 = vpack.c.b16 %v965, %v951
        %v1078 = vpack.c.b16 %v966, %v952
        %v1079 = vpack.c.b16 %v967, %v953
        %v1080 = vpack.c.b16 %v968, %v954
        %v1081 = vpack.c.b16 %v969, %v955
        %v1082 = vpack.c.b16 %v970, %v956
        %v1083 = vpack.c.b16 %v971, %v957
        %v1084 = vpack.c.b16 %v972, %v958
        %v1085 = vpack.c.b16 %v973, %v959
        %v1086 = vpack.c.b16 %v974, %v960
        %v1087 = vpack.c.b16 %v975, %v961
        %v1088 = vpack.c.b16 %v976, %v962
        %v1089 = vpack.c.b16 %v977, %v963
        %v1090 = vpack.c.b16 %v978, %v964
        %1203 = vmatprep.subr.bf16.mxu0 %v980
        %1204 = vmatpush1.bf16.msra.mxu0 %v979
        %1205 = vmatprep.subr.bf16.mxu0 %v994
        %1206 = vmatpush1.bf16.msra.mxu0 %v993
        %1207 = vmatprep.subr.bf16.mxu0 %v1008
        %1208 = vmatpush1.bf16.msra.mxu0 %v1007
        %1209 = vmatprep.subr.bf16.mxu0 %v1022
        %1210 = vmatpush1.bf16.msra.mxu0 %v1021
        %1211 = vmatprep.subr.bf16.mxu0 %v1036
        %1212 = vmatpush1.bf16.msra.mxu0 %v1035
        %1213 = vmatprep.subr.bf16.mxu0 %v1050
        %1214 = vmatpush1.bf16.msra.mxu0 %v1049
        %1215 = vmatprep.subr.bf16.mxu0 %v1064
        %1216 = vmatpush1.bf16.msra.mxu0 %v1063
        %1217 = vmatprep.subr.bf16.mxu0 %v1078
        %1218 = vmatpush1.bf16.msra.mxu0 %v1077
        %1219 = vmatprep.subr.bf16.mxu0 0
        %1220 = vmatpush1.bf16.msra.mxu0 0
        %1221 = vmatprep.subr.bf16.mxu0 0
        %1222 = vmatpush1.bf16.msra.mxu0 0
        %1223 = vmatprep.subr.bf16.mxu0 0
        %1224 = vmatpush1.bf16.msra.mxu0 0
        %1225 = vmatprep.subr.bf16.mxu0 0
        %1226 = vmatpush1.bf16.msra.mxu0 0
        %1227 = vmatprep.subr.bf16.mxu0 0
        %1228 = vmatpush1.bf16.msra.mxu0 0
        %1229 = vmatprep.subr.bf16.mxu0 0
        %1230 = vmatpush1.bf16.msra.mxu0 0
        %1231 = vmatprep.subr.bf16.mxu0 0
        %1232 = vmatpush1.bf16.msra.mxu0 0
        %1233 = vmatprep.subr.bf16.mxu0 0
        %1234 = vmatpush1.bf16.msra.mxu0 0
        %1235 = vmatprep.mubr.bf16.mxu0 0
        %1236 = vmatmul.mubr.bf16.gmra.mrb[0].mxu0 %v579
        %v1237 = vpop.f32.mrb[0].mxu0
        %v1238 = vadd.f32 0.0, %v1237
        %v1239 = vpop.f32.mrb[0].mxu0
        %v1240 = vadd.f32 0.0, %v1239
        %v1241 = vpop.f32.mrb[0].mxu0
        %v1242 = vadd.f32 0.0, %v1241
        %v1243 = vpop.f32.mrb[0].mxu0
        %v1244 = vadd.f32 0.0, %v1243
        %1245 = vmatprep.mubr.bf16.mxu0 0
        %1246 = vmatmul.mubr.bf16.gmra.mrb[0].mxu0 %v580
        %v1247 = vpop.f32.mrb[0].mxu0
        %v1248 = vadd.f32 0.0, %v1247
        %v1249 = vpop.f32.mrb[0].mxu0
        %v1250 = vadd.f32 0.0, %v1249
        %v1251 = vpop.f32.mrb[0].mxu0
        %v1252 = vadd.f32 0.0, %v1251
        %v1253 = vpop.f32.mrb[0].mxu0
        %v1254 = vadd.f32 0.0, %v1253
        %1255 = vmatprep.mubr.bf16.mxu0 0
        %1256 = vmatmul.mubr.bf16.gmra.mrb[0].mxu0 %v581
        %v1257 = vpop.f32.mrb[0].mxu0
        %v1258 = vadd.f32 0.0, %v1257
        %v1259 = vpop.f32.mrb[0].mxu0
        %v1260 = vadd.f32 0.0, %v1259
        %v1261 = vpop.f32.mrb[0].mxu0
        %v1262 = vadd.f32 0.0, %v1261
        %v1263 = vpop.f32.mrb[0].mxu0
        %v1264 = vadd.f32 0.0, %v1263
        %1265 = vmatprep.mubr.bf16.mxu0 0
        %1266 = vmatmul.mubr.bf16.gmra.mrb[0].mxu0 %v582
        %v1267 = vpop.f32.mrb[0].mxu0
        %v1268 = vadd.f32 0.0, %v1267
        %v1269 = vpop.f32.mrb[0].mxu0
        %v1270 = vadd.f32 0.0, %v1269
        %v1271 = vpop.f32.mrb[0].mxu0
        %v1272 = vadd.f32 0.0, %v1271
        %v1273 = vpop.f32.mrb[0].mxu0
        %v1274 = vadd.f32 0.0, %v1273
        %1275 = vmatprep.mubr.bf16.mxu0 0
        %1276 = vmatmul.mubr.bf16.gmra.mrb[0].mxu0 %v583
        %v1277 = vpop.f32.mrb[0].mxu0
        %v1278 = vadd.f32 0.0, %v1277
        %v1279 = vpop.f32.mrb[0].mxu0
        %v1280 = vadd.f32 0.0, %v1279
        %v1281 = vpop.f32.mrb[0].mxu0
        %v1282 = vadd.f32 0.0, %v1281
        %v1283 = vpop.f32.mrb[0].mxu0
        %v1284 = vadd.f32 0.0, %v1283
        %1285 = vmatprep.mubr.bf16.mxu0 0
        %1286 = vmatmul.mubr.bf16.gmra.mrb[0].mxu0 %v584
        %v1287 = vpop.f32.mrb[0].mxu0
        %v1288 = vadd.f32 0.0, %v1287
        %v1289 = vpop.f32.mrb[0].mxu0
        %v1290 = vadd.f32 0.0, %v1289
        %v1291 = vpop.f32.mrb[0].mxu0
        %v1292 = vadd.f32 0.0, %v1291
        %v1293 = vpop.f32.mrb[0].mxu0
        %v1294 = vadd.f32 0.0, %v1293
        %1295 = vmatprep.mubr.bf16.mxu0 0
        %1296 = vmatmul.mubr.bf16.gmra.mrb[0].mxu0 %v585
        %v1297 = vpop.f32.mrb[0].mxu0
        %v1298 = vadd.f32 0.0, %v1297
        %v1299 = vpop.f32.mrb[0].mxu0
        %v1300 = vadd.f32 0.0, %v1299
        %v1301 = vpop.f32.mrb[0].mxu0
        %v1302 = vadd.f32 0.0, %v1301
        %v1303 = vpop.f32.mrb[0].mxu0
        %v1304 = vadd.f32 0.0, %v1303
        %1305 = vmatprep.mubr.bf16.mxu0 0
        %1306 = vmatmul.mubr.bf16.gmra.mrb[0].mxu0 %v586
        %v1307 = vpop.f32.mrb[0].mxu0
        %v1308 = vadd.f32 0.0, %v1307
        %v1309 = vpop.f32.mrb[0].mxu0
        %v1310 = vadd.f32 0.0, %v1309
        %v1311 = vpop.f32.mrb[0].mxu0
        %v1312 = vadd.f32 0.0, %v1311
        %v1313 = vpop.f32.mrb[0].mxu0
        %v1314 = vadd.f32 0.0, %v1313
        %1315 = vmatprep.mubr.bf16.mxu0 0
        %1316 = vmatmul.mubr.bf16.gmra.mrb[0].mxu0 %v587
        %v1317 = vpop.f32.mrb[0].mxu0
        %v1318 = vadd.f32 0.0, %v1317
        %v1319 = vpop.f32.mrb[0].mxu0
        %v1320 = vadd.f32 0.0, %v1319
        %v1321 = vpop.f32.mrb[0].mxu0
        %v1322 = vadd.f32 0.0, %v1321
        %v1323 = vpop.f32.mrb[0].mxu0
        %v1324 = vadd.f32 0.0, %v1323
        %1325 = vmatprep.mubr.bf16.mxu0 0
        %1326 = vmatmul.mubr.bf16.gmra.mrb[0].mxu0 %v588
        %v1327 = vpop.f32.mrb[0].mxu0
        %v1328 = vadd.f32 0.0, %v1327
        %v1329 = vpop.f32.mrb[0].mxu0
        %v1330 = vadd.f32 0.0, %v1329
        %v1331 = vpop.f32.mrb[0].mxu0
        %v1332 = vadd.f32 0.0, %v1331
        %v1333 = vpop.f32.mrb[0].mxu0
        %v1334 = vadd.f32 0.0, %v1333
        %1335 = vmatprep.mubr.bf16.mxu0 0
        %1336 = vmatmul.mubr.bf16.gmra.mrb[0].mxu0 %v589
        %v1337 = vpop.f32.mrb[0].mxu0
        %v1338 = vadd.f32 0.0, %v1337
        %v1339 = vpop.f32.mrb[0].mxu0
        %v1340 = vadd.f32 0.0, %v1339
        %v1341 = vpop.f32.mrb[0].mxu0
        %v1342 = vadd.f32 0.0, %v1341
        %v1343 = vpop.f32.mrb[0].mxu0
        %v1344 = vadd.f32 0.0, %v1343
        %1345 = vmatprep.mubr.bf16.mxu0 0
        %1346 = vmatmul.mubr.bf16.gmra.mrb[0].mxu0 %v590
        %v1347 = vpop.f32.mrb[0].mxu0
        %v1348 = vadd.f32 0.0, %v1347
        %v1349 = vpop.f32.mrb[0].mxu0
        %v1350 = vadd.f32 0.0, %v1349
        %v1351 = vpop.f32.mrb[0].mxu0
        %v1352 = vadd.f32 0.0, %v1351
        %v1353 = vpop.f32.mrb[0].mxu0
        %v1354 = vadd.f32 0.0, %v1353
        %1355 = vmatprep.mubr.bf16.mxu0 0
        %1356 = vmatmul.mubr.bf16.gmra.mrb[0].mxu0 %v591
        %v1357 = vpop.f32.mrb[0].mxu0
        %v1358 = vadd.f32 0.0, %v1357
        %v1359 = vpop.f32.mrb[0].mxu0
        %v1360 = vadd.f32 0.0, %v1359
        %v1361 = vpop.f32.mrb[0].mxu0
        %v1362 = vadd.f32 0.0, %v1361
        %v1363 = vpop.f32.mrb[0].mxu0
        %v1364 = vadd.f32 0.0, %v1363
        %1365 = vmatprep.mubr.bf16.mxu0 0
        %1366 = vmatmul.mubr.bf16.gmra.mrb[0].mxu0 %v592
        %v1367 = vpop.f32.mrb[0].mxu0
        %v1368 = vadd.f32 0.0, %v1367
        %v1369 = vpop.f32.mrb[0].mxu0
        %v1370 = vadd.f32 0.0, %v1369
        %v1371 = vpop.f32.mrb[0].mxu0
        %v1372 = vadd.f32 0.0, %v1371
        %v1373 = vpop.f32.mrb[0].mxu0
        %v1374 = vadd.f32 0.0, %v1373
        %1375 = vmatprep.mubr.bf16.mxu0 0
        %1376 = vmatmul.mubr.bf16.gmra.mrb[0].mxu0 %v593
        %v1377 = vpop.f32.mrb[0].mxu0
        %v1378 = vadd.f32 0.0, %v1377
        %v1379 = vpop.f32.mrb[0].mxu0
        %v1380 = vadd.f32 0.0, %v1379
        %v1381 = vpop.f32.mrb[0].mxu0
        %v1382 = vadd.f32 0.0, %v1381
        %v1383 = vpop.f32.mrb[0].mxu0
        %v1384 = vadd.f32 0.0, %v1383
        %1385 = vmatprep.mubr.bf16.mxu0 0
        %1386 = vmatmul.mubr.bf16.gmra.mrb[0].mxu0 %v594
        %v1387 = vpop.f32.mrb[0].mxu0
        %v1388 = vadd.f32 0.0, %v1387
        %v1389 = vpop.f32.mrb[0].mxu0
        %v1390 = vadd.f32 0.0, %v1389
        %v1391 = vpop.f32.mrb[0].mxu0
        %v1392 = vadd.f32 0.0, %v1391
        %v1393 = vpop.f32.mrb[0].mxu0
        %v1394 = vadd.f32 0.0, %v1393
        %1395 = vmatprep.mubr.bf16.mxu0 0
        %1396 = vmatmul.mubr.bf16.gmra.mrb[0].mxu0 %v595
        %v1397 = vpop.f32.mrb[0].mxu0
        %v1398 = vadd.f32 0.0, %v1397
        %v1399 = vpop.f32.mrb[0].mxu0
        %v1400 = vadd.f32 0.0, %v1399
        %v1401 = vpop.f32.mrb[0].mxu0
        %v1402 = vadd.f32 0.0, %v1401
        %v1403 = vpop.f32.mrb[0].mxu0
        %v1404 = vadd.f32 0.0, %v1403
        %1405 = vmatprep.mubr.bf16.mxu0 0
        %1406 = vmatmul.mubr.bf16.gmra.mrb[0].mxu0 %v596
        %v1407 = vpop.f32.mrb[0].mxu0
        %v1408 = vadd.f32 0.0, %v1407
        %v1409 = vpop.f32.mrb[0].mxu0
        %v1410 = vadd.f32 0.0, %v1409
        %v1411 = vpop.f32.mrb[0].mxu0
        %v1412 = vadd.f32 0.0, %v1411
        %v1413 = vpop.f32.mrb[0].mxu0
        %v1414 = vadd.f32 0.0, %v1413
        %1415 = vmatprep.mubr.bf16.mxu0 0
        %1416 = vmatmul.mubr.bf16.gmra.mrb[0].mxu0 %v597
        %v1417 = vpop.f32.mrb[0].mxu0
        %v1418 = vadd.f32 0.0, %v1417
        %v1419 = vpop.f32.mrb[0].mxu0
        %v1420 = vadd.f32 0.0, %v1419
        %v1421 = vpop.f32.mrb[0].mxu0
        %v1422 = vadd.f32 0.0, %v1421
        %v1423 = vpop.f32.mrb[0].mxu0
        %v1424 = vadd.f32 0.0, %v1423
        %1425 = vmatprep.mubr.bf16.mxu0 0
        %1426 = vmatmul.mubr.bf16.gmra.mrb[0].mxu0 %v598
        %v1427 = vpop.f32.mrb[0].mxu0
        %v1428 = vadd.f32 0.0, %v1427
        %v1429 = vpop.f32.mrb[0].mxu0
        %v1430 = vadd.f32 0.0, %v1429
        %v1431 = vpop.f32.mrb[0].mxu0
        %v1432 = vadd.f32 0.0, %v1431
        %v1433 = vpop.f32.mrb[0].mxu0
        %v1434 = vadd.f32 0.0, %v1433
        %1435 = vmatprep.mubr.bf16.mxu0 0
        %1436 = vmatmul.mubr.bf16.gmra.mrb[0].mxu0 %v599
        %v1437 = vpop.f32.mrb[0].mxu0
        %v1438 = vadd.f32 0.0, %v1437
        %v1439 = vpop.f32.mrb[0].mxu0
        %v1440 = vadd.f32 0.0, %v1439
        %v1441 = vpop.f32.mrb[0].mxu0
        %v1442 = vadd.f32 0.0, %v1441
        %v1443 = vpop.f32.mrb[0].mxu0
        %v1444 = vadd.f32 0.0, %v1443
        %1445 = vmatprep.mubr.bf16.mxu0 0
        %1446 = vmatmul.mubr.bf16.gmra.mrb[0].mxu0 %v600
        %v1447 = vpop.f32.mrb[0].mxu0
        %v1448 = vadd.f32 0.0, %v1447
        %v1449 = vpop.f32.mrb[0].mxu0
        %v1450 = vadd.f32 0.0, %v1449
        %v1451 = vpop.f32.mrb[0].mxu0
        %v1452 = vadd.f32 0.0, %v1451
        %v1453 = vpop.f32.mrb[0].mxu0
        %v1454 = vadd.f32 0.0, %v1453
        %1455 = vmatprep.mubr.bf16.mxu0 0
        %1456 = vmatmul.mubr.bf16.gmra.mrb[0].mxu0 %v601
        %v1457 = vpop.f32.mrb[0].mxu0
        %v1458 = vadd.f32 0.0, %v1457
        %v1459 = vpop.f32.mrb[0].mxu0
        %v1460 = vadd.f32 0.0, %v1459
        %v1461 = vpop.f32.mrb[0].mxu0
        %v1462 = vadd.f32 0.0, %v1461
        %v1463 = vpop.f32.mrb[0].mxu0
        %v1464 = vadd.f32 0.0, %v1463
        %1465 = vmatprep.mubr.bf16.mxu0 0
        %1466 = vmatmul.mubr.bf16.gmra.mrb[0].mxu0 %v602
        %v1467 = vpop.f32.mrb[0].mxu0
        %v1468 = vadd.f32 0.0, %v1467
        %v1469 = vpop.f32.mrb[0].mxu0
        %v1470 = vadd.f32 0.0, %v1469
        %v1471 = vpop.f32.mrb[0].mxu0
        %v1472 = vadd.f32 0.0, %v1471
        %v1473 = vpop.f32.mrb[0].mxu0
        %v1474 = vadd.f32 0.0, %v1473
        %1475 = vmatprep.mubr.bf16.mxu0 0
        %1476 = vmatmul.mubr.bf16.gmra.mrb[0].mxu0 %v603
        %v1477 = vpop.f32.mrb[0].mxu0
        %v1478 = vadd.f32 0.0, %v1477
        %v1479 = vpop.f32.mrb[0].mxu0
        %v1480 = vadd.f32 0.0, %v1479
        %v1481 = vpop.f32.mrb[0].mxu0
        %v1482 = vadd.f32 0.0, %v1481
        %v1483 = vpop.f32.mrb[0].mxu0
        %v1484 = vadd.f32 0.0, %v1483
        %1485 = vmatprep.mubr.bf16.mxu0 0
        %1486 = vmatmul.mubr.bf16.gmra.mrb[0].mxu0 %v604
        %v1487 = vpop.f32.mrb[0].mxu0
        %v1488 = vadd.f32 0.0, %v1487
        %v1489 = vpop.f32.mrb[0].mxu0
        %v1490 = vadd.f32 0.0, %v1489
        %v1491 = vpop.f32.mrb[0].mxu0
        %v1492 = vadd.f32 0.0, %v1491
        %v1493 = vpop.f32.mrb[0].mxu0
        %v1494 = vadd.f32 0.0, %v1493
        %1495 = vmatprep.mubr.bf16.mxu0 0
        %1496 = vmatmul.mubr.bf16.gmra.mrb[0].mxu0 %v605
        %v1497 = vpop.f32.mrb[0].mxu0
        %v1498 = vadd.f32 0.0, %v1497
        %v1499 = vpop.f32.mrb[0].mxu0
        %v1500 = vadd.f32 0.0, %v1499
        %v1501 = vpop.f32.mrb[0].mxu0
        %v1502 = vadd.f32 0.0, %v1501
        %v1503 = vpop.f32.mrb[0].mxu0
        %v1504 = vadd.f32 0.0, %v1503
        %1505 = vmatprep.mubr.bf16.mxu0 0
        %1506 = vmatmul.mubr.bf16.gmra.mrb[0].mxu0 %v606
        %v1507 = vpop.f32.mrb[0].mxu0
        %v1508 = vadd.f32 0.0, %v1507
        %v1509 = vpop.f32.mrb[0].mxu0
        %v1510 = vadd.f32 0.0, %v1509
        %v1511 = vpop.f32.mrb[0].mxu0
        %v1512 = vadd.f32 0.0, %v1511
        %v1513 = vpop.f32.mrb[0].mxu0
        %v1514 = vadd.f32 0.0, %v1513
        %1515 = vmatprep.mubr.bf16.mxu0 0
        %1516 = vmatmul.mubr.bf16.gmra.mrb[0].mxu0 %v607
        %v1517 = vpop.f32.mrb[0].mxu0
        %v1518 = vadd.f32 0.0, %v1517
        %v1519 = vpop.f32.mrb[0].mxu0
        %v1520 = vadd.f32 0.0, %v1519
        %v1521 = vpop.f32.mrb[0].mxu0
        %v1522 = vadd.f32 0.0, %v1521
        %v1523 = vpop.f32.mrb[0].mxu0
        %v1524 = vadd.f32 0.0, %v1523
        %1525 = vmatprep.mubr.bf16.mxu0 0
        %1526 = vmatmul.mubr.bf16.gmra.mrb[0].mxu0 %v608
        %v1527 = vpop.f32.mrb[0].mxu0
        %v1528 = vadd.f32 0.0, %v1527
        %v1529 = vpop.f32.mrb[0].mxu0
        %v1530 = vadd.f32 0.0, %v1529
        %v1531 = vpop.f32.mrb[0].mxu0
        %v1532 = vadd.f32 0.0, %v1531
        %v1533 = vpop.f32.mrb[0].mxu0
        %v1534 = vadd.f32 0.0, %v1533
        %1535 = vmatprep.mubr.bf16.mxu0 0
        %1536 = vmatmul.mubr.bf16.gmra.mrb[0].mxu0 %v609
        %v1537 = vpop.f32.mrb[0].mxu0
        %v1538 = vadd.f32 0.0, %v1537
        %v1539 = vpop.f32.mrb[0].mxu0
        %v1540 = vadd.f32 0.0, %v1539
        %v1541 = vpop.f32.mrb[0].mxu0
        %v1542 = vadd.f32 0.0, %v1541
        %v1543 = vpop.f32.mrb[0].mxu0
        %v1544 = vadd.f32 0.0, %v1543
        %1545 = vmatprep.mubr.bf16.mxu0 0
        %1546 = vmatmul.mubr.bf16.gmra.mrb[0].mxu0 %v610
        %v1547 = vpop.f32.mrb[0].mxu0
        %v1548 = vadd.f32 0.0, %v1547
        %v1549 = vpop.f32.mrb[0].mxu0
        %v1550 = vadd.f32 0.0, %v1549
        %v1551 = vpop.f32.mrb[0].mxu0
        %v1552 = vadd.f32 0.0, %v1551
        %v1553 = vpop.f32.mrb[0].mxu0
        %v1554 = vadd.f32 0.0, %v1553
        %1555 = vdwg.mxu0
        %1556 = vmatprep.subr.bf16.mxu0 %v982
        %1557 = vmatpush1.bf16.msra.mxu0 %v981
        %1558 = vmatprep.subr.bf16.mxu0 %v996
        %1559 = vmatpush1.bf16.msra.mxu0 %v995
        %1560 = vmatprep.subr.bf16.mxu0 %v1010
        %1561 = vmatpush1.bf16.msra.mxu0 %v1009
        %1562 = vmatprep.subr.bf16.mxu0 %v1024
        %1563 = vmatpush1.bf16.msra.mxu0 %v1023
        %1564 = vmatprep.subr.bf16.mxu0 %v1038
        %1565 = vmatpush1.bf16.msra.mxu0 %v1037
        %1566 = vmatprep.subr.bf16.mxu0 %v1052
        %1567 = vmatpush1.bf16.msra.mxu0 %v1051
        %1568 = vmatprep.subr.bf16.mxu0 %v1066
        %1569 = vmatpush1.bf16.msra.mxu0 %v1065
        %1570 = vmatprep.subr.bf16.mxu0 %v1080
        %1571 = vmatpush1.bf16.msra.mxu0 %v1079
        %1572 = vmatprep.subr.bf16.mxu0 0
        %1573 = vmatpush1.bf16.msra.mxu0 0
        %1574 = vmatprep.subr.bf16.mxu0 0
        %1575 = vmatpush1.bf16.msra.mxu0 0
        %1576 = vmatprep.subr.bf16.mxu0 0
        %1577 = vmatpush1.bf16.msra.mxu0 0
        %1578 = vmatprep.subr.bf16.mxu0 0
        %1579 = vmatpush1.bf16.msra.mxu0 0
        %1580 = vmatprep.subr.bf16.mxu0 0
        %1581 = vmatpush1.bf16.msra.mxu0 0
        %1582 = vmatprep.subr.bf16.mxu0 0
        %1583 = vmatpush1.bf16.msra.mxu0 0
        %1584 = vmatprep.subr.bf16.mxu0 0
        %1585 = vmatpush1.bf16.msra.mxu0 0
        %1586 = vmatprep.subr.bf16.mxu0 0
        %1587 = vmatpush1.bf16.msra.mxu0 0
        %1588 = vmatprep.mubr.bf16.mxu0 0
        %1589 = vmatmul.mubr.bf16.gmra.mrb[0].mxu0 %v579
        %v1590 = vpop.f32.mrb[0].mxu0
        %v1591 = vadd.f32 0.0, %v1590
        %v1592 = vpop.f32.mrb[0].mxu0
        %v1593 = vadd.f32 0.0, %v1592
        %v1594 = vpop.f32.mrb[0].mxu0
        %v1595 = vadd.f32 0.0, %v1594
        %v1596 = vpop.f32.mrb[0].mxu0
        %v1597 = vadd.f32 0.0, %v1596
        %1598 = vmatprep.mubr.bf16.mxu0 0
        %1599 = vmatmul.mubr.bf16.gmra.mrb[0].mxu0 %v580
        %v1600 = vpop.f32.mrb[0].mxu0
        %v1601 = vadd.f32 0.0, %v1600
        %v1602 = vpop.f32.mrb[0].mxu0
        %v1603 = vadd.f32 0.0, %v1602
        %v1604 = vpop.f32.mrb[0].mxu0
        %v1605 = vadd.f32 0.0, %v1604
        %v1606 = vpop.f32.mrb[0].mxu0
        %v1607 = vadd.f32 0.0, %v1606
        %1608 = vmatprep.mubr.bf16.mxu0 0
        %1609 = vmatmul.mubr.bf16.gmra.mrb[0].mxu0 %v581
        %v1610 = vpop.f32.mrb[0].mxu0
        %v1611 = vadd.f32 0.0, %v1610
        %v1612 = vpop.f32.mrb[0].mxu0
        %v1613 = vadd.f32 0.0, %v1612
        %v1614 = vpop.f32.mrb[0].mxu0
        %v1615 = vadd.f32 0.0, %v1614
        %v1616 = vpop.f32.mrb[0].mxu0
        %v1617 = vadd.f32 0.0, %v1616
        %1618 = vmatprep.mubr.bf16.mxu0 0
        %1619 = vmatmul.mubr.bf16.gmra.mrb[0].mxu0 %v582
        %v1620 = vpop.f32.mrb[0].mxu0
        %v1621 = vadd.f32 0.0, %v1620
        %v1622 = vpop.f32.mrb[0].mxu0
        %v1623 = vadd.f32 0.0, %v1622
        %v1624 = vpop.f32.mrb[0].mxu0
        %v1625 = vadd.f32 0.0, %v1624
        %v1626 = vpop.f32.mrb[0].mxu0
        %v1627 = vadd.f32 0.0, %v1626
        %1628 = vmatprep.mubr.bf16.mxu0 0
        %1629 = vmatmul.mubr.bf16.gmra.mrb[0].mxu0 %v583
        %v1630 = vpop.f32.mrb[0].mxu0
        %v1631 = vadd.f32 0.0, %v1630
        %v1632 = vpop.f32.mrb[0].mxu0
        %v1633 = vadd.f32 0.0, %v1632
        %v1634 = vpop.f32.mrb[0].mxu0
        %v1635 = vadd.f32 0.0, %v1634
        %v1636 = vpop.f32.mrb[0].mxu0
        %v1637 = vadd.f32 0.0, %v1636
        %1638 = vmatprep.mubr.bf16.mxu0 0
        %1639 = vmatmul.mubr.bf16.gmra.mrb[0].mxu0 %v584
        %v1640 = vpop.f32.mrb[0].mxu0
        %v1641 = vadd.f32 0.0, %v1640
        %v1642 = vpop.f32.mrb[0].mxu0
        %v1643 = vadd.f32 0.0, %v1642
        %v1644 = vpop.f32.mrb[0].mxu0
        %v1645 = vadd.f32 0.0, %v1644
        %v1646 = vpop.f32.mrb[0].mxu0
        %v1647 = vadd.f32 0.0, %v1646
        %1648 = vmatprep.mubr.bf16.mxu0 0
        %1649 = vmatmul.mubr.bf16.gmra.mrb[0].mxu0 %v585
        %v1650 = vpop.f32.mrb[0].mxu0
        %v1651 = vadd.f32 0.0, %v1650
        %v1652 = vpop.f32.mrb[0].mxu0
        %v1653 = vadd.f32 0.0, %v1652
        %v1654 = vpop.f32.mrb[0].mxu0
        %v1655 = vadd.f32 0.0, %v1654
        %v1656 = vpop.f32.mrb[0].mxu0
        %v1657 = vadd.f32 0.0, %v1656
        %1658 = vmatprep.mubr.bf16.mxu0 0
        %1659 = vmatmul.mubr.bf16.gmra.mrb[0].mxu0 %v586
        %v1660 = vpop.f32.mrb[0].mxu0
        %v1661 = vadd.f32 0.0, %v1660
        %v1662 = vpop.f32.mrb[0].mxu0
        %v1663 = vadd.f32 0.0, %v1662
        %v1664 = vpop.f32.mrb[0].mxu0
        %v1665 = vadd.f32 0.0, %v1664
        %v1666 = vpop.f32.mrb[0].mxu0
        %v1667 = vadd.f32 0.0, %v1666
        %1668 = vmatprep.mubr.bf16.mxu0 0
        %1669 = vmatmul.mubr.bf16.gmra.mrb[0].mxu0 %v587
        %v1670 = vpop.f32.mrb[0].mxu0
        %v1671 = vadd.f32 0.0, %v1670
        %v1672 = vpop.f32.mrb[0].mxu0
        %v1673 = vadd.f32 0.0, %v1672
        %v1674 = vpop.f32.mrb[0].mxu0
        %v1675 = vadd.f32 0.0, %v1674
        %v1676 = vpop.f32.mrb[0].mxu0
        %v1677 = vadd.f32 0.0, %v1676
        %1678 = vmatprep.mubr.bf16.mxu0 0
        %1679 = vmatmul.mubr.bf16.gmra.mrb[0].mxu0 %v588
        %v1680 = vpop.f32.mrb[0].mxu0
        %v1681 = vadd.f32 0.0, %v1680
        %v1682 = vpop.f32.mrb[0].mxu0
        %v1683 = vadd.f32 0.0, %v1682
        %v1684 = vpop.f32.mrb[0].mxu0
        %v1685 = vadd.f32 0.0, %v1684
        %v1686 = vpop.f32.mrb[0].mxu0
        %v1687 = vadd.f32 0.0, %v1686
        %1688 = vmatprep.mubr.bf16.mxu0 0
        %1689 = vmatmul.mubr.bf16.gmra.mrb[0].mxu0 %v589
        %v1690 = vpop.f32.mrb[0].mxu0
        %v1691 = vadd.f32 0.0, %v1690
        %v1692 = vpop.f32.mrb[0].mxu0
        %v1693 = vadd.f32 0.0, %v1692
        %v1694 = vpop.f32.mrb[0].mxu0
        %v1695 = vadd.f32 0.0, %v1694
        %v1696 = vpop.f32.mrb[0].mxu0
        %v1697 = vadd.f32 0.0, %v1696
        %1698 = vmatprep.mubr.bf16.mxu0 0
        %1699 = vmatmul.mubr.bf16.gmra.mrb[0].mxu0 %v590
        %v1700 = vpop.f32.mrb[0].mxu0
        %v1701 = vadd.f32 0.0, %v1700
        %v1702 = vpop.f32.mrb[0].mxu0
        %v1703 = vadd.f32 0.0, %v1702
        %v1704 = vpop.f32.mrb[0].mxu0
        %v1705 = vadd.f32 0.0, %v1704
        %v1706 = vpop.f32.mrb[0].mxu0
        %v1707 = vadd.f32 0.0, %v1706
        %1708 = vmatprep.mubr.bf16.mxu0 0
        %1709 = vmatmul.mubr.bf16.gmra.mrb[0].mxu0 %v591
        %v1710 = vpop.f32.mrb[0].mxu0
        %v1711 = vadd.f32 0.0, %v1710
        %v1712 = vpop.f32.mrb[0].mxu0
        %v1713 = vadd.f32 0.0, %v1712
        %v1714 = vpop.f32.mrb[0].mxu0
        %v1715 = vadd.f32 0.0, %v1714
        %v1716 = vpop.f32.mrb[0].mxu0
        %v1717 = vadd.f32 0.0, %v1716
        %1718 = vmatprep.mubr.bf16.mxu0 0
        %1719 = vmatmul.mubr.bf16.gmra.mrb[0].mxu0 %v592
        %v1720 = vpop.f32.mrb[0].mxu0
        %v1721 = vadd.f32 0.0, %v1720
        %v1722 = vpop.f32.mrb[0].mxu0
        %v1723 = vadd.f32 0.0, %v1722
        %v1724 = vpop.f32.mrb[0].mxu0
        %v1725 = vadd.f32 0.0, %v1724
        %v1726 = vpop.f32.mrb[0].mxu0
        %v1727 = vadd.f32 0.0, %v1726
        %1728 = vmatprep.mubr.bf16.mxu0 0
        %1729 = vmatmul.mubr.bf16.gmra.mrb[0].mxu0 %v593
        %v1730 = vpop.f32.mrb[0].mxu0
        %v1731 = vadd.f32 0.0, %v1730
        %v1732 = vpop.f32.mrb[0].mxu0
        %v1733 = vadd.f32 0.0, %v1732
        %v1734 = vpop.f32.mrb[0].mxu0
        %v1735 = vadd.f32 0.0, %v1734
        %v1736 = vpop.f32.mrb[0].mxu0
        %v1737 = vadd.f32 0.0, %v1736
        %1738 = vmatprep.mubr.bf16.mxu0 0
        %1739 = vmatmul.mubr.bf16.gmra.mrb[0].mxu0 %v594
        %v1740 = vpop.f32.mrb[0].mxu0
        %v1741 = vadd.f32 0.0, %v1740
        %v1742 = vpop.f32.mrb[0].mxu0
        %v1743 = vadd.f32 0.0, %v1742
        %v1744 = vpop.f32.mrb[0].mxu0
        %v1745 = vadd.f32 0.0, %v1744
        %v1746 = vpop.f32.mrb[0].mxu0
        %v1747 = vadd.f32 0.0, %v1746
        %1748 = vmatprep.mubr.bf16.mxu0 0
        %1749 = vmatmul.mubr.bf16.gmra.mrb[0].mxu0 %v595
        %v1750 = vpop.f32.mrb[0].mxu0
        %v1751 = vadd.f32 0.0, %v1750
        %v1752 = vpop.f32.mrb[0].mxu0
        %v1753 = vadd.f32 0.0, %v1752
        %v1754 = vpop.f32.mrb[0].mxu0
        %v1755 = vadd.f32 0.0, %v1754
        %v1756 = vpop.f32.mrb[0].mxu0
        %v1757 = vadd.f32 0.0, %v1756
        %1758 = vmatprep.mubr.bf16.mxu0 0
        %1759 = vmatmul.mubr.bf16.gmra.mrb[0].mxu0 %v596
        %v1760 = vpop.f32.mrb[0].mxu0
        %v1761 = vadd.f32 0.0, %v1760
        %v1762 = vpop.f32.mrb[0].mxu0
        %v1763 = vadd.f32 0.0, %v1762
        %v1764 = vpop.f32.mrb[0].mxu0
        %v1765 = vadd.f32 0.0, %v1764
        %v1766 = vpop.f32.mrb[0].mxu0
        %v1767 = vadd.f32 0.0, %v1766
        %1768 = vmatprep.mubr.bf16.mxu0 0
        %1769 = vmatmul.mubr.bf16.gmra.mrb[0].mxu0 %v597
        %v1770 = vpop.f32.mrb[0].mxu0
        %v1771 = vadd.f32 0.0, %v1770
        %v1772 = vpop.f32.mrb[0].mxu0
        %v1773 = vadd.f32 0.0, %v1772
        %v1774 = vpop.f32.mrb[0].mxu0
        %v1775 = vadd.f32 0.0, %v1774
        %v1776 = vpop.f32.mrb[0].mxu0
        %v1777 = vadd.f32 0.0, %v1776
        %1778 = vmatprep.mubr.bf16.mxu0 0
        %1779 = vmatmul.mubr.bf16.gmra.mrb[0].mxu0 %v598
        %v1780 = vpop.f32.mrb[0].mxu0
        %v1781 = vadd.f32 0.0, %v1780
        %v1782 = vpop.f32.mrb[0].mxu0
        %v1783 = vadd.f32 0.0, %v1782
        %v1784 = vpop.f32.mrb[0].mxu0
        %v1785 = vadd.f32 0.0, %v1784
        %v1786 = vpop.f32.mrb[0].mxu0
        %v1787 = vadd.f32 0.0, %v1786
        %1788 = vmatprep.mubr.bf16.mxu0 0
        %1789 = vmatmul.mubr.bf16.gmra.mrb[0].mxu0 %v599
        %v1790 = vpop.f32.mrb[0].mxu0
        %v1791 = vadd.f32 0.0, %v1790
        %v1792 = vpop.f32.mrb[0].mxu0
        %v1793 = vadd.f32 0.0, %v1792
        %v1794 = vpop.f32.mrb[0].mxu0
        %v1795 = vadd.f32 0.0, %v1794
        %v1796 = vpop.f32.mrb[0].mxu0
        %v1797 = vadd.f32 0.0, %v1796
        %1798 = vmatprep.mubr.bf16.mxu0 0
        %1799 = vmatmul.mubr.bf16.gmra.mrb[0].mxu0 %v600
        %v1800 = vpop.f32.mrb[0].mxu0
        %v1801 = vadd.f32 0.0, %v1800
        %v1802 = vpop.f32.mrb[0].mxu0
        %v1803 = vadd.f32 0.0, %v1802
        %v1804 = vpop.f32.mrb[0].mxu0
        %v1805 = vadd.f32 0.0, %v1804
        %v1806 = vpop.f32.mrb[0].mxu0
        %v1807 = vadd.f32 0.0, %v1806
        %1808 = vmatprep.mubr.bf16.mxu0 0
        %1809 = vmatmul.mubr.bf16.gmra.mrb[0].mxu0 %v601
        %v1810 = vpop.f32.mrb[0].mxu0
        %v1811 = vadd.f32 0.0, %v1810
        %v1812 = vpop.f32.mrb[0].mxu0
        %v1813 = vadd.f32 0.0, %v1812
        %v1814 = vpop.f32.mrb[0].mxu0
        %v1815 = vadd.f32 0.0, %v1814
        %v1816 = vpop.f32.mrb[0].mxu0
        %v1817 = vadd.f32 0.0, %v1816
        %1818 = vmatprep.mubr.bf16.mxu0 0
        %1819 = vmatmul.mubr.bf16.gmra.mrb[0].mxu0 %v602
        %v1820 = vpop.f32.mrb[0].mxu0
        %v1821 = vadd.f32 0.0, %v1820
        %v1822 = vpop.f32.mrb[0].mxu0
        %v1823 = vadd.f32 0.0, %v1822
        %v1824 = vpop.f32.mrb[0].mxu0
        %v1825 = vadd.f32 0.0, %v1824
        %v1826 = vpop.f32.mrb[0].mxu0
        %v1827 = vadd.f32 0.0, %v1826
        %1828 = vmatprep.mubr.bf16.mxu0 0
        %1829 = vmatmul.mubr.bf16.gmra.mrb[0].mxu0 %v603
        %v1830 = vpop.f32.mrb[0].mxu0
        %v1831 = vadd.f32 0.0, %v1830
        %v1832 = vpop.f32.mrb[0].mxu0
        %v1833 = vadd.f32 0.0, %v1832
        %v1834 = vpop.f32.mrb[0].mxu0
        %v1835 = vadd.f32 0.0, %v1834
        %v1836 = vpop.f32.mrb[0].mxu0
        %v1837 = vadd.f32 0.0, %v1836
        %1838 = vmatprep.mubr.bf16.mxu0 0
        %1839 = vmatmul.mubr.bf16.gmra.mrb[0].mxu0 %v604
        %v1840 = vpop.f32.mrb[0].mxu0
        %v1841 = vadd.f32 0.0, %v1840
        %v1842 = vpop.f32.mrb[0].mxu0
        %v1843 = vadd.f32 0.0, %v1842
        %v1844 = vpop.f32.mrb[0].mxu0
        %v1845 = vadd.f32 0.0, %v1844
        %v1846 = vpop.f32.mrb[0].mxu0
        %v1847 = vadd.f32 0.0, %v1846
        %1848 = vmatprep.mubr.bf16.mxu0 0
        %1849 = vmatmul.mubr.bf16.gmra.mrb[0].mxu0 %v605
        %v1850 = vpop.f32.mrb[0].mxu0
        %v1851 = vadd.f32 0.0, %v1850
        %v1852 = vpop.f32.mrb[0].mxu0
        %v1853 = vadd.f32 0.0, %v1852
        %v1854 = vpop.f32.mrb[0].mxu0
        %v1855 = vadd.f32 0.0, %v1854
        %v1856 = vpop.f32.mrb[0].mxu0
        %v1857 = vadd.f32 0.0, %v1856
        %1858 = vmatprep.mubr.bf16.mxu0 0
        %1859 = vmatmul.mubr.bf16.gmra.mrb[0].mxu0 %v606
        %v1860 = vpop.f32.mrb[0].mxu0
        %v1861 = vadd.f32 0.0, %v1860
        %v1862 = vpop.f32.mrb[0].mxu0
        %v1863 = vadd.f32 0.0, %v1862
        %v1864 = vpop.f32.mrb[0].mxu0
        %v1865 = vadd.f32 0.0, %v1864
        %v1866 = vpop.f32.mrb[0].mxu0
        %v1867 = vadd.f32 0.0, %v1866
        %1868 = vmatprep.mubr.bf16.mxu0 0
        %1869 = vmatmul.mubr.bf16.gmra.mrb[0].mxu0 %v607
        %v1870 = vpop.f32.mrb[0].mxu0
        %v1871 = vadd.f32 0.0, %v1870
        %v1872 = vpop.f32.mrb[0].mxu0
        %v1873 = vadd.f32 0.0, %v1872
        %v1874 = vpop.f32.mrb[0].mxu0
        %v1875 = vadd.f32 0.0, %v1874
        %v1876 = vpop.f32.mrb[0].mxu0
        %v1877 = vadd.f32 0.0, %v1876
        %1878 = vmatprep.mubr.bf16.mxu0 0
        %1879 = vmatmul.mubr.bf16.gmra.mrb[0].mxu0 %v608
        %v1880 = vpop.f32.mrb[0].mxu0
        %v1881 = vadd.f32 0.0, %v1880
        %v1882 = vpop.f32.mrb[0].mxu0
        %v1883 = vadd.f32 0.0, %v1882
        %v1884 = vpop.f32.mrb[0].mxu0
        %v1885 = vadd.f32 0.0, %v1884
        %v1886 = vpop.f32.mrb[0].mxu0
        %v1887 = vadd.f32 0.0, %v1886
        %1888 = vmatprep.mubr.bf16.mxu0 0
        %1889 = vmatmul.mubr.bf16.gmra.mrb[0].mxu0 %v609
        %v1890 = vpop.f32.mrb[0].mxu0
        %v1891 = vadd.f32 0.0, %v1890
        %v1892 = vpop.f32.mrb[0].mxu0
        %v1893 = vadd.f32 0.0, %v1892
        %v1894 = vpop.f32.mrb[0].mxu0
        %v1895 = vadd.f32 0.0, %v1894
        %v1896 = vpop.f32.mrb[0].mxu0
        %v1897 = vadd.f32 0.0, %v1896
        %1898 = vmatprep.mubr.bf16.mxu0 0
        %1899 = vmatmul.mubr.bf16.gmra.mrb[0].mxu0 %v610
        %v1900 = vpop.f32.mrb[0].mxu0
        %v1901 = vadd.f32 0.0, %v1900
        %v1902 = vpop.f32.mrb[0].mxu0
        %v1903 = vadd.f32 0.0, %v1902
        %v1904 = vpop.f32.mrb[0].mxu0
        %v1905 = vadd.f32 0.0, %v1904
        %v1906 = vpop.f32.mrb[0].mxu0
        %v1907 = vadd.f32 0.0, %v1906
        %1908 = vdwg.mxu0
        %1909 = vmatprep.subr.bf16.mxu0 %v984
        %1910 = vmatpush1.bf16.msra.mxu0 %v983
        %1911 = vmatprep.subr.bf16.mxu0 %v998
        %1912 = vmatpush1.bf16.msra.mxu0 %v997
        %1913 = vmatprep.subr.bf16.mxu0 %v1012
        %1914 = vmatpush1.bf16.msra.mxu0 %v1011
        %1915 = vmatprep.subr.bf16.mxu0 %v1026
        %1916 = vmatpush1.bf16.msra.mxu0 %v1025
        %1917 = vmatprep.subr.bf16.mxu0 %v1040
        %1918 = vmatpush1.bf16.msra.mxu0 %v1039
        %1919 = vmatprep.subr.bf16.mxu0 %v1054
        %1920 = vmatpush1.bf16.msra.mxu0 %v1053
        %1921 = vmatprep.subr.bf16.mxu0 %v1068
        %1922 = vmatpush1.bf16.msra.mxu0 %v1067
        %1923 = vmatprep.subr.bf16.mxu0 %v1082
        %1924 = vmatpush1.bf16.msra.mxu0 %v1081
        %1925 = vmatprep.subr.bf16.mxu0 0
        %1926 = vmatpush1.bf16.msra.mxu0 0
        %1927 = vmatprep.subr.bf16.mxu0 0
        %1928 = vmatpush1.bf16.msra.mxu0 0
        %1929 = vmatprep.subr.bf16.mxu0 0
        %1930 = vmatpush1.bf16.msra.mxu0 0
        %1931 = vmatprep.subr.bf16.mxu0 0
        %1932 = vmatpush1.bf16.msra.mxu0 0
        %1933 = vmatprep.subr.bf16.mxu0 0
        %1934 = vmatpush1.bf16.msra.mxu0 0
        %1935 = vmatprep.subr.bf16.mxu0 0
        %1936 = vmatpush1.bf16.msra.mxu0 0
        %1937 = vmatprep.subr.bf16.mxu0 0
        %1938 = vmatpush1.bf16.msra.mxu0 0
        %1939 = vmatprep.subr.bf16.mxu0 0
        %1940 = vmatpush1.bf16.msra.mxu0 0
        %1941 = vmatprep.mubr.bf16.mxu0 0
        %1942 = vmatmul.mubr.bf16.gmra.mrb[0].mxu0 %v579
        %v1943 = vpop.f32.mrb[0].mxu0
        %v1944 = vadd.f32 0.0, %v1943
        %v1945 = vpop.f32.mrb[0].mxu0
        %v1946 = vadd.f32 0.0, %v1945
        %v1947 = vpop.f32.mrb[0].mxu0
        %v1948 = vadd.f32 0.0, %v1947
        %v1949 = vpop.f32.mrb[0].mxu0
        %v1950 = vadd.f32 0.0, %v1949
        %1951 = vmatprep.mubr.bf16.mxu0 0
        %1952 = vmatmul.mubr.bf16.gmra.mrb[0].mxu0 %v580
        %v1953 = vpop.f32.mrb[0].mxu0
        %v1954 = vadd.f32 0.0, %v1953
        %v1955 = vpop.f32.mrb[0].mxu0
        %v1956 = vadd.f32 0.0, %v1955
        %v1957 = vpop.f32.mrb[0].mxu0
        %v1958 = vadd.f32 0.0, %v1957
        %v1959 = vpop.f32.mrb[0].mxu0
        %v1960 = vadd.f32 0.0, %v1959
        %1961 = vmatprep.mubr.bf16.mxu0 0
        %1962 = vmatmul.mubr.bf16.gmra.mrb[0].mxu0 %v581
        %v1963 = vpop.f32.mrb[0].mxu0
        %v1964 = vadd.f32 0.0, %v1963
        %v1965 = vpop.f32.mrb[0].mxu0
        %v1966 = vadd.f32 0.0, %v1965
        %v1967 = vpop.f32.mrb[0].mxu0
        %v1968 = vadd.f32 0.0, %v1967
        %v1969 = vpop.f32.mrb[0].mxu0
        %v1970 = vadd.f32 0.0, %v1969
        %1971 = vmatprep.mubr.bf16.mxu0 0
        %1972 = vmatmul.mubr.bf16.gmra.mrb[0].mxu0 %v582
        %v1973 = vpop.f32.mrb[0].mxu0
        %v1974 = vadd.f32 0.0, %v1973
        %v1975 = vpop.f32.mrb[0].mxu0
        %v1976 = vadd.f32 0.0, %v1975
        %v1977 = vpop.f32.mrb[0].mxu0
        %v1978 = vadd.f32 0.0, %v1977
        %v1979 = vpop.f32.mrb[0].mxu0
        %v1980 = vadd.f32 0.0, %v1979
        %1981 = vmatprep.mubr.bf16.mxu0 0
        %1982 = vmatmul.mubr.bf16.gmra.mrb[0].mxu0 %v583
        %v1983 = vpop.f32.mrb[0].mxu0
        %v1984 = vadd.f32 0.0, %v1983
        %v1985 = vpop.f32.mrb[0].mxu0
        %v1986 = vadd.f32 0.0, %v1985
        %v1987 = vpop.f32.mrb[0].mxu0
        %v1988 = vadd.f32 0.0, %v1987
        %v1989 = vpop.f32.mrb[0].mxu0
        %v1990 = vadd.f32 0.0, %v1989
        %1991 = vmatprep.mubr.bf16.mxu0 0
        %1992 = vmatmul.mubr.bf16.gmra.mrb[0].mxu0 %v584
        %v1993 = vpop.f32.mrb[0].mxu0
        %v1994 = vadd.f32 0.0, %v1993
        %v1995 = vpop.f32.mrb[0].mxu0
        %v1996 = vadd.f32 0.0, %v1995
        %v1997 = vpop.f32.mrb[0].mxu0
        %v1998 = vadd.f32 0.0, %v1997
        %v1999 = vpop.f32.mrb[0].mxu0
        %v2000 = vadd.f32 0.0, %v1999
        %2001 = vmatprep.mubr.bf16.mxu0 0
        %2002 = vmatmul.mubr.bf16.gmra.mrb[0].mxu0 %v585
        %v2003 = vpop.f32.mrb[0].mxu0
        %v2004 = vadd.f32 0.0, %v2003
        %v2005 = vpop.f32.mrb[0].mxu0
        %v2006 = vadd.f32 0.0, %v2005
        %v2007 = vpop.f32.mrb[0].mxu0
        %v2008 = vadd.f32 0.0, %v2007
        %v2009 = vpop.f32.mrb[0].mxu0
        %v2010 = vadd.f32 0.0, %v2009
        %2011 = vmatprep.mubr.bf16.mxu0 0
        %2012 = vmatmul.mubr.bf16.gmra.mrb[0].mxu0 %v586
        %v2013 = vpop.f32.mrb[0].mxu0
        %v2014 = vadd.f32 0.0, %v2013
        %v2015 = vpop.f32.mrb[0].mxu0
        %v2016 = vadd.f32 0.0, %v2015
        %v2017 = vpop.f32.mrb[0].mxu0
        %v2018 = vadd.f32 0.0, %v2017
        %v2019 = vpop.f32.mrb[0].mxu0
        %v2020 = vadd.f32 0.0, %v2019
        %2021 = vmatprep.mubr.bf16.mxu0 0
        %2022 = vmatmul.mubr.bf16.gmra.mrb[0].mxu0 %v587
        %v2023 = vpop.f32.mrb[0].mxu0
        %v2024 = vadd.f32 0.0, %v2023
        %v2025 = vpop.f32.mrb[0].mxu0
        %v2026 = vadd.f32 0.0, %v2025
        %v2027 = vpop.f32.mrb[0].mxu0
        %v2028 = vadd.f32 0.0, %v2027
        %v2029 = vpop.f32.mrb[0].mxu0
        %v2030 = vadd.f32 0.0, %v2029
        %2031 = vmatprep.mubr.bf16.mxu0 0
        %2032 = vmatmul.mubr.bf16.gmra.mrb[0].mxu0 %v588
        %v2033 = vpop.f32.mrb[0].mxu0
        %v2034 = vadd.f32 0.0, %v2033
        %v2035 = vpop.f32.mrb[0].mxu0
        %v2036 = vadd.f32 0.0, %v2035
        %v2037 = vpop.f32.mrb[0].mxu0
        %v2038 = vadd.f32 0.0, %v2037
        %v2039 = vpop.f32.mrb[0].mxu0
        %v2040 = vadd.f32 0.0, %v2039
        %2041 = vmatprep.mubr.bf16.mxu0 0
        %2042 = vmatmul.mubr.bf16.gmra.mrb[0].mxu0 %v589
        %v2043 = vpop.f32.mrb[0].mxu0
        %v2044 = vadd.f32 0.0, %v2043
        %v2045 = vpop.f32.mrb[0].mxu0
        %v2046 = vadd.f32 0.0, %v2045
        %v2047 = vpop.f32.mrb[0].mxu0
        %v2048 = vadd.f32 0.0, %v2047
        %v2049 = vpop.f32.mrb[0].mxu0
        %v2050 = vadd.f32 0.0, %v2049
        %2051 = vmatprep.mubr.bf16.mxu0 0
        %2052 = vmatmul.mubr.bf16.gmra.mrb[0].mxu0 %v590
        %v2053 = vpop.f32.mrb[0].mxu0
        %v2054 = vadd.f32 0.0, %v2053
        %v2055 = vpop.f32.mrb[0].mxu0
        %v2056 = vadd.f32 0.0, %v2055
        %v2057 = vpop.f32.mrb[0].mxu0
        %v2058 = vadd.f32 0.0, %v2057
        %v2059 = vpop.f32.mrb[0].mxu0
        %v2060 = vadd.f32 0.0, %v2059
        %2061 = vmatprep.mubr.bf16.mxu0 0
        %2062 = vmatmul.mubr.bf16.gmra.mrb[0].mxu0 %v591
        %v2063 = vpop.f32.mrb[0].mxu0
        %v2064 = vadd.f32 0.0, %v2063
        %v2065 = vpop.f32.mrb[0].mxu0
        %v2066 = vadd.f32 0.0, %v2065
        %v2067 = vpop.f32.mrb[0].mxu0
        %v2068 = vadd.f32 0.0, %v2067
        %v2069 = vpop.f32.mrb[0].mxu0
        %v2070 = vadd.f32 0.0, %v2069
        %2071 = vmatprep.mubr.bf16.mxu0 0
        %2072 = vmatmul.mubr.bf16.gmra.mrb[0].mxu0 %v592
        %v2073 = vpop.f32.mrb[0].mxu0
        %v2074 = vadd.f32 0.0, %v2073
        %v2075 = vpop.f32.mrb[0].mxu0
        %v2076 = vadd.f32 0.0, %v2075
        %v2077 = vpop.f32.mrb[0].mxu0
        %v2078 = vadd.f32 0.0, %v2077
        %v2079 = vpop.f32.mrb[0].mxu0
        %v2080 = vadd.f32 0.0, %v2079
        %2081 = vmatprep.mubr.bf16.mxu0 0
        %2082 = vmatmul.mubr.bf16.gmra.mrb[0].mxu0 %v593
        %v2083 = vpop.f32.mrb[0].mxu0
        %v2084 = vadd.f32 0.0, %v2083
        %v2085 = vpop.f32.mrb[0].mxu0
        %v2086 = vadd.f32 0.0, %v2085
        %v2087 = vpop.f32.mrb[0].mxu0
        %v2088 = vadd.f32 0.0, %v2087
        %v2089 = vpop.f32.mrb[0].mxu0
        %v2090 = vadd.f32 0.0, %v2089
        %2091 = vmatprep.mubr.bf16.mxu0 0
        %2092 = vmatmul.mubr.bf16.gmra.mrb[0].mxu0 %v594
        %v2093 = vpop.f32.mrb[0].mxu0
        %v2094 = vadd.f32 0.0, %v2093
        %v2095 = vpop.f32.mrb[0].mxu0
        %v2096 = vadd.f32 0.0, %v2095
        %v2097 = vpop.f32.mrb[0].mxu0
        %v2098 = vadd.f32 0.0, %v2097
        %v2099 = vpop.f32.mrb[0].mxu0
        %v2100 = vadd.f32 0.0, %v2099
        %2101 = vmatprep.mubr.bf16.mxu0 0
        %2102 = vmatmul.mubr.bf16.gmra.mrb[0].mxu0 %v595
        %v2103 = vpop.f32.mrb[0].mxu0
        %v2104 = vadd.f32 0.0, %v2103
        %v2105 = vpop.f32.mrb[0].mxu0
        %v2106 = vadd.f32 0.0, %v2105
        %v2107 = vpop.f32.mrb[0].mxu0
        %v2108 = vadd.f32 0.0, %v2107
        %v2109 = vpop.f32.mrb[0].mxu0
        %v2110 = vadd.f32 0.0, %v2109
        %2111 = vmatprep.mubr.bf16.mxu0 0
        %2112 = vmatmul.mubr.bf16.gmra.mrb[0].mxu0 %v596
        %v2113 = vpop.f32.mrb[0].mxu0
        %v2114 = vadd.f32 0.0, %v2113
        %v2115 = vpop.f32.mrb[0].mxu0
        %v2116 = vadd.f32 0.0, %v2115
        %v2117 = vpop.f32.mrb[0].mxu0
        %v2118 = vadd.f32 0.0, %v2117
        %v2119 = vpop.f32.mrb[0].mxu0
        %v2120 = vadd.f32 0.0, %v2119
        %2121 = vmatprep.mubr.bf16.mxu0 0
        %2122 = vmatmul.mubr.bf16.gmra.mrb[0].mxu0 %v597
        %v2123 = vpop.f32.mrb[0].mxu0
        %v2124 = vadd.f32 0.0, %v2123
        %v2125 = vpop.f32.mrb[0].mxu0
        %v2126 = vadd.f32 0.0, %v2125
        %v2127 = vpop.f32.mrb[0].mxu0
        %v2128 = vadd.f32 0.0, %v2127
        %v2129 = vpop.f32.mrb[0].mxu0
        %v2130 = vadd.f32 0.0, %v2129
        %2131 = vmatprep.mubr.bf16.mxu0 0
        %2132 = vmatmul.mubr.bf16.gmra.mrb[0].mxu0 %v598
        %v2133 = vpop.f32.mrb[0].mxu0
        %v2134 = vadd.f32 0.0, %v2133
        %v2135 = vpop.f32.mrb[0].mxu0
        %v2136 = vadd.f32 0.0, %v2135
        %v2137 = vpop.f32.mrb[0].mxu0
        %v2138 = vadd.f32 0.0, %v2137
        %v2139 = vpop.f32.mrb[0].mxu0
        %v2140 = vadd.f32 0.0, %v2139
        %2141 = vmatprep.mubr.bf16.mxu0 0
        %2142 = vmatmul.mubr.bf16.gmra.mrb[0].mxu0 %v599
        %v2143 = vpop.f32.mrb[0].mxu0
        %v2144 = vadd.f32 0.0, %v2143
        %v2145 = vpop.f32.mrb[0].mxu0
        %v2146 = vadd.f32 0.0, %v2145
        %v2147 = vpop.f32.mrb[0].mxu0
        %v2148 = vadd.f32 0.0, %v2147
        %v2149 = vpop.f32.mrb[0].mxu0
        %v2150 = vadd.f32 0.0, %v2149
        %2151 = vmatprep.mubr.bf16.mxu0 0
        %2152 = vmatmul.mubr.bf16.gmra.mrb[0].mxu0 %v600
        %v2153 = vpop.f32.mrb[0].mxu0
        %v2154 = vadd.f32 0.0, %v2153
        %v2155 = vpop.f32.mrb[0].mxu0
        %v2156 = vadd.f32 0.0, %v2155
        %v2157 = vpop.f32.mrb[0].mxu0
        %v2158 = vadd.f32 0.0, %v2157
        %v2159 = vpop.f32.mrb[0].mxu0
        %v2160 = vadd.f32 0.0, %v2159
        %2161 = vmatprep.mubr.bf16.mxu0 0
        %2162 = vmatmul.mubr.bf16.gmra.mrb[0].mxu0 %v601
        %v2163 = vpop.f32.mrb[0].mxu0
        %v2164 = vadd.f32 0.0, %v2163
        %v2165 = vpop.f32.mrb[0].mxu0
        %v2166 = vadd.f32 0.0, %v2165
        %v2167 = vpop.f32.mrb[0].mxu0
        %v2168 = vadd.f32 0.0, %v2167
        %v2169 = vpop.f32.mrb[0].mxu0
        %v2170 = vadd.f32 0.0, %v2169
        %2171 = vmatprep.mubr.bf16.mxu0 0
        %2172 = vmatmul.mubr.bf16.gmra.mrb[0].mxu0 %v602
        %v2173 = vpop.f32.mrb[0].mxu0
        %v2174 = vadd.f32 0.0, %v2173
        %v2175 = vpop.f32.mrb[0].mxu0
        %v2176 = vadd.f32 0.0, %v2175
        %v2177 = vpop.f32.mrb[0].mxu0
        %v2178 = vadd.f32 0.0, %v2177
        %v2179 = vpop.f32.mrb[0].mxu0
        %v2180 = vadd.f32 0.0, %v2179
        %2181 = vmatprep.mubr.bf16.mxu0 0
        %2182 = vmatmul.mubr.bf16.gmra.mrb[0].mxu0 %v603
        %v2183 = vpop.f32.mrb[0].mxu0
        %v2184 = vadd.f32 0.0, %v2183
        %v2185 = vpop.f32.mrb[0].mxu0
        %v2186 = vadd.f32 0.0, %v2185
        %v2187 = vpop.f32.mrb[0].mxu0
        %v2188 = vadd.f32 0.0, %v2187
        %v2189 = vpop.f32.mrb[0].mxu0
        %v2190 = vadd.f32 0.0, %v2189
        %2191 = vmatprep.mubr.bf16.mxu0 0
        %2192 = vmatmul.mubr.bf16.gmra.mrb[0].mxu0 %v604
        %v2193 = vpop.f32.mrb[0].mxu0
        %v2194 = vadd.f32 0.0, %v2193
        %v2195 = vpop.f32.mrb[0].mxu0
        %v2196 = vadd.f32 0.0, %v2195
        %v2197 = vpop.f32.mrb[0].mxu0
        %v2198 = vadd.f32 0.0, %v2197
        %v2199 = vpop.f32.mrb[0].mxu0
        %v2200 = vadd.f32 0.0, %v2199
        %2201 = vmatprep.mubr.bf16.mxu0 0
        %2202 = vmatmul.mubr.bf16.gmra.mrb[0].mxu0 %v605
        %v2203 = vpop.f32.mrb[0].mxu0
        %v2204 = vadd.f32 0.0, %v2203
        %v2205 = vpop.f32.mrb[0].mxu0
        %v2206 = vadd.f32 0.0, %v2205
        %v2207 = vpop.f32.mrb[0].mxu0
        %v2208 = vadd.f32 0.0, %v2207
        %v2209 = vpop.f32.mrb[0].mxu0
        %v2210 = vadd.f32 0.0, %v2209
        %2211 = vmatprep.mubr.bf16.mxu0 0
        %2212 = vmatmul.mubr.bf16.gmra.mrb[0].mxu0 %v606
        %v2213 = vpop.f32.mrb[0].mxu0
        %v2214 = vadd.f32 0.0, %v2213
        %v2215 = vpop.f32.mrb[0].mxu0
        %v2216 = vadd.f32 0.0, %v2215
        %v2217 = vpop.f32.mrb[0].mxu0
        %v2218 = vadd.f32 0.0, %v2217
        %v2219 = vpop.f32.mrb[0].mxu0
        %v2220 = vadd.f32 0.0, %v2219
        %2221 = vmatprep.mubr.bf16.mxu0 0
        %2222 = vmatmul.mubr.bf16.gmra.mrb[0].mxu0 %v607
        %v2223 = vpop.f32.mrb[0].mxu0
        %v2224 = vadd.f32 0.0, %v2223
        %v2225 = vpop.f32.mrb[0].mxu0
        %v2226 = vadd.f32 0.0, %v2225
        %v2227 = vpop.f32.mrb[0].mxu0
        %v2228 = vadd.f32 0.0, %v2227
        %v2229 = vpop.f32.mrb[0].mxu0
        %v2230 = vadd.f32 0.0, %v2229
        %2231 = vmatprep.mubr.bf16.mxu0 0
        %2232 = vmatmul.mubr.bf16.gmra.mrb[0].mxu0 %v608
        %v2233 = vpop.f32.mrb[0].mxu0
        %v2234 = vadd.f32 0.0, %v2233
        %v2235 = vpop.f32.mrb[0].mxu0
        %v2236 = vadd.f32 0.0, %v2235
        %v2237 = vpop.f32.mrb[0].mxu0
        %v2238 = vadd.f32 0.0, %v2237
        %v2239 = vpop.f32.mrb[0].mxu0
        %v2240 = vadd.f32 0.0, %v2239
        %2241 = vmatprep.mubr.bf16.mxu0 0
        %2242 = vmatmul.mubr.bf16.gmra.mrb[0].mxu0 %v609
        %v2243 = vpop.f32.mrb[0].mxu0
        %v2244 = vadd.f32 0.0, %v2243
        %v2245 = vpop.f32.mrb[0].mxu0
        %v2246 = vadd.f32 0.0, %v2245
        %v2247 = vpop.f32.mrb[0].mxu0
        %v2248 = vadd.f32 0.0, %v2247
        %v2249 = vpop.f32.mrb[0].mxu0
        %v2250 = vadd.f32 0.0, %v2249
        %2251 = vmatprep.mubr.bf16.mxu0 0
        %2252 = vmatmul.mubr.bf16.gmra.mrb[0].mxu0 %v610
        %v2253 = vpop.f32.mrb[0].mxu0
        %v2254 = vadd.f32 0.0, %v2253
        %v2255 = vpop.f32.mrb[0].mxu0
        %v2256 = vadd.f32 0.0, %v2255
        %v2257 = vpop.f32.mrb[0].mxu0
        %v2258 = vadd.f32 0.0, %v2257
        %v2259 = vpop.f32.mrb[0].mxu0
        %v2260 = vadd.f32 0.0, %v2259
        %2261 = vdwg.mxu0
        %2262 = vmatprep.subr.bf16.mxu0 %v986
        %2263 = vmatpush1.bf16.msra.mxu0 %v985
        %2264 = vmatprep.subr.bf16.mxu0 %v1000
        %2265 = vmatpush1.bf16.msra.mxu0 %v999
        %2266 = vmatprep.subr.bf16.mxu0 %v1014
        %2267 = vmatpush1.bf16.msra.mxu0 %v1013
        %2268 = vmatprep.subr.bf16.mxu0 %v1028
        %2269 = vmatpush1.bf16.msra.mxu0 %v1027
        %2270 = vmatprep.subr.bf16.mxu0 %v1042
        %2271 = vmatpush1.bf16.msra.mxu0 %v1041
        %2272 = vmatprep.subr.bf16.mxu0 %v1056
        %2273 = vmatpush1.bf16.msra.mxu0 %v1055
        %2274 = vmatprep.subr.bf16.mxu0 %v1070
        %2275 = vmatpush1.bf16.msra.mxu0 %v1069
        %2276 = vmatprep.subr.bf16.mxu0 %v1084
        %2277 = vmatpush1.bf16.msra.mxu0 %v1083
        %2278 = vmatprep.subr.bf16.mxu0 0
        %2279 = vmatpush1.bf16.msra.mxu0 0
        %2280 = vmatprep.subr.bf16.mxu0 0
        %2281 = vmatpush1.bf16.msra.mxu0 0
        %2282 = vmatprep.subr.bf16.mxu0 0
        %2283 = vmatpush1.bf16.msra.mxu0 0
        %2284 = vmatprep.subr.bf16.mxu0 0
        %2285 = vmatpush1.bf16.msra.mxu0 0
        %2286 = vmatprep.subr.bf16.mxu0 0
        %2287 = vmatpush1.bf16.msra.mxu0 0
        %2288 = vmatprep.subr.bf16.mxu0 0
        %2289 = vmatpush1.bf16.msra.mxu0 0
        %2290 = vmatprep.subr.bf16.mxu0 0
        %2291 = vmatpush1.bf16.msra.mxu0 0
        %2292 = vmatprep.subr.bf16.mxu0 0
        %2293 = vmatpush1.bf16.msra.mxu0 0
        %2294 = vmatprep.mubr.bf16.mxu0 0
        %2295 = vmatmul.mubr.bf16.gmra.mrb[0].mxu0 %v579
        %v2296 = vpop.f32.mrb[0].mxu0
        %v2297 = vadd.f32 0.0, %v2296
        %v2298 = vpop.f32.mrb[0].mxu0
        %v2299 = vadd.f32 0.0, %v2298
        %v2300 = vpop.f32.mrb[0].mxu0
        %v2301 = vadd.f32 0.0, %v2300
        %v2302 = vpop.f32.mrb[0].mxu0
        %v2303 = vadd.f32 0.0, %v2302
        %2304 = vmatprep.mubr.bf16.mxu0 0
        %2305 = vmatmul.mubr.bf16.gmra.mrb[0].mxu0 %v580
        %v2306 = vpop.f32.mrb[0].mxu0
        %v2307 = vadd.f32 0.0, %v2306
        %v2308 = vpop.f32.mrb[0].mxu0
        %v2309 = vadd.f32 0.0, %v2308
        %v2310 = vpop.f32.mrb[0].mxu0
        %v2311 = vadd.f32 0.0, %v2310
        %v2312 = vpop.f32.mrb[0].mxu0
        %v2313 = vadd.f32 0.0, %v2312
        %2314 = vmatprep.mubr.bf16.mxu0 0
        %2315 = vmatmul.mubr.bf16.gmra.mrb[0].mxu0 %v581
        %v2316 = vpop.f32.mrb[0].mxu0
        %v2317 = vadd.f32 0.0, %v2316
        %v2318 = vpop.f32.mrb[0].mxu0
        %v2319 = vadd.f32 0.0, %v2318
        %v2320 = vpop.f32.mrb[0].mxu0
        %v2321 = vadd.f32 0.0, %v2320
        %v2322 = vpop.f32.mrb[0].mxu0
        %v2323 = vadd.f32 0.0, %v2322
        %2324 = vmatprep.mubr.bf16.mxu0 0
        %2325 = vmatmul.mubr.bf16.gmra.mrb[0].mxu0 %v582
        %v2326 = vpop.f32.mrb[0].mxu0
        %v2327 = vadd.f32 0.0, %v2326
        %v2328 = vpop.f32.mrb[0].mxu0
        %v2329 = vadd.f32 0.0, %v2328
        %v2330 = vpop.f32.mrb[0].mxu0
        %v2331 = vadd.f32 0.0, %v2330
        %v2332 = vpop.f32.mrb[0].mxu0
        %v2333 = vadd.f32 0.0, %v2332
        %2334 = vmatprep.mubr.bf16.mxu0 0
        %2335 = vmatmul.mubr.bf16.gmra.mrb[0].mxu0 %v583
        %v2336 = vpop.f32.mrb[0].mxu0
        %v2337 = vadd.f32 0.0, %v2336
        %v2338 = vpop.f32.mrb[0].mxu0
        %v2339 = vadd.f32 0.0, %v2338
        %v2340 = vpop.f32.mrb[0].mxu0
        %v2341 = vadd.f32 0.0, %v2340
        %v2342 = vpop.f32.mrb[0].mxu0
        %v2343 = vadd.f32 0.0, %v2342
        %2344 = vmatprep.mubr.bf16.mxu0 0
        %2345 = vmatmul.mubr.bf16.gmra.mrb[0].mxu0 %v584
        %v2346 = vpop.f32.mrb[0].mxu0
        %v2347 = vadd.f32 0.0, %v2346
        %v2348 = vpop.f32.mrb[0].mxu0
        %v2349 = vadd.f32 0.0, %v2348
        %v2350 = vpop.f32.mrb[0].mxu0
        %v2351 = vadd.f32 0.0, %v2350
        %v2352 = vpop.f32.mrb[0].mxu0
        %v2353 = vadd.f32 0.0, %v2352
        %2354 = vmatprep.mubr.bf16.mxu0 0
        %2355 = vmatmul.mubr.bf16.gmra.mrb[0].mxu0 %v585
        %v2356 = vpop.f32.mrb[0].mxu0
        %v2357 = vadd.f32 0.0, %v2356
        %v2358 = vpop.f32.mrb[0].mxu0
        %v2359 = vadd.f32 0.0, %v2358
        %v2360 = vpop.f32.mrb[0].mxu0
        %v2361 = vadd.f32 0.0, %v2360
        %v2362 = vpop.f32.mrb[0].mxu0
        %v2363 = vadd.f32 0.0, %v2362
        %2364 = vmatprep.mubr.bf16.mxu0 0
        %2365 = vmatmul.mubr.bf16.gmra.mrb[0].mxu0 %v586
        %v2366 = vpop.f32.mrb[0].mxu0
        %v2367 = vadd.f32 0.0, %v2366
        %v2368 = vpop.f32.mrb[0].mxu0
        %v2369 = vadd.f32 0.0, %v2368
        %v2370 = vpop.f32.mrb[0].mxu0
        %v2371 = vadd.f32 0.0, %v2370
        %v2372 = vpop.f32.mrb[0].mxu0
        %v2373 = vadd.f32 0.0, %v2372
        %2374 = vmatprep.mubr.bf16.mxu0 0
        %2375 = vmatmul.mubr.bf16.gmra.mrb[0].mxu0 %v587
        %v2376 = vpop.f32.mrb[0].mxu0
        %v2377 = vadd.f32 0.0, %v2376
        %v2378 = vpop.f32.mrb[0].mxu0
        %v2379 = vadd.f32 0.0, %v2378
        %v2380 = vpop.f32.mrb[0].mxu0
        %v2381 = vadd.f32 0.0, %v2380
        %v2382 = vpop.f32.mrb[0].mxu0
        %v2383 = vadd.f32 0.0, %v2382
        %2384 = vmatprep.mubr.bf16.mxu0 0
        %2385 = vmatmul.mubr.bf16.gmra.mrb[0].mxu0 %v588
        %v2386 = vpop.f32.mrb[0].mxu0
        %v2387 = vadd.f32 0.0, %v2386
        %v2388 = vpop.f32.mrb[0].mxu0
        %v2389 = vadd.f32 0.0, %v2388
        %v2390 = vpop.f32.mrb[0].mxu0
        %v2391 = vadd.f32 0.0, %v2390
        %v2392 = vpop.f32.mrb[0].mxu0
        %v2393 = vadd.f32 0.0, %v2392
        %2394 = vmatprep.mubr.bf16.mxu0 0
        %2395 = vmatmul.mubr.bf16.gmra.mrb[0].mxu0 %v589
        %v2396 = vpop.f32.mrb[0].mxu0
        %v2397 = vadd.f32 0.0, %v2396
        %v2398 = vpop.f32.mrb[0].mxu0
        %v2399 = vadd.f32 0.0, %v2398
        %v2400 = vpop.f32.mrb[0].mxu0
        %v2401 = vadd.f32 0.0, %v2400
        %v2402 = vpop.f32.mrb[0].mxu0
        %v2403 = vadd.f32 0.0, %v2402
        %2404 = vmatprep.mubr.bf16.mxu0 0
        %2405 = vmatmul.mubr.bf16.gmra.mrb[0].mxu0 %v590
        %v2406 = vpop.f32.mrb[0].mxu0
        %v2407 = vadd.f32 0.0, %v2406
        %v2408 = vpop.f32.mrb[0].mxu0
        %v2409 = vadd.f32 0.0, %v2408
        %v2410 = vpop.f32.mrb[0].mxu0
        %v2411 = vadd.f32 0.0, %v2410
        %v2412 = vpop.f32.mrb[0].mxu0
        %v2413 = vadd.f32 0.0, %v2412
        %2414 = vmatprep.mubr.bf16.mxu0 0
        %2415 = vmatmul.mubr.bf16.gmra.mrb[0].mxu0 %v591
        %v2416 = vpop.f32.mrb[0].mxu0
        %v2417 = vadd.f32 0.0, %v2416
        %v2418 = vpop.f32.mrb[0].mxu0
        %v2419 = vadd.f32 0.0, %v2418
        %v2420 = vpop.f32.mrb[0].mxu0
        %v2421 = vadd.f32 0.0, %v2420
        %v2422 = vpop.f32.mrb[0].mxu0
        %v2423 = vadd.f32 0.0, %v2422
        %2424 = vmatprep.mubr.bf16.mxu0 0
        %2425 = vmatmul.mubr.bf16.gmra.mrb[0].mxu0 %v592
        %v2426 = vpop.f32.mrb[0].mxu0
        %v2427 = vadd.f32 0.0, %v2426
        %v2428 = vpop.f32.mrb[0].mxu0
        %v2429 = vadd.f32 0.0, %v2428
        %v2430 = vpop.f32.mrb[0].mxu0
        %v2431 = vadd.f32 0.0, %v2430
        %v2432 = vpop.f32.mrb[0].mxu0
        %v2433 = vadd.f32 0.0, %v2432
        %2434 = vmatprep.mubr.bf16.mxu0 0
        %2435 = vmatmul.mubr.bf16.gmra.mrb[0].mxu0 %v593
        %v2436 = vpop.f32.mrb[0].mxu0
        %v2437 = vadd.f32 0.0, %v2436
        %v2438 = vpop.f32.mrb[0].mxu0
        %v2439 = vadd.f32 0.0, %v2438
        %v2440 = vpop.f32.mrb[0].mxu0
        %v2441 = vadd.f32 0.0, %v2440
        %v2442 = vpop.f32.mrb[0].mxu0
        %v2443 = vadd.f32 0.0, %v2442
        %2444 = vmatprep.mubr.bf16.mxu0 0
        %2445 = vmatmul.mubr.bf16.gmra.mrb[0].mxu0 %v594
        %v2446 = vpop.f32.mrb[0].mxu0
        %v2447 = vadd.f32 0.0, %v2446
        %v2448 = vpop.f32.mrb[0].mxu0
        %v2449 = vadd.f32 0.0, %v2448
        %v2450 = vpop.f32.mrb[0].mxu0
        %v2451 = vadd.f32 0.0, %v2450
        %v2452 = vpop.f32.mrb[0].mxu0
        %v2453 = vadd.f32 0.0, %v2452
        %2454 = vmatprep.mubr.bf16.mxu0 0
        %2455 = vmatmul.mubr.bf16.gmra.mrb[0].mxu0 %v595
        %v2456 = vpop.f32.mrb[0].mxu0
        %v2457 = vadd.f32 0.0, %v2456
        %v2458 = vpop.f32.mrb[0].mxu0
        %v2459 = vadd.f32 0.0, %v2458
        %v2460 = vpop.f32.mrb[0].mxu0
        %v2461 = vadd.f32 0.0, %v2460
        %v2462 = vpop.f32.mrb[0].mxu0
        %v2463 = vadd.f32 0.0, %v2462
        %2464 = vmatprep.mubr.bf16.mxu0 0
        %2465 = vmatmul.mubr.bf16.gmra.mrb[0].mxu0 %v596
        %v2466 = vpop.f32.mrb[0].mxu0
        %v2467 = vadd.f32 0.0, %v2466
        %v2468 = vpop.f32.mrb[0].mxu0
        %v2469 = vadd.f32 0.0, %v2468
        %v2470 = vpop.f32.mrb[0].mxu0
        %v2471 = vadd.f32 0.0, %v2470
        %v2472 = vpop.f32.mrb[0].mxu0
        %v2473 = vadd.f32 0.0, %v2472
        %2474 = vmatprep.mubr.bf16.mxu0 0
        %2475 = vmatmul.mubr.bf16.gmra.mrb[0].mxu0 %v597
        %v2476 = vpop.f32.mrb[0].mxu0
        %v2477 = vadd.f32 0.0, %v2476
        %v2478 = vpop.f32.mrb[0].mxu0
        %v2479 = vadd.f32 0.0, %v2478
        %v2480 = vpop.f32.mrb[0].mxu0
        %v2481 = vadd.f32 0.0, %v2480
        %v2482 = vpop.f32.mrb[0].mxu0
        %v2483 = vadd.f32 0.0, %v2482
        %2484 = vmatprep.mubr.bf16.mxu0 0
        %2485 = vmatmul.mubr.bf16.gmra.mrb[0].mxu0 %v598
        %v2486 = vpop.f32.mrb[0].mxu0
        %v2487 = vadd.f32 0.0, %v2486
        %v2488 = vpop.f32.mrb[0].mxu0
        %v2489 = vadd.f32 0.0, %v2488
        %v2490 = vpop.f32.mrb[0].mxu0
        %v2491 = vadd.f32 0.0, %v2490
        %v2492 = vpop.f32.mrb[0].mxu0
        %v2493 = vadd.f32 0.0, %v2492
        %2494 = vmatprep.mubr.bf16.mxu0 0
        %2495 = vmatmul.mubr.bf16.gmra.mrb[0].mxu0 %v599
        %v2496 = vpop.f32.mrb[0].mxu0
        %v2497 = vadd.f32 0.0, %v2496
        %v2498 = vpop.f32.mrb[0].mxu0
        %v2499 = vadd.f32 0.0, %v2498
        %v2500 = vpop.f32.mrb[0].mxu0
        %v2501 = vadd.f32 0.0, %v2500
        %v2502 = vpop.f32.mrb[0].mxu0
        %v2503 = vadd.f32 0.0, %v2502
        %2504 = vmatprep.mubr.bf16.mxu0 0
        %2505 = vmatmul.mubr.bf16.gmra.mrb[0].mxu0 %v600
        %v2506 = vpop.f32.mrb[0].mxu0
        %v2507 = vadd.f32 0.0, %v2506
        %v2508 = vpop.f32.mrb[0].mxu0
        %v2509 = vadd.f32 0.0, %v2508
        %v2510 = vpop.f32.mrb[0].mxu0
        %v2511 = vadd.f32 0.0, %v2510
        %v2512 = vpop.f32.mrb[0].mxu0
        %v2513 = vadd.f32 0.0, %v2512
        %2514 = vmatprep.mubr.bf16.mxu0 0
        %2515 = vmatmul.mubr.bf16.gmra.mrb[0].mxu0 %v601
        %v2516 = vpop.f32.mrb[0].mxu0
        %v2517 = vadd.f32 0.0, %v2516
        %v2518 = vpop.f32.mrb[0].mxu0
        %v2519 = vadd.f32 0.0, %v2518
        %v2520 = vpop.f32.mrb[0].mxu0
        %v2521 = vadd.f32 0.0, %v2520
        %v2522 = vpop.f32.mrb[0].mxu0
        %v2523 = vadd.f32 0.0, %v2522
        %2524 = vmatprep.mubr.bf16.mxu0 0
        %2525 = vmatmul.mubr.bf16.gmra.mrb[0].mxu0 %v602
        %v2526 = vpop.f32.mrb[0].mxu0
        %v2527 = vadd.f32 0.0, %v2526
        %v2528 = vpop.f32.mrb[0].mxu0
        %v2529 = vadd.f32 0.0, %v2528
        %v2530 = vpop.f32.mrb[0].mxu0
        %v2531 = vadd.f32 0.0, %v2530
        %v2532 = vpop.f32.mrb[0].mxu0
        %v2533 = vadd.f32 0.0, %v2532
        %2534 = vmatprep.mubr.bf16.mxu0 0
        %2535 = vmatmul.mubr.bf16.gmra.mrb[0].mxu0 %v603
        %v2536 = vpop.f32.mrb[0].mxu0
        %v2537 = vadd.f32 0.0, %v2536
        %v2538 = vpop.f32.mrb[0].mxu0
        %v2539 = vadd.f32 0.0, %v2538
        %v2540 = vpop.f32.mrb[0].mxu0
        %v2541 = vadd.f32 0.0, %v2540
        %v2542 = vpop.f32.mrb[0].mxu0
        %v2543 = vadd.f32 0.0, %v2542
        %2544 = vmatprep.mubr.bf16.mxu0 0
        %2545 = vmatmul.mubr.bf16.gmra.mrb[0].mxu0 %v604
        %v2546 = vpop.f32.mrb[0].mxu0
        %v2547 = vadd.f32 0.0, %v2546
        %v2548 = vpop.f32.mrb[0].mxu0
        %v2549 = vadd.f32 0.0, %v2548
        %v2550 = vpop.f32.mrb[0].mxu0
        %v2551 = vadd.f32 0.0, %v2550
        %v2552 = vpop.f32.mrb[0].mxu0
        %v2553 = vadd.f32 0.0, %v2552
        %2554 = vmatprep.mubr.bf16.mxu0 0
        %2555 = vmatmul.mubr.bf16.gmra.mrb[0].mxu0 %v605
        %v2556 = vpop.f32.mrb[0].mxu0
        %v2557 = vadd.f32 0.0, %v2556
        %v2558 = vpop.f32.mrb[0].mxu0
        %v2559 = vadd.f32 0.0, %v2558
        %v2560 = vpop.f32.mrb[0].mxu0
        %v2561 = vadd.f32 0.0, %v2560
        %v2562 = vpop.f32.mrb[0].mxu0
        %v2563 = vadd.f32 0.0, %v2562
        %2564 = vmatprep.mubr.bf16.mxu0 0
        %2565 = vmatmul.mubr.bf16.gmra.mrb[0].mxu0 %v606
        %v2566 = vpop.f32.mrb[0].mxu0
        %v2567 = vadd.f32 0.0, %v2566
        %v2568 = vpop.f32.mrb[0].mxu0
        %v2569 = vadd.f32 0.0, %v2568
        %v2570 = vpop.f32.mrb[0].mxu0
        %v2571 = vadd.f32 0.0, %v2570
        %v2572 = vpop.f32.mrb[0].mxu0
        %v2573 = vadd.f32 0.0, %v2572
        %2574 = vmatprep.mubr.bf16.mxu0 0
        %2575 = vmatmul.mubr.bf16.gmra.mrb[0].mxu0 %v607
        %v2576 = vpop.f32.mrb[0].mxu0
        %v2577 = vadd.f32 0.0, %v2576
        %v2578 = vpop.f32.mrb[0].mxu0
        %v2579 = vadd.f32 0.0, %v2578
        %v2580 = vpop.f32.mrb[0].mxu0
        %v2581 = vadd.f32 0.0, %v2580
        %v2582 = vpop.f32.mrb[0].mxu0
        %v2583 = vadd.f32 0.0, %v2582
        %2584 = vmatprep.mubr.bf16.mxu0 0
        %2585 = vmatmul.mubr.bf16.gmra.mrb[0].mxu0 %v608
        %v2586 = vpop.f32.mrb[0].mxu0
        %v2587 = vadd.f32 0.0, %v2586
        %v2588 = vpop.f32.mrb[0].mxu0
        %v2589 = vadd.f32 0.0, %v2588
        %v2590 = vpop.f32.mrb[0].mxu0
        %v2591 = vadd.f32 0.0, %v2590
        %v2592 = vpop.f32.mrb[0].mxu0
        %v2593 = vadd.f32 0.0, %v2592
        %2594 = vmatprep.mubr.bf16.mxu0 0
        %2595 = vmatmul.mubr.bf16.gmra.mrb[0].mxu0 %v609
        %v2596 = vpop.f32.mrb[0].mxu0
        %v2597 = vadd.f32 0.0, %v2596
        %v2598 = vpop.f32.mrb[0].mxu0
        %v2599 = vadd.f32 0.0, %v2598
        %v2600 = vpop.f32.mrb[0].mxu0
        %v2601 = vadd.f32 0.0, %v2600
        %v2602 = vpop.f32.mrb[0].mxu0
        %v2603 = vadd.f32 0.0, %v2602
        %2604 = vmatprep.mubr.bf16.mxu0 0
        %2605 = vmatmul.mubr.bf16.gmra.mrb[0].mxu0 %v610
        %v2606 = vpop.f32.mrb[0].mxu0
        %v2607 = vadd.f32 0.0, %v2606
        %v2608 = vpop.f32.mrb[0].mxu0
        %v2609 = vadd.f32 0.0, %v2608
        %v2610 = vpop.f32.mrb[0].mxu0
        %v2611 = vadd.f32 0.0, %v2610
        %v2612 = vpop.f32.mrb[0].mxu0
        %v2613 = vadd.f32 0.0, %v2612
        %2614 = vdwg.mxu0
        %2615 = vmatprep.subr.bf16.mxu0 %v988
        %2616 = vmatpush1.bf16.msra.mxu0 %v987
        %2617 = vmatprep.subr.bf16.mxu0 %v1002
        %2618 = vmatpush1.bf16.msra.mxu0 %v1001
        %2619 = vmatprep.subr.bf16.mxu0 %v1016
        %2620 = vmatpush1.bf16.msra.mxu0 %v1015
        %2621 = vmatprep.subr.bf16.mxu0 %v1030
        %2622 = vmatpush1.bf16.msra.mxu0 %v1029
        %2623 = vmatprep.subr.bf16.mxu0 %v1044
        %2624 = vmatpush1.bf16.msra.mxu0 %v1043
        %2625 = vmatprep.subr.bf16.mxu0 %v1058
        %2626 = vmatpush1.bf16.msra.mxu0 %v1057
        %2627 = vmatprep.subr.bf16.mxu0 %v1072
        %2628 = vmatpush1.bf16.msra.mxu0 %v1071
        %2629 = vmatprep.subr.bf16.mxu0 %v1086
        %2630 = vmatpush1.bf16.msra.mxu0 %v1085
        %2631 = vmatprep.subr.bf16.mxu0 0
        %2632 = vmatpush1.bf16.msra.mxu0 0
        %2633 = vmatprep.subr.bf16.mxu0 0
        %2634 = vmatpush1.bf16.msra.mxu0 0
        %2635 = vmatprep.subr.bf16.mxu0 0
        %2636 = vmatpush1.bf16.msra.mxu0 0
        %2637 = vmatprep.subr.bf16.mxu0 0
        %2638 = vmatpush1.bf16.msra.mxu0 0
        %2639 = vmatprep.subr.bf16.mxu0 0
        %2640 = vmatpush1.bf16.msra.mxu0 0
        %2641 = vmatprep.subr.bf16.mxu0 0
        %2642 = vmatpush1.bf16.msra.mxu0 0
        %2643 = vmatprep.subr.bf16.mxu0 0
        %2644 = vmatpush1.bf16.msra.mxu0 0
        %2645 = vmatprep.subr.bf16.mxu0 0
        %2646 = vmatpush1.bf16.msra.mxu0 0
        %2647 = vmatprep.mubr.bf16.mxu0 0
        %2648 = vmatmul.mubr.bf16.gmra.mrb[0].mxu0 %v579
        %v2649 = vpop.f32.mrb[0].mxu0
        %v2650 = vadd.f32 0.0, %v2649
        %v2651 = vpop.f32.mrb[0].mxu0
        %v2652 = vadd.f32 0.0, %v2651
        %v2653 = vpop.f32.mrb[0].mxu0
        %v2654 = vadd.f32 0.0, %v2653
        %v2655 = vpop.f32.mrb[0].mxu0
        %v2656 = vadd.f32 0.0, %v2655
        %2657 = vmatprep.mubr.bf16.mxu0 0
        %2658 = vmatmul.mubr.bf16.gmra.mrb[0].mxu0 %v580
        %v2659 = vpop.f32.mrb[0].mxu0
        %v2660 = vadd.f32 0.0, %v2659
        %v2661 = vpop.f32.mrb[0].mxu0
        %v2662 = vadd.f32 0.0, %v2661
        %v2663 = vpop.f32.mrb[0].mxu0
        %v2664 = vadd.f32 0.0, %v2663
        %v2665 = vpop.f32.mrb[0].mxu0
        %v2666 = vadd.f32 0.0, %v2665
        %2667 = vmatprep.mubr.bf16.mxu0 0
        %2668 = vmatmul.mubr.bf16.gmra.mrb[0].mxu0 %v581
        %v2669 = vpop.f32.mrb[0].mxu0
        %v2670 = vadd.f32 0.0, %v2669
        %v2671 = vpop.f32.mrb[0].mxu0
        %v2672 = vadd.f32 0.0, %v2671
        %v2673 = vpop.f32.mrb[0].mxu0
        %v2674 = vadd.f32 0.0, %v2673
        %v2675 = vpop.f32.mrb[0].mxu0
        %v2676 = vadd.f32 0.0, %v2675
        %2677 = vmatprep.mubr.bf16.mxu0 0
        %2678 = vmatmul.mubr.bf16.gmra.mrb[0].mxu0 %v582
        %v2679 = vpop.f32.mrb[0].mxu0
        %v2680 = vadd.f32 0.0, %v2679
        %v2681 = vpop.f32.mrb[0].mxu0
        %v2682 = vadd.f32 0.0, %v2681
        %v2683 = vpop.f32.mrb[0].mxu0
        %v2684 = vadd.f32 0.0, %v2683
        %v2685 = vpop.f32.mrb[0].mxu0
        %v2686 = vadd.f32 0.0, %v2685
        %2687 = vmatprep.mubr.bf16.mxu0 0
        %2688 = vmatmul.mubr.bf16.gmra.mrb[0].mxu0 %v583
        %v2689 = vpop.f32.mrb[0].mxu0
        %v2690 = vadd.f32 0.0, %v2689
        %v2691 = vpop.f32.mrb[0].mxu0
        %v2692 = vadd.f32 0.0, %v2691
        %v2693 = vpop.f32.mrb[0].mxu0
        %v2694 = vadd.f32 0.0, %v2693
        %v2695 = vpop.f32.mrb[0].mxu0
        %v2696 = vadd.f32 0.0, %v2695
        %2697 = vmatprep.mubr.bf16.mxu0 0
        %2698 = vmatmul.mubr.bf16.gmra.mrb[0].mxu0 %v584
        %v2699 = vpop.f32.mrb[0].mxu0
        %v2700 = vadd.f32 0.0, %v2699
        %v2701 = vpop.f32.mrb[0].mxu0
        %v2702 = vadd.f32 0.0, %v2701
        %v2703 = vpop.f32.mrb[0].mxu0
        %v2704 = vadd.f32 0.0, %v2703
        %v2705 = vpop.f32.mrb[0].mxu0
        %v2706 = vadd.f32 0.0, %v2705
        %2707 = vmatprep.mubr.bf16.mxu0 0
        %2708 = vmatmul.mubr.bf16.gmra.mrb[0].mxu0 %v585
        %v2709 = vpop.f32.mrb[0].mxu0
        %v2710 = vadd.f32 0.0, %v2709
        %v2711 = vpop.f32.mrb[0].mxu0
        %v2712 = vadd.f32 0.0, %v2711
        %v2713 = vpop.f32.mrb[0].mxu0
        %v2714 = vadd.f32 0.0, %v2713
        %v2715 = vpop.f32.mrb[0].mxu0
        %v2716 = vadd.f32 0.0, %v2715
        %2717 = vmatprep.mubr.bf16.mxu0 0
        %2718 = vmatmul.mubr.bf16.gmra.mrb[0].mxu0 %v586
        %v2719 = vpop.f32.mrb[0].mxu0
        %v2720 = vadd.f32 0.0, %v2719
        %v2721 = vpop.f32.mrb[0].mxu0
        %v2722 = vadd.f32 0.0, %v2721
        %v2723 = vpop.f32.mrb[0].mxu0
        %v2724 = vadd.f32 0.0, %v2723
        %v2725 = vpop.f32.mrb[0].mxu0
        %v2726 = vadd.f32 0.0, %v2725
        %2727 = vmatprep.mubr.bf16.mxu0 0
        %2728 = vmatmul.mubr.bf16.gmra.mrb[0].mxu0 %v587
        %v2729 = vpop.f32.mrb[0].mxu0
        %v2730 = vadd.f32 0.0, %v2729
        %v2731 = vpop.f32.mrb[0].mxu0
        %v2732 = vadd.f32 0.0, %v2731
        %v2733 = vpop.f32.mrb[0].mxu0
        %v2734 = vadd.f32 0.0, %v2733
        %v2735 = vpop.f32.mrb[0].mxu0
        %v2736 = vadd.f32 0.0, %v2735
        %2737 = vmatprep.mubr.bf16.mxu0 0
        %2738 = vmatmul.mubr.bf16.gmra.mrb[0].mxu0 %v588
        %v2739 = vpop.f32.mrb[0].mxu0
        %v2740 = vadd.f32 0.0, %v2739
        %v2741 = vpop.f32.mrb[0].mxu0
        %v2742 = vadd.f32 0.0, %v2741
        %v2743 = vpop.f32.mrb[0].mxu0
        %v2744 = vadd.f32 0.0, %v2743
        %v2745 = vpop.f32.mrb[0].mxu0
        %v2746 = vadd.f32 0.0, %v2745
        %2747 = vmatprep.mubr.bf16.mxu0 0
        %2748 = vmatmul.mubr.bf16.gmra.mrb[0].mxu0 %v589
        %v2749 = vpop.f32.mrb[0].mxu0
        %v2750 = vadd.f32 0.0, %v2749
        %v2751 = vpop.f32.mrb[0].mxu0
        %v2752 = vadd.f32 0.0, %v2751
        %v2753 = vpop.f32.mrb[0].mxu0
        %v2754 = vadd.f32 0.0, %v2753
        %v2755 = vpop.f32.mrb[0].mxu0
        %v2756 = vadd.f32 0.0, %v2755
        %2757 = vmatprep.mubr.bf16.mxu0 0
        %2758 = vmatmul.mubr.bf16.gmra.mrb[0].mxu0 %v590
        %v2759 = vpop.f32.mrb[0].mxu0
        %v2760 = vadd.f32 0.0, %v2759
        %v2761 = vpop.f32.mrb[0].mxu0
        %v2762 = vadd.f32 0.0, %v2761
        %v2763 = vpop.f32.mrb[0].mxu0
        %v2764 = vadd.f32 0.0, %v2763
        %v2765 = vpop.f32.mrb[0].mxu0
        %v2766 = vadd.f32 0.0, %v2765
        %2767 = vmatprep.mubr.bf16.mxu0 0
        %2768 = vmatmul.mubr.bf16.gmra.mrb[0].mxu0 %v591
        %v2769 = vpop.f32.mrb[0].mxu0
        %v2770 = vadd.f32 0.0, %v2769
        %v2771 = vpop.f32.mrb[0].mxu0
        %v2772 = vadd.f32 0.0, %v2771
        %v2773 = vpop.f32.mrb[0].mxu0
        %v2774 = vadd.f32 0.0, %v2773
        %v2775 = vpop.f32.mrb[0].mxu0
        %v2776 = vadd.f32 0.0, %v2775
        %2777 = vmatprep.mubr.bf16.mxu0 0
        %2778 = vmatmul.mubr.bf16.gmra.mrb[0].mxu0 %v592
        %v2779 = vpop.f32.mrb[0].mxu0
        %v2780 = vadd.f32 0.0, %v2779
        %v2781 = vpop.f32.mrb[0].mxu0
        %v2782 = vadd.f32 0.0, %v2781
        %v2783 = vpop.f32.mrb[0].mxu0
        %v2784 = vadd.f32 0.0, %v2783
        %v2785 = vpop.f32.mrb[0].mxu0
        %v2786 = vadd.f32 0.0, %v2785
        %2787 = vmatprep.mubr.bf16.mxu0 0
        %2788 = vmatmul.mubr.bf16.gmra.mrb[0].mxu0 %v593
        %v2789 = vpop.f32.mrb[0].mxu0
        %v2790 = vadd.f32 0.0, %v2789
        %v2791 = vpop.f32.mrb[0].mxu0
        %v2792 = vadd.f32 0.0, %v2791
        %v2793 = vpop.f32.mrb[0].mxu0
        %v2794 = vadd.f32 0.0, %v2793
        %v2795 = vpop.f32.mrb[0].mxu0
        %v2796 = vadd.f32 0.0, %v2795
        %2797 = vmatprep.mubr.bf16.mxu0 0
        %2798 = vmatmul.mubr.bf16.gmra.mrb[0].mxu0 %v594
        %v2799 = vpop.f32.mrb[0].mxu0
        %v2800 = vadd.f32 0.0, %v2799
        %v2801 = vpop.f32.mrb[0].mxu0
        %v2802 = vadd.f32 0.0, %v2801
        %v2803 = vpop.f32.mrb[0].mxu0
        %v2804 = vadd.f32 0.0, %v2803
        %v2805 = vpop.f32.mrb[0].mxu0
        %v2806 = vadd.f32 0.0, %v2805
        %2807 = vmatprep.mubr.bf16.mxu0 0
        %2808 = vmatmul.mubr.bf16.gmra.mrb[0].mxu0 %v595
        %v2809 = vpop.f32.mrb[0].mxu0
        %v2810 = vadd.f32 0.0, %v2809
        %v2811 = vpop.f32.mrb[0].mxu0
        %v2812 = vadd.f32 0.0, %v2811
        %v2813 = vpop.f32.mrb[0].mxu0
        %v2814 = vadd.f32 0.0, %v2813
        %v2815 = vpop.f32.mrb[0].mxu0
        %v2816 = vadd.f32 0.0, %v2815
        %2817 = vmatprep.mubr.bf16.mxu0 0
        %2818 = vmatmul.mubr.bf16.gmra.mrb[0].mxu0 %v596
        %v2819 = vpop.f32.mrb[0].mxu0
        %v2820 = vadd.f32 0.0, %v2819
        %v2821 = vpop.f32.mrb[0].mxu0
        %v2822 = vadd.f32 0.0, %v2821
        %v2823 = vpop.f32.mrb[0].mxu0
        %v2824 = vadd.f32 0.0, %v2823
        %v2825 = vpop.f32.mrb[0].mxu0
        %v2826 = vadd.f32 0.0, %v2825
        %2827 = vmatprep.mubr.bf16.mxu0 0
        %2828 = vmatmul.mubr.bf16.gmra.mrb[0].mxu0 %v597
        %v2829 = vpop.f32.mrb[0].mxu0
        %v2830 = vadd.f32 0.0, %v2829
        %v2831 = vpop.f32.mrb[0].mxu0
        %v2832 = vadd.f32 0.0, %v2831
        %v2833 = vpop.f32.mrb[0].mxu0
        %v2834 = vadd.f32 0.0, %v2833
        %v2835 = vpop.f32.mrb[0].mxu0
        %v2836 = vadd.f32 0.0, %v2835
        %2837 = vmatprep.mubr.bf16.mxu0 0
        %2838 = vmatmul.mubr.bf16.gmra.mrb[0].mxu0 %v598
        %v2839 = vpop.f32.mrb[0].mxu0
        %v2840 = vadd.f32 0.0, %v2839
        %v2841 = vpop.f32.mrb[0].mxu0
        %v2842 = vadd.f32 0.0, %v2841
        %v2843 = vpop.f32.mrb[0].mxu0
        %v2844 = vadd.f32 0.0, %v2843
        %v2845 = vpop.f32.mrb[0].mxu0
        %v2846 = vadd.f32 0.0, %v2845
        %2847 = vmatprep.mubr.bf16.mxu0 0
        %2848 = vmatmul.mubr.bf16.gmra.mrb[0].mxu0 %v599
        %v2849 = vpop.f32.mrb[0].mxu0
        %v2850 = vadd.f32 0.0, %v2849
        %v2851 = vpop.f32.mrb[0].mxu0
        %v2852 = vadd.f32 0.0, %v2851
        %v2853 = vpop.f32.mrb[0].mxu0
        %v2854 = vadd.f32 0.0, %v2853
        %v2855 = vpop.f32.mrb[0].mxu0
        %v2856 = vadd.f32 0.0, %v2855
        %2857 = vmatprep.mubr.bf16.mxu0 0
        %2858 = vmatmul.mubr.bf16.gmra.mrb[0].mxu0 %v600
        %v2859 = vpop.f32.mrb[0].mxu0
        %v2860 = vadd.f32 0.0, %v2859
        %v2861 = vpop.f32.mrb[0].mxu0
        %v2862 = vadd.f32 0.0, %v2861
        %v2863 = vpop.f32.mrb[0].mxu0
        %v2864 = vadd.f32 0.0, %v2863
        %v2865 = vpop.f32.mrb[0].mxu0
        %v2866 = vadd.f32 0.0, %v2865
        %2867 = vmatprep.mubr.bf16.mxu0 0
        %2868 = vmatmul.mubr.bf16.gmra.mrb[0].mxu0 %v601
        %v2869 = vpop.f32.mrb[0].mxu0
        %v2870 = vadd.f32 0.0, %v2869
        %v2871 = vpop.f32.mrb[0].mxu0
        %v2872 = vadd.f32 0.0, %v2871
        %v2873 = vpop.f32.mrb[0].mxu0
        %v2874 = vadd.f32 0.0, %v2873
        %v2875 = vpop.f32.mrb[0].mxu0
        %v2876 = vadd.f32 0.0, %v2875
        %2877 = vmatprep.mubr.bf16.mxu0 0
        %2878 = vmatmul.mubr.bf16.gmra.mrb[0].mxu0 %v602
        %v2879 = vpop.f32.mrb[0].mxu0
        %v2880 = vadd.f32 0.0, %v2879
        %v2881 = vpop.f32.mrb[0].mxu0
        %v2882 = vadd.f32 0.0, %v2881
        %v2883 = vpop.f32.mrb[0].mxu0
        %v2884 = vadd.f32 0.0, %v2883
        %v2885 = vpop.f32.mrb[0].mxu0
        %v2886 = vadd.f32 0.0, %v2885
        %2887 = vmatprep.mubr.bf16.mxu0 0
        %2888 = vmatmul.mubr.bf16.gmra.mrb[0].mxu0 %v603
        %v2889 = vpop.f32.mrb[0].mxu0
        %v2890 = vadd.f32 0.0, %v2889
        %v2891 = vpop.f32.mrb[0].mxu0
        %v2892 = vadd.f32 0.0, %v2891
        %v2893 = vpop.f32.mrb[0].mxu0
        %v2894 = vadd.f32 0.0, %v2893
        %v2895 = vpop.f32.mrb[0].mxu0
        %v2896 = vadd.f32 0.0, %v2895
        %2897 = vmatprep.mubr.bf16.mxu0 0
        %2898 = vmatmul.mubr.bf16.gmra.mrb[0].mxu0 %v604
        %v2899 = vpop.f32.mrb[0].mxu0
        %v2900 = vadd.f32 0.0, %v2899
        %v2901 = vpop.f32.mrb[0].mxu0
        %v2902 = vadd.f32 0.0, %v2901
        %v2903 = vpop.f32.mrb[0].mxu0
        %v2904 = vadd.f32 0.0, %v2903
        %v2905 = vpop.f32.mrb[0].mxu0
        %v2906 = vadd.f32 0.0, %v2905
        %2907 = vmatprep.mubr.bf16.mxu0 0
        %2908 = vmatmul.mubr.bf16.gmra.mrb[0].mxu0 %v605
        %v2909 = vpop.f32.mrb[0].mxu0
        %v2910 = vadd.f32 0.0, %v2909
        %v2911 = vpop.f32.mrb[0].mxu0
        %v2912 = vadd.f32 0.0, %v2911
        %v2913 = vpop.f32.mrb[0].mxu0
        %v2914 = vadd.f32 0.0, %v2913
        %v2915 = vpop.f32.mrb[0].mxu0
        %v2916 = vadd.f32 0.0, %v2915
        %2917 = vmatprep.mubr.bf16.mxu0 0
        %2918 = vmatmul.mubr.bf16.gmra.mrb[0].mxu0 %v606
        %v2919 = vpop.f32.mrb[0].mxu0
        %v2920 = vadd.f32 0.0, %v2919
        %v2921 = vpop.f32.mrb[0].mxu0
        %v2922 = vadd.f32 0.0, %v2921
        %v2923 = vpop.f32.mrb[0].mxu0
        %v2924 = vadd.f32 0.0, %v2923
        %v2925 = vpop.f32.mrb[0].mxu0
        %v2926 = vadd.f32 0.0, %v2925
        %2927 = vmatprep.mubr.bf16.mxu0 0
        %2928 = vmatmul.mubr.bf16.gmra.mrb[0].mxu0 %v607
        %v2929 = vpop.f32.mrb[0].mxu0
        %v2930 = vadd.f32 0.0, %v2929
        %v2931 = vpop.f32.mrb[0].mxu0
        %v2932 = vadd.f32 0.0, %v2931
        %v2933 = vpop.f32.mrb[0].mxu0
        %v2934 = vadd.f32 0.0, %v2933
        %v2935 = vpop.f32.mrb[0].mxu0
        %v2936 = vadd.f32 0.0, %v2935
        %2937 = vmatprep.mubr.bf16.mxu0 0
        %2938 = vmatmul.mubr.bf16.gmra.mrb[0].mxu0 %v608
        %v2939 = vpop.f32.mrb[0].mxu0
        %v2940 = vadd.f32 0.0, %v2939
        %v2941 = vpop.f32.mrb[0].mxu0
        %v2942 = vadd.f32 0.0, %v2941
        %v2943 = vpop.f32.mrb[0].mxu0
        %v2944 = vadd.f32 0.0, %v2943
        %v2945 = vpop.f32.mrb[0].mxu0
        %v2946 = vadd.f32 0.0, %v2945
        %2947 = vmatprep.mubr.bf16.mxu0 0
        %2948 = vmatmul.mubr.bf16.gmra.mrb[0].mxu0 %v609
        %v2949 = vpop.f32.mrb[0].mxu0
        %v2950 = vadd.f32 0.0, %v2949
        %v2951 = vpop.f32.mrb[0].mxu0
        %v2952 = vadd.f32 0.0, %v2951
        %v2953 = vpop.f32.mrb[0].mxu0
        %v2954 = vadd.f32 0.0, %v2953
        %v2955 = vpop.f32.mrb[0].mxu0
        %v2956 = vadd.f32 0.0, %v2955
        %2957 = vmatprep.mubr.bf16.mxu0 0
        %2958 = vmatmul.mubr.bf16.gmra.mrb[0].mxu0 %v610
        %v2959 = vpop.f32.mrb[0].mxu0
        %v2960 = vadd.f32 0.0, %v2959
        %v2961 = vpop.f32.mrb[0].mxu0
        %v2962 = vadd.f32 0.0, %v2961
        %v2963 = vpop.f32.mrb[0].mxu0
        %v2964 = vadd.f32 0.0, %v2963
        %v2965 = vpop.f32.mrb[0].mxu0
        %v2966 = vadd.f32 0.0, %v2965
        %2967 = vdwg.mxu0
        %2968 = vmatprep.subr.bf16.mxu0 %v990
        %2969 = vmatpush1.bf16.msra.mxu0 %v989
        %2970 = vmatprep.subr.bf16.mxu0 %v1004
        %2971 = vmatpush1.bf16.msra.mxu0 %v1003
        %2972 = vmatprep.subr.bf16.mxu0 %v1018
        %2973 = vmatpush1.bf16.msra.mxu0 %v1017
        %2974 = vmatprep.subr.bf16.mxu0 %v1032
        %2975 = vmatpush1.bf16.msra.mxu0 %v1031
        %2976 = vmatprep.subr.bf16.mxu0 %v1046
        %2977 = vmatpush1.bf16.msra.mxu0 %v1045
        %2978 = vmatprep.subr.bf16.mxu0 %v1060
        %2979 = vmatpush1.bf16.msra.mxu0 %v1059
        %2980 = vmatprep.subr.bf16.mxu0 %v1074
        %2981 = vmatpush1.bf16.msra.mxu0 %v1073
        %2982 = vmatprep.subr.bf16.mxu0 %v1088
        %2983 = vmatpush1.bf16.msra.mxu0 %v1087
        %2984 = vmatprep.subr.bf16.mxu0 0
        %2985 = vmatpush1.bf16.msra.mxu0 0
        %2986 = vmatprep.subr.bf16.mxu0 0
        %2987 = vmatpush1.bf16.msra.mxu0 0
        %2988 = vmatprep.subr.bf16.mxu0 0
        %2989 = vmatpush1.bf16.msra.mxu0 0
        %2990 = vmatprep.subr.bf16.mxu0 0
        %2991 = vmatpush1.bf16.msra.mxu0 0
        %2992 = vmatprep.subr.bf16.mxu0 0
        %2993 = vmatpush1.bf16.msra.mxu0 0
        %2994 = vmatprep.subr.bf16.mxu0 0
        %2995 = vmatpush1.bf16.msra.mxu0 0
        %2996 = vmatprep.subr.bf16.mxu0 0
        %2997 = vmatpush1.bf16.msra.mxu0 0
        %2998 = vmatprep.subr.bf16.mxu0 0
        %2999 = vmatpush1.bf16.msra.mxu0 0
        %3000 = vmatprep.mubr.bf16.mxu0 0
        %3001 = vmatmul.mubr.bf16.gmra.mrb[0].mxu0 %v579
        %v3002 = vpop.f32.mrb[0].mxu0
        %v3003 = vadd.f32 0.0, %v3002
        %v3004 = vpop.f32.mrb[0].mxu0
        %v3005 = vadd.f32 0.0, %v3004
        %v3006 = vpop.f32.mrb[0].mxu0
        %v3007 = vadd.f32 0.0, %v3006
        %v3008 = vpop.f32.mrb[0].mxu0
        %v3009 = vadd.f32 0.0, %v3008
        %3010 = vmatprep.mubr.bf16.mxu0 0
        %3011 = vmatmul.mubr.bf16.gmra.mrb[0].mxu0 %v580
        %v3012 = vpop.f32.mrb[0].mxu0
        %v3013 = vadd.f32 0.0, %v3012
        %v3014 = vpop.f32.mrb[0].mxu0
        %v3015 = vadd.f32 0.0, %v3014
        %v3016 = vpop.f32.mrb[0].mxu0
        %v3017 = vadd.f32 0.0, %v3016
        %v3018 = vpop.f32.mrb[0].mxu0
        %v3019 = vadd.f32 0.0, %v3018
        %3020 = vmatprep.mubr.bf16.mxu0 0
        %3021 = vmatmul.mubr.bf16.gmra.mrb[0].mxu0 %v581
        %v3022 = vpop.f32.mrb[0].mxu0
        %v3023 = vadd.f32 0.0, %v3022
        %v3024 = vpop.f32.mrb[0].mxu0
        %v3025 = vadd.f32 0.0, %v3024
        %v3026 = vpop.f32.mrb[0].mxu0
        %v3027 = vadd.f32 0.0, %v3026
        %v3028 = vpop.f32.mrb[0].mxu0
        %v3029 = vadd.f32 0.0, %v3028
        %3030 = vmatprep.mubr.bf16.mxu0 0
        %3031 = vmatmul.mubr.bf16.gmra.mrb[0].mxu0 %v582
        %v3032 = vpop.f32.mrb[0].mxu0
        %v3033 = vadd.f32 0.0, %v3032
        %v3034 = vpop.f32.mrb[0].mxu0
        %v3035 = vadd.f32 0.0, %v3034
        %v3036 = vpop.f32.mrb[0].mxu0
        %v3037 = vadd.f32 0.0, %v3036
        %v3038 = vpop.f32.mrb[0].mxu0
        %v3039 = vadd.f32 0.0, %v3038
        %3040 = vmatprep.mubr.bf16.mxu0 0
        %3041 = vmatmul.mubr.bf16.gmra.mrb[0].mxu0 %v583
        %v3042 = vpop.f32.mrb[0].mxu0
        %v3043 = vadd.f32 0.0, %v3042
        %v3044 = vpop.f32.mrb[0].mxu0
        %v3045 = vadd.f32 0.0, %v3044
        %v3046 = vpop.f32.mrb[0].mxu0
        %v3047 = vadd.f32 0.0, %v3046
        %v3048 = vpop.f32.mrb[0].mxu0
        %v3049 = vadd.f32 0.0, %v3048
        %3050 = vmatprep.mubr.bf16.mxu0 0
        %3051 = vmatmul.mubr.bf16.gmra.mrb[0].mxu0 %v584
        %v3052 = vpop.f32.mrb[0].mxu0
        %v3053 = vadd.f32 0.0, %v3052
        %v3054 = vpop.f32.mrb[0].mxu0
        %v3055 = vadd.f32 0.0, %v3054
        %v3056 = vpop.f32.mrb[0].mxu0
        %v3057 = vadd.f32 0.0, %v3056
        %v3058 = vpop.f32.mrb[0].mxu0
        %v3059 = vadd.f32 0.0, %v3058
        %3060 = vmatprep.mubr.bf16.mxu0 0
        %3061 = vmatmul.mubr.bf16.gmra.mrb[0].mxu0 %v585
        %v3062 = vpop.f32.mrb[0].mxu0
        %v3063 = vadd.f32 0.0, %v3062
        %v3064 = vpop.f32.mrb[0].mxu0
        %v3065 = vadd.f32 0.0, %v3064
        %v3066 = vpop.f32.mrb[0].mxu0
        %v3067 = vadd.f32 0.0, %v3066
        %v3068 = vpop.f32.mrb[0].mxu0
        %v3069 = vadd.f32 0.0, %v3068
        %3070 = vmatprep.mubr.bf16.mxu0 0
        %3071 = vmatmul.mubr.bf16.gmra.mrb[0].mxu0 %v586
        %v3072 = vpop.f32.mrb[0].mxu0
        %v3073 = vadd.f32 0.0, %v3072
        %v3074 = vpop.f32.mrb[0].mxu0
        %v3075 = vadd.f32 0.0, %v3074
        %v3076 = vpop.f32.mrb[0].mxu0
        %v3077 = vadd.f32 0.0, %v3076
        %v3078 = vpop.f32.mrb[0].mxu0
        %v3079 = vadd.f32 0.0, %v3078
        %3080 = vmatprep.mubr.bf16.mxu0 0
        %3081 = vmatmul.mubr.bf16.gmra.mrb[0].mxu0 %v587
        %v3082 = vpop.f32.mrb[0].mxu0
        %v3083 = vadd.f32 0.0, %v3082
        %v3084 = vpop.f32.mrb[0].mxu0
        %v3085 = vadd.f32 0.0, %v3084
        %v3086 = vpop.f32.mrb[0].mxu0
        %v3087 = vadd.f32 0.0, %v3086
        %v3088 = vpop.f32.mrb[0].mxu0
        %v3089 = vadd.f32 0.0, %v3088
        %3090 = vmatprep.mubr.bf16.mxu0 0
        %3091 = vmatmul.mubr.bf16.gmra.mrb[0].mxu0 %v588
        %v3092 = vpop.f32.mrb[0].mxu0
        %v3093 = vadd.f32 0.0, %v3092
        %v3094 = vpop.f32.mrb[0].mxu0
        %v3095 = vadd.f32 0.0, %v3094
        %v3096 = vpop.f32.mrb[0].mxu0
        %v3097 = vadd.f32 0.0, %v3096
        %v3098 = vpop.f32.mrb[0].mxu0
        %v3099 = vadd.f32 0.0, %v3098
        %3100 = vmatprep.mubr.bf16.mxu0 0
        %3101 = vmatmul.mubr.bf16.gmra.mrb[0].mxu0 %v589
        %v3102 = vpop.f32.mrb[0].mxu0
        %v3103 = vadd.f32 0.0, %v3102
        %v3104 = vpop.f32.mrb[0].mxu0
        %v3105 = vadd.f32 0.0, %v3104
        %v3106 = vpop.f32.mrb[0].mxu0
        %v3107 = vadd.f32 0.0, %v3106
        %v3108 = vpop.f32.mrb[0].mxu0
        %v3109 = vadd.f32 0.0, %v3108
        %3110 = vmatprep.mubr.bf16.mxu0 0
        %3111 = vmatmul.mubr.bf16.gmra.mrb[0].mxu0 %v590
        %v3112 = vpop.f32.mrb[0].mxu0
        %v3113 = vadd.f32 0.0, %v3112
        %v3114 = vpop.f32.mrb[0].mxu0
        %v3115 = vadd.f32 0.0, %v3114
        %v3116 = vpop.f32.mrb[0].mxu0
        %v3117 = vadd.f32 0.0, %v3116
        %v3118 = vpop.f32.mrb[0].mxu0
        %v3119 = vadd.f32 0.0, %v3118
        %3120 = vmatprep.mubr.bf16.mxu0 0
        %3121 = vmatmul.mubr.bf16.gmra.mrb[0].mxu0 %v591
        %v3122 = vpop.f32.mrb[0].mxu0
        %v3123 = vadd.f32 0.0, %v3122
        %v3124 = vpop.f32.mrb[0].mxu0
        %v3125 = vadd.f32 0.0, %v3124
        %v3126 = vpop.f32.mrb[0].mxu0
        %v3127 = vadd.f32 0.0, %v3126
        %v3128 = vpop.f32.mrb[0].mxu0
        %v3129 = vadd.f32 0.0, %v3128
        %3130 = vmatprep.mubr.bf16.mxu0 0
        %3131 = vmatmul.mubr.bf16.gmra.mrb[0].mxu0 %v592
        %v3132 = vpop.f32.mrb[0].mxu0
        %v3133 = vadd.f32 0.0, %v3132
        %v3134 = vpop.f32.mrb[0].mxu0
        %v3135 = vadd.f32 0.0, %v3134
        %v3136 = vpop.f32.mrb[0].mxu0
        %v3137 = vadd.f32 0.0, %v3136
        %v3138 = vpop.f32.mrb[0].mxu0
        %v3139 = vadd.f32 0.0, %v3138
        %3140 = vmatprep.mubr.bf16.mxu0 0
        %3141 = vmatmul.mubr.bf16.gmra.mrb[0].mxu0 %v593
        %v3142 = vpop.f32.mrb[0].mxu0
        %v3143 = vadd.f32 0.0, %v3142
        %v3144 = vpop.f32.mrb[0].mxu0
        %v3145 = vadd.f32 0.0, %v3144
        %v3146 = vpop.f32.mrb[0].mxu0
        %v3147 = vadd.f32 0.0, %v3146
        %v3148 = vpop.f32.mrb[0].mxu0
        %v3149 = vadd.f32 0.0, %v3148
        %3150 = vmatprep.mubr.bf16.mxu0 0
        %3151 = vmatmul.mubr.bf16.gmra.mrb[0].mxu0 %v594
        %v3152 = vpop.f32.mrb[0].mxu0
        %v3153 = vadd.f32 0.0, %v3152
        %v3154 = vpop.f32.mrb[0].mxu0
        %v3155 = vadd.f32 0.0, %v3154
        %v3156 = vpop.f32.mrb[0].mxu0
        %v3157 = vadd.f32 0.0, %v3156
        %v3158 = vpop.f32.mrb[0].mxu0
        %v3159 = vadd.f32 0.0, %v3158
        %3160 = vmatprep.mubr.bf16.mxu0 0
        %3161 = vmatmul.mubr.bf16.gmra.mrb[0].mxu0 %v595
        %v3162 = vpop.f32.mrb[0].mxu0
        %v3163 = vadd.f32 0.0, %v3162
        %v3164 = vpop.f32.mrb[0].mxu0
        %v3165 = vadd.f32 0.0, %v3164
        %v3166 = vpop.f32.mrb[0].mxu0
        %v3167 = vadd.f32 0.0, %v3166
        %v3168 = vpop.f32.mrb[0].mxu0
        %v3169 = vadd.f32 0.0, %v3168
        %3170 = vmatprep.mubr.bf16.mxu0 0
        %3171 = vmatmul.mubr.bf16.gmra.mrb[0].mxu0 %v596
        %v3172 = vpop.f32.mrb[0].mxu0
        %v3173 = vadd.f32 0.0, %v3172
        %v3174 = vpop.f32.mrb[0].mxu0
        %v3175 = vadd.f32 0.0, %v3174
        %v3176 = vpop.f32.mrb[0].mxu0
        %v3177 = vadd.f32 0.0, %v3176
        %v3178 = vpop.f32.mrb[0].mxu0
        %v3179 = vadd.f32 0.0, %v3178
        %3180 = vmatprep.mubr.bf16.mxu0 0
        %3181 = vmatmul.mubr.bf16.gmra.mrb[0].mxu0 %v597
        %v3182 = vpop.f32.mrb[0].mxu0
        %v3183 = vadd.f32 0.0, %v3182
        %v3184 = vpop.f32.mrb[0].mxu0
        %v3185 = vadd.f32 0.0, %v3184
        %v3186 = vpop.f32.mrb[0].mxu0
        %v3187 = vadd.f32 0.0, %v3186
        %v3188 = vpop.f32.mrb[0].mxu0
        %v3189 = vadd.f32 0.0, %v3188
        %3190 = vmatprep.mubr.bf16.mxu0 0
        %3191 = vmatmul.mubr.bf16.gmra.mrb[0].mxu0 %v598
        %v3192 = vpop.f32.mrb[0].mxu0
        %v3193 = vadd.f32 0.0, %v3192
        %v3194 = vpop.f32.mrb[0].mxu0
        %v3195 = vadd.f32 0.0, %v3194
        %v3196 = vpop.f32.mrb[0].mxu0
        %v3197 = vadd.f32 0.0, %v3196
        %v3198 = vpop.f32.mrb[0].mxu0
        %v3199 = vadd.f32 0.0, %v3198
        %3200 = vmatprep.mubr.bf16.mxu0 0
        %3201 = vmatmul.mubr.bf16.gmra.mrb[0].mxu0 %v599
        %v3202 = vpop.f32.mrb[0].mxu0
        %v3203 = vadd.f32 0.0, %v3202
        %v3204 = vpop.f32.mrb[0].mxu0
        %v3205 = vadd.f32 0.0, %v3204
        %v3206 = vpop.f32.mrb[0].mxu0
        %v3207 = vadd.f32 0.0, %v3206
        %v3208 = vpop.f32.mrb[0].mxu0
        %v3209 = vadd.f32 0.0, %v3208
        %3210 = vmatprep.mubr.bf16.mxu0 0
        %3211 = vmatmul.mubr.bf16.gmra.mrb[0].mxu0 %v600
        %v3212 = vpop.f32.mrb[0].mxu0
        %v3213 = vadd.f32 0.0, %v3212
        %v3214 = vpop.f32.mrb[0].mxu0
        %v3215 = vadd.f32 0.0, %v3214
        %v3216 = vpop.f32.mrb[0].mxu0
        %v3217 = vadd.f32 0.0, %v3216
        %v3218 = vpop.f32.mrb[0].mxu0
        %v3219 = vadd.f32 0.0, %v3218
        %3220 = vmatprep.mubr.bf16.mxu0 0
        %3221 = vmatmul.mubr.bf16.gmra.mrb[0].mxu0 %v601
        %v3222 = vpop.f32.mrb[0].mxu0
        %v3223 = vadd.f32 0.0, %v3222
        %v3224 = vpop.f32.mrb[0].mxu0
        %v3225 = vadd.f32 0.0, %v3224
        %v3226 = vpop.f32.mrb[0].mxu0
        %v3227 = vadd.f32 0.0, %v3226
        %v3228 = vpop.f32.mrb[0].mxu0
        %v3229 = vadd.f32 0.0, %v3228
        %3230 = vmatprep.mubr.bf16.mxu0 0
        %3231 = vmatmul.mubr.bf16.gmra.mrb[0].mxu0 %v602
        %v3232 = vpop.f32.mrb[0].mxu0
        %v3233 = vadd.f32 0.0, %v3232
        %v3234 = vpop.f32.mrb[0].mxu0
        %v3235 = vadd.f32 0.0, %v3234
        %v3236 = vpop.f32.mrb[0].mxu0
        %v3237 = vadd.f32 0.0, %v3236
        %v3238 = vpop.f32.mrb[0].mxu0
        %v3239 = vadd.f32 0.0, %v3238
        %3240 = vmatprep.mubr.bf16.mxu0 0
        %3241 = vmatmul.mubr.bf16.gmra.mrb[0].mxu0 %v603
        %v3242 = vpop.f32.mrb[0].mxu0
        %v3243 = vadd.f32 0.0, %v3242
        %v3244 = vpop.f32.mrb[0].mxu0
        %v3245 = vadd.f32 0.0, %v3244
        %v3246 = vpop.f32.mrb[0].mxu0
        %v3247 = vadd.f32 0.0, %v3246
        %v3248 = vpop.f32.mrb[0].mxu0
        %v3249 = vadd.f32 0.0, %v3248
        %3250 = vmatprep.mubr.bf16.mxu0 0
        %3251 = vmatmul.mubr.bf16.gmra.mrb[0].mxu0 %v604
        %v3252 = vpop.f32.mrb[0].mxu0
        %v3253 = vadd.f32 0.0, %v3252
        %v3254 = vpop.f32.mrb[0].mxu0
        %v3255 = vadd.f32 0.0, %v3254
        %v3256 = vpop.f32.mrb[0].mxu0
        %v3257 = vadd.f32 0.0, %v3256
        %v3258 = vpop.f32.mrb[0].mxu0
        %v3259 = vadd.f32 0.0, %v3258
        %3260 = vmatprep.mubr.bf16.mxu0 0
        %3261 = vmatmul.mubr.bf16.gmra.mrb[0].mxu0 %v605
        %v3262 = vpop.f32.mrb[0].mxu0
        %v3263 = vadd.f32 0.0, %v3262
        %v3264 = vpop.f32.mrb[0].mxu0
        %v3265 = vadd.f32 0.0, %v3264
        %v3266 = vpop.f32.mrb[0].mxu0
        %v3267 = vadd.f32 0.0, %v3266
        %v3268 = vpop.f32.mrb[0].mxu0
        %v3269 = vadd.f32 0.0, %v3268
        %3270 = vmatprep.mubr.bf16.mxu0 0
        %3271 = vmatmul.mubr.bf16.gmra.mrb[0].mxu0 %v606
        %v3272 = vpop.f32.mrb[0].mxu0
        %v3273 = vadd.f32 0.0, %v3272
        %v3274 = vpop.f32.mrb[0].mxu0
        %v3275 = vadd.f32 0.0, %v3274
        %v3276 = vpop.f32.mrb[0].mxu0
        %v3277 = vadd.f32 0.0, %v3276
        %v3278 = vpop.f32.mrb[0].mxu0
        %v3279 = vadd.f32 0.0, %v3278
        %3280 = vmatprep.mubr.bf16.mxu0 0
        %3281 = vmatmul.mubr.bf16.gmra.mrb[0].mxu0 %v607
        %v3282 = vpop.f32.mrb[0].mxu0
        %v3283 = vadd.f32 0.0, %v3282
        %v3284 = vpop.f32.mrb[0].mxu0
        %v3285 = vadd.f32 0.0, %v3284
        %v3286 = vpop.f32.mrb[0].mxu0
        %v3287 = vadd.f32 0.0, %v3286
        %v3288 = vpop.f32.mrb[0].mxu0
        %v3289 = vadd.f32 0.0, %v3288
        %3290 = vmatprep.mubr.bf16.mxu0 0
        %3291 = vmatmul.mubr.bf16.gmra.mrb[0].mxu0 %v608
        %v3292 = vpop.f32.mrb[0].mxu0
        %v3293 = vadd.f32 0.0, %v3292
        %v3294 = vpop.f32.mrb[0].mxu0
        %v3295 = vadd.f32 0.0, %v3294
        %v3296 = vpop.f32.mrb[0].mxu0
        %v3297 = vadd.f32 0.0, %v3296
        %v3298 = vpop.f32.mrb[0].mxu0
        %v3299 = vadd.f32 0.0, %v3298
        %3300 = vmatprep.mubr.bf16.mxu0 0
        %3301 = vmatmul.mubr.bf16.gmra.mrb[0].mxu0 %v609
        %v3302 = vpop.f32.mrb[0].mxu0
        %v3303 = vadd.f32 0.0, %v3302
        %v3304 = vpop.f32.mrb[0].mxu0
        %v3305 = vadd.f32 0.0, %v3304
        %v3306 = vpop.f32.mrb[0].mxu0
        %v3307 = vadd.f32 0.0, %v3306
        %v3308 = vpop.f32.mrb[0].mxu0
        %v3309 = vadd.f32 0.0, %v3308
        %3310 = vmatprep.mubr.bf16.mxu0 0
        %3311 = vmatmul.mubr.bf16.gmra.mrb[0].mxu0 %v610
        %v3312 = vpop.f32.mrb[0].mxu0
        %v3313 = vadd.f32 0.0, %v3312
        %v3314 = vpop.f32.mrb[0].mxu0
        %v3315 = vadd.f32 0.0, %v3314
        %v3316 = vpop.f32.mrb[0].mxu0
        %v3317 = vadd.f32 0.0, %v3316
        %v3318 = vpop.f32.mrb[0].mxu0
        %v3319 = vadd.f32 0.0, %v3318
        %3320 = vdwg.mxu0
        %3321 = vmatprep.subr.bf16.mxu0 %v992
        %3322 = vmatpush1.bf16.msra.mxu0 %v991
        %3323 = vmatprep.subr.bf16.mxu0 %v1006
        %3324 = vmatpush1.bf16.msra.mxu0 %v1005
        %3325 = vmatprep.subr.bf16.mxu0 %v1020
        %3326 = vmatpush1.bf16.msra.mxu0 %v1019
        %3327 = vmatprep.subr.bf16.mxu0 %v1034
        %3328 = vmatpush1.bf16.msra.mxu0 %v1033
        %3329 = vmatprep.subr.bf16.mxu0 %v1048
        %3330 = vmatpush1.bf16.msra.mxu0 %v1047
        %3331 = vmatprep.subr.bf16.mxu0 %v1062
        %3332 = vmatpush1.bf16.msra.mxu0 %v1061
        %3333 = vmatprep.subr.bf16.mxu0 %v1076
        %3334 = vmatpush1.bf16.msra.mxu0 %v1075
        %3335 = vmatprep.subr.bf16.mxu0 %v1090
        %3336 = vmatpush1.bf16.msra.mxu0 %v1089
        %3337 = vmatprep.subr.bf16.mxu0 0
        %3338 = vmatpush1.bf16.msra.mxu0 0
        %3339 = vmatprep.subr.bf16.mxu0 0
        %3340 = vmatpush1.bf16.msra.mxu0 0
        %3341 = vmatprep.subr.bf16.mxu0 0
        %3342 = vmatpush1.bf16.msra.mxu0 0
        %3343 = vmatprep.subr.bf16.mxu0 0
        %3344 = vmatpush1.bf16.msra.mxu0 0
        %3345 = vmatprep.subr.bf16.mxu0 0
        %3346 = vmatpush1.bf16.msra.mxu0 0
        %3347 = vmatprep.subr.bf16.mxu0 0
        %3348 = vmatpush1.bf16.msra.mxu0 0
        %3349 = vmatprep.subr.bf16.mxu0 0
        %3350 = vmatpush1.bf16.msra.mxu0 0
        %3351 = vmatprep.subr.bf16.mxu0 0
        %3352 = vmatpush1.bf16.msra.mxu0 0
        %3353 = vmatprep.mubr.bf16.mxu0 0
        %3354 = vmatmul.mubr.bf16.gmra.mrb[0].mxu0 %v579
        %v3355 = vpop.f32.mrb[0].mxu0
        %v3356 = vadd.f32 0.0, %v3355
        %v3357 = vpop.f32.mrb[0].mxu0
        %v3358 = vadd.f32 0.0, %v3357
        %v3359 = vpop.f32.mrb[0].mxu0
        %v3360 = vadd.f32 0.0, %v3359
        %v3361 = vpop.f32.mrb[0].mxu0
        %v3362 = vadd.f32 0.0, %v3361
        %3363 = vmatprep.mubr.bf16.mxu0 0
        %3364 = vmatmul.mubr.bf16.gmra.mrb[0].mxu0 %v580
        %v3365 = vpop.f32.mrb[0].mxu0
        %v3366 = vadd.f32 0.0, %v3365
        %v3367 = vpop.f32.mrb[0].mxu0
        %v3368 = vadd.f32 0.0, %v3367
        %v3369 = vpop.f32.mrb[0].mxu0
        %v3370 = vadd.f32 0.0, %v3369
        %v3371 = vpop.f32.mrb[0].mxu0
        %v3372 = vadd.f32 0.0, %v3371
        %3373 = vmatprep.mubr.bf16.mxu0 0
        %3374 = vmatmul.mubr.bf16.gmra.mrb[0].mxu0 %v581
        %v3375 = vpop.f32.mrb[0].mxu0
        %v3376 = vadd.f32 0.0, %v3375
        %v3377 = vpop.f32.mrb[0].mxu0
        %v3378 = vadd.f32 0.0, %v3377
        %v3379 = vpop.f32.mrb[0].mxu0
        %v3380 = vadd.f32 0.0, %v3379
        %v3381 = vpop.f32.mrb[0].mxu0
        %v3382 = vadd.f32 0.0, %v3381
        %3383 = vmatprep.mubr.bf16.mxu0 0
        %3384 = vmatmul.mubr.bf16.gmra.mrb[0].mxu0 %v582
        %v3385 = vpop.f32.mrb[0].mxu0
        %v3386 = vadd.f32 0.0, %v3385
        %v3387 = vpop.f32.mrb[0].mxu0
        %v3388 = vadd.f32 0.0, %v3387
        %v3389 = vpop.f32.mrb[0].mxu0
        %v3390 = vadd.f32 0.0, %v3389
        %v3391 = vpop.f32.mrb[0].mxu0
        %v3392 = vadd.f32 0.0, %v3391
        %3393 = vmatprep.mubr.bf16.mxu0 0
        %3394 = vmatmul.mubr.bf16.gmra.mrb[0].mxu0 %v583
        %v3395 = vpop.f32.mrb[0].mxu0
        %v3396 = vadd.f32 0.0, %v3395
        %v3397 = vpop.f32.mrb[0].mxu0
        %v3398 = vadd.f32 0.0, %v3397
        %v3399 = vpop.f32.mrb[0].mxu0
        %v3400 = vadd.f32 0.0, %v3399
        %v3401 = vpop.f32.mrb[0].mxu0
        %v3402 = vadd.f32 0.0, %v3401
        %3403 = vmatprep.mubr.bf16.mxu0 0
        %3404 = vmatmul.mubr.bf16.gmra.mrb[0].mxu0 %v584
        %v3405 = vpop.f32.mrb[0].mxu0
        %v3406 = vadd.f32 0.0, %v3405
        %v3407 = vpop.f32.mrb[0].mxu0
        %v3408 = vadd.f32 0.0, %v3407
        %v3409 = vpop.f32.mrb[0].mxu0
        %v3410 = vadd.f32 0.0, %v3409
        %v3411 = vpop.f32.mrb[0].mxu0
        %v3412 = vadd.f32 0.0, %v3411
        %3413 = vmatprep.mubr.bf16.mxu0 0
        %3414 = vmatmul.mubr.bf16.gmra.mrb[0].mxu0 %v585
        %v3415 = vpop.f32.mrb[0].mxu0
        %v3416 = vadd.f32 0.0, %v3415
        %v3417 = vpop.f32.mrb[0].mxu0
        %v3418 = vadd.f32 0.0, %v3417
        %v3419 = vpop.f32.mrb[0].mxu0
        %v3420 = vadd.f32 0.0, %v3419
        %v3421 = vpop.f32.mrb[0].mxu0
        %v3422 = vadd.f32 0.0, %v3421
        %3423 = vmatprep.mubr.bf16.mxu0 0
        %3424 = vmatmul.mubr.bf16.gmra.mrb[0].mxu0 %v586
        %v3425 = vpop.f32.mrb[0].mxu0
        %v3426 = vadd.f32 0.0, %v3425
        %v3427 = vpop.f32.mrb[0].mxu0
        %v3428 = vadd.f32 0.0, %v3427
        %v3429 = vpop.f32.mrb[0].mxu0
        %v3430 = vadd.f32 0.0, %v3429
        %v3431 = vpop.f32.mrb[0].mxu0
        %v3432 = vadd.f32 0.0, %v3431
        %3433 = vmatprep.mubr.bf16.mxu0 0
        %3434 = vmatmul.mubr.bf16.gmra.mrb[0].mxu0 %v587
        %v3435 = vpop.f32.mrb[0].mxu0
        %v3436 = vadd.f32 0.0, %v3435
        %v3437 = vpop.f32.mrb[0].mxu0
        %v3438 = vadd.f32 0.0, %v3437
        %v3439 = vpop.f32.mrb[0].mxu0
        %v3440 = vadd.f32 0.0, %v3439
        %v3441 = vpop.f32.mrb[0].mxu0
        %v3442 = vadd.f32 0.0, %v3441
        %3443 = vmatprep.mubr.bf16.mxu0 0
        %3444 = vmatmul.mubr.bf16.gmra.mrb[0].mxu0 %v588
        %v3445 = vpop.f32.mrb[0].mxu0
        %v3446 = vadd.f32 0.0, %v3445
        %v3447 = vpop.f32.mrb[0].mxu0
        %v3448 = vadd.f32 0.0, %v3447
        %v3449 = vpop.f32.mrb[0].mxu0
        %v3450 = vadd.f32 0.0, %v3449
        %v3451 = vpop.f32.mrb[0].mxu0
        %v3452 = vadd.f32 0.0, %v3451
        %3453 = vmatprep.mubr.bf16.mxu0 0
        %3454 = vmatmul.mubr.bf16.gmra.mrb[0].mxu0 %v589
        %v3455 = vpop.f32.mrb[0].mxu0
        %v3456 = vadd.f32 0.0, %v3455
        %v3457 = vpop.f32.mrb[0].mxu0
        %v3458 = vadd.f32 0.0, %v3457
        %v3459 = vpop.f32.mrb[0].mxu0
        %v3460 = vadd.f32 0.0, %v3459
        %v3461 = vpop.f32.mrb[0].mxu0
        %v3462 = vadd.f32 0.0, %v3461
        %3463 = vmatprep.mubr.bf16.mxu0 0
        %3464 = vmatmul.mubr.bf16.gmra.mrb[0].mxu0 %v590
        %v3465 = vpop.f32.mrb[0].mxu0
        %v3466 = vadd.f32 0.0, %v3465
        %v3467 = vpop.f32.mrb[0].mxu0
        %v3468 = vadd.f32 0.0, %v3467
        %v3469 = vpop.f32.mrb[0].mxu0
        %v3470 = vadd.f32 0.0, %v3469
        %v3471 = vpop.f32.mrb[0].mxu0
        %v3472 = vadd.f32 0.0, %v3471
        %3473 = vmatprep.mubr.bf16.mxu0 0
        %3474 = vmatmul.mubr.bf16.gmra.mrb[0].mxu0 %v591
        %v3475 = vpop.f32.mrb[0].mxu0
        %v3476 = vadd.f32 0.0, %v3475
        %v3477 = vpop.f32.mrb[0].mxu0
        %v3478 = vadd.f32 0.0, %v3477
        %v3479 = vpop.f32.mrb[0].mxu0
        %v3480 = vadd.f32 0.0, %v3479
        %v3481 = vpop.f32.mrb[0].mxu0
        %v3482 = vadd.f32 0.0, %v3481
        %3483 = vmatprep.mubr.bf16.mxu0 0
        %3484 = vmatmul.mubr.bf16.gmra.mrb[0].mxu0 %v592
        %v3485 = vpop.f32.mrb[0].mxu0
        %v3486 = vadd.f32 0.0, %v3485
        %v3487 = vpop.f32.mrb[0].mxu0
        %v3488 = vadd.f32 0.0, %v3487
        %v3489 = vpop.f32.mrb[0].mxu0
        %v3490 = vadd.f32 0.0, %v3489
        %v3491 = vpop.f32.mrb[0].mxu0
        %v3492 = vadd.f32 0.0, %v3491
        %3493 = vmatprep.mubr.bf16.mxu0 0
        %3494 = vmatmul.mubr.bf16.gmra.mrb[0].mxu0 %v593
        %v3495 = vpop.f32.mrb[0].mxu0
        %v3496 = vadd.f32 0.0, %v3495
        %v3497 = vpop.f32.mrb[0].mxu0
        %v3498 = vadd.f32 0.0, %v3497
        %v3499 = vpop.f32.mrb[0].mxu0
        %v3500 = vadd.f32 0.0, %v3499
        %v3501 = vpop.f32.mrb[0].mxu0
        %v3502 = vadd.f32 0.0, %v3501
        %3503 = vmatprep.mubr.bf16.mxu0 0
        %3504 = vmatmul.mubr.bf16.gmra.mrb[0].mxu0 %v594
        %v3505 = vpop.f32.mrb[0].mxu0
        %v3506 = vadd.f32 0.0, %v3505
        %v3507 = vpop.f32.mrb[0].mxu0
        %v3508 = vadd.f32 0.0, %v3507
        %v3509 = vpop.f32.mrb[0].mxu0
        %v3510 = vadd.f32 0.0, %v3509
        %v3511 = vpop.f32.mrb[0].mxu0
        %v3512 = vadd.f32 0.0, %v3511
        %3513 = vmatprep.mubr.bf16.mxu0 0
        %3514 = vmatmul.mubr.bf16.gmra.mrb[0].mxu0 %v595
        %v3515 = vpop.f32.mrb[0].mxu0
        %v3516 = vadd.f32 0.0, %v3515
        %v3517 = vpop.f32.mrb[0].mxu0
        %v3518 = vadd.f32 0.0, %v3517
        %v3519 = vpop.f32.mrb[0].mxu0
        %v3520 = vadd.f32 0.0, %v3519
        %v3521 = vpop.f32.mrb[0].mxu0
        %v3522 = vadd.f32 0.0, %v3521
        %3523 = vmatprep.mubr.bf16.mxu0 0
        %3524 = vmatmul.mubr.bf16.gmra.mrb[0].mxu0 %v596
        %v3525 = vpop.f32.mrb[0].mxu0
        %v3526 = vadd.f32 0.0, %v3525
        %v3527 = vpop.f32.mrb[0].mxu0
        %v3528 = vadd.f32 0.0, %v3527
        %v3529 = vpop.f32.mrb[0].mxu0
        %v3530 = vadd.f32 0.0, %v3529
        %v3531 = vpop.f32.mrb[0].mxu0
        %v3532 = vadd.f32 0.0, %v3531
        %3533 = vmatprep.mubr.bf16.mxu0 0
        %3534 = vmatmul.mubr.bf16.gmra.mrb[0].mxu0 %v597
        %v3535 = vpop.f32.mrb[0].mxu0
        %v3536 = vadd.f32 0.0, %v3535
        %v3537 = vpop.f32.mrb[0].mxu0
        %v3538 = vadd.f32 0.0, %v3537
        %v3539 = vpop.f32.mrb[0].mxu0
        %v3540 = vadd.f32 0.0, %v3539
        %v3541 = vpop.f32.mrb[0].mxu0
        %v3542 = vadd.f32 0.0, %v3541
        %3543 = vmatprep.mubr.bf16.mxu0 0
        %3544 = vmatmul.mubr.bf16.gmra.mrb[0].mxu0 %v598
        %v3545 = vpop.f32.mrb[0].mxu0
        %v3546 = vadd.f32 0.0, %v3545
        %v3547 = vpop.f32.mrb[0].mxu0
        %v3548 = vadd.f32 0.0, %v3547
        %v3549 = vpop.f32.mrb[0].mxu0
        %v3550 = vadd.f32 0.0, %v3549
        %v3551 = vpop.f32.mrb[0].mxu0
        %v3552 = vadd.f32 0.0, %v3551
        %3553 = vmatprep.mubr.bf16.mxu0 0
        %3554 = vmatmul.mubr.bf16.gmra.mrb[0].mxu0 %v599
        %v3555 = vpop.f32.mrb[0].mxu0
        %v3556 = vadd.f32 0.0, %v3555
        %v3557 = vpop.f32.mrb[0].mxu0
        %v3558 = vadd.f32 0.0, %v3557
        %v3559 = vpop.f32.mrb[0].mxu0
        %v3560 = vadd.f32 0.0, %v3559
        %v3561 = vpop.f32.mrb[0].mxu0
        %v3562 = vadd.f32 0.0, %v3561
        %3563 = vmatprep.mubr.bf16.mxu0 0
        %3564 = vmatmul.mubr.bf16.gmra.mrb[0].mxu0 %v600
        %v3565 = vpop.f32.mrb[0].mxu0
        %v3566 = vadd.f32 0.0, %v3565
        %v3567 = vpop.f32.mrb[0].mxu0
        %v3568 = vadd.f32 0.0, %v3567
        %v3569 = vpop.f32.mrb[0].mxu0
        %v3570 = vadd.f32 0.0, %v3569
        %v3571 = vpop.f32.mrb[0].mxu0
        %v3572 = vadd.f32 0.0, %v3571
        %3573 = vmatprep.mubr.bf16.mxu0 0
        %3574 = vmatmul.mubr.bf16.gmra.mrb[0].mxu0 %v601
        %v3575 = vpop.f32.mrb[0].mxu0
        %v3576 = vadd.f32 0.0, %v3575
        %v3577 = vpop.f32.mrb[0].mxu0
        %v3578 = vadd.f32 0.0, %v3577
        %v3579 = vpop.f32.mrb[0].mxu0
        %v3580 = vadd.f32 0.0, %v3579
        %v3581 = vpop.f32.mrb[0].mxu0
        %v3582 = vadd.f32 0.0, %v3581
        %3583 = vmatprep.mubr.bf16.mxu0 0
        %3584 = vmatmul.mubr.bf16.gmra.mrb[0].mxu0 %v602
        %v3585 = vpop.f32.mrb[0].mxu0
        %v3586 = vadd.f32 0.0, %v3585
        %v3587 = vpop.f32.mrb[0].mxu0
        %v3588 = vadd.f32 0.0, %v3587
        %v3589 = vpop.f32.mrb[0].mxu0
        %v3590 = vadd.f32 0.0, %v3589
        %v3591 = vpop.f32.mrb[0].mxu0
        %v3592 = vadd.f32 0.0, %v3591
        %3593 = vmatprep.mubr.bf16.mxu0 0
        %3594 = vmatmul.mubr.bf16.gmra.mrb[0].mxu0 %v603
        %v3595 = vpop.f32.mrb[0].mxu0
        %v3596 = vadd.f32 0.0, %v3595
        %v3597 = vpop.f32.mrb[0].mxu0
        %v3598 = vadd.f32 0.0, %v3597
        %v3599 = vpop.f32.mrb[0].mxu0
        %v3600 = vadd.f32 0.0, %v3599
        %v3601 = vpop.f32.mrb[0].mxu0
        %v3602 = vadd.f32 0.0, %v3601
        %3603 = vmatprep.mubr.bf16.mxu0 0
        %3604 = vmatmul.mubr.bf16.gmra.mrb[0].mxu0 %v604
        %v3605 = vpop.f32.mrb[0].mxu0
        %v3606 = vadd.f32 0.0, %v3605
        %v3607 = vpop.f32.mrb[0].mxu0
        %v3608 = vadd.f32 0.0, %v3607
        %v3609 = vpop.f32.mrb[0].mxu0
        %v3610 = vadd.f32 0.0, %v3609
        %v3611 = vpop.f32.mrb[0].mxu0
        %v3612 = vadd.f32 0.0, %v3611
        %3613 = vmatprep.mubr.bf16.mxu0 0
        %3614 = vmatmul.mubr.bf16.gmra.mrb[0].mxu0 %v605
        %v3615 = vpop.f32.mrb[0].mxu0
        %v3616 = vadd.f32 0.0, %v3615
        %v3617 = vpop.f32.mrb[0].mxu0
        %v3618 = vadd.f32 0.0, %v3617
        %v3619 = vpop.f32.mrb[0].mxu0
        %v3620 = vadd.f32 0.0, %v3619
        %v3621 = vpop.f32.mrb[0].mxu0
        %v3622 = vadd.f32 0.0, %v3621
        %3623 = vmatprep.mubr.bf16.mxu0 0
        %3624 = vmatmul.mubr.bf16.gmra.mrb[0].mxu0 %v606
        %v3625 = vpop.f32.mrb[0].mxu0
        %v3626 = vadd.f32 0.0, %v3625
        %v3627 = vpop.f32.mrb[0].mxu0
        %v3628 = vadd.f32 0.0, %v3627
        %v3629 = vpop.f32.mrb[0].mxu0
        %v3630 = vadd.f32 0.0, %v3629
        %v3631 = vpop.f32.mrb[0].mxu0
        %v3632 = vadd.f32 0.0, %v3631
        %3633 = vmatprep.mubr.bf16.mxu0 0
        %3634 = vmatmul.mubr.bf16.gmra.mrb[0].mxu0 %v607
        %v3635 = vpop.f32.mrb[0].mxu0
        %v3636 = vadd.f32 0.0, %v3635
        %v3637 = vpop.f32.mrb[0].mxu0
        %v3638 = vadd.f32 0.0, %v3637
        %v3639 = vpop.f32.mrb[0].mxu0
        %v3640 = vadd.f32 0.0, %v3639
        %v3641 = vpop.f32.mrb[0].mxu0
        %v3642 = vadd.f32 0.0, %v3641
        %3643 = vmatprep.mubr.bf16.mxu0 0
        %3644 = vmatmul.mubr.bf16.gmra.mrb[0].mxu0 %v608
        %v3645 = vpop.f32.mrb[0].mxu0
        %v3646 = vadd.f32 0.0, %v3645
        %v3647 = vpop.f32.mrb[0].mxu0
        %v3648 = vadd.f32 0.0, %v3647
        %v3649 = vpop.f32.mrb[0].mxu0
        %v3650 = vadd.f32 0.0, %v3649
        %v3651 = vpop.f32.mrb[0].mxu0
        %v3652 = vadd.f32 0.0, %v3651
        %3653 = vmatprep.mubr.bf16.mxu0 0
        %3654 = vmatmul.mubr.bf16.gmra.mrb[0].mxu0 %v609
        %v3655 = vpop.f32.mrb[0].mxu0
        %v3656 = vadd.f32 0.0, %v3655
        %v3657 = vpop.f32.mrb[0].mxu0
        %v3658 = vadd.f32 0.0, %v3657
        %v3659 = vpop.f32.mrb[0].mxu0
        %v3660 = vadd.f32 0.0, %v3659
        %v3661 = vpop.f32.mrb[0].mxu0
        %v3662 = vadd.f32 0.0, %v3661
        %3663 = vmatprep.mubr.bf16.mxu0 0
        %3664 = vmatmul.mubr.bf16.gmra.mrb[0].mxu0 %v610
        %v3665 = vpop.f32.mrb[0].mxu0
        %v3666 = vadd.f32 0.0, %v3665
        %v3667 = vpop.f32.mrb[0].mxu0
        %v3668 = vadd.f32 0.0, %v3667
        %v3669 = vpop.f32.mrb[0].mxu0
        %v3670 = vadd.f32 0.0, %v3669
        %v3671 = vpop.f32.mrb[0].mxu0
        %v3672 = vadd.f32 0.0, %v3671
        %3673 = vdwg.mxu0
        %v3674 = vlaneseq
        %v3675 = vshrl.u32 %v3674, 7
        %v3676 = vadd.s32 %v3675, 8
        %v3677 = vrot.slane %v1240, 1
        %v3678 = vrot.slane %v1250, 1
        %v3679 = vrot.slane %v1260, 1
        %v3680 = vrot.slane %v1270, 1
        %v3681 = vrot.slane %v1280, 1
        %v3682 = vrot.slane %v1290, 1
        %v3683 = vrot.slane %v1300, 1
        %v3684 = vrot.slane %v1310, 1
        %v3685 = vrot.slane %v1320, 1
        %v3686 = vrot.slane %v1330, 1
        %v3687 = vrot.slane %v1340, 1
        %v3688 = vrot.slane %v1350, 1
        %v3689 = vrot.slane %v1360, 1
        %v3690 = vrot.slane %v1370, 1
        %v3691 = vrot.slane %v1380, 1
        %v3692 = vrot.slane %v1390, 1
        %v3693 = vrot.slane %v1400, 1
        %v3694 = vrot.slane %v1410, 1
        %v3695 = vrot.slane %v1420, 1
        %v3696 = vrot.slane %v1430, 1
        %v3697 = vrot.slane %v1440, 1
        %v3698 = vrot.slane %v1450, 1
        %v3699 = vrot.slane %v1460, 1
        %v3700 = vrot.slane %v1470, 1
        %v3701 = vrot.slane %v1480, 1
        %v3702 = vrot.slane %v1490, 1
        %v3703 = vrot.slane %v1500, 1
        %v3704 = vrot.slane %v1510, 1
        %v3705 = vrot.slane %v1520, 1
        %v3706 = vrot.slane %v1530, 1
        %v3707 = vrot.slane %v1540, 1
        %v3708 = vrot.slane %v1550, 1
        %v3709 = vrot.slane %v1244, 1
        %v3710 = vrot.slane %v1254, 1
        %v3711 = vrot.slane %v1264, 1
        %v3712 = vrot.slane %v1274, 1
        %v3713 = vrot.slane %v1284, 1
        %v3714 = vrot.slane %v1294, 1
        %v3715 = vrot.slane %v1304, 1
        %v3716 = vrot.slane %v1314, 1
        %v3717 = vrot.slane %v1324, 1
        %v3718 = vrot.slane %v1334, 1
        %v3719 = vrot.slane %v1344, 1
        %v3720 = vrot.slane %v1354, 1
        %v3721 = vrot.slane %v1364, 1
        %v3722 = vrot.slane %v1374, 1
        %v3723 = vrot.slane %v1384, 1
        %v3724 = vrot.slane %v1394, 1
        %v3725 = vrot.slane %v1404, 1
        %v3726 = vrot.slane %v1414, 1
        %v3727 = vrot.slane %v1424, 1
        %v3728 = vrot.slane %v1434, 1
        %v3729 = vrot.slane %v1444, 1
        %v3730 = vrot.slane %v1454, 1
        %v3731 = vrot.slane %v1464, 1
        %v3732 = vrot.slane %v1474, 1
        %v3733 = vrot.slane %v1484, 1
        %v3734 = vrot.slane %v1494, 1
        %v3735 = vrot.slane %v1504, 1
        %v3736 = vrot.slane %v1514, 1
        %v3737 = vrot.slane %v1524, 1
        %v3738 = vrot.slane %v1534, 1
        %v3739 = vrot.slane %v1544, 1
        %v3740 = vrot.slane %v1554, 1
        %vm3741 = vcmp.lt.s32.totalorder %v3675, 7
        %v3742 = vsel %vm3741, %v3677, %v3709
        %v3743 = vsel %vm3741, %v3678, %v3710
        %v3744 = vsel %vm3741, %v3679, %v3711
        %v3745 = vsel %vm3741, %v3680, %v3712
        %v3746 = vsel %vm3741, %v3681, %v3713
        %v3747 = vsel %vm3741, %v3682, %v3714
        %v3748 = vsel %vm3741, %v3683, %v3715
        %v3749 = vsel %vm3741, %v3684, %v3716
        %v3750 = vsel %vm3741, %v3685, %v3717
        %v3751 = vsel %vm3741, %v3686, %v3718
        %v3752 = vsel %vm3741, %v3687, %v3719
        %v3753 = vsel %vm3741, %v3688, %v3720
        %v3754 = vsel %vm3741, %v3689, %v3721
        %v3755 = vsel %vm3741, %v3690, %v3722
        %v3756 = vsel %vm3741, %v3691, %v3723
        %v3757 = vsel %vm3741, %v3692, %v3724
        %v3758 = vsel %vm3741, %v3693, %v3725
        %v3759 = vsel %vm3741, %v3694, %v3726
        %v3760 = vsel %vm3741, %v3695, %v3727
        %v3761 = vsel %vm3741, %v3696, %v3728
        %v3762 = vsel %vm3741, %v3697, %v3729
        %v3763 = vsel %vm3741, %v3698, %v3730
        %v3764 = vsel %vm3741, %v3699, %v3731
        %v3765 = vsel %vm3741, %v3700, %v3732
        %v3766 = vsel %vm3741, %v3701, %v3733
        %v3767 = vsel %vm3741, %v3702, %v3734
        %v3768 = vsel %vm3741, %v3703, %v3735
        %v3769 = vsel %vm3741, %v3704, %v3736
        %v3770 = vsel %vm3741, %v3705, %v3737
        %v3771 = vsel %vm3741, %v3706, %v3738
        %v3772 = vsel %vm3741, %v3707, %v3739
        %v3773 = vsel %vm3741, %v3708, %v3740
        %v3774 = vsel %vm3741, %v3709, %v3677
        %v3775 = vsel %vm3741, %v3710, %v3678
        %v3776 = vsel %vm3741, %v3711, %v3679
        %v3777 = vsel %vm3741, %v3712, %v3680
        %v3778 = vsel %vm3741, %v3713, %v3681
        %v3779 = vsel %vm3741, %v3714, %v3682
        %v3780 = vsel %vm3741, %v3715, %v3683
        %v3781 = vsel %vm3741, %v3716, %v3684
        %v3782 = vsel %vm3741, %v3717, %v3685
        %v3783 = vsel %vm3741, %v3718, %v3686
        %v3784 = vsel %vm3741, %v3719, %v3687
        %v3785 = vsel %vm3741, %v3720, %v3688
        %v3786 = vsel %vm3741, %v3721, %v3689
        %v3787 = vsel %vm3741, %v3722, %v3690
        %v3788 = vsel %vm3741, %v3723, %v3691
        %v3789 = vsel %vm3741, %v3724, %v3692
        %v3790 = vsel %vm3741, %v3725, %v3693
        %v3791 = vsel %vm3741, %v3726, %v3694
        %v3792 = vsel %vm3741, %v3727, %v3695
        %v3793 = vsel %vm3741, %v3728, %v3696
        %v3794 = vsel %vm3741, %v3729, %v3697
        %v3795 = vsel %vm3741, %v3730, %v3698
        %v3796 = vsel %vm3741, %v3731, %v3699
        %v3797 = vsel %vm3741, %v3732, %v3700
        %v3798 = vsel %vm3741, %v3733, %v3701
        %v3799 = vsel %vm3741, %v3734, %v3702
        %v3800 = vsel %vm3741, %v3735, %v3703
        %v3801 = vsel %vm3741, %v3736, %v3704
        %v3802 = vsel %vm3741, %v3737, %v3705
        %v3803 = vsel %vm3741, %v3738, %v3706
        %v3804 = vsel %vm3741, %v3739, %v3707
        %v3805 = vsel %vm3741, %v3740, %v3708
        %v3806 = vadd.f32 %v1238, %v3742
        %v3807 = vadd.f32 %v1242, %v3774
        %v3808 = vadd.f32 %v1248, %v3743
        %v3809 = vadd.f32 %v1252, %v3775
        %v3810 = vadd.f32 %v1258, %v3744
        %v3811 = vadd.f32 %v1262, %v3776
        %v3812 = vadd.f32 %v1268, %v3745
        %v3813 = vadd.f32 %v1272, %v3777
        %v3814 = vadd.f32 %v1278, %v3746
        %v3815 = vadd.f32 %v1282, %v3778
        %v3816 = vadd.f32 %v1288, %v3747
        %v3817 = vadd.f32 %v1292, %v3779
        %v3818 = vadd.f32 %v1298, %v3748
        %v3819 = vadd.f32 %v1302, %v3780
        %v3820 = vadd.f32 %v1308, %v3749
        %v3821 = vadd.f32 %v1312, %v3781
        %v3822 = vadd.f32 %v1318, %v3750
        %v3823 = vadd.f32 %v1322, %v3782
        %v3824 = vadd.f32 %v1328, %v3751
        %v3825 = vadd.f32 %v1332, %v3783
        %v3826 = vadd.f32 %v1338, %v3752
        %v3827 = vadd.f32 %v1342, %v3784
        %v3828 = vadd.f32 %v1348, %v3753
        %v3829 = vadd.f32 %v1352, %v3785
        %v3830 = vadd.f32 %v1358, %v3754
        %v3831 = vadd.f32 %v1362, %v3786
        %v3832 = vadd.f32 %v1368, %v3755
        %v3833 = vadd.f32 %v1372, %v3787
        %v3834 = vadd.f32 %v1378, %v3756
        %v3835 = vadd.f32 %v1382, %v3788
        %v3836 = vadd.f32 %v1388, %v3757
        %v3837 = vadd.f32 %v1392, %v3789
        %v3838 = vadd.f32 %v1398, %v3758
        %v3839 = vadd.f32 %v1402, %v3790
        %v3840 = vadd.f32 %v1408, %v3759
        %v3841 = vadd.f32 %v1412, %v3791
        %v3842 = vadd.f32 %v1418, %v3760
        %v3843 = vadd.f32 %v1422, %v3792
        %v3844 = vadd.f32 %v1428, %v3761
        %v3845 = vadd.f32 %v1432, %v3793
        %v3846 = vadd.f32 %v1438, %v3762
        %v3847 = vadd.f32 %v1442, %v3794
        %v3848 = vadd.f32 %v1448, %v3763
        %v3849 = vadd.f32 %v1452, %v3795
        %v3850 = vadd.f32 %v1458, %v3764
        %v3851 = vadd.f32 %v1462, %v3796
        %v3852 = vadd.f32 %v1468, %v3765
        %v3853 = vadd.f32 %v1472, %v3797
        %v3854 = vadd.f32 %v1478, %v3766
        %v3855 = vadd.f32 %v1482, %v3798
        %v3856 = vadd.f32 %v1488, %v3767
        %v3857 = vadd.f32 %v1492, %v3799
        %v3858 = vadd.f32 %v1498, %v3768
        %v3859 = vadd.f32 %v1502, %v3800
        %v3860 = vadd.f32 %v1508, %v3769
        %v3861 = vadd.f32 %v1512, %v3801
        %v3862 = vadd.f32 %v1518, %v3770
        %v3863 = vadd.f32 %v1522, %v3802
        %v3864 = vadd.f32 %v1528, %v3771
        %v3865 = vadd.f32 %v1532, %v3803
        %v3866 = vadd.f32 %v1538, %v3772
        %v3867 = vadd.f32 %v1542, %v3804
        %v3868 = vadd.f32 %v1548, %v3773
        %v3869 = vadd.f32 %v1552, %v3805
        %vm3870 = vcmp.lt.s32.totalorder %v3675, 15
        %vm3871 = vcmp.lt.s32.totalorder %v3676, 15
        %v3872 = vsel %vm3870, %v3806, -inf
        %v3873 = vsel %vm3871, %v3807, -inf
        %v3874 = vsel %vm3870, %v3808, -inf
        %v3875 = vsel %vm3871, %v3809, -inf
        %v3876 = vsel %vm3870, %v3810, -inf
        %v3877 = vsel %vm3871, %v3811, -inf
        %v3878 = vsel %vm3870, %v3812, -inf
        %v3879 = vsel %vm3871, %v3813, -inf
        %v3880 = vsel %vm3870, %v3814, -inf
        %v3881 = vsel %vm3871, %v3815, -inf
        %v3882 = vsel %vm3870, %v3816, -inf
        %v3883 = vsel %vm3871, %v3817, -inf
        %v3884 = vsel %vm3870, %v3818, -inf
        %v3885 = vsel %vm3871, %v3819, -inf
        %v3886 = vsel %vm3870, %v3820, -inf
        %v3887 = vsel %vm3871, %v3821, -inf
        %v3888 = vsel %vm3870, %v3822, -inf
        %v3889 = vsel %vm3871, %v3823, -inf
        %v3890 = vsel %vm3870, %v3824, -inf
        %v3891 = vsel %vm3871, %v3825, -inf
        %v3892 = vsel %vm3870, %v3826, -inf
        %v3893 = vsel %vm3871, %v3827, -inf
        %v3894 = vsel %vm3870, %v3828, -inf
        %v3895 = vsel %vm3871, %v3829, -inf
        %v3896 = vsel %vm3870, %v3830, -inf
        %v3897 = vsel %vm3871, %v3831, -inf
        %v3898 = vsel %vm3870, %v3832, -inf
        %v3899 = vsel %vm3871, %v3833, -inf
        %v3900 = vsel %vm3870, %v3834, -inf
        %v3901 = vsel %vm3871, %v3835, -inf
        %v3902 = vsel %vm3870, %v3836, -inf
        %v3903 = vsel %vm3871, %v3837, -inf
        %v3904 = vsel %vm3870, %v3838, -inf
        %v3905 = vsel %vm3871, %v3839, -inf
        %v3906 = vsel %vm3870, %v3840, -inf
        %v3907 = vsel %vm3871, %v3841, -inf
        %v3908 = vsel %vm3870, %v3842, -inf
        %v3909 = vsel %vm3871, %v3843, -inf
        %v3910 = vsel %vm3870, %v3844, -inf
        %v3911 = vsel %vm3871, %v3845, -inf
        %v3912 = vsel %vm3870, %v3846, -inf
        %v3913 = vsel %vm3871, %v3847, -inf
        %v3914 = vsel %vm3870, %v3848, -inf
        %v3915 = vsel %vm3871, %v3849, -inf
        %v3916 = vsel %vm3870, %v3850, -inf
        %v3917 = vsel %vm3871, %v3851, -inf
        %v3918 = vsel %vm3870, %v3852, -inf
        %v3919 = vsel %vm3871, %v3853, -inf
        %v3920 = vsel %vm3870, %v3854, -inf
        %v3921 = vsel %vm3871, %v3855, -inf
        %v3922 = vsel %vm3870, %v3856, -inf
        %v3923 = vsel %vm3871, %v3857, -inf
        %v3924 = vsel %vm3870, %v3858, -inf
        %v3925 = vsel %vm3871, %v3859, -inf
        %v3926 = vsel %vm3870, %v3860, -inf
        %v3927 = vsel %vm3871, %v3861, -inf
        %v3928 = vsel %vm3870, %v3862, -inf
        %v3929 = vsel %vm3871, %v3863, -inf
        %v3930 = vsel %vm3870, %v3864, -inf
        %v3931 = vsel %vm3871, %v3865, -inf
        %v3932 = vsel %vm3870, %v3866, -inf
        %v3933 = vsel %vm3871, %v3867, -inf
        %v3934 = vsel %vm3870, %v3868, -inf
        %v3935 = vsel %vm3871, %v3869, -inf
        %v3936 = vmax.f32 %v3872, %v3873
        %v3937 = vrot.slane %v3936, 4
        %v3938 = vmax.f32 %v3936, %v3937
        %v3939 = vrot.slane %v3938, 2
        %v3940 = vmax.f32 %v3938, %v3939
        %v3941 = vrot.slane %v3940, 1
        %v3942 = vmax.f32 %v3940, %v3941
        %v3943 = vmax.f32 %v3874, %v3875
        %v3944 = vrot.slane %v3943, 4
        %v3945 = vmax.f32 %v3943, %v3944
        %v3946 = vrot.slane %v3945, 2
        %v3947 = vmax.f32 %v3945, %v3946
        %v3948 = vrot.slane %v3947, 1
        %v3949 = vmax.f32 %v3947, %v3948
        %v3950 = vmax.f32 %v3876, %v3877
        %v3951 = vrot.slane %v3950, 4
        %v3952 = vmax.f32 %v3950, %v3951
        %v3953 = vrot.slane %v3952, 2
        %v3954 = vmax.f32 %v3952, %v3953
        %v3955 = vrot.slane %v3954, 1
        %v3956 = vmax.f32 %v3954, %v3955
        %v3957 = vmax.f32 %v3878, %v3879
        %v3958 = vrot.slane %v3957, 4
        %v3959 = vmax.f32 %v3957, %v3958
        %v3960 = vrot.slane %v3959, 2
        %v3961 = vmax.f32 %v3959, %v3960
        %v3962 = vrot.slane %v3961, 1
        %v3963 = vmax.f32 %v3961, %v3962
        %v3964 = vmax.f32 %v3880, %v3881
        %v3965 = vrot.slane %v3964, 4
        %v3966 = vmax.f32 %v3964, %v3965
        %v3967 = vrot.slane %v3966, 2
        %v3968 = vmax.f32 %v3966, %v3967
        %v3969 = vrot.slane %v3968, 1
        %v3970 = vmax.f32 %v3968, %v3969
        %v3971 = vmax.f32 %v3882, %v3883
        %v3972 = vrot.slane %v3971, 4
        %v3973 = vmax.f32 %v3971, %v3972
        %v3974 = vrot.slane %v3973, 2
        %v3975 = vmax.f32 %v3973, %v3974
        %v3976 = vrot.slane %v3975, 1
        %v3977 = vmax.f32 %v3975, %v3976
        %v3978 = vmax.f32 %v3884, %v3885
        %v3979 = vrot.slane %v3978, 4
        %v3980 = vmax.f32 %v3978, %v3979
        %v3981 = vrot.slane %v3980, 2
        %v3982 = vmax.f32 %v3980, %v3981
        %v3983 = vrot.slane %v3982, 1
        %v3984 = vmax.f32 %v3982, %v3983
        %v3985 = vmax.f32 %v3886, %v3887
        %v3986 = vrot.slane %v3985, 4
        %v3987 = vmax.f32 %v3985, %v3986
        %v3988 = vrot.slane %v3987, 2
        %v3989 = vmax.f32 %v3987, %v3988
        %v3990 = vrot.slane %v3989, 1
        %v3991 = vmax.f32 %v3989, %v3990
        %v3992 = vmax.f32 %v3888, %v3889
        %v3993 = vrot.slane %v3992, 4
        %v3994 = vmax.f32 %v3992, %v3993
        %v3995 = vrot.slane %v3994, 2
        %v3996 = vmax.f32 %v3994, %v3995
        %v3997 = vrot.slane %v3996, 1
        %v3998 = vmax.f32 %v3996, %v3997
        %v3999 = vmax.f32 %v3890, %v3891
        %v4000 = vrot.slane %v3999, 4
        %v4001 = vmax.f32 %v3999, %v4000
        %v4002 = vrot.slane %v4001, 2
        %v4003 = vmax.f32 %v4001, %v4002
        %v4004 = vrot.slane %v4003, 1
        %v4005 = vmax.f32 %v4003, %v4004
        %v4006 = vmax.f32 %v3892, %v3893
        %v4007 = vrot.slane %v4006, 4
        %v4008 = vmax.f32 %v4006, %v4007
        %v4009 = vrot.slane %v4008, 2
        %v4010 = vmax.f32 %v4008, %v4009
        %v4011 = vrot.slane %v4010, 1
        %v4012 = vmax.f32 %v4010, %v4011
        %v4013 = vmax.f32 %v3894, %v3895
        %v4014 = vrot.slane %v4013, 4
        %v4015 = vmax.f32 %v4013, %v4014
        %v4016 = vrot.slane %v4015, 2
        %v4017 = vmax.f32 %v4015, %v4016
        %v4018 = vrot.slane %v4017, 1
        %v4019 = vmax.f32 %v4017, %v4018
        %v4020 = vmax.f32 %v3896, %v3897
        %v4021 = vrot.slane %v4020, 4
        %v4022 = vmax.f32 %v4020, %v4021
        %v4023 = vrot.slane %v4022, 2
        %v4024 = vmax.f32 %v4022, %v4023
        %v4025 = vrot.slane %v4024, 1
        %v4026 = vmax.f32 %v4024, %v4025
        %v4027 = vmax.f32 %v3898, %v3899
        %v4028 = vrot.slane %v4027, 4
        %v4029 = vmax.f32 %v4027, %v4028
        %v4030 = vrot.slane %v4029, 2
        %v4031 = vmax.f32 %v4029, %v4030
        %v4032 = vrot.slane %v4031, 1
        %v4033 = vmax.f32 %v4031, %v4032
        %v4034 = vmax.f32 %v3900, %v3901
        %v4035 = vrot.slane %v4034, 4
        %v4036 = vmax.f32 %v4034, %v4035
        %v4037 = vrot.slane %v4036, 2
        %v4038 = vmax.f32 %v4036, %v4037
        %v4039 = vrot.slane %v4038, 1
        %v4040 = vmax.f32 %v4038, %v4039
        %v4041 = vmax.f32 %v3902, %v3903
        %v4042 = vrot.slane %v4041, 4
        %v4043 = vmax.f32 %v4041, %v4042
        %v4044 = vrot.slane %v4043, 2
        %v4045 = vmax.f32 %v4043, %v4044
        %v4046 = vrot.slane %v4045, 1
        %v4047 = vmax.f32 %v4045, %v4046
        %v4048 = vmax.f32 %v3904, %v3905
        %v4049 = vrot.slane %v4048, 4
        %v4050 = vmax.f32 %v4048, %v4049
        %v4051 = vrot.slane %v4050, 2
        %v4052 = vmax.f32 %v4050, %v4051
        %v4053 = vrot.slane %v4052, 1
        %v4054 = vmax.f32 %v4052, %v4053
        %v4055 = vmax.f32 %v3906, %v3907
        %v4056 = vrot.slane %v4055, 4
        %v4057 = vmax.f32 %v4055, %v4056
        %v4058 = vrot.slane %v4057, 2
        %v4059 = vmax.f32 %v4057, %v4058
        %v4060 = vrot.slane %v4059, 1
        %v4061 = vmax.f32 %v4059, %v4060
        %v4062 = vmax.f32 %v3908, %v3909
        %v4063 = vrot.slane %v4062, 4
        %v4064 = vmax.f32 %v4062, %v4063
        %v4065 = vrot.slane %v4064, 2
        %v4066 = vmax.f32 %v4064, %v4065
        %v4067 = vrot.slane %v4066, 1
        %v4068 = vmax.f32 %v4066, %v4067
        %v4069 = vmax.f32 %v3910, %v3911
        %v4070 = vrot.slane %v4069, 4
        %v4071 = vmax.f32 %v4069, %v4070
        %v4072 = vrot.slane %v4071, 2
        %v4073 = vmax.f32 %v4071, %v4072
        %v4074 = vrot.slane %v4073, 1
        %v4075 = vmax.f32 %v4073, %v4074
        %v4076 = vmax.f32 %v3912, %v3913
        %v4077 = vrot.slane %v4076, 4
        %v4078 = vmax.f32 %v4076, %v4077
        %v4079 = vrot.slane %v4078, 2
        %v4080 = vmax.f32 %v4078, %v4079
        %v4081 = vrot.slane %v4080, 1
        %v4082 = vmax.f32 %v4080, %v4081
        %v4083 = vmax.f32 %v3914, %v3915
        %v4084 = vrot.slane %v4083, 4
        %v4085 = vmax.f32 %v4083, %v4084
        %v4086 = vrot.slane %v4085, 2
        %v4087 = vmax.f32 %v4085, %v4086
        %v4088 = vrot.slane %v4087, 1
        %v4089 = vmax.f32 %v4087, %v4088
        %v4090 = vmax.f32 %v3916, %v3917
        %v4091 = vrot.slane %v4090, 4
        %v4092 = vmax.f32 %v4090, %v4091
        %v4093 = vrot.slane %v4092, 2
        %v4094 = vmax.f32 %v4092, %v4093
        %v4095 = vrot.slane %v4094, 1
        %v4096 = vmax.f32 %v4094, %v4095
        %v4097 = vmax.f32 %v3918, %v3919
        %v4098 = vrot.slane %v4097, 4
        %v4099 = vmax.f32 %v4097, %v4098
        %v4100 = vrot.slane %v4099, 2
        %v4101 = vmax.f32 %v4099, %v4100
        %v4102 = vrot.slane %v4101, 1
        %v4103 = vmax.f32 %v4101, %v4102
        %v4104 = vmax.f32 %v3920, %v3921
        %v4105 = vrot.slane %v4104, 4
        %v4106 = vmax.f32 %v4104, %v4105
        %v4107 = vrot.slane %v4106, 2
        %v4108 = vmax.f32 %v4106, %v4107
        %v4109 = vrot.slane %v4108, 1
        %v4110 = vmax.f32 %v4108, %v4109
        %v4111 = vmax.f32 %v3922, %v3923
        %v4112 = vrot.slane %v4111, 4
        %v4113 = vmax.f32 %v4111, %v4112
        %v4114 = vrot.slane %v4113, 2
        %v4115 = vmax.f32 %v4113, %v4114
        %v4116 = vrot.slane %v4115, 1
        %v4117 = vmax.f32 %v4115, %v4116
        %v4118 = vmax.f32 %v3924, %v3925
        %v4119 = vrot.slane %v4118, 4
        %v4120 = vmax.f32 %v4118, %v4119
        %v4121 = vrot.slane %v4120, 2
        %v4122 = vmax.f32 %v4120, %v4121
        %v4123 = vrot.slane %v4122, 1
        %v4124 = vmax.f32 %v4122, %v4123
        %v4125 = vmax.f32 %v3926, %v3927
        %v4126 = vrot.slane %v4125, 4
        %v4127 = vmax.f32 %v4125, %v4126
        %v4128 = vrot.slane %v4127, 2
        %v4129 = vmax.f32 %v4127, %v4128
        %v4130 = vrot.slane %v4129, 1
        %v4131 = vmax.f32 %v4129, %v4130
        %v4132 = vmax.f32 %v3928, %v3929
        %v4133 = vrot.slane %v4132, 4
        %v4134 = vmax.f32 %v4132, %v4133
        %v4135 = vrot.slane %v4134, 2
        %v4136 = vmax.f32 %v4134, %v4135
        %v4137 = vrot.slane %v4136, 1
        %v4138 = vmax.f32 %v4136, %v4137
        %v4139 = vmax.f32 %v3930, %v3931
        %v4140 = vrot.slane %v4139, 4
        %v4141 = vmax.f32 %v4139, %v4140
        %v4142 = vrot.slane %v4141, 2
        %v4143 = vmax.f32 %v4141, %v4142
        %v4144 = vrot.slane %v4143, 1
        %v4145 = vmax.f32 %v4143, %v4144
        %v4146 = vmax.f32 %v3932, %v3933
        %v4147 = vrot.slane %v4146, 4
        %v4148 = vmax.f32 %v4146, %v4147
        %v4149 = vrot.slane %v4148, 2
        %v4150 = vmax.f32 %v4148, %v4149
        %v4151 = vrot.slane %v4150, 1
        %v4152 = vmax.f32 %v4150, %v4151
        %v4153 = vmax.f32 %v3934, %v3935
        %v4154 = vrot.slane %v4153, 4
        %v4155 = vmax.f32 %v4153, %v4154
        %v4156 = vrot.slane %v4155, 2
        %v4157 = vmax.f32 %v4155, %v4156
        %v4158 = vrot.slane %v4157, 1
        %v4159 = vmax.f32 %v4157, %v4158
        %v4160 = vld [vmem:[%s2] sm:$0x1]
        %v4162 = vlaneseq
        %v4163 = vshrl.u32 %v4162, 7
        %v4164 = vsub.s32 0, %v4163
        %v4165 = vrot.slane %v4160, %v4164
        %v4167 = vadd.f32 %v3942, %v4165
        %v4168 = vadd.f32 %v3949, %v4165
        %v4169 = vadd.f32 %v3956, %v4165
        %v4170 = vadd.f32 %v3963, %v4165
        %v4171 = vadd.f32 %v3970, %v4165
        %v4172 = vadd.f32 %v3977, %v4165
        %v4173 = vadd.f32 %v3984, %v4165
        %v4174 = vadd.f32 %v3991, %v4165
        %v4175 = vadd.f32 %v3998, %v4165
        %v4176 = vadd.f32 %v4005, %v4165
        %v4177 = vadd.f32 %v4012, %v4165
        %v4178 = vadd.f32 %v4019, %v4165
        %v4179 = vadd.f32 %v4026, %v4165
        %v4180 = vadd.f32 %v4033, %v4165
        %v4181 = vadd.f32 %v4040, %v4165
        %v4182 = vadd.f32 %v4047, %v4165
        %v4183 = vadd.f32 %v4054, %v4165
        %v4184 = vadd.f32 %v4061, %v4165
        %v4185 = vadd.f32 %v4068, %v4165
        %v4186 = vadd.f32 %v4075, %v4165
        %v4187 = vadd.f32 %v4082, %v4165
        %v4188 = vadd.f32 %v4089, %v4165
        %v4189 = vadd.f32 %v4096, %v4165
        %v4190 = vadd.f32 %v4103, %v4165
        %v4191 = vadd.f32 %v4110, %v4165
        %v4192 = vadd.f32 %v4117, %v4165
        %v4193 = vadd.f32 %v4124, %v4165
        %v4194 = vadd.f32 %v4131, %v4165
        %v4195 = vadd.f32 %v4138, %v4165
        %v4196 = vadd.f32 %v4145, %v4165
        %v4197 = vadd.f32 %v4152, %v4165
        %v4198 = vadd.f32 %v4159, %v4165
        %v4199 = vxor.u32 %v4167, 2147483648
        %v4200 = vxor.u32 %v4168, 2147483648
        %v4201 = vxor.u32 %v4169, 2147483648
        %v4202 = vxor.u32 %v4170, 2147483648
        %v4203 = vxor.u32 %v4171, 2147483648
        %v4204 = vxor.u32 %v4172, 2147483648
        %v4205 = vxor.u32 %v4173, 2147483648
        %v4206 = vxor.u32 %v4174, 2147483648
        %v4207 = vxor.u32 %v4175, 2147483648
        %v4208 = vxor.u32 %v4176, 2147483648
        %v4209 = vxor.u32 %v4177, 2147483648
        %v4210 = vxor.u32 %v4178, 2147483648
        %v4211 = vxor.u32 %v4179, 2147483648
        %v4212 = vxor.u32 %v4180, 2147483648
        %v4213 = vxor.u32 %v4181, 2147483648
        %v4214 = vxor.u32 %v4182, 2147483648
        %v4215 = vxor.u32 %v4183, 2147483648
        %v4216 = vxor.u32 %v4184, 2147483648
        %v4217 = vxor.u32 %v4185, 2147483648
        %v4218 = vxor.u32 %v4186, 2147483648
        %v4219 = vxor.u32 %v4187, 2147483648
        %v4220 = vxor.u32 %v4188, 2147483648
        %v4221 = vxor.u32 %v4189, 2147483648
        %v4222 = vxor.u32 %v4190, 2147483648
        %v4223 = vxor.u32 %v4191, 2147483648
        %v4224 = vxor.u32 %v4192, 2147483648
        %v4225 = vxor.u32 %v4193, 2147483648
        %v4226 = vxor.u32 %v4194, 2147483648
        %v4227 = vxor.u32 %v4195, 2147483648
        %v4228 = vxor.u32 %v4196, 2147483648
        %v4229 = vxor.u32 %v4197, 2147483648
        %v4230 = vxor.u32 %v4198, 2147483648
        %v4231 = vmul.f32 %v4199, 1.442695
        %v4232 = vpow.pop %v4231
        %v4233 = vmul.f32 %v4200, 1.442695
        %v4234 = vpow.pop %v4233
        %v4235 = vmul.f32 %v4201, 1.442695
        %v4236 = vpow.pop %v4235
        %v4237 = vmul.f32 %v4202, 1.442695
        %v4238 = vpow.pop %v4237
        %v4239 = vmul.f32 %v4203, 1.442695
        %v4240 = vpow.pop %v4239
        %v4241 = vmul.f32 %v4204, 1.442695
        %v4242 = vpow.pop %v4241
        %v4243 = vmul.f32 %v4205, 1.442695
        %v4244 = vpow.pop %v4243
        %v4245 = vmul.f32 %v4206, 1.442695
        %v4246 = vpow.pop %v4245
        %v4247 = vmul.f32 %v4207, 1.442695
        %v4248 = vpow.pop %v4247
        %v4249 = vmul.f32 %v4208, 1.442695
        %v4250 = vpow.pop %v4249
        %v4251 = vmul.f32 %v4209, 1.442695
        %v4252 = vpow.pop %v4251
        %v4253 = vmul.f32 %v4210, 1.442695
        %v4254 = vpow.pop %v4253
        %v4255 = vmul.f32 %v4211, 1.442695
        %v4256 = vpow.pop %v4255
        %v4257 = vmul.f32 %v4212, 1.442695
        %v4258 = vpow.pop %v4257
        %v4259 = vmul.f32 %v4213, 1.442695
        %v4260 = vpow.pop %v4259
        %v4261 = vmul.f32 %v4214, 1.442695
        %v4262 = vpow.pop %v4261
        %v4263 = vmul.f32 %v4215, 1.442695
        %v4264 = vpow.pop %v4263
        %v4265 = vmul.f32 %v4216, 1.442695
        %v4266 = vpow.pop %v4265
        %v4267 = vmul.f32 %v4217, 1.442695
        %v4268 = vpow.pop %v4267
        %v4269 = vmul.f32 %v4218, 1.442695
        %v4270 = vpow.pop %v4269
        %v4271 = vmul.f32 %v4219, 1.442695
        %v4272 = vpow.pop %v4271
        %v4273 = vmul.f32 %v4220, 1.442695
        %v4274 = vpow.pop %v4273
        %v4275 = vmul.f32 %v4221, 1.442695
        %v4276 = vpow.pop %v4275
        %v4277 = vmul.f32 %v4222, 1.442695
        %v4278 = vpow.pop %v4277
        %v4279 = vmul.f32 %v4223, 1.442695
        %v4280 = vpow.pop %v4279
        %v4281 = vmul.f32 %v4224, 1.442695
        %v4282 = vpow.pop %v4281
        %v4283 = vmul.f32 %v4225, 1.442695
        %v4284 = vpow.pop %v4283
        %v4285 = vmul.f32 %v4226, 1.442695
        %v4286 = vpow.pop %v4285
        %v4287 = vmul.f32 %v4227, 1.442695
        %v4288 = vpow.pop %v4287
        %v4289 = vmul.f32 %v4228, 1.442695
        %v4290 = vpow.pop %v4289
        %v4291 = vmul.f32 %v4229, 1.442695
        %v4292 = vpow.pop %v4291
        %v4293 = vmul.f32 %v4230, 1.442695
        %v4294 = vpow.pop %v4293
        %v4295 = vadd.f32 %v4232, 1.0
        %v4296 = vadd.f32 %v4234, 1.0
        %v4297 = vadd.f32 %v4236, 1.0
        %v4298 = vadd.f32 %v4238, 1.0
        %v4299 = vadd.f32 %v4240, 1.0
        %v4300 = vadd.f32 %v4242, 1.0
        %v4301 = vadd.f32 %v4244, 1.0
        %v4302 = vadd.f32 %v4246, 1.0
        %v4303 = vadd.f32 %v4248, 1.0
        %v4304 = vadd.f32 %v4250, 1.0
        %v4305 = vadd.f32 %v4252, 1.0
        %v4306 = vadd.f32 %v4254, 1.0
        %v4307 = vadd.f32 %v4256, 1.0
        %v4308 = vadd.f32 %v4258, 1.0
        %v4309 = vadd.f32 %v4260, 1.0
        %v4310 = vadd.f32 %v4262, 1.0
        %v4311 = vadd.f32 %v4264, 1.0
        %v4312 = vadd.f32 %v4266, 1.0
        %v4313 = vadd.f32 %v4268, 1.0
        %v4314 = vadd.f32 %v4270, 1.0
        %v4315 = vadd.f32 %v4272, 1.0
        %v4316 = vadd.f32 %v4274, 1.0
        %v4317 = vadd.f32 %v4276, 1.0
        %v4318 = vadd.f32 %v4278, 1.0
        %v4319 = vadd.f32 %v4280, 1.0
        %v4320 = vadd.f32 %v4282, 1.0
        %v4321 = vadd.f32 %v4284, 1.0
        %v4322 = vadd.f32 %v4286, 1.0
        %v4323 = vadd.f32 %v4288, 1.0
        %v4324 = vadd.f32 %v4290, 1.0
        %v4325 = vadd.f32 %v4292, 1.0
        %v4326 = vadd.f32 %v4294, 1.0
        %v4327 = vrcp.pop %v4295
        %v4328 = vmul.f32 1.0, %v4327
        %v4329 = vrcp.pop %v4296
        %v4330 = vmul.f32 1.0, %v4329
        %v4331 = vrcp.pop %v4297
        %v4332 = vmul.f32 1.0, %v4331
        %v4333 = vrcp.pop %v4298
        %v4334 = vmul.f32 1.0, %v4333
        %v4335 = vrcp.pop %v4299
        %v4336 = vmul.f32 1.0, %v4335
        %v4337 = vrcp.pop %v4300
        %v4338 = vmul.f32 1.0, %v4337
        %v4339 = vrcp.pop %v4301
        %v4340 = vmul.f32 1.0, %v4339
        %v4341 = vrcp.pop %v4302
        %v4342 = vmul.f32 1.0, %v4341
        %v4343 = vrcp.pop %v4303
        %v4344 = vmul.f32 1.0, %v4343
        %v4345 = vrcp.pop %v4304
        %v4346 = vmul.f32 1.0, %v4345
        %v4347 = vrcp.pop %v4305
        %v4348 = vmul.f32 1.0, %v4347
        %v4349 = vrcp.pop %v4306
        %v4350 = vmul.f32 1.0, %v4349
        %v4351 = vrcp.pop %v4307
        %v4352 = vmul.f32 1.0, %v4351
        %v4353 = vrcp.pop %v4308
        %v4354 = vmul.f32 1.0, %v4353
        %v4355 = vrcp.pop %v4309
        %v4356 = vmul.f32 1.0, %v4355
        %v4357 = vrcp.pop %v4310
        %v4358 = vmul.f32 1.0, %v4357
        %v4359 = vrcp.pop %v4311
        %v4360 = vmul.f32 1.0, %v4359
        %v4361 = vrcp.pop %v4312
        %v4362 = vmul.f32 1.0, %v4361
        %v4363 = vrcp.pop %v4313
        %v4364 = vmul.f32 1.0, %v4363
        %v4365 = vrcp.pop %v4314
        %v4366 = vmul.f32 1.0, %v4365
        %v4367 = vrcp.pop %v4315
        %v4368 = vmul.f32 1.0, %v4367
        %v4369 = vrcp.pop %v4316
        %v4370 = vmul.f32 1.0, %v4369
        %v4371 = vrcp.pop %v4317
        %v4372 = vmul.f32 1.0, %v4371
        %v4373 = vrcp.pop %v4318
        %v4374 = vmul.f32 1.0, %v4373
        %v4375 = vrcp.pop %v4319
        %v4376 = vmul.f32 1.0, %v4375
        %v4377 = vrcp.pop %v4320
        %v4378 = vmul.f32 1.0, %v4377
        %v4379 = vrcp.pop %v4321
        %v4380 = vmul.f32 1.0, %v4379
        %v4381 = vrcp.pop %v4322
        %v4382 = vmul.f32 1.0, %v4381
        %v4383 = vrcp.pop %v4323
        %v4384 = vmul.f32 1.0, %v4383
        %v4385 = vrcp.pop %v4324
        %v4386 = vmul.f32 1.0, %v4385
        %v4387 = vrcp.pop %v4325
        %v4388 = vmul.f32 1.0, %v4387
        %v4389 = vrcp.pop %v4326
        %v4390 = vmul.f32 1.0, %v4389
        %v4391 = vrot.slane %v1593, 1
        %v4392 = vrot.slane %v1603, 1
        %v4393 = vrot.slane %v1613, 1
        %v4394 = vrot.slane %v1623, 1
        %v4395 = vrot.slane %v1633, 1
        %v4396 = vrot.slane %v1643, 1
        %v4397 = vrot.slane %v1653, 1
        %v4398 = vrot.slane %v1663, 1
        %v4399 = vrot.slane %v1673, 1
        %v4400 = vrot.slane %v1683, 1
        %v4401 = vrot.slane %v1693, 1
        %v4402 = vrot.slane %v1703, 1
        %v4403 = vrot.slane %v1713, 1
        %v4404 = vrot.slane %v1723, 1
        %v4405 = vrot.slane %v1733, 1
        %v4406 = vrot.slane %v1743, 1
        %v4407 = vrot.slane %v1753, 1
        %v4408 = vrot.slane %v1763, 1
        %v4409 = vrot.slane %v1773, 1
        %v4410 = vrot.slane %v1783, 1
        %v4411 = vrot.slane %v1793, 1
        %v4412 = vrot.slane %v1803, 1
        %v4413 = vrot.slane %v1813, 1
        %v4414 = vrot.slane %v1823, 1
        %v4415 = vrot.slane %v1833, 1
        %v4416 = vrot.slane %v1843, 1
        %v4417 = vrot.slane %v1853, 1
        %v4418 = vrot.slane %v1863, 1
        %v4419 = vrot.slane %v1873, 1
        %v4420 = vrot.slane %v1883, 1
        %v4421 = vrot.slane %v1893, 1
        %v4422 = vrot.slane %v1903, 1
        %v4423 = vrot.slane %v1597, 1
        %v4424 = vrot.slane %v1607, 1
        %v4425 = vrot.slane %v1617, 1
        %v4426 = vrot.slane %v1627, 1
        %v4427 = vrot.slane %v1637, 1
        %v4428 = vrot.slane %v1647, 1
        %v4429 = vrot.slane %v1657, 1
        %v4430 = vrot.slane %v1667, 1
        %v4431 = vrot.slane %v1677, 1
        %v4432 = vrot.slane %v1687, 1
        %v4433 = vrot.slane %v1697, 1
        %v4434 = vrot.slane %v1707, 1
        %v4435 = vrot.slane %v1717, 1
        %v4436 = vrot.slane %v1727, 1
        %v4437 = vrot.slane %v1737, 1
        %v4438 = vrot.slane %v1747, 1
        %v4439 = vrot.slane %v1757, 1
        %v4440 = vrot.slane %v1767, 1
        %v4441 = vrot.slane %v1777, 1
        %v4442 = vrot.slane %v1787, 1
        %v4443 = vrot.slane %v1797, 1
        %v4444 = vrot.slane %v1807, 1
        %v4445 = vrot.slane %v1817, 1
        %v4446 = vrot.slane %v1827, 1
        %v4447 = vrot.slane %v1837, 1
        %v4448 = vrot.slane %v1847, 1
        %v4449 = vrot.slane %v1857, 1
        %v4450 = vrot.slane %v1867, 1
        %v4451 = vrot.slane %v1877, 1
        %v4452 = vrot.slane %v1887, 1
        %v4453 = vrot.slane %v1897, 1
        %v4454 = vrot.slane %v1907, 1
        %v4455 = vsel %vm3741, %v4391, %v4423
        %v4456 = vsel %vm3741, %v4392, %v4424
        %v4457 = vsel %vm3741, %v4393, %v4425
        %v4458 = vsel %vm3741, %v4394, %v4426
        %v4459 = vsel %vm3741, %v4395, %v4427
        %v4460 = vsel %vm3741, %v4396, %v4428
        %v4461 = vsel %vm3741, %v4397, %v4429
        %v4462 = vsel %vm3741, %v4398, %v4430
        %v4463 = vsel %vm3741, %v4399, %v4431
        %v4464 = vsel %vm3741, %v4400, %v4432
        %v4465 = vsel %vm3741, %v4401, %v4433
        %v4466 = vsel %vm3741, %v4402, %v4434
        %v4467 = vsel %vm3741, %v4403, %v4435
        %v4468 = vsel %vm3741, %v4404, %v4436
        %v4469 = vsel %vm3741, %v4405, %v4437
        %v4470 = vsel %vm3741, %v4406, %v4438
        %v4471 = vsel %vm3741, %v4407, %v4439
        %v4472 = vsel %vm3741, %v4408, %v4440
        %v4473 = vsel %vm3741, %v4409, %v4441
        %v4474 = vsel %vm3741, %v4410, %v4442
        %v4475 = vsel %vm3741, %v4411, %v4443
        %v4476 = vsel %vm3741, %v4412, %v4444
        %v4477 = vsel %vm3741, %v4413, %v4445
        %v4478 = vsel %vm3741, %v4414, %v4446
        %v4479 = vsel %vm3741, %v4415, %v4447
        %v4480 = vsel %vm3741, %v4416, %v4448
        %v4481 = vsel %vm3741, %v4417, %v4449
        %v4482 = vsel %vm3741, %v4418, %v4450
        %v4483 = vsel %vm3741, %v4419, %v4451
        %v4484 = vsel %vm3741, %v4420, %v4452
        %v4485 = vsel %vm3741, %v4421, %v4453
        %v4486 = vsel %vm3741, %v4422, %v4454
        %v4487 = vsel %vm3741, %v4423, %v4391
        %v4488 = vsel %vm3741, %v4424, %v4392
        %v4489 = vsel %vm3741, %v4425, %v4393
        %v4490 = vsel %vm3741, %v4426, %v4394
        %v4491 = vsel %vm3741, %v4427, %v4395
        %v4492 = vsel %vm3741, %v4428, %v4396
        %v4493 = vsel %vm3741, %v4429, %v4397
        %v4494 = vsel %vm3741, %v4430, %v4398
        %v4495 = vsel %vm3741, %v4431, %v4399
        %v4496 = vsel %vm3741, %v4432, %v4400
        %v4497 = vsel %vm3741, %v4433, %v4401
        %v4498 = vsel %vm3741, %v4434, %v4402
        %v4499 = vsel %vm3741, %v4435, %v4403
        %v4500 = vsel %vm3741, %v4436, %v4404
        %v4501 = vsel %vm3741, %v4437, %v4405
        %v4502 = vsel %vm3741, %v4438, %v4406
        %v4503 = vsel %vm3741, %v4439, %v4407
        %v4504 = vsel %vm3741, %v4440, %v4408
        %v4505 = vsel %vm3741, %v4441, %v4409
        %v4506 = vsel %vm3741, %v4442, %v4410
        %v4507 = vsel %vm3741, %v4443, %v4411
        %v4508 = vsel %vm3741, %v4444, %v4412
        %v4509 = vsel %vm3741, %v4445, %v4413
        %v4510 = vsel %vm3741, %v4446, %v4414
        %v4511 = vsel %vm3741, %v4447, %v4415
        %v4512 = vsel %vm3741, %v4448, %v4416
        %v4513 = vsel %vm3741, %v4449, %v4417
        %v4514 = vsel %vm3741, %v4450, %v4418
        %v4515 = vsel %vm3741, %v4451, %v4419
        %v4516 = vsel %vm3741, %v4452, %v4420
        %v4517 = vsel %vm3741, %v4453, %v4421
        %v4518 = vsel %vm3741, %v4454, %v4422
        %v4519 = vadd.f32 %v1591, %v4455
        %v4520 = vadd.f32 %v1595, %v4487
        %v4521 = vadd.f32 %v1601, %v4456
        %v4522 = vadd.f32 %v1605, %v4488
        %v4523 = vadd.f32 %v1611, %v4457
        %v4524 = vadd.f32 %v1615, %v4489
        %v4525 = vadd.f32 %v1621, %v4458
        %v4526 = vadd.f32 %v1625, %v4490
        %v4527 = vadd.f32 %v1631, %v4459
        %v4528 = vadd.f32 %v1635, %v4491
        %v4529 = vadd.f32 %v1641, %v4460
        %v4530 = vadd.f32 %v1645, %v4492
        %v4531 = vadd.f32 %v1651, %v4461
        %v4532 = vadd.f32 %v1655, %v4493
        %v4533 = vadd.f32 %v1661, %v4462
        %v4534 = vadd.f32 %v1665, %v4494
        %v4535 = vadd.f32 %v1671, %v4463
        %v4536 = vadd.f32 %v1675, %v4495
        %v4537 = vadd.f32 %v1681, %v4464
        %v4538 = vadd.f32 %v1685, %v4496
        %v4539 = vadd.f32 %v1691, %v4465
        %v4540 = vadd.f32 %v1695, %v4497
        %v4541 = vadd.f32 %v1701, %v4466
        %v4542 = vadd.f32 %v1705, %v4498
        %v4543 = vadd.f32 %v1711, %v4467
        %v4544 = vadd.f32 %v1715, %v4499
        %v4545 = vadd.f32 %v1721, %v4468
        %v4546 = vadd.f32 %v1725, %v4500
        %v4547 = vadd.f32 %v1731, %v4469
        %v4548 = vadd.f32 %v1735, %v4501
        %v4549 = vadd.f32 %v1741, %v4470
        %v4550 = vadd.f32 %v1745, %v4502
        %v4551 = vadd.f32 %v1751, %v4471
        %v4552 = vadd.f32 %v1755, %v4503
        %v4553 = vadd.f32 %v1761, %v4472
        %v4554 = vadd.f32 %v1765, %v4504
        %v4555 = vadd.f32 %v1771, %v4473
        %v4556 = vadd.f32 %v1775, %v4505
        %v4557 = vadd.f32 %v1781, %v4474
        %v4558 = vadd.f32 %v1785, %v4506
        %v4559 = vadd.f32 %v1791, %v4475
        %v4560 = vadd.f32 %v1795, %v4507
        %v4561 = vadd.f32 %v1801, %v4476
        %v4562 = vadd.f32 %v1805, %v4508
        %v4563 = vadd.f32 %v1811, %v4477
        %v4564 = vadd.f32 %v1815, %v4509
        %v4565 = vadd.f32 %v1821, %v4478
        %v4566 = vadd.f32 %v1825, %v4510
        %v4567 = vadd.f32 %v1831, %v4479
        %v4568 = vadd.f32 %v1835, %v4511
        %v4569 = vadd.f32 %v1841, %v4480
        %v4570 = vadd.f32 %v1845, %v4512
        %v4571 = vadd.f32 %v1851, %v4481
        %v4572 = vadd.f32 %v1855, %v4513
        %v4573 = vadd.f32 %v1861, %v4482
        %v4574 = vadd.f32 %v1865, %v4514
        %v4575 = vadd.f32 %v1871, %v4483
        %v4576 = vadd.f32 %v1875, %v4515
        %v4577 = vadd.f32 %v1881, %v4484
        %v4578 = vadd.f32 %v1885, %v4516
        %v4579 = vadd.f32 %v1891, %v4485
        %v4580 = vadd.f32 %v1895, %v4517
        %v4581 = vadd.f32 %v1901, %v4486
        %v4582 = vadd.f32 %v1905, %v4518
        %v4583 = vrot.slane %v1944, 2
        %v4584 = vrot.slane %v1954, 2
        %v4585 = vrot.slane %v1964, 2
        %v4586 = vrot.slane %v1974, 2
        %v4587 = vrot.slane %v1984, 2
        %v4588 = vrot.slane %v1994, 2
        %v4589 = vrot.slane %v2004, 2
        %v4590 = vrot.slane %v2014, 2
        %v4591 = vrot.slane %v2024, 2
        %v4592 = vrot.slane %v2034, 2
        %v4593 = vrot.slane %v2044, 2
        %v4594 = vrot.slane %v2054, 2
        %v4595 = vrot.slane %v2064, 2
        %v4596 = vrot.slane %v2074, 2
        %v4597 = vrot.slane %v2084, 2
        %v4598 = vrot.slane %v2094, 2
        %v4599 = vrot.slane %v2104, 2
        %v4600 = vrot.slane %v2114, 2
        %v4601 = vrot.slane %v2124, 2
        %v4602 = vrot.slane %v2134, 2
        %v4603 = vrot.slane %v2144, 2
        %v4604 = vrot.slane %v2154, 2
        %v4605 = vrot.slane %v2164, 2
        %v4606 = vrot.slane %v2174, 2
        %v4607 = vrot.slane %v2184, 2
        %v4608 = vrot.slane %v2194, 2
        %v4609 = vrot.slane %v2204, 2
        %v4610 = vrot.slane %v2214, 2
        %v4611 = vrot.slane %v2224, 2
        %v4612 = vrot.slane %v2234, 2
        %v4613 = vrot.slane %v2244, 2
        %v4614 = vrot.slane %v2254, 2
        %v4615 = vrot.slane %v1948, 2
        %v4616 = vrot.slane %v1958, 2
        %v4617 = vrot.slane %v1968, 2
        %v4618 = vrot.slane %v1978, 2
        %v4619 = vrot.slane %v1988, 2
        %v4620 = vrot.slane %v1998, 2
        %v4621 = vrot.slane %v2008, 2
        %v4622 = vrot.slane %v2018, 2
        %v4623 = vrot.slane %v2028, 2
        %v4624 = vrot.slane %v2038, 2
        %v4625 = vrot.slane %v2048, 2
        %v4626 = vrot.slane %v2058, 2
        %v4627 = vrot.slane %v2068, 2
        %v4628 = vrot.slane %v2078, 2
        %v4629 = vrot.slane %v2088, 2
        %v4630 = vrot.slane %v2098, 2
        %v4631 = vrot.slane %v2108, 2
        %v4632 = vrot.slane %v2118, 2
        %v4633 = vrot.slane %v2128, 2
        %v4634 = vrot.slane %v2138, 2
        %v4635 = vrot.slane %v2148, 2
        %v4636 = vrot.slane %v2158, 2
        %v4637 = vrot.slane %v2168, 2
        %v4638 = vrot.slane %v2178, 2
        %v4639 = vrot.slane %v2188, 2
        %v4640 = vrot.slane %v2198, 2
        %v4641 = vrot.slane %v2208, 2
        %v4642 = vrot.slane %v2218, 2
        %v4643 = vrot.slane %v2228, 2
        %v4644 = vrot.slane %v2238, 2
        %v4645 = vrot.slane %v2248, 2
        %v4646 = vrot.slane %v2258, 2
        %vm4647 = vcmp.lt.s32.totalorder %v3675, 6
        %v4648 = vsel %vm4647, %v4583, %v4615
        %v4649 = vsel %vm4647, %v4584, %v4616
        %v4650 = vsel %vm4647, %v4585, %v4617
        %v4651 = vsel %vm4647, %v4586, %v4618
        %v4652 = vsel %vm4647, %v4587, %v4619
        %v4653 = vsel %vm4647, %v4588, %v4620
        %v4654 = vsel %vm4647, %v4589, %v4621
        %v4655 = vsel %vm4647, %v4590, %v4622
        %v4656 = vsel %vm4647, %v4591, %v4623
        %v4657 = vsel %vm4647, %v4592, %v4624
        %v4658 = vsel %vm4647, %v4593, %v4625
        %v4659 = vsel %vm4647, %v4594, %v4626
        %v4660 = vsel %vm4647, %v4595, %v4627
        %v4661 = vsel %vm4647, %v4596, %v4628
        %v4662 = vsel %vm4647, %v4597, %v4629
        %v4663 = vsel %vm4647, %v4598, %v4630
        %v4664 = vsel %vm4647, %v4599, %v4631
        %v4665 = vsel %vm4647, %v4600, %v4632
        %v4666 = vsel %vm4647, %v4601, %v4633
        %v4667 = vsel %vm4647, %v4602, %v4634
        %v4668 = vsel %vm4647, %v4603, %v4635
        %v4669 = vsel %vm4647, %v4604, %v4636
        %v4670 = vsel %vm4647, %v4605, %v4637
        %v4671 = vsel %vm4647, %v4606, %v4638
        %v4672 = vsel %vm4647, %v4607, %v4639
        %v4673 = vsel %vm4647, %v4608, %v4640
        %v4674 = vsel %vm4647, %v4609, %v4641
        %v4675 = vsel %vm4647, %v4610, %v4642
        %v4676 = vsel %vm4647, %v4611, %v4643
        %v4677 = vsel %vm4647, %v4612, %v4644
        %v4678 = vsel %vm4647, %v4613, %v4645
        %v4679 = vsel %vm4647, %v4614, %v4646
        %v4680 = vsel %vm4647, %v4615, %v4583
        %v4681 = vsel %vm4647, %v4616, %v4584
        %v4682 = vsel %vm4647, %v4617, %v4585
        %v4683 = vsel %vm4647, %v4618, %v4586
        %v4684 = vsel %vm4647, %v4619, %v4587
        %v4685 = vsel %vm4647, %v4620, %v4588
        %v4686 = vsel %vm4647, %v4621, %v4589
        %v4687 = vsel %vm4647, %v4622, %v4590
        %v4688 = vsel %vm4647, %v4623, %v4591
        %v4689 = vsel %vm4647, %v4624, %v4592
        %v4690 = vsel %vm4647, %v4625, %v4593
        %v4691 = vsel %vm4647, %v4626, %v4594
        %v4692 = vsel %vm4647, %v4627, %v4595
        %v4693 = vsel %vm4647, %v4628, %v4596
        %v4694 = vsel %vm4647, %v4629, %v4597
        %v4695 = vsel %vm4647, %v4630, %v4598
        %v4696 = vsel %vm4647, %v4631, %v4599
        %v4697 = vsel %vm4647, %v4632, %v4600
        %v4698 = vsel %vm4647, %v4633, %v4601
        %v4699 = vsel %vm4647, %v4634, %v4602
        %v4700 = vsel %vm4647, %v4635, %v4603
        %v4701 = vsel %vm4647, %v4636, %v4604
        %v4702 = vsel %vm4647, %v4637, %v4605
        %v4703 = vsel %vm4647, %v4638, %v4606
        %v4704 = vsel %vm4647, %v4639, %v4607
        %v4705 = vsel %vm4647, %v4640, %v4608
        %v4706 = vsel %vm4647, %v4641, %v4609
        %v4707 = vsel %vm4647, %v4642, %v4610
        %v4708 = vsel %vm4647, %v4643, %v4611
        %v4709 = vsel %vm4647, %v4644, %v4612
        %v4710 = vsel %vm4647, %v4645, %v4613
        %v4711 = vsel %vm4647, %v4646, %v4614
        %v4712 = vadd.f32 %v4519, %v4648
        %v4713 = vadd.f32 %v4520, %v4680
        %v4714 = vadd.f32 %v4521, %v4649
        %v4715 = vadd.f32 %v4522, %v4681
        %v4716 = vadd.f32 %v4523, %v4650
        %v4717 = vadd.f32 %v4524, %v4682
        %v4718 = vadd.f32 %v4525, %v4651
        %v4719 = vadd.f32 %v4526, %v4683
        %v4720 = vadd.f32 %v4527, %v4652
        %v4721 = vadd.f32 %v4528, %v4684
        %v4722 = vadd.f32 %v4529, %v4653
        %v4723 = vadd.f32 %v4530, %v4685
        %v4724 = vadd.f32 %v4531, %v4654
        %v4725 = vadd.f32 %v4532, %v4686
        %v4726 = vadd.f32 %v4533, %v4655
        %v4727 = vadd.f32 %v4534, %v4687
        %v4728 = vadd.f32 %v4535, %v4656
        %v4729 = vadd.f32 %v4536, %v4688
        %v4730 = vadd.f32 %v4537, %v4657
        %v4731 = vadd.f32 %v4538, %v4689
        %v4732 = vadd.f32 %v4539, %v4658
        %v4733 = vadd.f32 %v4540, %v4690
        %v4734 = vadd.f32 %v4541, %v4659
        %v4735 = vadd.f32 %v4542, %v4691
        %v4736 = vadd.f32 %v4543, %v4660
        %v4737 = vadd.f32 %v4544, %v4692
        %v4738 = vadd.f32 %v4545, %v4661
        %v4739 = vadd.f32 %v4546, %v4693
        %v4740 = vadd.f32 %v4547, %v4662
        %v4741 = vadd.f32 %v4548, %v4694
        %v4742 = vadd.f32 %v4549, %v4663
        %v4743 = vadd.f32 %v4550, %v4695
        %v4744 = vadd.f32 %v4551, %v4664
        %v4745 = vadd.f32 %v4552, %v4696
        %v4746 = vadd.f32 %v4553, %v4665
        %v4747 = vadd.f32 %v4554, %v4697
        %v4748 = vadd.f32 %v4555, %v4666
        %v4749 = vadd.f32 %v4556, %v4698
        %v4750 = vadd.f32 %v4557, %v4667
        %v4751 = vadd.f32 %v4558, %v4699
        %v4752 = vadd.f32 %v4559, %v4668
        %v4753 = vadd.f32 %v4560, %v4700
        %v4754 = vadd.f32 %v4561, %v4669
        %v4755 = vadd.f32 %v4562, %v4701
        %v4756 = vadd.f32 %v4563, %v4670
        %v4757 = vadd.f32 %v4564, %v4702
        %v4758 = vadd.f32 %v4565, %v4671
        %v4759 = vadd.f32 %v4566, %v4703
        %v4760 = vadd.f32 %v4567, %v4672
        %v4761 = vadd.f32 %v4568, %v4704
        %v4762 = vadd.f32 %v4569, %v4673
        %v4763 = vadd.f32 %v4570, %v4705
        %v4764 = vadd.f32 %v4571, %v4674
        %v4765 = vadd.f32 %v4572, %v4706
        %v4766 = vadd.f32 %v4573, %v4675
        %v4767 = vadd.f32 %v4574, %v4707
        %v4768 = vadd.f32 %v4575, %v4676
        %v4769 = vadd.f32 %v4576, %v4708
        %v4770 = vadd.f32 %v4577, %v4677
        %v4771 = vadd.f32 %v4578, %v4709
        %v4772 = vadd.f32 %v4579, %v4678
        %v4773 = vadd.f32 %v4580, %v4710
        %v4774 = vadd.f32 %v4581, %v4679
        %v4775 = vadd.f32 %v4582, %v4711
        %vm4776 = vcmp.lt.s32.totalorder %v3675, 14
        %vm4777 = vcmp.lt.s32.totalorder %v3676, 14
        %v4778 = vsel %vm4776, %v4712, -inf
        %v4779 = vsel %vm4777, %v4713, -inf
        %v4780 = vsel %vm4776, %v4714, -inf
        %v4781 = vsel %vm4777, %v4715, -inf
        %v4782 = vsel %vm4776, %v4716, -inf
        %v4783 = vsel %vm4777, %v4717, -inf
        %v4784 = vsel %vm4776, %v4718, -inf
        %v4785 = vsel %vm4777, %v4719, -inf
        %v4786 = vsel %vm4776, %v4720, -inf
        %v4787 = vsel %vm4777, %v4721, -inf
        %v4788 = vsel %vm4776, %v4722, -inf
        %v4789 = vsel %vm4777, %v4723, -inf
        %v4790 = vsel %vm4776, %v4724, -inf
        %v4791 = vsel %vm4777, %v4725, -inf
        %v4792 = vsel %vm4776, %v4726, -inf
        %v4793 = vsel %vm4777, %v4727, -inf
        %v4794 = vsel %vm4776, %v4728, -inf
        %v4795 = vsel %vm4777, %v4729, -inf
        %v4796 = vsel %vm4776, %v4730, -inf
        %v4797 = vsel %vm4777, %v4731, -inf
        %v4798 = vsel %vm4776, %v4732, -inf
        %v4799 = vsel %vm4777, %v4733, -inf
        %v4800 = vsel %vm4776, %v4734, -inf
        %v4801 = vsel %vm4777, %v4735, -inf
        %v4802 = vsel %vm4776, %v4736, -inf
        %v4803 = vsel %vm4777, %v4737, -inf
        %v4804 = vsel %vm4776, %v4738, -inf
        %v4805 = vsel %vm4777, %v4739, -inf
        %v4806 = vsel %vm4776, %v4740, -inf
        %v4807 = vsel %vm4777, %v4741, -inf
        %v4808 = vsel %vm4776, %v4742, -inf
        %v4809 = vsel %vm4777, %v4743, -inf
        %v4810 = vsel %vm4776, %v4744, -inf
        %v4811 = vsel %vm4777, %v4745, -inf
        %v4812 = vsel %vm4776, %v4746, -inf
        %v4813 = vsel %vm4777, %v4747, -inf
        %v4814 = vsel %vm4776, %v4748, -inf
        %v4815 = vsel %vm4777, %v4749, -inf
        %v4816 = vsel %vm4776, %v4750, -inf
        %v4817 = vsel %vm4777, %v4751, -inf
        %v4818 = vsel %vm4776, %v4752, -inf
        %v4819 = vsel %vm4777, %v4753, -inf
        %v4820 = vsel %vm4776, %v4754, -inf
        %v4821 = vsel %vm4777, %v4755, -inf
        %v4822 = vsel %vm4776, %v4756, -inf
        %v4823 = vsel %vm4777, %v4757, -inf
        %v4824 = vsel %vm4776, %v4758, -inf
        %v4825 = vsel %vm4777, %v4759, -inf
        %v4826 = vsel %vm4776, %v4760, -inf
        %v4827 = vsel %vm4777, %v4761, -inf
        %v4828 = vsel %vm4776, %v4762, -inf
        %v4829 = vsel %vm4777, %v4763, -inf
        %v4830 = vsel %vm4776, %v4764, -inf
        %v4831 = vsel %vm4777, %v4765, -inf
        %v4832 = vsel %vm4776, %v4766, -inf
        %v4833 = vsel %vm4777, %v4767, -inf
        %v4834 = vsel %vm4776, %v4768, -inf
        %v4835 = vsel %vm4777, %v4769, -inf
        %v4836 = vsel %vm4776, %v4770, -inf
        %v4837 = vsel %vm4777, %v4771, -inf
        %v4838 = vsel %vm4776, %v4772, -inf
        %v4839 = vsel %vm4777, %v4773, -inf
        %v4840 = vsel %vm4776, %v4774, -inf
        %v4841 = vsel %vm4777, %v4775, -inf
        %v4842 = vmax.f32 %v4778, %v4779
        %v4843 = vrot.slane %v4842, 4
        %v4844 = vmax.f32 %v4842, %v4843
        %v4845 = vrot.slane %v4844, 2
        %v4846 = vmax.f32 %v4844, %v4845
        %v4847 = vrot.slane %v4846, 1
        %v4848 = vmax.f32 %v4846, %v4847
        %v4849 = vmax.f32 %v4780, %v4781
        %v4850 = vrot.slane %v4849, 4
        %v4851 = vmax.f32 %v4849, %v4850
        %v4852 = vrot.slane %v4851, 2
        %v4853 = vmax.f32 %v4851, %v4852
        %v4854 = vrot.slane %v4853, 1
        %v4855 = vmax.f32 %v4853, %v4854
        %v4856 = vmax.f32 %v4782, %v4783
        %v4857 = vrot.slane %v4856, 4
        %v4858 = vmax.f32 %v4856, %v4857
        %v4859 = vrot.slane %v4858, 2
        %v4860 = vmax.f32 %v4858, %v4859
        %v4861 = vrot.slane %v4860, 1
        %v4862 = vmax.f32 %v4860, %v4861
        %v4863 = vmax.f32 %v4784, %v4785
        %v4864 = vrot.slane %v4863, 4
        %v4865 = vmax.f32 %v4863, %v4864
        %v4866 = vrot.slane %v4865, 2
        %v4867 = vmax.f32 %v4865, %v4866
        %v4868 = vrot.slane %v4867, 1
        %v4869 = vmax.f32 %v4867, %v4868
        %v4870 = vmax.f32 %v4786, %v4787
        %v4871 = vrot.slane %v4870, 4
        %v4872 = vmax.f32 %v4870, %v4871
        %v4873 = vrot.slane %v4872, 2
        %v4874 = vmax.f32 %v4872, %v4873
        %v4875 = vrot.slane %v4874, 1
        %v4876 = vmax.f32 %v4874, %v4875
        %v4877 = vmax.f32 %v4788, %v4789
        %v4878 = vrot.slane %v4877, 4
        %v4879 = vmax.f32 %v4877, %v4878
        %v4880 = vrot.slane %v4879, 2
        %v4881 = vmax.f32 %v4879, %v4880
        %v4882 = vrot.slane %v4881, 1
        %v4883 = vmax.f32 %v4881, %v4882
        %v4884 = vmax.f32 %v4790, %v4791
        %v4885 = vrot.slane %v4884, 4
        %v4886 = vmax.f32 %v4884, %v4885
        %v4887 = vrot.slane %v4886, 2
        %v4888 = vmax.f32 %v4886, %v4887
        %v4889 = vrot.slane %v4888, 1
        %v4890 = vmax.f32 %v4888, %v4889
        %v4891 = vmax.f32 %v4792, %v4793
        %v4892 = vrot.slane %v4891, 4
        %v4893 = vmax.f32 %v4891, %v4892
        %v4894 = vrot.slane %v4893, 2
        %v4895 = vmax.f32 %v4893, %v4894
        %v4896 = vrot.slane %v4895, 1
        %v4897 = vmax.f32 %v4895, %v4896
        %v4898 = vmax.f32 %v4794, %v4795
        %v4899 = vrot.slane %v4898, 4
        %v4900 = vmax.f32 %v4898, %v4899
        %v4901 = vrot.slane %v4900, 2
        %v4902 = vmax.f32 %v4900, %v4901
        %v4903 = vrot.slane %v4902, 1
        %v4904 = vmax.f32 %v4902, %v4903
        %v4905 = vmax.f32 %v4796, %v4797
        %v4906 = vrot.slane %v4905, 4
        %v4907 = vmax.f32 %v4905, %v4906
        %v4908 = vrot.slane %v4907, 2
        %v4909 = vmax.f32 %v4907, %v4908
        %v4910 = vrot.slane %v4909, 1
        %v4911 = vmax.f32 %v4909, %v4910
        %v4912 = vmax.f32 %v4798, %v4799
        %v4913 = vrot.slane %v4912, 4
        %v4914 = vmax.f32 %v4912, %v4913
        %v4915 = vrot.slane %v4914, 2
        %v4916 = vmax.f32 %v4914, %v4915
        %v4917 = vrot.slane %v4916, 1
        %v4918 = vmax.f32 %v4916, %v4917
        %v4919 = vmax.f32 %v4800, %v4801
        %v4920 = vrot.slane %v4919, 4
        %v4921 = vmax.f32 %v4919, %v4920
        %v4922 = vrot.slane %v4921, 2
        %v4923 = vmax.f32 %v4921, %v4922
        %v4924 = vrot.slane %v4923, 1
        %v4925 = vmax.f32 %v4923, %v4924
        %v4926 = vmax.f32 %v4802, %v4803
        %v4927 = vrot.slane %v4926, 4
        %v4928 = vmax.f32 %v4926, %v4927
        %v4929 = vrot.slane %v4928, 2
        %v4930 = vmax.f32 %v4928, %v4929
        %v4931 = vrot.slane %v4930, 1
        %v4932 = vmax.f32 %v4930, %v4931
        %v4933 = vmax.f32 %v4804, %v4805
        %v4934 = vrot.slane %v4933, 4
        %v4935 = vmax.f32 %v4933, %v4934
        %v4936 = vrot.slane %v4935, 2
        %v4937 = vmax.f32 %v4935, %v4936
        %v4938 = vrot.slane %v4937, 1
        %v4939 = vmax.f32 %v4937, %v4938
        %v4940 = vmax.f32 %v4806, %v4807
        %v4941 = vrot.slane %v4940, 4
        %v4942 = vmax.f32 %v4940, %v4941
        %v4943 = vrot.slane %v4942, 2
        %v4944 = vmax.f32 %v4942, %v4943
        %v4945 = vrot.slane %v4944, 1
        %v4946 = vmax.f32 %v4944, %v4945
        %v4947 = vmax.f32 %v4808, %v4809
        %v4948 = vrot.slane %v4947, 4
        %v4949 = vmax.f32 %v4947, %v4948
        %v4950 = vrot.slane %v4949, 2
        %v4951 = vmax.f32 %v4949, %v4950
        %v4952 = vrot.slane %v4951, 1
        %v4953 = vmax.f32 %v4951, %v4952
        %v4954 = vmax.f32 %v4810, %v4811
        %v4955 = vrot.slane %v4954, 4
        %v4956 = vmax.f32 %v4954, %v4955
        %v4957 = vrot.slane %v4956, 2
        %v4958 = vmax.f32 %v4956, %v4957
        %v4959 = vrot.slane %v4958, 1
        %v4960 = vmax.f32 %v4958, %v4959
        %v4961 = vmax.f32 %v4812, %v4813
        %v4962 = vrot.slane %v4961, 4
        %v4963 = vmax.f32 %v4961, %v4962
        %v4964 = vrot.slane %v4963, 2
        %v4965 = vmax.f32 %v4963, %v4964
        %v4966 = vrot.slane %v4965, 1
        %v4967 = vmax.f32 %v4965, %v4966
        %v4968 = vmax.f32 %v4814, %v4815
        %v4969 = vrot.slane %v4968, 4
        %v4970 = vmax.f32 %v4968, %v4969
        %v4971 = vrot.slane %v4970, 2
        %v4972 = vmax.f32 %v4970, %v4971
        %v4973 = vrot.slane %v4972, 1
        %v4974 = vmax.f32 %v4972, %v4973
        %v4975 = vmax.f32 %v4816, %v4817
        %v4976 = vrot.slane %v4975, 4
        %v4977 = vmax.f32 %v4975, %v4976
        %v4978 = vrot.slane %v4977, 2
        %v4979 = vmax.f32 %v4977, %v4978
        %v4980 = vrot.slane %v4979, 1
        %v4981 = vmax.f32 %v4979, %v4980
        %v4982 = vmax.f32 %v4818, %v4819
        %v4983 = vrot.slane %v4982, 4
        %v4984 = vmax.f32 %v4982, %v4983
        %v4985 = vrot.slane %v4984, 2
        %v4986 = vmax.f32 %v4984, %v4985
        %v4987 = vrot.slane %v4986, 1
        %v4988 = vmax.f32 %v4986, %v4987
        %v4989 = vmax.f32 %v4820, %v4821
        %v4990 = vrot.slane %v4989, 4
        %v4991 = vmax.f32 %v4989, %v4990
        %v4992 = vrot.slane %v4991, 2
        %v4993 = vmax.f32 %v4991, %v4992
        %v4994 = vrot.slane %v4993, 1
        %v4995 = vmax.f32 %v4993, %v4994
        %v4996 = vmax.f32 %v4822, %v4823
        %v4997 = vrot.slane %v4996, 4
        %v4998 = vmax.f32 %v4996, %v4997
        %v4999 = vrot.slane %v4998, 2
        %v5000 = vmax.f32 %v4998, %v4999
        %v5001 = vrot.slane %v5000, 1
        %v5002 = vmax.f32 %v5000, %v5001
        %v5003 = vmax.f32 %v4824, %v4825
        %v5004 = vrot.slane %v5003, 4
        %v5005 = vmax.f32 %v5003, %v5004
        %v5006 = vrot.slane %v5005, 2
        %v5007 = vmax.f32 %v5005, %v5006
        %v5008 = vrot.slane %v5007, 1
        %v5009 = vmax.f32 %v5007, %v5008
        %v5010 = vmax.f32 %v4826, %v4827
        %v5011 = vrot.slane %v5010, 4
        %v5012 = vmax.f32 %v5010, %v5011
        %v5013 = vrot.slane %v5012, 2
        %v5014 = vmax.f32 %v5012, %v5013
        %v5015 = vrot.slane %v5014, 1
        %v5016 = vmax.f32 %v5014, %v5015
        %v5017 = vmax.f32 %v4828, %v4829
        %v5018 = vrot.slane %v5017, 4
        %v5019 = vmax.f32 %v5017, %v5018
        %v5020 = vrot.slane %v5019, 2
        %v5021 = vmax.f32 %v5019, %v5020
        %v5022 = vrot.slane %v5021, 1
        %v5023 = vmax.f32 %v5021, %v5022
        %v5024 = vmax.f32 %v4830, %v4831
        %v5025 = vrot.slane %v5024, 4
        %v5026 = vmax.f32 %v5024, %v5025
        %v5027 = vrot.slane %v5026, 2
        %v5028 = vmax.f32 %v5026, %v5027
        %v5029 = vrot.slane %v5028, 1
        %v5030 = vmax.f32 %v5028, %v5029
        %v5031 = vmax.f32 %v4832, %v4833
        %v5032 = vrot.slane %v5031, 4
        %v5033 = vmax.f32 %v5031, %v5032
        %v5034 = vrot.slane %v5033, 2
        %v5035 = vmax.f32 %v5033, %v5034
        %v5036 = vrot.slane %v5035, 1
        %v5037 = vmax.f32 %v5035, %v5036
        %v5038 = vmax.f32 %v4834, %v4835
        %v5039 = vrot.slane %v5038, 4
        %v5040 = vmax.f32 %v5038, %v5039
        %v5041 = vrot.slane %v5040, 2
        %v5042 = vmax.f32 %v5040, %v5041
        %v5043 = vrot.slane %v5042, 1
        %v5044 = vmax.f32 %v5042, %v5043
        %v5045 = vmax.f32 %v4836, %v4837
        %v5046 = vrot.slane %v5045, 4
        %v5047 = vmax.f32 %v5045, %v5046
        %v5048 = vrot.slane %v5047, 2
        %v5049 = vmax.f32 %v5047, %v5048
        %v5050 = vrot.slane %v5049, 1
        %v5051 = vmax.f32 %v5049, %v5050
        %v5052 = vmax.f32 %v4838, %v4839
        %v5053 = vrot.slane %v5052, 4
        %v5054 = vmax.f32 %v5052, %v5053
        %v5055 = vrot.slane %v5054, 2
        %v5056 = vmax.f32 %v5054, %v5055
        %v5057 = vrot.slane %v5056, 1
        %v5058 = vmax.f32 %v5056, %v5057
        %v5059 = vmax.f32 %v4840, %v4841
        %v5060 = vrot.slane %v5059, 4
        %v5061 = vmax.f32 %v5059, %v5060
        %v5062 = vrot.slane %v5061, 2
        %v5063 = vmax.f32 %v5061, %v5062
        %v5064 = vrot.slane %v5063, 1
        %v5065 = vmax.f32 %v5063, %v5064
        %v5066 = vld [vmem:[%s2 + $0x1] sm:$0x1]
        %v5068 = vlaneseq
        %v5069 = vshrl.u32 %v5068, 7
        %v5070 = vsub.s32 0, %v5069
        %v5071 = vrot.slane %v5066, %v5070
        %v5073 = vadd.f32 %v4848, %v5071
        %v5074 = vadd.f32 %v4855, %v5071
        %v5075 = vadd.f32 %v4862, %v5071
        %v5076 = vadd.f32 %v4869, %v5071
        %v5077 = vadd.f32 %v4876, %v5071
        %v5078 = vadd.f32 %v4883, %v5071
        %v5079 = vadd.f32 %v4890, %v5071
        %v5080 = vadd.f32 %v4897, %v5071
        %v5081 = vadd.f32 %v4904, %v5071
        %v5082 = vadd.f32 %v4911, %v5071
        %v5083 = vadd.f32 %v4918, %v5071
        %v5084 = vadd.f32 %v4925, %v5071
        %v5085 = vadd.f32 %v4932, %v5071
        %v5086 = vadd.f32 %v4939, %v5071
        %v5087 = vadd.f32 %v4946, %v5071
        %v5088 = vadd.f32 %v4953, %v5071
        %v5089 = vadd.f32 %v4960, %v5071
        %v5090 = vadd.f32 %v4967, %v5071
        %v5091 = vadd.f32 %v4974, %v5071
        %v5092 = vadd.f32 %v4981, %v5071
        %v5093 = vadd.f32 %v4988, %v5071
        %v5094 = vadd.f32 %v4995, %v5071
        %v5095 = vadd.f32 %v5002, %v5071
        %v5096 = vadd.f32 %v5009, %v5071
        %v5097 = vadd.f32 %v5016, %v5071
        %v5098 = vadd.f32 %v5023, %v5071
        %v5099 = vadd.f32 %v5030, %v5071
        %v5100 = vadd.f32 %v5037, %v5071
        %v5101 = vadd.f32 %v5044, %v5071
        %v5102 = vadd.f32 %v5051, %v5071
        %v5103 = vadd.f32 %v5058, %v5071
        %v5104 = vadd.f32 %v5065, %v5071
        %v5105 = vxor.u32 %v5073, 2147483648
        %v5106 = vxor.u32 %v5074, 2147483648
        %v5107 = vxor.u32 %v5075, 2147483648
        %v5108 = vxor.u32 %v5076, 2147483648
        %v5109 = vxor.u32 %v5077, 2147483648
        %v5110 = vxor.u32 %v5078, 2147483648
        %v5111 = vxor.u32 %v5079, 2147483648
        %v5112 = vxor.u32 %v5080, 2147483648
        %v5113 = vxor.u32 %v5081, 2147483648
        %v5114 = vxor.u32 %v5082, 2147483648
        %v5115 = vxor.u32 %v5083, 2147483648
        %v5116 = vxor.u32 %v5084, 2147483648
        %v5117 = vxor.u32 %v5085, 2147483648
        %v5118 = vxor.u32 %v5086, 2147483648
        %v5119 = vxor.u32 %v5087, 2147483648
        %v5120 = vxor.u32 %v5088, 2147483648
        %v5121 = vxor.u32 %v5089, 2147483648
        %v5122 = vxor.u32 %v5090, 2147483648
        %v5123 = vxor.u32 %v5091, 2147483648
        %v5124 = vxor.u32 %v5092, 2147483648
        %v5125 = vxor.u32 %v5093, 2147483648
        %v5126 = vxor.u32 %v5094, 2147483648
        %v5127 = vxor.u32 %v5095, 2147483648
        %v5128 = vxor.u32 %v5096, 2147483648
        %v5129 = vxor.u32 %v5097, 2147483648
        %v5130 = vxor.u32 %v5098, 2147483648
        %v5131 = vxor.u32 %v5099, 2147483648
        %v5132 = vxor.u32 %v5100, 2147483648
        %v5133 = vxor.u32 %v5101, 2147483648
        %v5134 = vxor.u32 %v5102, 2147483648
        %v5135 = vxor.u32 %v5103, 2147483648
        %v5136 = vxor.u32 %v5104, 2147483648
        %v5137 = vmul.f32 %v5105, 1.442695
        %v5138 = vpow.pop %v5137
        %v5139 = vmul.f32 %v5106, 1.442695
        %v5140 = vpow.pop %v5139
        %v5141 = vmul.f32 %v5107, 1.442695
        %v5142 = vpow.pop %v5141
        %v5143 = vmul.f32 %v5108, 1.442695
        %v5144 = vpow.pop %v5143
        %v5145 = vmul.f32 %v5109, 1.442695
        %v5146 = vpow.pop %v5145
        %v5147 = vmul.f32 %v5110, 1.442695
        %v5148 = vpow.pop %v5147
        %v5149 = vmul.f32 %v5111, 1.442695
        %v5150 = vpow.pop %v5149
        %v5151 = vmul.f32 %v5112, 1.442695
        %v5152 = vpow.pop %v5151
        %v5153 = vmul.f32 %v5113, 1.442695
        %v5154 = vpow.pop %v5153
        %v5155 = vmul.f32 %v5114, 1.442695
        %v5156 = vpow.pop %v5155
        %v5157 = vmul.f32 %v5115, 1.442695
        %v5158 = vpow.pop %v5157
        %v5159 = vmul.f32 %v5116, 1.442695
        %v5160 = vpow.pop %v5159
        %v5161 = vmul.f32 %v5117, 1.442695
        %v5162 = vpow.pop %v5161
        %v5163 = vmul.f32 %v5118, 1.442695
        %v5164 = vpow.pop %v5163
        %v5165 = vmul.f32 %v5119, 1.442695
        %v5166 = vpow.pop %v5165
        %v5167 = vmul.f32 %v5120, 1.442695
        %v5168 = vpow.pop %v5167
        %v5169 = vmul.f32 %v5121, 1.442695
        %v5170 = vpow.pop %v5169
        %v5171 = vmul.f32 %v5122, 1.442695
        %v5172 = vpow.pop %v5171
        %v5173 = vmul.f32 %v5123, 1.442695
        %v5174 = vpow.pop %v5173
        %v5175 = vmul.f32 %v5124, 1.442695
        %v5176 = vpow.pop %v5175
        %v5177 = vmul.f32 %v5125, 1.442695
        %v5178 = vpow.pop %v5177
        %v5179 = vmul.f32 %v5126, 1.442695
        %v5180 = vpow.pop %v5179
        %v5181 = vmul.f32 %v5127, 1.442695
        %v5182 = vpow.pop %v5181
        %v5183 = vmul.f32 %v5128, 1.442695
        %v5184 = vpow.pop %v5183
        %v5185 = vmul.f32 %v5129, 1.442695
        %v5186 = vpow.pop %v5185
        %v5187 = vmul.f32 %v5130, 1.442695
        %v5188 = vpow.pop %v5187
        %v5189 = vmul.f32 %v5131, 1.442695
        %v5190 = vpow.pop %v5189
        %v5191 = vmul.f32 %v5132, 1.442695
        %v5192 = vpow.pop %v5191
        %v5193 = vmul.f32 %v5133, 1.442695
        %v5194 = vpow.pop %v5193
        %v5195 = vmul.f32 %v5134, 1.442695
        %v5196 = vpow.pop %v5195
        %v5197 = vmul.f32 %v5135, 1.442695
        %v5198 = vpow.pop %v5197
        %v5199 = vmul.f32 %v5136, 1.442695
        %v5200 = vpow.pop %v5199
        %v5201 = vadd.f32 %v5138, 1.0
        %v5202 = vadd.f32 %v5140, 1.0
        %v5203 = vadd.f32 %v5142, 1.0
        %v5204 = vadd.f32 %v5144, 1.0
        %v5205 = vadd.f32 %v5146, 1.0
        %v5206 = vadd.f32 %v5148, 1.0
        %v5207 = vadd.f32 %v5150, 1.0
        %v5208 = vadd.f32 %v5152, 1.0
        %v5209 = vadd.f32 %v5154, 1.0
        %v5210 = vadd.f32 %v5156, 1.0
        %v5211 = vadd.f32 %v5158, 1.0
        %v5212 = vadd.f32 %v5160, 1.0
        %v5213 = vadd.f32 %v5162, 1.0
        %v5214 = vadd.f32 %v5164, 1.0
        %v5215 = vadd.f32 %v5166, 1.0
        %v5216 = vadd.f32 %v5168, 1.0
        %v5217 = vadd.f32 %v5170, 1.0
        %v5218 = vadd.f32 %v5172, 1.0
        %v5219 = vadd.f32 %v5174, 1.0
        %v5220 = vadd.f32 %v5176, 1.0
        %v5221 = vadd.f32 %v5178, 1.0
        %v5222 = vadd.f32 %v5180, 1.0
        %v5223 = vadd.f32 %v5182, 1.0
        %v5224 = vadd.f32 %v5184, 1.0
        %v5225 = vadd.f32 %v5186, 1.0
        %v5226 = vadd.f32 %v5188, 1.0
        %v5227 = vadd.f32 %v5190, 1.0
        %v5228 = vadd.f32 %v5192, 1.0
        %v5229 = vadd.f32 %v5194, 1.0
        %v5230 = vadd.f32 %v5196, 1.0
        %v5231 = vadd.f32 %v5198, 1.0
        %v5232 = vadd.f32 %v5200, 1.0
        %v5233 = vrcp.pop %v5201
        %v5234 = vmul.f32 1.0, %v5233
        %v5235 = vrcp.pop %v5202
        %v5236 = vmul.f32 1.0, %v5235
        %v5237 = vrcp.pop %v5203
        %v5238 = vmul.f32 1.0, %v5237
        %v5239 = vrcp.pop %v5204
        %v5240 = vmul.f32 1.0, %v5239
        %v5241 = vrcp.pop %v5205
        %v5242 = vmul.f32 1.0, %v5241
        %v5243 = vrcp.pop %v5206
        %v5244 = vmul.f32 1.0, %v5243
        %v5245 = vrcp.pop %v5207
        %v5246 = vmul.f32 1.0, %v5245
        %v5247 = vrcp.pop %v5208
        %v5248 = vmul.f32 1.0, %v5247
        %v5249 = vrcp.pop %v5209
        %v5250 = vmul.f32 1.0, %v5249
        %v5251 = vrcp.pop %v5210
        %v5252 = vmul.f32 1.0, %v5251
        %v5253 = vrcp.pop %v5211
        %v5254 = vmul.f32 1.0, %v5253
        %v5255 = vrcp.pop %v5212
        %v5256 = vmul.f32 1.0, %v5255
        %v5257 = vrcp.pop %v5213
        %v5258 = vmul.f32 1.0, %v5257
        %v5259 = vrcp.pop %v5214
        %v5260 = vmul.f32 1.0, %v5259
        %v5261 = vrcp.pop %v5215
        %v5262 = vmul.f32 1.0, %v5261
        %v5263 = vrcp.pop %v5216
        %v5264 = vmul.f32 1.0, %v5263
        %v5265 = vrcp.pop %v5217
        %v5266 = vmul.f32 1.0, %v5265
        %v5267 = vrcp.pop %v5218
        %v5268 = vmul.f32 1.0, %v5267
        %v5269 = vrcp.pop %v5219
        %v5270 = vmul.f32 1.0, %v5269
        %v5271 = vrcp.pop %v5220
        %v5272 = vmul.f32 1.0, %v5271
        %v5273 = vrcp.pop %v5221
        %v5274 = vmul.f32 1.0, %v5273
        %v5275 = vrcp.pop %v5222
        %v5276 = vmul.f32 1.0, %v5275
        %v5277 = vrcp.pop %v5223
        %v5278 = vmul.f32 1.0, %v5277
        %v5279 = vrcp.pop %v5224
        %v5280 = vmul.f32 1.0, %v5279
        %v5281 = vrcp.pop %v5225
        %v5282 = vmul.f32 1.0, %v5281
        %v5283 = vrcp.pop %v5226
        %v5284 = vmul.f32 1.0, %v5283
        %v5285 = vrcp.pop %v5227
        %v5286 = vmul.f32 1.0, %v5285
        %v5287 = vrcp.pop %v5228
        %v5288 = vmul.f32 1.0, %v5287
        %v5289 = vrcp.pop %v5229
        %v5290 = vmul.f32 1.0, %v5289
        %v5291 = vrcp.pop %v5230
        %v5292 = vmul.f32 1.0, %v5291
        %v5293 = vrcp.pop %v5231
        %v5294 = vmul.f32 1.0, %v5293
        %v5295 = vrcp.pop %v5232
        %v5296 = vmul.f32 1.0, %v5295
        %v5297 = vrot.slane %v2297, 1
        %v5298 = vrot.slane %v2307, 1
        %v5299 = vrot.slane %v2317, 1
        %v5300 = vrot.slane %v2327, 1
        %v5301 = vrot.slane %v2337, 1
        %v5302 = vrot.slane %v2347, 1
        %v5303 = vrot.slane %v2357, 1
        %v5304 = vrot.slane %v2367, 1
        %v5305 = vrot.slane %v2377, 1
        %v5306 = vrot.slane %v2387, 1
        %v5307 = vrot.slane %v2397, 1
        %v5308 = vrot.slane %v2407, 1
        %v5309 = vrot.slane %v2417, 1
        %v5310 = vrot.slane %v2427, 1
        %v5311 = vrot.slane %v2437, 1
        %v5312 = vrot.slane %v2447, 1
        %v5313 = vrot.slane %v2457, 1
        %v5314 = vrot.slane %v2467, 1
        %v5315 = vrot.slane %v2477, 1
        %v5316 = vrot.slane %v2487, 1
        %v5317 = vrot.slane %v2497, 1
        %v5318 = vrot.slane %v2507, 1
        %v5319 = vrot.slane %v2517, 1
        %v5320 = vrot.slane %v2527, 1
        %v5321 = vrot.slane %v2537, 1
        %v5322 = vrot.slane %v2547, 1
        %v5323 = vrot.slane %v2557, 1
        %v5324 = vrot.slane %v2567, 1
        %v5325 = vrot.slane %v2577, 1
        %v5326 = vrot.slane %v2587, 1
        %v5327 = vrot.slane %v2597, 1
        %v5328 = vrot.slane %v2607, 1
        %v5329 = vrot.slane %v2301, 1
        %v5330 = vrot.slane %v2311, 1
        %v5331 = vrot.slane %v2321, 1
        %v5332 = vrot.slane %v2331, 1
        %v5333 = vrot.slane %v2341, 1
        %v5334 = vrot.slane %v2351, 1
        %v5335 = vrot.slane %v2361, 1
        %v5336 = vrot.slane %v2371, 1
        %v5337 = vrot.slane %v2381, 1
        %v5338 = vrot.slane %v2391, 1
        %v5339 = vrot.slane %v2401, 1
        %v5340 = vrot.slane %v2411, 1
        %v5341 = vrot.slane %v2421, 1
        %v5342 = vrot.slane %v2431, 1
        %v5343 = vrot.slane %v2441, 1
        %v5344 = vrot.slane %v2451, 1
        %v5345 = vrot.slane %v2461, 1
        %v5346 = vrot.slane %v2471, 1
        %v5347 = vrot.slane %v2481, 1
        %v5348 = vrot.slane %v2491, 1
        %v5349 = vrot.slane %v2501, 1
        %v5350 = vrot.slane %v2511, 1
        %v5351 = vrot.slane %v2521, 1
        %v5352 = vrot.slane %v2531, 1
        %v5353 = vrot.slane %v2541, 1
        %v5354 = vrot.slane %v2551, 1
        %v5355 = vrot.slane %v2561, 1
        %v5356 = vrot.slane %v2571, 1
        %v5357 = vrot.slane %v2581, 1
        %v5358 = vrot.slane %v2591, 1
        %v5359 = vrot.slane %v2601, 1
        %v5360 = vrot.slane %v2611, 1
        %v5361 = vsel %vm3741, %v5297, %v5329
        %v5362 = vsel %vm3741, %v5298, %v5330
        %v5363 = vsel %vm3741, %v5299, %v5331
        %v5364 = vsel %vm3741, %v5300, %v5332
        %v5365 = vsel %vm3741, %v5301, %v5333
        %v5366 = vsel %vm3741, %v5302, %v5334
        %v5367 = vsel %vm3741, %v5303, %v5335
        %v5368 = vsel %vm3741, %v5304, %v5336
        %v5369 = vsel %vm3741, %v5305, %v5337
        %v5370 = vsel %vm3741, %v5306, %v5338
        %v5371 = vsel %vm3741, %v5307, %v5339
        %v5372 = vsel %vm3741, %v5308, %v5340
        %v5373 = vsel %vm3741, %v5309, %v5341
        %v5374 = vsel %vm3741, %v5310, %v5342
        %v5375 = vsel %vm3741, %v5311, %v5343
        %v5376 = vsel %vm3741, %v5312, %v5344
        %v5377 = vsel %vm3741, %v5313, %v5345
        %v5378 = vsel %vm3741, %v5314, %v5346
        %v5379 = vsel %vm3741, %v5315, %v5347
        %v5380 = vsel %vm3741, %v5316, %v5348
        %v5381 = vsel %vm3741, %v5317, %v5349
        %v5382 = vsel %vm3741, %v5318, %v5350
        %v5383 = vsel %vm3741, %v5319, %v5351
        %v5384 = vsel %vm3741, %v5320, %v5352
        %v5385 = vsel %vm3741, %v5321, %v5353
        %v5386 = vsel %vm3741, %v5322, %v5354
        %v5387 = vsel %vm3741, %v5323, %v5355
        %v5388 = vsel %vm3741, %v5324, %v5356
        %v5389 = vsel %vm3741, %v5325, %v5357
        %v5390 = vsel %vm3741, %v5326, %v5358
        %v5391 = vsel %vm3741, %v5327, %v5359
        %v5392 = vsel %vm3741, %v5328, %v5360
        %v5393 = vsel %vm3741, %v5329, %v5297
        %v5394 = vsel %vm3741, %v5330, %v5298
        %v5395 = vsel %vm3741, %v5331, %v5299
        %v5396 = vsel %vm3741, %v5332, %v5300
        %v5397 = vsel %vm3741, %v5333, %v5301
        %v5398 = vsel %vm3741, %v5334, %v5302
        %v5399 = vsel %vm3741, %v5335, %v5303
        %v5400 = vsel %vm3741, %v5336, %v5304
        %v5401 = vsel %vm3741, %v5337, %v5305
        %v5402 = vsel %vm3741, %v5338, %v5306
        %v5403 = vsel %vm3741, %v5339, %v5307
        %v5404 = vsel %vm3741, %v5340, %v5308
        %v5405 = vsel %vm3741, %v5341, %v5309
        %v5406 = vsel %vm3741, %v5342, %v5310
        %v5407 = vsel %vm3741, %v5343, %v5311
        %v5408 = vsel %vm3741, %v5344, %v5312
        %v5409 = vsel %vm3741, %v5345, %v5313
        %v5410 = vsel %vm3741, %v5346, %v5314
        %v5411 = vsel %vm3741, %v5347, %v5315
        %v5412 = vsel %vm3741, %v5348, %v5316
        %v5413 = vsel %vm3741, %v5349, %v5317
        %v5414 = vsel %vm3741, %v5350, %v5318
        %v5415 = vsel %vm3741, %v5351, %v5319
        %v5416 = vsel %vm3741, %v5352, %v5320
        %v5417 = vsel %vm3741, %v5353, %v5321
        %v5418 = vsel %vm3741, %v5354, %v5322
        %v5419 = vsel %vm3741, %v5355, %v5323
        %v5420 = vsel %vm3741, %v5356, %v5324
        %v5421 = vsel %vm3741, %v5357, %v5325
        %v5422 = vsel %vm3741, %v5358, %v5326
        %v5423 = vsel %vm3741, %v5359, %v5327
        %v5424 = vsel %vm3741, %v5360, %v5328
        %v5425 = vadd.f32 %v1946, %v5361
        %v5426 = vadd.f32 %v1950, %v5393
        %v5427 = vadd.f32 %v1956, %v5362
        %v5428 = vadd.f32 %v1960, %v5394
        %v5429 = vadd.f32 %v1966, %v5363
        %v5430 = vadd.f32 %v1970, %v5395
        %v5431 = vadd.f32 %v1976, %v5364
        %v5432 = vadd.f32 %v1980, %v5396
        %v5433 = vadd.f32 %v1986, %v5365
        %v5434 = vadd.f32 %v1990, %v5397
        %v5435 = vadd.f32 %v1996, %v5366
        %v5436 = vadd.f32 %v2000, %v5398
        %v5437 = vadd.f32 %v2006, %v5367
        %v5438 = vadd.f32 %v2010, %v5399
        %v5439 = vadd.f32 %v2016, %v5368
        %v5440 = vadd.f32 %v2020, %v5400
        %v5441 = vadd.f32 %v2026, %v5369
        %v5442 = vadd.f32 %v2030, %v5401
        %v5443 = vadd.f32 %v2036, %v5370
        %v5444 = vadd.f32 %v2040, %v5402
        %v5445 = vadd.f32 %v2046, %v5371
        %v5446 = vadd.f32 %v2050, %v5403
        %v5447 = vadd.f32 %v2056, %v5372
        %v5448 = vadd.f32 %v2060, %v5404
        %v5449 = vadd.f32 %v2066, %v5373
        %v5450 = vadd.f32 %v2070, %v5405
        %v5451 = vadd.f32 %v2076, %v5374
        %v5452 = vadd.f32 %v2080, %v5406
        %v5453 = vadd.f32 %v2086, %v5375
        %v5454 = vadd.f32 %v2090, %v5407
        %v5455 = vadd.f32 %v2096, %v5376
        %v5456 = vadd.f32 %v2100, %v5408
        %v5457 = vadd.f32 %v2106, %v5377
        %v5458 = vadd.f32 %v2110, %v5409
        %v5459 = vadd.f32 %v2116, %v5378
        %v5460 = vadd.f32 %v2120, %v5410
        %v5461 = vadd.f32 %v2126, %v5379
        %v5462 = vadd.f32 %v2130, %v5411
        %v5463 = vadd.f32 %v2136, %v5380
        %v5464 = vadd.f32 %v2140, %v5412
        %v5465 = vadd.f32 %v2146, %v5381
        %v5466 = vadd.f32 %v2150, %v5413
        %v5467 = vadd.f32 %v2156, %v5382
        %v5468 = vadd.f32 %v2160, %v5414
        %v5469 = vadd.f32 %v2166, %v5383
        %v5470 = vadd.f32 %v2170, %v5415
        %v5471 = vadd.f32 %v2176, %v5384
        %v5472 = vadd.f32 %v2180, %v5416
        %v5473 = vadd.f32 %v2186, %v5385
        %v5474 = vadd.f32 %v2190, %v5417
        %v5475 = vadd.f32 %v2196, %v5386
        %v5476 = vadd.f32 %v2200, %v5418
        %v5477 = vadd.f32 %v2206, %v5387
        %v5478 = vadd.f32 %v2210, %v5419
        %v5479 = vadd.f32 %v2216, %v5388
        %v5480 = vadd.f32 %v2220, %v5420
        %v5481 = vadd.f32 %v2226, %v5389
        %v5482 = vadd.f32 %v2230, %v5421
        %v5483 = vadd.f32 %v2236, %v5390
        %v5484 = vadd.f32 %v2240, %v5422
        %v5485 = vadd.f32 %v2246, %v5391
        %v5486 = vadd.f32 %v2250, %v5423
        %v5487 = vadd.f32 %v2256, %v5392
        %v5488 = vadd.f32 %v2260, %v5424
        %v5489 = vrot.slane %v2299, 2
        %v5490 = vrot.slane %v2309, 2
        %v5491 = vrot.slane %v2319, 2
        %v5492 = vrot.slane %v2329, 2
        %v5493 = vrot.slane %v2339, 2
        %v5494 = vrot.slane %v2349, 2
        %v5495 = vrot.slane %v2359, 2
        %v5496 = vrot.slane %v2369, 2
        %v5497 = vrot.slane %v2379, 2
        %v5498 = vrot.slane %v2389, 2
        %v5499 = vrot.slane %v2399, 2
        %v5500 = vrot.slane %v2409, 2
        %v5501 = vrot.slane %v2419, 2
        %v5502 = vrot.slane %v2429, 2
        %v5503 = vrot.slane %v2439, 2
        %v5504 = vrot.slane %v2449, 2
        %v5505 = vrot.slane %v2459, 2
        %v5506 = vrot.slane %v2469, 2
        %v5507 = vrot.slane %v2479, 2
        %v5508 = vrot.slane %v2489, 2
        %v5509 = vrot.slane %v2499, 2
        %v5510 = vrot.slane %v2509, 2
        %v5511 = vrot.slane %v2519, 2
        %v5512 = vrot.slane %v2529, 2
        %v5513 = vrot.slane %v2539, 2
        %v5514 = vrot.slane %v2549, 2
        %v5515 = vrot.slane %v2559, 2
        %v5516 = vrot.slane %v2569, 2
        %v5517 = vrot.slane %v2579, 2
        %v5518 = vrot.slane %v2589, 2
        %v5519 = vrot.slane %v2599, 2
        %v5520 = vrot.slane %v2609, 2
        %v5521 = vrot.slane %v2303, 2
        %v5522 = vrot.slane %v2313, 2
        %v5523 = vrot.slane %v2323, 2
        %v5524 = vrot.slane %v2333, 2
        %v5525 = vrot.slane %v2343, 2
        %v5526 = vrot.slane %v2353, 2
        %v5527 = vrot.slane %v2363, 2
        %v5528 = vrot.slane %v2373, 2
        %v5529 = vrot.slane %v2383, 2
        %v5530 = vrot.slane %v2393, 2
        %v5531 = vrot.slane %v2403, 2
        %v5532 = vrot.slane %v2413, 2
        %v5533 = vrot.slane %v2423, 2
        %v5534 = vrot.slane %v2433, 2
        %v5535 = vrot.slane %v2443, 2
        %v5536 = vrot.slane %v2453, 2
        %v5537 = vrot.slane %v2463, 2
        %v5538 = vrot.slane %v2473, 2
        %v5539 = vrot.slane %v2483, 2
        %v5540 = vrot.slane %v2493, 2
        %v5541 = vrot.slane %v2503, 2
        %v5542 = vrot.slane %v2513, 2
        %v5543 = vrot.slane %v2523, 2
        %v5544 = vrot.slane %v2533, 2
        %v5545 = vrot.slane %v2543, 2
        %v5546 = vrot.slane %v2553, 2
        %v5547 = vrot.slane %v2563, 2
        %v5548 = vrot.slane %v2573, 2
        %v5549 = vrot.slane %v2583, 2
        %v5550 = vrot.slane %v2593, 2
        %v5551 = vrot.slane %v2603, 2
        %v5552 = vrot.slane %v2613, 2
        %v5553 = vsel %vm4647, %v5489, %v5521
        %v5554 = vsel %vm4647, %v5490, %v5522
        %v5555 = vsel %vm4647, %v5491, %v5523
        %v5556 = vsel %vm4647, %v5492, %v5524
        %v5557 = vsel %vm4647, %v5493, %v5525
        %v5558 = vsel %vm4647, %v5494, %v5526
        %v5559 = vsel %vm4647, %v5495, %v5527
        %v5560 = vsel %vm4647, %v5496, %v5528
        %v5561 = vsel %vm4647, %v5497, %v5529
        %v5562 = vsel %vm4647, %v5498, %v5530
        %v5563 = vsel %vm4647, %v5499, %v5531
        %v5564 = vsel %vm4647, %v5500, %v5532
        %v5565 = vsel %vm4647, %v5501, %v5533
        %v5566 = vsel %vm4647, %v5502, %v5534
        %v5567 = vsel %vm4647, %v5503, %v5535
        %v5568 = vsel %vm4647, %v5504, %v5536
        %v5569 = vsel %vm4647, %v5505, %v5537
        %v5570 = vsel %vm4647, %v5506, %v5538
        %v5571 = vsel %vm4647, %v5507, %v5539
        %v5572 = vsel %vm4647, %v5508, %v5540
        %v5573 = vsel %vm4647, %v5509, %v5541
        %v5574 = vsel %vm4647, %v5510, %v5542
        %v5575 = vsel %vm4647, %v5511, %v5543
        %v5576 = vsel %vm4647, %v5512, %v5544
        %v5577 = vsel %vm4647, %v5513, %v5545
        %v5578 = vsel %vm4647, %v5514, %v5546
        %v5579 = vsel %vm4647, %v5515, %v5547
        %v5580 = vsel %vm4647, %v5516, %v5548
        %v5581 = vsel %vm4647, %v5517, %v5549
        %v5582 = vsel %vm4647, %v5518, %v5550
        %v5583 = vsel %vm4647, %v5519, %v5551
        %v5584 = vsel %vm4647, %v5520, %v5552
        %v5585 = vsel %vm4647, %v5521, %v5489
        %v5586 = vsel %vm4647, %v5522, %v5490
        %v5587 = vsel %vm4647, %v5523, %v5491
        %v5588 = vsel %vm4647, %v5524, %v5492
        %v5589 = vsel %vm4647, %v5525, %v5493
        %v5590 = vsel %vm4647, %v5526, %v5494
        %v5591 = vsel %vm4647, %v5527, %v5495
        %v5592 = vsel %vm4647, %v5528, %v5496
        %v5593 = vsel %vm4647, %v5529, %v5497
        %v5594 = vsel %vm4647, %v5530, %v5498
        %v5595 = vsel %vm4647, %v5531, %v5499
        %v5596 = vsel %vm4647, %v5532, %v5500
        %v5597 = vsel %vm4647, %v5533, %v5501
        %v5598 = vsel %vm4647, %v5534, %v5502
        %v5599 = vsel %vm4647, %v5535, %v5503
        %v5600 = vsel %vm4647, %v5536, %v5504
        %v5601 = vsel %vm4647, %v5537, %v5505
        %v5602 = vsel %vm4647, %v5538, %v5506
        %v5603 = vsel %vm4647, %v5539, %v5507
        %v5604 = vsel %vm4647, %v5540, %v5508
        %v5605 = vsel %vm4647, %v5541, %v5509
        %v5606 = vsel %vm4647, %v5542, %v5510
        %v5607 = vsel %vm4647, %v5543, %v5511
        %v5608 = vsel %vm4647, %v5544, %v5512
        %v5609 = vsel %vm4647, %v5545, %v5513
        %v5610 = vsel %vm4647, %v5546, %v5514
        %v5611 = vsel %vm4647, %v5547, %v5515
        %v5612 = vsel %vm4647, %v5548, %v5516
        %v5613 = vsel %vm4647, %v5549, %v5517
        %v5614 = vsel %vm4647, %v5550, %v5518
        %v5615 = vsel %vm4647, %v5551, %v5519
        %v5616 = vsel %vm4647, %v5552, %v5520
        %v5617 = vadd.f32 %v5425, %v5553
        %v5618 = vadd.f32 %v5426, %v5585
        %v5619 = vadd.f32 %v5427, %v5554
        %v5620 = vadd.f32 %v5428, %v5586
        %v5621 = vadd.f32 %v5429, %v5555
        %v5622 = vadd.f32 %v5430, %v5587
        %v5623 = vadd.f32 %v5431, %v5556
        %v5624 = vadd.f32 %v5432, %v5588
        %v5625 = vadd.f32 %v5433, %v5557
        %v5626 = vadd.f32 %v5434, %v5589
        %v5627 = vadd.f32 %v5435, %v5558
        %v5628 = vadd.f32 %v5436, %v5590
        %v5629 = vadd.f32 %v5437, %v5559
        %v5630 = vadd.f32 %v5438, %v5591
        %v5631 = vadd.f32 %v5439, %v5560
        %v5632 = vadd.f32 %v5440, %v5592
        %v5633 = vadd.f32 %v5441, %v5561
        %v5634 = vadd.f32 %v5442, %v5593
        %v5635 = vadd.f32 %v5443, %v5562
        %v5636 = vadd.f32 %v5444, %v5594
        %v5637 = vadd.f32 %v5445, %v5563
        %v5638 = vadd.f32 %v5446, %v5595
        %v5639 = vadd.f32 %v5447, %v5564
        %v5640 = vadd.f32 %v5448, %v5596
        %v5641 = vadd.f32 %v5449, %v5565
        %v5642 = vadd.f32 %v5450, %v5597
        %v5643 = vadd.f32 %v5451, %v5566
        %v5644 = vadd.f32 %v5452, %v5598
        %v5645 = vadd.f32 %v5453, %v5567
        %v5646 = vadd.f32 %v5454, %v5599
        %v5647 = vadd.f32 %v5455, %v5568
        %v5648 = vadd.f32 %v5456, %v5600
        %v5649 = vadd.f32 %v5457, %v5569
        %v5650 = vadd.f32 %v5458, %v5601
        %v5651 = vadd.f32 %v5459, %v5570
        %v5652 = vadd.f32 %v5460, %v5602
        %v5653 = vadd.f32 %v5461, %v5571
        %v5654 = vadd.f32 %v5462, %v5603
        %v5655 = vadd.f32 %v5463, %v5572
        %v5656 = vadd.f32 %v5464, %v5604
        %v5657 = vadd.f32 %v5465, %v5573
        %v5658 = vadd.f32 %v5466, %v5605
        %v5659 = vadd.f32 %v5467, %v5574
        %v5660 = vadd.f32 %v5468, %v5606
        %v5661 = vadd.f32 %v5469, %v5575
        %v5662 = vadd.f32 %v5470, %v5607
        %v5663 = vadd.f32 %v5471, %v5576
        %v5664 = vadd.f32 %v5472, %v5608
        %v5665 = vadd.f32 %v5473, %v5577
        %v5666 = vadd.f32 %v5474, %v5609
        %v5667 = vadd.f32 %v5475, %v5578
        %v5668 = vadd.f32 %v5476, %v5610
        %v5669 = vadd.f32 %v5477, %v5579
        %v5670 = vadd.f32 %v5478, %v5611
        %v5671 = vadd.f32 %v5479, %v5580
        %v5672 = vadd.f32 %v5480, %v5612
        %v5673 = vadd.f32 %v5481, %v5581
        %v5674 = vadd.f32 %v5482, %v5613
        %v5675 = vadd.f32 %v5483, %v5582
        %v5676 = vadd.f32 %v5484, %v5614
        %v5677 = vadd.f32 %v5485, %v5583
        %v5678 = vadd.f32 %v5486, %v5615
        %v5679 = vadd.f32 %v5487, %v5584
        %v5680 = vadd.f32 %v5488, %v5616
        %v5681 = vrot.slane %v2650, 3
        %v5682 = vrot.slane %v2660, 3
        %v5683 = vrot.slane %v2670, 3
        %v5684 = vrot.slane %v2680, 3
        %v5685 = vrot.slane %v2690, 3
        %v5686 = vrot.slane %v2700, 3
        %v5687 = vrot.slane %v2710, 3
        %v5688 = vrot.slane %v2720, 3
        %v5689 = vrot.slane %v2730, 3
        %v5690 = vrot.slane %v2740, 3
        %v5691 = vrot.slane %v2750, 3
        %v5692 = vrot.slane %v2760, 3
        %v5693 = vrot.slane %v2770, 3
        %v5694 = vrot.slane %v2780, 3
        %v5695 = vrot.slane %v2790, 3
        %v5696 = vrot.slane %v2800, 3
        %v5697 = vrot.slane %v2810, 3
        %v5698 = vrot.slane %v2820, 3
        %v5699 = vrot.slane %v2830, 3
        %v5700 = vrot.slane %v2840, 3
        %v5701 = vrot.slane %v2850, 3
        %v5702 = vrot.slane %v2860, 3
        %v5703 = vrot.slane %v2870, 3
        %v5704 = vrot.slane %v2880, 3
        %v5705 = vrot.slane %v2890, 3
        %v5706 = vrot.slane %v2900, 3
        %v5707 = vrot.slane %v2910, 3
        %v5708 = vrot.slane %v2920, 3
        %v5709 = vrot.slane %v2930, 3
        %v5710 = vrot.slane %v2940, 3
        %v5711 = vrot.slane %v2950, 3
        %v5712 = vrot.slane %v2960, 3
        %v5713 = vrot.slane %v2654, 3
        %v5714 = vrot.slane %v2664, 3
        %v5715 = vrot.slane %v2674, 3
        %v5716 = vrot.slane %v2684, 3
        %v5717 = vrot.slane %v2694, 3
        %v5718 = vrot.slane %v2704, 3
        %v5719 = vrot.slane %v2714, 3
        %v5720 = vrot.slane %v2724, 3
        %v5721 = vrot.slane %v2734, 3
        %v5722 = vrot.slane %v2744, 3
        %v5723 = vrot.slane %v2754, 3
        %v5724 = vrot.slane %v2764, 3
        %v5725 = vrot.slane %v2774, 3
        %v5726 = vrot.slane %v2784, 3
        %v5727 = vrot.slane %v2794, 3
        %v5728 = vrot.slane %v2804, 3
        %v5729 = vrot.slane %v2814, 3
        %v5730 = vrot.slane %v2824, 3
        %v5731 = vrot.slane %v2834, 3
        %v5732 = vrot.slane %v2844, 3
        %v5733 = vrot.slane %v2854, 3
        %v5734 = vrot.slane %v2864, 3
        %v5735 = vrot.slane %v2874, 3
        %v5736 = vrot.slane %v2884, 3
        %v5737 = vrot.slane %v2894, 3
        %v5738 = vrot.slane %v2904, 3
        %v5739 = vrot.slane %v2914, 3
        %v5740 = vrot.slane %v2924, 3
        %v5741 = vrot.slane %v2934, 3
        %v5742 = vrot.slane %v2944, 3
        %v5743 = vrot.slane %v2954, 3
        %v5744 = vrot.slane %v2964, 3
        %vm5745 = vcmp.lt.s32.totalorder %v3675, 5
        %v5746 = vsel %vm5745, %v5681, %v5713
        %v5747 = vsel %vm5745, %v5682, %v5714
        %v5748 = vsel %vm5745, %v5683, %v5715
        %v5749 = vsel %vm5745, %v5684, %v5716
        %v5750 = vsel %vm5745, %v5685, %v5717
        %v5751 = vsel %vm5745, %v5686, %v5718
        %v5752 = vsel %vm5745, %v5687, %v5719
        %v5753 = vsel %vm5745, %v5688, %v5720
        %v5754 = vsel %vm5745, %v5689, %v5721
        %v5755 = vsel %vm5745, %v5690, %v5722
        %v5756 = vsel %vm5745, %v5691, %v5723
        %v5757 = vsel %vm5745, %v5692, %v5724
        %v5758 = vsel %vm5745, %v5693, %v5725
        %v5759 = vsel %vm5745, %v5694, %v5726
        %v5760 = vsel %vm5745, %v5695, %v5727
        %v5761 = vsel %vm5745, %v5696, %v5728
        %v5762 = vsel %vm5745, %v5697, %v5729
        %v5763 = vsel %vm5745, %v5698, %v5730
        %v5764 = vsel %vm5745, %v5699, %v5731
        %v5765 = vsel %vm5745, %v5700, %v5732
        %v5766 = vsel %vm5745, %v5701, %v5733
        %v5767 = vsel %vm5745, %v5702, %v5734
        %v5768 = vsel %vm5745, %v5703, %v5735
        %v5769 = vsel %vm5745, %v5704, %v5736
        %v5770 = vsel %vm5745, %v5705, %v5737
        %v5771 = vsel %vm5745, %v5706, %v5738
        %v5772 = vsel %vm5745, %v5707, %v5739
        %v5773 = vsel %vm5745, %v5708, %v5740
        %v5774 = vsel %vm5745, %v5709, %v5741
        %v5775 = vsel %vm5745, %v5710, %v5742
        %v5776 = vsel %vm5745, %v5711, %v5743
        %v5777 = vsel %vm5745, %v5712, %v5744
        %v5778 = vsel %vm5745, %v5713, %v5681
        %v5779 = vsel %vm5745, %v5714, %v5682
        %v5780 = vsel %vm5745, %v5715, %v5683
        %v5781 = vsel %vm5745, %v5716, %v5684
        %v5782 = vsel %vm5745, %v5717, %v5685
        %v5783 = vsel %vm5745, %v5718, %v5686
        %v5784 = vsel %vm5745, %v5719, %v5687
        %v5785 = vsel %vm5745, %v5720, %v5688
        %v5786 = vsel %vm5745, %v5721, %v5689
        %v5787 = vsel %vm5745, %v5722, %v5690
        %v5788 = vsel %vm5745, %v5723, %v5691
        %v5789 = vsel %vm5745, %v5724, %v5692
        %v5790 = vsel %vm5745, %v5725, %v5693
        %v5791 = vsel %vm5745, %v5726, %v5694
        %v5792 = vsel %vm5745, %v5727, %v5695
        %v5793 = vsel %vm5745, %v5728, %v5696
        %v5794 = vsel %vm5745, %v5729, %v5697
        %v5795 = vsel %vm5745, %v5730, %v5698
        %v5796 = vsel %vm5745, %v5731, %v5699
        %v5797 = vsel %vm5745, %v5732, %v5700
        %v5798 = vsel %vm5745, %v5733, %v5701
        %v5799 = vsel %vm5745, %v5734, %v5702
        %v5800 = vsel %vm5745, %v5735, %v5703
        %v5801 = vsel %vm5745, %v5736, %v5704
        %v5802 = vsel %vm5745, %v5737, %v5705
        %v5803 = vsel %vm5745, %v5738, %v5706
        %v5804 = vsel %vm5745, %v5739, %v5707
        %v5805 = vsel %vm5745, %v5740, %v5708
        %v5806 = vsel %vm5745, %v5741, %v5709
        %v5807 = vsel %vm5745, %v5742, %v5710
        %v5808 = vsel %vm5745, %v5743, %v5711
        %v5809 = vsel %vm5745, %v5744, %v5712
        %v5810 = vadd.f32 %v5617, %v5746
        %v5811 = vadd.f32 %v5618, %v5778
        %v5812 = vadd.f32 %v5619, %v5747
        %v5813 = vadd.f32 %v5620, %v5779
        %v5814 = vadd.f32 %v5621, %v5748
        %v5815 = vadd.f32 %v5622, %v5780
        %v5816 = vadd.f32 %v5623, %v5749
        %v5817 = vadd.f32 %v5624, %v5781
        %v5818 = vadd.f32 %v5625, %v5750
        %v5819 = vadd.f32 %v5626, %v5782
        %v5820 = vadd.f32 %v5627, %v5751
        %v5821 = vadd.f32 %v5628, %v5783
        %v5822 = vadd.f32 %v5629, %v5752
        %v5823 = vadd.f32 %v5630, %v5784
        %v5824 = vadd.f32 %v5631, %v5753
        %v5825 = vadd.f32 %v5632, %v5785
        %v5826 = vadd.f32 %v5633, %v5754
        %v5827 = vadd.f32 %v5634, %v5786
        %v5828 = vadd.f32 %v5635, %v5755
        %v5829 = vadd.f32 %v5636, %v5787
        %v5830 = vadd.f32 %v5637, %v5756
        %v5831 = vadd.f32 %v5638, %v5788
        %v5832 = vadd.f32 %v5639, %v5757
        %v5833 = vadd.f32 %v5640, %v5789
        %v5834 = vadd.f32 %v5641, %v5758
        %v5835 = vadd.f32 %v5642, %v5790
        %v5836 = vadd.f32 %v5643, %v5759
        %v5837 = vadd.f32 %v5644, %v5791
        %v5838 = vadd.f32 %v5645, %v5760
        %v5839 = vadd.f32 %v5646, %v5792
        %v5840 = vadd.f32 %v5647, %v5761
        %v5841 = vadd.f32 %v5648, %v5793
        %v5842 = vadd.f32 %v5649, %v5762
        %v5843 = vadd.f32 %v5650, %v5794
        %v5844 = vadd.f32 %v5651, %v5763
        %v5845 = vadd.f32 %v5652, %v5795
        %v5846 = vadd.f32 %v5653, %v5764
        %v5847 = vadd.f32 %v5654, %v5796
        %v5848 = vadd.f32 %v5655, %v5765
        %v5849 = vadd.f32 %v5656, %v5797
        %v5850 = vadd.f32 %v5657, %v5766
        %v5851 = vadd.f32 %v5658, %v5798
        %v5852 = vadd.f32 %v5659, %v5767
        %v5853 = vadd.f32 %v5660, %v5799
        %v5854 = vadd.f32 %v5661, %v5768
        %v5855 = vadd.f32 %v5662, %v5800
        %v5856 = vadd.f32 %v5663, %v5769
        %v5857 = vadd.f32 %v5664, %v5801
        %v5858 = vadd.f32 %v5665, %v5770
        %v5859 = vadd.f32 %v5666, %v5802
        %v5860 = vadd.f32 %v5667, %v5771
        %v5861 = vadd.f32 %v5668, %v5803
        %v5862 = vadd.f32 %v5669, %v5772
        %v5863 = vadd.f32 %v5670, %v5804
        %v5864 = vadd.f32 %v5671, %v5773
        %v5865 = vadd.f32 %v5672, %v5805
        %v5866 = vadd.f32 %v5673, %v5774
        %v5867 = vadd.f32 %v5674, %v5806
        %v5868 = vadd.f32 %v5675, %v5775
        %v5869 = vadd.f32 %v5676, %v5807
        %v5870 = vadd.f32 %v5677, %v5776
        %v5871 = vadd.f32 %v5678, %v5808
        %v5872 = vadd.f32 %v5679, %v5777
        %v5873 = vadd.f32 %v5680, %v5809
        %vm5874 = vcmp.lt.s32.totalorder %v3675, 13
        %vm5875 = vcmp.lt.s32.totalorder %v3676, 13
        %v5876 = vsel %vm5874, %v5810, -inf
        %v5877 = vsel %vm5875, %v5811, -inf
        %v5878 = vsel %vm5874, %v5812, -inf
        %v5879 = vsel %vm5875, %v5813, -inf
        %v5880 = vsel %vm5874, %v5814, -inf
        %v5881 = vsel %vm5875, %v5815, -inf
        %v5882 = vsel %vm5874, %v5816, -inf
        %v5883 = vsel %vm5875, %v5817, -inf
        %v5884 = vsel %vm5874, %v5818, -inf
        %v5885 = vsel %vm5875, %v5819, -inf
        %v5886 = vsel %vm5874, %v5820, -inf
        %v5887 = vsel %vm5875, %v5821, -inf
        %v5888 = vsel %vm5874, %v5822, -inf
        %v5889 = vsel %vm5875, %v5823, -inf
        %v5890 = vsel %vm5874, %v5824, -inf
        %v5891 = vsel %vm5875, %v5825, -inf
        %v5892 = vsel %vm5874, %v5826, -inf
        %v5893 = vsel %vm5875, %v5827, -inf
        %v5894 = vsel %vm5874, %v5828, -inf
        %v5895 = vsel %vm5875, %v5829, -inf
        %v5896 = vsel %vm5874, %v5830, -inf
        %v5897 = vsel %vm5875, %v5831, -inf
        %v5898 = vsel %vm5874, %v5832, -inf
        %v5899 = vsel %vm5875, %v5833, -inf
        %v5900 = vsel %vm5874, %v5834, -inf
        %v5901 = vsel %vm5875, %v5835, -inf
        %v5902 = vsel %vm5874, %v5836, -inf
        %v5903 = vsel %vm5875, %v5837, -inf
        %v5904 = vsel %vm5874, %v5838, -inf
        %v5905 = vsel %vm5875, %v5839, -inf
        %v5906 = vsel %vm5874, %v5840, -inf
        %v5907 = vsel %vm5875, %v5841, -inf
        %v5908 = vsel %vm5874, %v5842, -inf
        %v5909 = vsel %vm5875, %v5843, -inf
        %v5910 = vsel %vm5874, %v5844, -inf
        %v5911 = vsel %vm5875, %v5845, -inf
        %v5912 = vsel %vm5874, %v5846, -inf
        %v5913 = vsel %vm5875, %v5847, -inf
        %v5914 = vsel %vm5874, %v5848, -inf
        %v5915 = vsel %vm5875, %v5849, -inf
        %v5916 = vsel %vm5874, %v5850, -inf
        %v5917 = vsel %vm5875, %v5851, -inf
        %v5918 = vsel %vm5874, %v5852, -inf
        %v5919 = vsel %vm5875, %v5853, -inf
        %v5920 = vsel %vm5874, %v5854, -inf
        %v5921 = vsel %vm5875, %v5855, -inf
        %v5922 = vsel %vm5874, %v5856, -inf
        %v5923 = vsel %vm5875, %v5857, -inf
        %v5924 = vsel %vm5874, %v5858, -inf
        %v5925 = vsel %vm5875, %v5859, -inf
        %v5926 = vsel %vm5874, %v5860, -inf
        %v5927 = vsel %vm5875, %v5861, -inf
        %v5928 = vsel %vm5874, %v5862, -inf
        %v5929 = vsel %vm5875, %v5863, -inf
        %v5930 = vsel %vm5874, %v5864, -inf
        %v5931 = vsel %vm5875, %v5865, -inf
        %v5932 = vsel %vm5874, %v5866, -inf
        %v5933 = vsel %vm5875, %v5867, -inf
        %v5934 = vsel %vm5874, %v5868, -inf
        %v5935 = vsel %vm5875, %v5869, -inf
        %v5936 = vsel %vm5874, %v5870, -inf
        %v5937 = vsel %vm5875, %v5871, -inf
        %v5938 = vsel %vm5874, %v5872, -inf
        %v5939 = vsel %vm5875, %v5873, -inf
        %v5940 = vmax.f32 %v5876, %v5877
        %v5941 = vrot.slane %v5940, 4
        %v5942 = vmax.f32 %v5940, %v5941
        %v5943 = vrot.slane %v5942, 2
        %v5944 = vmax.f32 %v5942, %v5943
        %v5945 = vrot.slane %v5944, 1
        %v5946 = vmax.f32 %v5944, %v5945
        %v5947 = vmax.f32 %v5878, %v5879
        %v5948 = vrot.slane %v5947, 4
        %v5949 = vmax.f32 %v5947, %v5948
        %v5950 = vrot.slane %v5949, 2
        %v5951 = vmax.f32 %v5949, %v5950
        %v5952 = vrot.slane %v5951, 1
        %v5953 = vmax.f32 %v5951, %v5952
        %v5954 = vmax.f32 %v5880, %v5881
        %v5955 = vrot.slane %v5954, 4
        %v5956 = vmax.f32 %v5954, %v5955
        %v5957 = vrot.slane %v5956, 2
        %v5958 = vmax.f32 %v5956, %v5957
        %v5959 = vrot.slane %v5958, 1
        %v5960 = vmax.f32 %v5958, %v5959
        %v5961 = vmax.f32 %v5882, %v5883
        %v5962 = vrot.slane %v5961, 4
        %v5963 = vmax.f32 %v5961, %v5962
        %v5964 = vrot.slane %v5963, 2
        %v5965 = vmax.f32 %v5963, %v5964
        %v5966 = vrot.slane %v5965, 1
        %v5967 = vmax.f32 %v5965, %v5966
        %v5968 = vmax.f32 %v5884, %v5885
        %v5969 = vrot.slane %v5968, 4
        %v5970 = vmax.f32 %v5968, %v5969
        %v5971 = vrot.slane %v5970, 2
        %v5972 = vmax.f32 %v5970, %v5971
        %v5973 = vrot.slane %v5972, 1
        %v5974 = vmax.f32 %v5972, %v5973
        %v5975 = vmax.f32 %v5886, %v5887
        %v5976 = vrot.slane %v5975, 4
        %v5977 = vmax.f32 %v5975, %v5976
        %v5978 = vrot.slane %v5977, 2
        %v5979 = vmax.f32 %v5977, %v5978
        %v5980 = vrot.slane %v5979, 1
        %v5981 = vmax.f32 %v5979, %v5980
        %v5982 = vmax.f32 %v5888, %v5889
        %v5983 = vrot.slane %v5982, 4
        %v5984 = vmax.f32 %v5982, %v5983
        %v5985 = vrot.slane %v5984, 2
        %v5986 = vmax.f32 %v5984, %v5985
        %v5987 = vrot.slane %v5986, 1
        %v5988 = vmax.f32 %v5986, %v5987
        %v5989 = vmax.f32 %v5890, %v5891
        %v5990 = vrot.slane %v5989, 4
        %v5991 = vmax.f32 %v5989, %v5990
        %v5992 = vrot.slane %v5991, 2
        %v5993 = vmax.f32 %v5991, %v5992
        %v5994 = vrot.slane %v5993, 1
        %v5995 = vmax.f32 %v5993, %v5994
        %v5996 = vmax.f32 %v5892, %v5893
        %v5997 = vrot.slane %v5996, 4
        %v5998 = vmax.f32 %v5996, %v5997
        %v5999 = vrot.slane %v5998, 2
        %v6000 = vmax.f32 %v5998, %v5999
        %v6001 = vrot.slane %v6000, 1
        %v6002 = vmax.f32 %v6000, %v6001
        %v6003 = vmax.f32 %v5894, %v5895
        %v6004 = vrot.slane %v6003, 4
        %v6005 = vmax.f32 %v6003, %v6004
        %v6006 = vrot.slane %v6005, 2
        %v6007 = vmax.f32 %v6005, %v6006
        %v6008 = vrot.slane %v6007, 1
        %v6009 = vmax.f32 %v6007, %v6008
        %v6010 = vmax.f32 %v5896, %v5897
        %v6011 = vrot.slane %v6010, 4
        %v6012 = vmax.f32 %v6010, %v6011
        %v6013 = vrot.slane %v6012, 2
        %v6014 = vmax.f32 %v6012, %v6013
        %v6015 = vrot.slane %v6014, 1
        %v6016 = vmax.f32 %v6014, %v6015
        %v6017 = vmax.f32 %v5898, %v5899
        %v6018 = vrot.slane %v6017, 4
        %v6019 = vmax.f32 %v6017, %v6018
        %v6020 = vrot.slane %v6019, 2
        %v6021 = vmax.f32 %v6019, %v6020
        %v6022 = vrot.slane %v6021, 1
        %v6023 = vmax.f32 %v6021, %v6022
        %v6024 = vmax.f32 %v5900, %v5901
        %v6025 = vrot.slane %v6024, 4
        %v6026 = vmax.f32 %v6024, %v6025
        %v6027 = vrot.slane %v6026, 2
        %v6028 = vmax.f32 %v6026, %v6027
        %v6029 = vrot.slane %v6028, 1
        %v6030 = vmax.f32 %v6028, %v6029
        %v6031 = vmax.f32 %v5902, %v5903
        %v6032 = vrot.slane %v6031, 4
        %v6033 = vmax.f32 %v6031, %v6032
        %v6034 = vrot.slane %v6033, 2
        %v6035 = vmax.f32 %v6033, %v6034
        %v6036 = vrot.slane %v6035, 1
        %v6037 = vmax.f32 %v6035, %v6036
        %v6038 = vmax.f32 %v5904, %v5905
        %v6039 = vrot.slane %v6038, 4
        %v6040 = vmax.f32 %v6038, %v6039
        %v6041 = vrot.slane %v6040, 2
        %v6042 = vmax.f32 %v6040, %v6041
        %v6043 = vrot.slane %v6042, 1
        %v6044 = vmax.f32 %v6042, %v6043
        %v6045 = vmax.f32 %v5906, %v5907
        %v6046 = vrot.slane %v6045, 4
        %v6047 = vmax.f32 %v6045, %v6046
        %v6048 = vrot.slane %v6047, 2
        %v6049 = vmax.f32 %v6047, %v6048
        %v6050 = vrot.slane %v6049, 1
        %v6051 = vmax.f32 %v6049, %v6050
        %v6052 = vmax.f32 %v5908, %v5909
        %v6053 = vrot.slane %v6052, 4
        %v6054 = vmax.f32 %v6052, %v6053
        %v6055 = vrot.slane %v6054, 2
        %v6056 = vmax.f32 %v6054, %v6055
        %v6057 = vrot.slane %v6056, 1
        %v6058 = vmax.f32 %v6056, %v6057
        %v6059 = vmax.f32 %v5910, %v5911
        %v6060 = vrot.slane %v6059, 4
        %v6061 = vmax.f32 %v6059, %v6060
        %v6062 = vrot.slane %v6061, 2
        %v6063 = vmax.f32 %v6061, %v6062
        %v6064 = vrot.slane %v6063, 1
        %v6065 = vmax.f32 %v6063, %v6064
        %v6066 = vmax.f32 %v5912, %v5913
        %v6067 = vrot.slane %v6066, 4
        %v6068 = vmax.f32 %v6066, %v6067
        %v6069 = vrot.slane %v6068, 2
        %v6070 = vmax.f32 %v6068, %v6069
        %v6071 = vrot.slane %v6070, 1
        %v6072 = vmax.f32 %v6070, %v6071
        %v6073 = vmax.f32 %v5914, %v5915
        %v6074 = vrot.slane %v6073, 4
        %v6075 = vmax.f32 %v6073, %v6074
        %v6076 = vrot.slane %v6075, 2
        %v6077 = vmax.f32 %v6075, %v6076
        %v6078 = vrot.slane %v6077, 1
        %v6079 = vmax.f32 %v6077, %v6078
        %v6080 = vmax.f32 %v5916, %v5917
        %v6081 = vrot.slane %v6080, 4
        %v6082 = vmax.f32 %v6080, %v6081
        %v6083 = vrot.slane %v6082, 2
        %v6084 = vmax.f32 %v6082, %v6083
        %v6085 = vrot.slane %v6084, 1
        %v6086 = vmax.f32 %v6084, %v6085
        %v6087 = vmax.f32 %v5918, %v5919
        %v6088 = vrot.slane %v6087, 4
        %v6089 = vmax.f32 %v6087, %v6088
        %v6090 = vrot.slane %v6089, 2
        %v6091 = vmax.f32 %v6089, %v6090
        %v6092 = vrot.slane %v6091, 1
        %v6093 = vmax.f32 %v6091, %v6092
        %v6094 = vmax.f32 %v5920, %v5921
        %v6095 = vrot.slane %v6094, 4
        %v6096 = vmax.f32 %v6094, %v6095
        %v6097 = vrot.slane %v6096, 2
        %v6098 = vmax.f32 %v6096, %v6097
        %v6099 = vrot.slane %v6098, 1
        %v6100 = vmax.f32 %v6098, %v6099
        %v6101 = vmax.f32 %v5922, %v5923
        %v6102 = vrot.slane %v6101, 4
        %v6103 = vmax.f32 %v6101, %v6102
        %v6104 = vrot.slane %v6103, 2
        %v6105 = vmax.f32 %v6103, %v6104
        %v6106 = vrot.slane %v6105, 1
        %v6107 = vmax.f32 %v6105, %v6106
        %v6108 = vmax.f32 %v5924, %v5925
        %v6109 = vrot.slane %v6108, 4
        %v6110 = vmax.f32 %v6108, %v6109
        %v6111 = vrot.slane %v6110, 2
        %v6112 = vmax.f32 %v6110, %v6111
        %v6113 = vrot.slane %v6112, 1
        %v6114 = vmax.f32 %v6112, %v6113
        %v6115 = vmax.f32 %v5926, %v5927
        %v6116 = vrot.slane %v6115, 4
        %v6117 = vmax.f32 %v6115, %v6116
        %v6118 = vrot.slane %v6117, 2
        %v6119 = vmax.f32 %v6117, %v6118
        %v6120 = vrot.slane %v6119, 1
        %v6121 = vmax.f32 %v6119, %v6120
        %v6122 = vmax.f32 %v5928, %v5929
        %v6123 = vrot.slane %v6122, 4
        %v6124 = vmax.f32 %v6122, %v6123
        %v6125 = vrot.slane %v6124, 2
        %v6126 = vmax.f32 %v6124, %v6125
        %v6127 = vrot.slane %v6126, 1
        %v6128 = vmax.f32 %v6126, %v6127
        %v6129 = vmax.f32 %v5930, %v5931
        %v6130 = vrot.slane %v6129, 4
        %v6131 = vmax.f32 %v6129, %v6130
        %v6132 = vrot.slane %v6131, 2
        %v6133 = vmax.f32 %v6131, %v6132
        %v6134 = vrot.slane %v6133, 1
        %v6135 = vmax.f32 %v6133, %v6134
        %v6136 = vmax.f32 %v5932, %v5933
        %v6137 = vrot.slane %v6136, 4
        %v6138 = vmax.f32 %v6136, %v6137
        %v6139 = vrot.slane %v6138, 2
        %v6140 = vmax.f32 %v6138, %v6139
        %v6141 = vrot.slane %v6140, 1
        %v6142 = vmax.f32 %v6140, %v6141
        %v6143 = vmax.f32 %v5934, %v5935
        %v6144 = vrot.slane %v6143, 4
        %v6145 = vmax.f32 %v6143, %v6144
        %v6146 = vrot.slane %v6145, 2
        %v6147 = vmax.f32 %v6145, %v6146
        %v6148 = vrot.slane %v6147, 1
        %v6149 = vmax.f32 %v6147, %v6148
        %v6150 = vmax.f32 %v5936, %v5937
        %v6151 = vrot.slane %v6150, 4
        %v6152 = vmax.f32 %v6150, %v6151
        %v6153 = vrot.slane %v6152, 2
        %v6154 = vmax.f32 %v6152, %v6153
        %v6155 = vrot.slane %v6154, 1
        %v6156 = vmax.f32 %v6154, %v6155
        %v6157 = vmax.f32 %v5938, %v5939
        %v6158 = vrot.slane %v6157, 4
        %v6159 = vmax.f32 %v6157, %v6158
        %v6160 = vrot.slane %v6159, 2
        %v6161 = vmax.f32 %v6159, %v6160
        %v6162 = vrot.slane %v6161, 1
        %v6163 = vmax.f32 %v6161, %v6162
        %v6164 = vld [vmem:[%s2 + $0x2] sm:$0x1]
        %v6166 = vlaneseq
        %v6167 = vshrl.u32 %v6166, 7
        %v6168 = vsub.s32 0, %v6167
        %v6169 = vrot.slane %v6164, %v6168
        %v6171 = vadd.f32 %v5946, %v6169
        %v6172 = vadd.f32 %v5953, %v6169
        %v6173 = vadd.f32 %v5960, %v6169
        %v6174 = vadd.f32 %v5967, %v6169
        %v6175 = vadd.f32 %v5974, %v6169
        %v6176 = vadd.f32 %v5981, %v6169
        %v6177 = vadd.f32 %v5988, %v6169
        %v6178 = vadd.f32 %v5995, %v6169
        %v6179 = vadd.f32 %v6002, %v6169
        %v6180 = vadd.f32 %v6009, %v6169
        %v6181 = vadd.f32 %v6016, %v6169
        %v6182 = vadd.f32 %v6023, %v6169
        %v6183 = vadd.f32 %v6030, %v6169
        %v6184 = vadd.f32 %v6037, %v6169
        %v6185 = vadd.f32 %v6044, %v6169
        %v6186 = vadd.f32 %v6051, %v6169
        %v6187 = vadd.f32 %v6058, %v6169
        %v6188 = vadd.f32 %v6065, %v6169
        %v6189 = vadd.f32 %v6072, %v6169
        %v6190 = vadd.f32 %v6079, %v6169
        %v6191 = vadd.f32 %v6086, %v6169
        %v6192 = vadd.f32 %v6093, %v6169
        %v6193 = vadd.f32 %v6100, %v6169
        %v6194 = vadd.f32 %v6107, %v6169
        %v6195 = vadd.f32 %v6114, %v6169
        %v6196 = vadd.f32 %v6121, %v6169
        %v6197 = vadd.f32 %v6128, %v6169
        %v6198 = vadd.f32 %v6135, %v6169
        %v6199 = vadd.f32 %v6142, %v6169
        %v6200 = vadd.f32 %v6149, %v6169
        %v6201 = vadd.f32 %v6156, %v6169
        %v6202 = vadd.f32 %v6163, %v6169
        %v6203 = vxor.u32 %v6171, 2147483648
        %v6204 = vxor.u32 %v6172, 2147483648
        %v6205 = vxor.u32 %v6173, 2147483648
        %v6206 = vxor.u32 %v6174, 2147483648
        %v6207 = vxor.u32 %v6175, 2147483648
        %v6208 = vxor.u32 %v6176, 2147483648
        %v6209 = vxor.u32 %v6177, 2147483648
        %v6210 = vxor.u32 %v6178, 2147483648
        %v6211 = vxor.u32 %v6179, 2147483648
        %v6212 = vxor.u32 %v6180, 2147483648
        %v6213 = vxor.u32 %v6181, 2147483648
        %v6214 = vxor.u32 %v6182, 2147483648
        %v6215 = vxor.u32 %v6183, 2147483648
        %v6216 = vxor.u32 %v6184, 2147483648
        %v6217 = vxor.u32 %v6185, 2147483648
        %v6218 = vxor.u32 %v6186, 2147483648
        %v6219 = vxor.u32 %v6187, 2147483648
        %v6220 = vxor.u32 %v6188, 2147483648
        %v6221 = vxor.u32 %v6189, 2147483648
        %v6222 = vxor.u32 %v6190, 2147483648
        %v6223 = vxor.u32 %v6191, 2147483648
        %v6224 = vxor.u32 %v6192, 2147483648
        %v6225 = vxor.u32 %v6193, 2147483648
        %v6226 = vxor.u32 %v6194, 2147483648
        %v6227 = vxor.u32 %v6195, 2147483648
        %v6228 = vxor.u32 %v6196, 2147483648
        %v6229 = vxor.u32 %v6197, 2147483648
        %v6230 = vxor.u32 %v6198, 2147483648
        %v6231 = vxor.u32 %v6199, 2147483648
        %v6232 = vxor.u32 %v6200, 2147483648
        %v6233 = vxor.u32 %v6201, 2147483648
        %v6234 = vxor.u32 %v6202, 2147483648
        %v6235 = vmul.f32 %v6203, 1.442695
        %v6236 = vpow.pop %v6235
        %v6237 = vmul.f32 %v6204, 1.442695
        %v6238 = vpow.pop %v6237
        %v6239 = vmul.f32 %v6205, 1.442695
        %v6240 = vpow.pop %v6239
        %v6241 = vmul.f32 %v6206, 1.442695
        %v6242 = vpow.pop %v6241
        %v6243 = vmul.f32 %v6207, 1.442695
        %v6244 = vpow.pop %v6243
        %v6245 = vmul.f32 %v6208, 1.442695
        %v6246 = vpow.pop %v6245
        %v6247 = vmul.f32 %v6209, 1.442695
        %v6248 = vpow.pop %v6247
        %v6249 = vmul.f32 %v6210, 1.442695
        %v6250 = vpow.pop %v6249
        %v6251 = vmul.f32 %v6211, 1.442695
        %v6252 = vpow.pop %v6251
        %v6253 = vmul.f32 %v6212, 1.442695
        %v6254 = vpow.pop %v6253
        %v6255 = vmul.f32 %v6213, 1.442695
        %v6256 = vpow.pop %v6255
        %v6257 = vmul.f32 %v6214, 1.442695
        %v6258 = vpow.pop %v6257
        %v6259 = vmul.f32 %v6215, 1.442695
        %v6260 = vpow.pop %v6259
        %v6261 = vmul.f32 %v6216, 1.442695
        %v6262 = vpow.pop %v6261
        %v6263 = vmul.f32 %v6217, 1.442695
        %v6264 = vpow.pop %v6263
        %v6265 = vmul.f32 %v6218, 1.442695
        %v6266 = vpow.pop %v6265
        %v6267 = vmul.f32 %v6219, 1.442695
        %v6268 = vpow.pop %v6267
        %v6269 = vmul.f32 %v6220, 1.442695
        %v6270 = vpow.pop %v6269
        %v6271 = vmul.f32 %v6221, 1.442695
        %v6272 = vpow.pop %v6271
        %v6273 = vmul.f32 %v6222, 1.442695
        %v6274 = vpow.pop %v6273
        %v6275 = vmul.f32 %v6223, 1.442695
        %v6276 = vpow.pop %v6275
        %v6277 = vmul.f32 %v6224, 1.442695
        %v6278 = vpow.pop %v6277
        %v6279 = vmul.f32 %v6225, 1.442695
        %v6280 = vpow.pop %v6279
        %v6281 = vmul.f32 %v6226, 1.442695
        %v6282 = vpow.pop %v6281
        %v6283 = vmul.f32 %v6227, 1.442695
        %v6284 = vpow.pop %v6283
        %v6285 = vmul.f32 %v6228, 1.442695
        %v6286 = vpow.pop %v6285
        %v6287 = vmul.f32 %v6229, 1.442695
        %v6288 = vpow.pop %v6287
        %v6289 = vmul.f32 %v6230, 1.442695
        %v6290 = vpow.pop %v6289
        %v6291 = vmul.f32 %v6231, 1.442695
        %v6292 = vpow.pop %v6291
        %v6293 = vmul.f32 %v6232, 1.442695
        %v6294 = vpow.pop %v6293
        %v6295 = vmul.f32 %v6233, 1.442695
        %v6296 = vpow.pop %v6295
        %v6297 = vmul.f32 %v6234, 1.442695
        %v6298 = vpow.pop %v6297
        %v6299 = vadd.f32 %v6236, 1.0
        %v6300 = vadd.f32 %v6238, 1.0
        %v6301 = vadd.f32 %v6240, 1.0
        %v6302 = vadd.f32 %v6242, 1.0
        %v6303 = vadd.f32 %v6244, 1.0
        %v6304 = vadd.f32 %v6246, 1.0
        %v6305 = vadd.f32 %v6248, 1.0
        %v6306 = vadd.f32 %v6250, 1.0
        %v6307 = vadd.f32 %v6252, 1.0
        %v6308 = vadd.f32 %v6254, 1.0
        %v6309 = vadd.f32 %v6256, 1.0
        %v6310 = vadd.f32 %v6258, 1.0
        %v6311 = vadd.f32 %v6260, 1.0
        %v6312 = vadd.f32 %v6262, 1.0
        %v6313 = vadd.f32 %v6264, 1.0
        %v6314 = vadd.f32 %v6266, 1.0
        %v6315 = vadd.f32 %v6268, 1.0
        %v6316 = vadd.f32 %v6270, 1.0
        %v6317 = vadd.f32 %v6272, 1.0
        %v6318 = vadd.f32 %v6274, 1.0
        %v6319 = vadd.f32 %v6276, 1.0
        %v6320 = vadd.f32 %v6278, 1.0
        %v6321 = vadd.f32 %v6280, 1.0
        %v6322 = vadd.f32 %v6282, 1.0
        %v6323 = vadd.f32 %v6284, 1.0
        %v6324 = vadd.f32 %v6286, 1.0
        %v6325 = vadd.f32 %v6288, 1.0
        %v6326 = vadd.f32 %v6290, 1.0
        %v6327 = vadd.f32 %v6292, 1.0
        %v6328 = vadd.f32 %v6294, 1.0
        %v6329 = vadd.f32 %v6296, 1.0
        %v6330 = vadd.f32 %v6298, 1.0
        %v6331 = vrcp.pop %v6299
        %v6332 = vmul.f32 1.0, %v6331
        %v6333 = vrcp.pop %v6300
        %v6334 = vmul.f32 1.0, %v6333
        %v6335 = vrcp.pop %v6301
        %v6336 = vmul.f32 1.0, %v6335
        %v6337 = vrcp.pop %v6302
        %v6338 = vmul.f32 1.0, %v6337
        %v6339 = vrcp.pop %v6303
        %v6340 = vmul.f32 1.0, %v6339
        %v6341 = vrcp.pop %v6304
        %v6342 = vmul.f32 1.0, %v6341
        %v6343 = vrcp.pop %v6305
        %v6344 = vmul.f32 1.0, %v6343
        %v6345 = vrcp.pop %v6306
        %v6346 = vmul.f32 1.0, %v6345
        %v6347 = vrcp.pop %v6307
        %v6348 = vmul.f32 1.0, %v6347
        %v6349 = vrcp.pop %v6308
        %v6350 = vmul.f32 1.0, %v6349
        %v6351 = vrcp.pop %v6309
        %v6352 = vmul.f32 1.0, %v6351
        %v6353 = vrcp.pop %v6310
        %v6354 = vmul.f32 1.0, %v6353
        %v6355 = vrcp.pop %v6311
        %v6356 = vmul.f32 1.0, %v6355
        %v6357 = vrcp.pop %v6312
        %v6358 = vmul.f32 1.0, %v6357
        %v6359 = vrcp.pop %v6313
        %v6360 = vmul.f32 1.0, %v6359
        %v6361 = vrcp.pop %v6314
        %v6362 = vmul.f32 1.0, %v6361
        %v6363 = vrcp.pop %v6315
        %v6364 = vmul.f32 1.0, %v6363
        %v6365 = vrcp.pop %v6316
        %v6366 = vmul.f32 1.0, %v6365
        %v6367 = vrcp.pop %v6317
        %v6368 = vmul.f32 1.0, %v6367
        %v6369 = vrcp.pop %v6318
        %v6370 = vmul.f32 1.0, %v6369
        %v6371 = vrcp.pop %v6319
        %v6372 = vmul.f32 1.0, %v6371
        %v6373 = vrcp.pop %v6320
        %v6374 = vmul.f32 1.0, %v6373
        %v6375 = vrcp.pop %v6321
        %v6376 = vmul.f32 1.0, %v6375
        %v6377 = vrcp.pop %v6322
        %v6378 = vmul.f32 1.0, %v6377
        %v6379 = vrcp.pop %v6323
        %v6380 = vmul.f32 1.0, %v6379
        %v6381 = vrcp.pop %v6324
        %v6382 = vmul.f32 1.0, %v6381
        %v6383 = vrcp.pop %v6325
        %v6384 = vmul.f32 1.0, %v6383
        %v6385 = vrcp.pop %v6326
        %v6386 = vmul.f32 1.0, %v6385
        %v6387 = vrcp.pop %v6327
        %v6388 = vmul.f32 1.0, %v6387
        %v6389 = vrcp.pop %v6328
        %v6390 = vmul.f32 1.0, %v6389
        %v6391 = vrcp.pop %v6329
        %v6392 = vmul.f32 1.0, %v6391
        %v6393 = vrcp.pop %v6330
        %v6394 = vmul.f32 1.0, %v6393
        %v6395 = vrot.slane %v3003, 1
        %v6396 = vrot.slane %v3013, 1
        %v6397 = vrot.slane %v3023, 1
        %v6398 = vrot.slane %v3033, 1
        %v6399 = vrot.slane %v3043, 1
        %v6400 = vrot.slane %v3053, 1
        %v6401 = vrot.slane %v3063, 1
        %v6402 = vrot.slane %v3073, 1
        %v6403 = vrot.slane %v3083, 1
        %v6404 = vrot.slane %v3093, 1
        %v6405 = vrot.slane %v3103, 1
        %v6406 = vrot.slane %v3113, 1
        %v6407 = vrot.slane %v3123, 1
        %v6408 = vrot.slane %v3133, 1
        %v6409 = vrot.slane %v3143, 1
        %v6410 = vrot.slane %v3153, 1
        %v6411 = vrot.slane %v3163, 1
        %v6412 = vrot.slane %v3173, 1
        %v6413 = vrot.slane %v3183, 1
        %v6414 = vrot.slane %v3193, 1
        %v6415 = vrot.slane %v3203, 1
        %v6416 = vrot.slane %v3213, 1
        %v6417 = vrot.slane %v3223, 1
        %v6418 = vrot.slane %v3233, 1
        %v6419 = vrot.slane %v3243, 1
        %v6420 = vrot.slane %v3253, 1
        %v6421 = vrot.slane %v3263, 1
        %v6422 = vrot.slane %v3273, 1
        %v6423 = vrot.slane %v3283, 1
        %v6424 = vrot.slane %v3293, 1
        %v6425 = vrot.slane %v3303, 1
        %v6426 = vrot.slane %v3313, 1
        %v6427 = vrot.slane %v3007, 1
        %v6428 = vrot.slane %v3017, 1
        %v6429 = vrot.slane %v3027, 1
        %v6430 = vrot.slane %v3037, 1
        %v6431 = vrot.slane %v3047, 1
        %v6432 = vrot.slane %v3057, 1
        %v6433 = vrot.slane %v3067, 1
        %v6434 = vrot.slane %v3077, 1
        %v6435 = vrot.slane %v3087, 1
        %v6436 = vrot.slane %v3097, 1
        %v6437 = vrot.slane %v3107, 1
        %v6438 = vrot.slane %v3117, 1
        %v6439 = vrot.slane %v3127, 1
        %v6440 = vrot.slane %v3137, 1
        %v6441 = vrot.slane %v3147, 1
        %v6442 = vrot.slane %v3157, 1
        %v6443 = vrot.slane %v3167, 1
        %v6444 = vrot.slane %v3177, 1
        %v6445 = vrot.slane %v3187, 1
        %v6446 = vrot.slane %v3197, 1
        %v6447 = vrot.slane %v3207, 1
        %v6448 = vrot.slane %v3217, 1
        %v6449 = vrot.slane %v3227, 1
        %v6450 = vrot.slane %v3237, 1
        %v6451 = vrot.slane %v3247, 1
        %v6452 = vrot.slane %v3257, 1
        %v6453 = vrot.slane %v3267, 1
        %v6454 = vrot.slane %v3277, 1
        %v6455 = vrot.slane %v3287, 1
        %v6456 = vrot.slane %v3297, 1
        %v6457 = vrot.slane %v3307, 1
        %v6458 = vrot.slane %v3317, 1
        %v6459 = vsel %vm3741, %v6395, %v6427
        %v6460 = vsel %vm3741, %v6396, %v6428
        %v6461 = vsel %vm3741, %v6397, %v6429
        %v6462 = vsel %vm3741, %v6398, %v6430
        %v6463 = vsel %vm3741, %v6399, %v6431
        %v6464 = vsel %vm3741, %v6400, %v6432
        %v6465 = vsel %vm3741, %v6401, %v6433
        %v6466 = vsel %vm3741, %v6402, %v6434
        %v6467 = vsel %vm3741, %v6403, %v6435
        %v6468 = vsel %vm3741, %v6404, %v6436
        %v6469 = vsel %vm3741, %v6405, %v6437
        %v6470 = vsel %vm3741, %v6406, %v6438
        %v6471 = vsel %vm3741, %v6407, %v6439
        %v6472 = vsel %vm3741, %v6408, %v6440
        %v6473 = vsel %vm3741, %v6409, %v6441
        %v6474 = vsel %vm3741, %v6410, %v6442
        %v6475 = vsel %vm3741, %v6411, %v6443
        %v6476 = vsel %vm3741, %v6412, %v6444
        %v6477 = vsel %vm3741, %v6413, %v6445
        %v6478 = vsel %vm3741, %v6414, %v6446
        %v6479 = vsel %vm3741, %v6415, %v6447
        %v6480 = vsel %vm3741, %v6416, %v6448
        %v6481 = vsel %vm3741, %v6417, %v6449
        %v6482 = vsel %vm3741, %v6418, %v6450
        %v6483 = vsel %vm3741, %v6419, %v6451
        %v6484 = vsel %vm3741, %v6420, %v6452
        %v6485 = vsel %vm3741, %v6421, %v6453
        %v6486 = vsel %vm3741, %v6422, %v6454
        %v6487 = vsel %vm3741, %v6423, %v6455
        %v6488 = vsel %vm3741, %v6424, %v6456
        %v6489 = vsel %vm3741, %v6425, %v6457
        %v6490 = vsel %vm3741, %v6426, %v6458
        %v6491 = vsel %vm3741, %v6427, %v6395
        %v6492 = vsel %vm3741, %v6428, %v6396
        %v6493 = vsel %vm3741, %v6429, %v6397
        %v6494 = vsel %vm3741, %v6430, %v6398
        %v6495 = vsel %vm3741, %v6431, %v6399
        %v6496 = vsel %vm3741, %v6432, %v6400
        %v6497 = vsel %vm3741, %v6433, %v6401
        %v6498 = vsel %vm3741, %v6434, %v6402
        %v6499 = vsel %vm3741, %v6435, %v6403
        %v6500 = vsel %vm3741, %v6436, %v6404
        %v6501 = vsel %vm3741, %v6437, %v6405
        %v6502 = vsel %vm3741, %v6438, %v6406
        %v6503 = vsel %vm3741, %v6439, %v6407
        %v6504 = vsel %vm3741, %v6440, %v6408
        %v6505 = vsel %vm3741, %v6441, %v6409
        %v6506 = vsel %vm3741, %v6442, %v6410
        %v6507 = vsel %vm3741, %v6443, %v6411
        %v6508 = vsel %vm3741, %v6444, %v6412
        %v6509 = vsel %vm3741, %v6445, %v6413
        %v6510 = vsel %vm3741, %v6446, %v6414
        %v6511 = vsel %vm3741, %v6447, %v6415
        %v6512 = vsel %vm3741, %v6448, %v6416
        %v6513 = vsel %vm3741, %v6449, %v6417
        %v6514 = vsel %vm3741, %v6450, %v6418
        %v6515 = vsel %vm3741, %v6451, %v6419
        %v6516 = vsel %vm3741, %v6452, %v6420
        %v6517 = vsel %vm3741, %v6453, %v6421
        %v6518 = vsel %vm3741, %v6454, %v6422
        %v6519 = vsel %vm3741, %v6455, %v6423
        %v6520 = vsel %vm3741, %v6456, %v6424
        %v6521 = vsel %vm3741, %v6457, %v6425
        %v6522 = vsel %vm3741, %v6458, %v6426
        %v6523 = vadd.f32 %v2652, %v6459
        %v6524 = vadd.f32 %v2656, %v6491
        %v6525 = vadd.f32 %v2662, %v6460
        %v6526 = vadd.f32 %v2666, %v6492
        %v6527 = vadd.f32 %v2672, %v6461
        %v6528 = vadd.f32 %v2676, %v6493
        %v6529 = vadd.f32 %v2682, %v6462
        %v6530 = vadd.f32 %v2686, %v6494
        %v6531 = vadd.f32 %v2692, %v6463
        %v6532 = vadd.f32 %v2696, %v6495
        %v6533 = vadd.f32 %v2702, %v6464
        %v6534 = vadd.f32 %v2706, %v6496
        %v6535 = vadd.f32 %v2712, %v6465
        %v6536 = vadd.f32 %v2716, %v6497
        %v6537 = vadd.f32 %v2722, %v6466
        %v6538 = vadd.f32 %v2726, %v6498
        %v6539 = vadd.f32 %v2732, %v6467
        %v6540 = vadd.f32 %v2736, %v6499
        %v6541 = vadd.f32 %v2742, %v6468
        %v6542 = vadd.f32 %v2746, %v6500
        %v6543 = vadd.f32 %v2752, %v6469
        %v6544 = vadd.f32 %v2756, %v6501
        %v6545 = vadd.f32 %v2762, %v6470
        %v6546 = vadd.f32 %v2766, %v6502
        %v6547 = vadd.f32 %v2772, %v6471
        %v6548 = vadd.f32 %v2776, %v6503
        %v6549 = vadd.f32 %v2782, %v6472
        %v6550 = vadd.f32 %v2786, %v6504
        %v6551 = vadd.f32 %v2792, %v6473
        %v6552 = vadd.f32 %v2796, %v6505
        %v6553 = vadd.f32 %v2802, %v6474
        %v6554 = vadd.f32 %v2806, %v6506
        %v6555 = vadd.f32 %v2812, %v6475
        %v6556 = vadd.f32 %v2816, %v6507
        %v6557 = vadd.f32 %v2822, %v6476
        %v6558 = vadd.f32 %v2826, %v6508
        %v6559 = vadd.f32 %v2832, %v6477
        %v6560 = vadd.f32 %v2836, %v6509
        %v6561 = vadd.f32 %v2842, %v6478
        %v6562 = vadd.f32 %v2846, %v6510
        %v6563 = vadd.f32 %v2852, %v6479
        %v6564 = vadd.f32 %v2856, %v6511
        %v6565 = vadd.f32 %v2862, %v6480
        %v6566 = vadd.f32 %v2866, %v6512
        %v6567 = vadd.f32 %v2872, %v6481
        %v6568 = vadd.f32 %v2876, %v6513
        %v6569 = vadd.f32 %v2882, %v6482
        %v6570 = vadd.f32 %v2886, %v6514
        %v6571 = vadd.f32 %v2892, %v6483
        %v6572 = vadd.f32 %v2896, %v6515
        %v6573 = vadd.f32 %v2902, %v6484
        %v6574 = vadd.f32 %v2906, %v6516
        %v6575 = vadd.f32 %v2912, %v6485
        %v6576 = vadd.f32 %v2916, %v6517
        %v6577 = vadd.f32 %v2922, %v6486
        %v6578 = vadd.f32 %v2926, %v6518
        %v6579 = vadd.f32 %v2932, %v6487
        %v6580 = vadd.f32 %v2936, %v6519
        %v6581 = vadd.f32 %v2942, %v6488
        %v6582 = vadd.f32 %v2946, %v6520
        %v6583 = vadd.f32 %v2952, %v6489
        %v6584 = vadd.f32 %v2956, %v6521
        %v6585 = vadd.f32 %v2962, %v6490
        %v6586 = vadd.f32 %v2966, %v6522
        %v6587 = vrot.slane %v3005, 2
        %v6588 = vrot.slane %v3015, 2
        %v6589 = vrot.slane %v3025, 2
        %v6590 = vrot.slane %v3035, 2
        %v6591 = vrot.slane %v3045, 2
        %v6592 = vrot.slane %v3055, 2
        %v6593 = vrot.slane %v3065, 2
        %v6594 = vrot.slane %v3075, 2
        %v6595 = vrot.slane %v3085, 2
        %v6596 = vrot.slane %v3095, 2
        %v6597 = vrot.slane %v3105, 2
        %v6598 = vrot.slane %v3115, 2
        %v6599 = vrot.slane %v3125, 2
        %v6600 = vrot.slane %v3135, 2
        %v6601 = vrot.slane %v3145, 2
        %v6602 = vrot.slane %v3155, 2
        %v6603 = vrot.slane %v3165, 2
        %v6604 = vrot.slane %v3175, 2
        %v6605 = vrot.slane %v3185, 2
        %v6606 = vrot.slane %v3195, 2
        %v6607 = vrot.slane %v3205, 2
        %v6608 = vrot.slane %v3215, 2
        %v6609 = vrot.slane %v3225, 2
        %v6610 = vrot.slane %v3235, 2
        %v6611 = vrot.slane %v3245, 2
        %v6612 = vrot.slane %v3255, 2
        %v6613 = vrot.slane %v3265, 2
        %v6614 = vrot.slane %v3275, 2
        %v6615 = vrot.slane %v3285, 2
        %v6616 = vrot.slane %v3295, 2
        %v6617 = vrot.slane %v3305, 2
        %v6618 = vrot.slane %v3315, 2
        %v6619 = vrot.slane %v3009, 2
        %v6620 = vrot.slane %v3019, 2
        %v6621 = vrot.slane %v3029, 2
        %v6622 = vrot.slane %v3039, 2
        %v6623 = vrot.slane %v3049, 2
        %v6624 = vrot.slane %v3059, 2
        %v6625 = vrot.slane %v3069, 2
        %v6626 = vrot.slane %v3079, 2
        %v6627 = vrot.slane %v3089, 2
        %v6628 = vrot.slane %v3099, 2
        %v6629 = vrot.slane %v3109, 2
        %v6630 = vrot.slane %v3119, 2
        %v6631 = vrot.slane %v3129, 2
        %v6632 = vrot.slane %v3139, 2
        %v6633 = vrot.slane %v3149, 2
        %v6634 = vrot.slane %v3159, 2
        %v6635 = vrot.slane %v3169, 2
        %v6636 = vrot.slane %v3179, 2
        %v6637 = vrot.slane %v3189, 2
        %v6638 = vrot.slane %v3199, 2
        %v6639 = vrot.slane %v3209, 2
        %v6640 = vrot.slane %v3219, 2
        %v6641 = vrot.slane %v3229, 2
        %v6642 = vrot.slane %v3239, 2
        %v6643 = vrot.slane %v3249, 2
        %v6644 = vrot.slane %v3259, 2
        %v6645 = vrot.slane %v3269, 2
        %v6646 = vrot.slane %v3279, 2
        %v6647 = vrot.slane %v3289, 2
        %v6648 = vrot.slane %v3299, 2
        %v6649 = vrot.slane %v3309, 2
        %v6650 = vrot.slane %v3319, 2
        %v6651 = vsel %vm4647, %v6587, %v6619
        %v6652 = vsel %vm4647, %v6588, %v6620
        %v6653 = vsel %vm4647, %v6589, %v6621
        %v6654 = vsel %vm4647, %v6590, %v6622
        %v6655 = vsel %vm4647, %v6591, %v6623
        %v6656 = vsel %vm4647, %v6592, %v6624
        %v6657 = vsel %vm4647, %v6593, %v6625
        %v6658 = vsel %vm4647, %v6594, %v6626
        %v6659 = vsel %vm4647, %v6595, %v6627
        %v6660 = vsel %vm4647, %v6596, %v6628
        %v6661 = vsel %vm4647, %v6597, %v6629
        %v6662 = vsel %vm4647, %v6598, %v6630
        %v6663 = vsel %vm4647, %v6599, %v6631
        %v6664 = vsel %vm4647, %v6600, %v6632
        %v6665 = vsel %vm4647, %v6601, %v6633
        %v6666 = vsel %vm4647, %v6602, %v6634
        %v6667 = vsel %vm4647, %v6603, %v6635
        %v6668 = vsel %vm4647, %v6604, %v6636
        %v6669 = vsel %vm4647, %v6605, %v6637
        %v6670 = vsel %vm4647, %v6606, %v6638
        %v6671 = vsel %vm4647, %v6607, %v6639
        %v6672 = vsel %vm4647, %v6608, %v6640
        %v6673 = vsel %vm4647, %v6609, %v6641
        %v6674 = vsel %vm4647, %v6610, %v6642
        %v6675 = vsel %vm4647, %v6611, %v6643
        %v6676 = vsel %vm4647, %v6612, %v6644
        %v6677 = vsel %vm4647, %v6613, %v6645
        %v6678 = vsel %vm4647, %v6614, %v6646
        %v6679 = vsel %vm4647, %v6615, %v6647
        %v6680 = vsel %vm4647, %v6616, %v6648
        %v6681 = vsel %vm4647, %v6617, %v6649
        %v6682 = vsel %vm4647, %v6618, %v6650
        %v6683 = vsel %vm4647, %v6619, %v6587
        %v6684 = vsel %vm4647, %v6620, %v6588
        %v6685 = vsel %vm4647, %v6621, %v6589
        %v6686 = vsel %vm4647, %v6622, %v6590
        %v6687 = vsel %vm4647, %v6623, %v6591
        %v6688 = vsel %vm4647, %v6624, %v6592
        %v6689 = vsel %vm4647, %v6625, %v6593
        %v6690 = vsel %vm4647, %v6626, %v6594
        %v6691 = vsel %vm4647, %v6627, %v6595
        %v6692 = vsel %vm4647, %v6628, %v6596
        %v6693 = vsel %vm4647, %v6629, %v6597
        %v6694 = vsel %vm4647, %v6630, %v6598
        %v6695 = vsel %vm4647, %v6631, %v6599
        %v6696 = vsel %vm4647, %v6632, %v6600
        %v6697 = vsel %vm4647, %v6633, %v6601
        %v6698 = vsel %vm4647, %v6634, %v6602
        %v6699 = vsel %vm4647, %v6635, %v6603
        %v6700 = vsel %vm4647, %v6636, %v6604
        %v6701 = vsel %vm4647, %v6637, %v6605
        %v6702 = vsel %vm4647, %v6638, %v6606
        %v6703 = vsel %vm4647, %v6639, %v6607
        %v6704 = vsel %vm4647, %v6640, %v6608
        %v6705 = vsel %vm4647, %v6641, %v6609
        %v6706 = vsel %vm4647, %v6642, %v6610
        %v6707 = vsel %vm4647, %v6643, %v6611
        %v6708 = vsel %vm4647, %v6644, %v6612
        %v6709 = vsel %vm4647, %v6645, %v6613
        %v6710 = vsel %vm4647, %v6646, %v6614
        %v6711 = vsel %vm4647, %v6647, %v6615
        %v6712 = vsel %vm4647, %v6648, %v6616
        %v6713 = vsel %vm4647, %v6649, %v6617
        %v6714 = vsel %vm4647, %v6650, %v6618
        %v6715 = vadd.f32 %v6523, %v6651
        %v6716 = vadd.f32 %v6524, %v6683
        %v6717 = vadd.f32 %v6525, %v6652
        %v6718 = vadd.f32 %v6526, %v6684
        %v6719 = vadd.f32 %v6527, %v6653
        %v6720 = vadd.f32 %v6528, %v6685
        %v6721 = vadd.f32 %v6529, %v6654
        %v6722 = vadd.f32 %v6530, %v6686
        %v6723 = vadd.f32 %v6531, %v6655
        %v6724 = vadd.f32 %v6532, %v6687
        %v6725 = vadd.f32 %v6533, %v6656
        %v6726 = vadd.f32 %v6534, %v6688
        %v6727 = vadd.f32 %v6535, %v6657
        %v6728 = vadd.f32 %v6536, %v6689
        %v6729 = vadd.f32 %v6537, %v6658
        %v6730 = vadd.f32 %v6538, %v6690
        %v6731 = vadd.f32 %v6539, %v6659
        %v6732 = vadd.f32 %v6540, %v6691
        %v6733 = vadd.f32 %v6541, %v6660
        %v6734 = vadd.f32 %v6542, %v6692
        %v6735 = vadd.f32 %v6543, %v6661
        %v6736 = vadd.f32 %v6544, %v6693
        %v6737 = vadd.f32 %v6545, %v6662
        %v6738 = vadd.f32 %v6546, %v6694
        %v6739 = vadd.f32 %v6547, %v6663
        %v6740 = vadd.f32 %v6548, %v6695
        %v6741 = vadd.f32 %v6549, %v6664
        %v6742 = vadd.f32 %v6550, %v6696
        %v6743 = vadd.f32 %v6551, %v6665
        %v6744 = vadd.f32 %v6552, %v6697
        %v6745 = vadd.f32 %v6553, %v6666
        %v6746 = vadd.f32 %v6554, %v6698
        %v6747 = vadd.f32 %v6555, %v6667
        %v6748 = vadd.f32 %v6556, %v6699
        %v6749 = vadd.f32 %v6557, %v6668
        %v6750 = vadd.f32 %v6558, %v6700
        %v6751 = vadd.f32 %v6559, %v6669
        %v6752 = vadd.f32 %v6560, %v6701
        %v6753 = vadd.f32 %v6561, %v6670
        %v6754 = vadd.f32 %v6562, %v6702
        %v6755 = vadd.f32 %v6563, %v6671
        %v6756 = vadd.f32 %v6564, %v6703
        %v6757 = vadd.f32 %v6565, %v6672
        %v6758 = vadd.f32 %v6566, %v6704
        %v6759 = vadd.f32 %v6567, %v6673
        %v6760 = vadd.f32 %v6568, %v6705
        %v6761 = vadd.f32 %v6569, %v6674
        %v6762 = vadd.f32 %v6570, %v6706
        %v6763 = vadd.f32 %v6571, %v6675
        %v6764 = vadd.f32 %v6572, %v6707
        %v6765 = vadd.f32 %v6573, %v6676
        %v6766 = vadd.f32 %v6574, %v6708
        %v6767 = vadd.f32 %v6575, %v6677
        %v6768 = vadd.f32 %v6576, %v6709
        %v6769 = vadd.f32 %v6577, %v6678
        %v6770 = vadd.f32 %v6578, %v6710
        %v6771 = vadd.f32 %v6579, %v6679
        %v6772 = vadd.f32 %v6580, %v6711
        %v6773 = vadd.f32 %v6581, %v6680
        %v6774 = vadd.f32 %v6582, %v6712
        %v6775 = vadd.f32 %v6583, %v6681
        %v6776 = vadd.f32 %v6584, %v6713
        %v6777 = vadd.f32 %v6585, %v6682
        %v6778 = vadd.f32 %v6586, %v6714
        %v6779 = vrot.slane %v3356, 3
        %v6780 = vrot.slane %v3366, 3
        %v6781 = vrot.slane %v3376, 3
        %v6782 = vrot.slane %v3386, 3
        %v6783 = vrot.slane %v3396, 3
        %v6784 = vrot.slane %v3406, 3
        %v6785 = vrot.slane %v3416, 3
        %v6786 = vrot.slane %v3426, 3
        %v6787 = vrot.slane %v3436, 3
        %v6788 = vrot.slane %v3446, 3
        %v6789 = vrot.slane %v3456, 3
        %v6790 = vrot.slane %v3466, 3
        %v6791 = vrot.slane %v3476, 3
        %v6792 = vrot.slane %v3486, 3
        %v6793 = vrot.slane %v3496, 3
        %v6794 = vrot.slane %v3506, 3
        %v6795 = vrot.slane %v3516, 3
        %v6796 = vrot.slane %v3526, 3
        %v6797 = vrot.slane %v3536, 3
        %v6798 = vrot.slane %v3546, 3
        %v6799 = vrot.slane %v3556, 3
        %v6800 = vrot.slane %v3566, 3
        %v6801 = vrot.slane %v3576, 3
        %v6802 = vrot.slane %v3586, 3
        %v6803 = vrot.slane %v3596, 3
        %v6804 = vrot.slane %v3606, 3
        %v6805 = vrot.slane %v3616, 3
        %v6806 = vrot.slane %v3626, 3
        %v6807 = vrot.slane %v3636, 3
        %v6808 = vrot.slane %v3646, 3
        %v6809 = vrot.slane %v3656, 3
        %v6810 = vrot.slane %v3666, 3
        %v6811 = vrot.slane %v3360, 3
        %v6812 = vrot.slane %v3370, 3
        %v6813 = vrot.slane %v3380, 3
        %v6814 = vrot.slane %v3390, 3
        %v6815 = vrot.slane %v3400, 3
        %v6816 = vrot.slane %v3410, 3
        %v6817 = vrot.slane %v3420, 3
        %v6818 = vrot.slane %v3430, 3
        %v6819 = vrot.slane %v3440, 3
        %v6820 = vrot.slane %v3450, 3
        %v6821 = vrot.slane %v3460, 3
        %v6822 = vrot.slane %v3470, 3
        %v6823 = vrot.slane %v3480, 3
        %v6824 = vrot.slane %v3490, 3
        %v6825 = vrot.slane %v3500, 3
        %v6826 = vrot.slane %v3510, 3
        %v6827 = vrot.slane %v3520, 3
        %v6828 = vrot.slane %v3530, 3
        %v6829 = vrot.slane %v3540, 3
        %v6830 = vrot.slane %v3550, 3
        %v6831 = vrot.slane %v3560, 3
        %v6832 = vrot.slane %v3570, 3
        %v6833 = vrot.slane %v3580, 3
        %v6834 = vrot.slane %v3590, 3
        %v6835 = vrot.slane %v3600, 3
        %v6836 = vrot.slane %v3610, 3
        %v6837 = vrot.slane %v3620, 3
        %v6838 = vrot.slane %v3630, 3
        %v6839 = vrot.slane %v3640, 3
        %v6840 = vrot.slane %v3650, 3
        %v6841 = vrot.slane %v3660, 3
        %v6842 = vrot.slane %v3670, 3
        %v6843 = vsel %vm5745, %v6779, %v6811
        %v6844 = vsel %vm5745, %v6780, %v6812
        %v6845 = vsel %vm5745, %v6781, %v6813
        %v6846 = vsel %vm5745, %v6782, %v6814
        %v6847 = vsel %vm5745, %v6783, %v6815
        %v6848 = vsel %vm5745, %v6784, %v6816
        %v6849 = vsel %vm5745, %v6785, %v6817
        %v6850 = vsel %vm5745, %v6786, %v6818
        %v6851 = vsel %vm5745, %v6787, %v6819
        %v6852 = vsel %vm5745, %v6788, %v6820
        %v6853 = vsel %vm5745, %v6789, %v6821
        %v6854 = vsel %vm5745, %v6790, %v6822
        %v6855 = vsel %vm5745, %v6791, %v6823
        %v6856 = vsel %vm5745, %v6792, %v6824
        %v6857 = vsel %vm5745, %v6793, %v6825
        %v6858 = vsel %vm5745, %v6794, %v6826
        %v6859 = vsel %vm5745, %v6795, %v6827
        %v6860 = vsel %vm5745, %v6796, %v6828
        %v6861 = vsel %vm5745, %v6797, %v6829
        %v6862 = vsel %vm5745, %v6798, %v6830
        %v6863 = vsel %vm5745, %v6799, %v6831
        %v6864 = vsel %vm5745, %v6800, %v6832
        %v6865 = vsel %vm5745, %v6801, %v6833
        %v6866 = vsel %vm5745, %v6802, %v6834
        %v6867 = vsel %vm5745, %v6803, %v6835
        %v6868 = vsel %vm5745, %v6804, %v6836
        %v6869 = vsel %vm5745, %v6805, %v6837
        %v6870 = vsel %vm5745, %v6806, %v6838
        %v6871 = vsel %vm5745, %v6807, %v6839
        %v6872 = vsel %vm5745, %v6808, %v6840
        %v6873 = vsel %vm5745, %v6809, %v6841
        %v6874 = vsel %vm5745, %v6810, %v6842
        %v6875 = vsel %vm5745, %v6811, %v6779
        %v6876 = vsel %vm5745, %v6812, %v6780
        %v6877 = vsel %vm5745, %v6813, %v6781
        %v6878 = vsel %vm5745, %v6814, %v6782
        %v6879 = vsel %vm5745, %v6815, %v6783
        %v6880 = vsel %vm5745, %v6816, %v6784
        %v6881 = vsel %vm5745, %v6817, %v6785
        %v6882 = vsel %vm5745, %v6818, %v6786
        %v6883 = vsel %vm5745, %v6819, %v6787
        %v6884 = vsel %vm5745, %v6820, %v6788
        %v6885 = vsel %vm5745, %v6821, %v6789
        %v6886 = vsel %vm5745, %v6822, %v6790
        %v6887 = vsel %vm5745, %v6823, %v6791
        %v6888 = vsel %vm5745, %v6824, %v6792
        %v6889 = vsel %vm5745, %v6825, %v6793
        %v6890 = vsel %vm5745, %v6826, %v6794
        %v6891 = vsel %vm5745, %v6827, %v6795
        %v6892 = vsel %vm5745, %v6828, %v6796
        %v6893 = vsel %vm5745, %v6829, %v6797
        %v6894 = vsel %vm5745, %v6830, %v6798
        %v6895 = vsel %vm5745, %v6831, %v6799
        %v6896 = vsel %vm5745, %v6832, %v6800
        %v6897 = vsel %vm5745, %v6833, %v6801
        %v6898 = vsel %vm5745, %v6834, %v6802
        %v6899 = vsel %vm5745, %v6835, %v6803
        %v6900 = vsel %vm5745, %v6836, %v6804
        %v6901 = vsel %vm5745, %v6837, %v6805
        %v6902 = vsel %vm5745, %v6838, %v6806
        %v6903 = vsel %vm5745, %v6839, %v6807
        %v6904 = vsel %vm5745, %v6840, %v6808
        %v6905 = vsel %vm5745, %v6841, %v6809
        %v6906 = vsel %vm5745, %v6842, %v6810
        %v6907 = vadd.f32 %v6715, %v6843
        %v6908 = vadd.f32 %v6716, %v6875
        %v6909 = vadd.f32 %v6717, %v6844
        %v6910 = vadd.f32 %v6718, %v6876
        %v6911 = vadd.f32 %v6719, %v6845
        %v6912 = vadd.f32 %v6720, %v6877
        %v6913 = vadd.f32 %v6721, %v6846
        %v6914 = vadd.f32 %v6722, %v6878
        %v6915 = vadd.f32 %v6723, %v6847
        %v6916 = vadd.f32 %v6724, %v6879
        %v6917 = vadd.f32 %v6725, %v6848
        %v6918 = vadd.f32 %v6726, %v6880
        %v6919 = vadd.f32 %v6727, %v6849
        %v6920 = vadd.f32 %v6728, %v6881
        %v6921 = vadd.f32 %v6729, %v6850
        %v6922 = vadd.f32 %v6730, %v6882
        %v6923 = vadd.f32 %v6731, %v6851
        %v6924 = vadd.f32 %v6732, %v6883
        %v6925 = vadd.f32 %v6733, %v6852
        %v6926 = vadd.f32 %v6734, %v6884
        %v6927 = vadd.f32 %v6735, %v6853
        %v6928 = vadd.f32 %v6736, %v6885
        %v6929 = vadd.f32 %v6737, %v6854
        %v6930 = vadd.f32 %v6738, %v6886
        %v6931 = vadd.f32 %v6739, %v6855
        %v6932 = vadd.f32 %v6740, %v6887
        %v6933 = vadd.f32 %v6741, %v6856
        %v6934 = vadd.f32 %v6742, %v6888
        %v6935 = vadd.f32 %v6743, %v6857
        %v6936 = vadd.f32 %v6744, %v6889
        %v6937 = vadd.f32 %v6745, %v6858
        %v6938 = vadd.f32 %v6746, %v6890
        %v6939 = vadd.f32 %v6747, %v6859
        %v6940 = vadd.f32 %v6748, %v6891
        %v6941 = vadd.f32 %v6749, %v6860
        %v6942 = vadd.f32 %v6750, %v6892
        %v6943 = vadd.f32 %v6751, %v6861
        %v6944 = vadd.f32 %v6752, %v6893
        %v6945 = vadd.f32 %v6753, %v6862
        %v6946 = vadd.f32 %v6754, %v6894
        %v6947 = vadd.f32 %v6755, %v6863
        %v6948 = vadd.f32 %v6756, %v6895
        %v6949 = vadd.f32 %v6757, %v6864
        %v6950 = vadd.f32 %v6758, %v6896
        %v6951 = vadd.f32 %v6759, %v6865
        %v6952 = vadd.f32 %v6760, %v6897
        %v6953 = vadd.f32 %v6761, %v6866
        %v6954 = vadd.f32 %v6762, %v6898
        %v6955 = vadd.f32 %v6763, %v6867
        %v6956 = vadd.f32 %v6764, %v6899
        %v6957 = vadd.f32 %v6765, %v6868
        %v6958 = vadd.f32 %v6766, %v6900
        %v6959 = vadd.f32 %v6767, %v6869
        %v6960 = vadd.f32 %v6768, %v6901
        %v6961 = vadd.f32 %v6769, %v6870
        %v6962 = vadd.f32 %v6770, %v6902
        %v6963 = vadd.f32 %v6771, %v6871
        %v6964 = vadd.f32 %v6772, %v6903
        %v6965 = vadd.f32 %v6773, %v6872
        %v6966 = vadd.f32 %v6774, %v6904
        %v6967 = vadd.f32 %v6775, %v6873
        %v6968 = vadd.f32 %v6776, %v6905
        %v6969 = vadd.f32 %v6777, %v6874
        %v6970 = vadd.f32 %v6778, %v6906
        %v6971 = vrot.slane %v3358, 4
        %v6972 = vrot.slane %v3368, 4
        %v6973 = vrot.slane %v3378, 4
        %v6974 = vrot.slane %v3388, 4
        %v6975 = vrot.slane %v3398, 4
        %v6976 = vrot.slane %v3408, 4
        %v6977 = vrot.slane %v3418, 4
        %v6978 = vrot.slane %v3428, 4
        %v6979 = vrot.slane %v3438, 4
        %v6980 = vrot.slane %v3448, 4
        %v6981 = vrot.slane %v3458, 4
        %v6982 = vrot.slane %v3468, 4
        %v6983 = vrot.slane %v3478, 4
        %v6984 = vrot.slane %v3488, 4
        %v6985 = vrot.slane %v3498, 4
        %v6986 = vrot.slane %v3508, 4
        %v6987 = vrot.slane %v3518, 4
        %v6988 = vrot.slane %v3528, 4
        %v6989 = vrot.slane %v3538, 4
        %v6990 = vrot.slane %v3548, 4
        %v6991 = vrot.slane %v3558, 4
        %v6992 = vrot.slane %v3568, 4
        %v6993 = vrot.slane %v3578, 4
        %v6994 = vrot.slane %v3588, 4
        %v6995 = vrot.slane %v3598, 4
        %v6996 = vrot.slane %v3608, 4
        %v6997 = vrot.slane %v3618, 4
        %v6998 = vrot.slane %v3628, 4
        %v6999 = vrot.slane %v3638, 4
        %v7000 = vrot.slane %v3648, 4
        %v7001 = vrot.slane %v3658, 4
        %v7002 = vrot.slane %v3668, 4
        %v7003 = vrot.slane %v3362, 4
        %v7004 = vrot.slane %v3372, 4
        %v7005 = vrot.slane %v3382, 4
        %v7006 = vrot.slane %v3392, 4
        %v7007 = vrot.slane %v3402, 4
        %v7008 = vrot.slane %v3412, 4
        %v7009 = vrot.slane %v3422, 4
        %v7010 = vrot.slane %v3432, 4
        %v7011 = vrot.slane %v3442, 4
        %v7012 = vrot.slane %v3452, 4
        %v7013 = vrot.slane %v3462, 4
        %v7014 = vrot.slane %v3472, 4
        %v7015 = vrot.slane %v3482, 4
        %v7016 = vrot.slane %v3492, 4
        %v7017 = vrot.slane %v3502, 4
        %v7018 = vrot.slane %v3512, 4
        %v7019 = vrot.slane %v3522, 4
        %v7020 = vrot.slane %v3532, 4
        %v7021 = vrot.slane %v3542, 4
        %v7022 = vrot.slane %v3552, 4
        %v7023 = vrot.slane %v3562, 4
        %v7024 = vrot.slane %v3572, 4
        %v7025 = vrot.slane %v3582, 4
        %v7026 = vrot.slane %v3592, 4
        %v7027 = vrot.slane %v3602, 4
        %v7028 = vrot.slane %v3612, 4
        %v7029 = vrot.slane %v3622, 4
        %v7030 = vrot.slane %v3632, 4
        %v7031 = vrot.slane %v3642, 4
        %v7032 = vrot.slane %v3652, 4
        %v7033 = vrot.slane %v3662, 4
        %v7034 = vrot.slane %v3672, 4
        %vm7035 = vcmp.lt.s32.totalorder %v3675, 4
        %v7036 = vsel %vm7035, %v6971, %v7003
        %v7037 = vsel %vm7035, %v6972, %v7004
        %v7038 = vsel %vm7035, %v6973, %v7005
        %v7039 = vsel %vm7035, %v6974, %v7006
        %v7040 = vsel %vm7035, %v6975, %v7007
        %v7041 = vsel %vm7035, %v6976, %v7008
        %v7042 = vsel %vm7035, %v6977, %v7009
        %v7043 = vsel %vm7035, %v6978, %v7010
        %v7044 = vsel %vm7035, %v6979, %v7011
        %v7045 = vsel %vm7035, %v6980, %v7012
        %v7046 = vsel %vm7035, %v6981, %v7013
        %v7047 = vsel %vm7035, %v6982, %v7014
        %v7048 = vsel %vm7035, %v6983, %v7015
        %v7049 = vsel %vm7035, %v6984, %v7016
        %v7050 = vsel %vm7035, %v6985, %v7017
        %v7051 = vsel %vm7035, %v6986, %v7018
        %v7052 = vsel %vm7035, %v6987, %v7019
        %v7053 = vsel %vm7035, %v6988, %v7020
        %v7054 = vsel %vm7035, %v6989, %v7021
        %v7055 = vsel %vm7035, %v6990, %v7022
        %v7056 = vsel %vm7035, %v6991, %v7023
        %v7057 = vsel %vm7035, %v6992, %v7024
        %v7058 = vsel %vm7035, %v6993, %v7025
        %v7059 = vsel %vm7035, %v6994, %v7026
        %v7060 = vsel %vm7035, %v6995, %v7027
        %v7061 = vsel %vm7035, %v6996, %v7028
        %v7062 = vsel %vm7035, %v6997, %v7029
        %v7063 = vsel %vm7035, %v6998, %v7030
        %v7064 = vsel %vm7035, %v6999, %v7031
        %v7065 = vsel %vm7035, %v7000, %v7032
        %v7066 = vsel %vm7035, %v7001, %v7033
        %v7067 = vsel %vm7035, %v7002, %v7034
        %v7068 = vsel %vm7035, %v7003, %v6971
        %v7069 = vsel %vm7035, %v7004, %v6972
        %v7070 = vsel %vm7035, %v7005, %v6973
        %v7071 = vsel %vm7035, %v7006, %v6974
        %v7072 = vsel %vm7035, %v7007, %v6975
        %v7073 = vsel %vm7035, %v7008, %v6976
        %v7074 = vsel %vm7035, %v7009, %v6977
        %v7075 = vsel %vm7035, %v7010, %v6978
        %v7076 = vsel %vm7035, %v7011, %v6979
        %v7077 = vsel %vm7035, %v7012, %v6980
        %v7078 = vsel %vm7035, %v7013, %v6981
        %v7079 = vsel %vm7035, %v7014, %v6982
        %v7080 = vsel %vm7035, %v7015, %v6983
        %v7081 = vsel %vm7035, %v7016, %v6984
        %v7082 = vsel %vm7035, %v7017, %v6985
        %v7083 = vsel %vm7035, %v7018, %v6986
        %v7084 = vsel %vm7035, %v7019, %v6987
        %v7085 = vsel %vm7035, %v7020, %v6988
        %v7086 = vsel %vm7035, %v7021, %v6989
        %v7087 = vsel %vm7035, %v7022, %v6990
        %v7088 = vsel %vm7035, %v7023, %v6991
        %v7089 = vsel %vm7035, %v7024, %v6992
        %v7090 = vsel %vm7035, %v7025, %v6993
        %v7091 = vsel %vm7035, %v7026, %v6994
        %v7092 = vsel %vm7035, %v7027, %v6995
        %v7093 = vsel %vm7035, %v7028, %v6996
        %v7094 = vsel %vm7035, %v7029, %v6997
        %v7095 = vsel %vm7035, %v7030, %v6998
        %v7096 = vsel %vm7035, %v7031, %v6999
        %v7097 = vsel %vm7035, %v7032, %v7000
        %v7098 = vsel %vm7035, %v7033, %v7001
        %v7099 = vsel %vm7035, %v7034, %v7002
        %v7100 = vadd.f32 %v6907, %v7036
        %v7101 = vadd.f32 %v6908, %v7068
        %v7102 = vadd.f32 %v6909, %v7037
        %v7103 = vadd.f32 %v6910, %v7069
        %v7104 = vadd.f32 %v6911, %v7038
        %v7105 = vadd.f32 %v6912, %v7070
        %v7106 = vadd.f32 %v6913, %v7039
        %v7107 = vadd.f32 %v6914, %v7071
        %v7108 = vadd.f32 %v6915, %v7040
        %v7109 = vadd.f32 %v6916, %v7072
        %v7110 = vadd.f32 %v6917, %v7041
        %v7111 = vadd.f32 %v6918, %v7073
        %v7112 = vadd.f32 %v6919, %v7042
        %v7113 = vadd.f32 %v6920, %v7074
        %v7114 = vadd.f32 %v6921, %v7043
        %v7115 = vadd.f32 %v6922, %v7075
        %v7116 = vadd.f32 %v6923, %v7044
        %v7117 = vadd.f32 %v6924, %v7076
        %v7118 = vadd.f32 %v6925, %v7045
        %v7119 = vadd.f32 %v6926, %v7077
        %v7120 = vadd.f32 %v6927, %v7046
        %v7121 = vadd.f32 %v6928, %v7078
        %v7122 = vadd.f32 %v6929, %v7047
        %v7123 = vadd.f32 %v6930, %v7079
        %v7124 = vadd.f32 %v6931, %v7048
        %v7125 = vadd.f32 %v6932, %v7080
        %v7126 = vadd.f32 %v6933, %v7049
        %v7127 = vadd.f32 %v6934, %v7081
        %v7128 = vadd.f32 %v6935, %v7050
        %v7129 = vadd.f32 %v6936, %v7082
        %v7130 = vadd.f32 %v6937, %v7051
        %v7131 = vadd.f32 %v6938, %v7083
        %v7132 = vadd.f32 %v6939, %v7052
        %v7133 = vadd.f32 %v6940, %v7084
        %v7134 = vadd.f32 %v6941, %v7053
        %v7135 = vadd.f32 %v6942, %v7085
        %v7136 = vadd.f32 %v6943, %v7054
        %v7137 = vadd.f32 %v6944, %v7086
        %v7138 = vadd.f32 %v6945, %v7055
        %v7139 = vadd.f32 %v6946, %v7087
        %v7140 = vadd.f32 %v6947, %v7056
        %v7141 = vadd.f32 %v6948, %v7088
        %v7142 = vadd.f32 %v6949, %v7057
        %v7143 = vadd.f32 %v6950, %v7089
        %v7144 = vadd.f32 %v6951, %v7058
        %v7145 = vadd.f32 %v6952, %v7090
        %v7146 = vadd.f32 %v6953, %v7059
        %v7147 = vadd.f32 %v6954, %v7091
        %v7148 = vadd.f32 %v6955, %v7060
        %v7149 = vadd.f32 %v6956, %v7092
        %v7150 = vadd.f32 %v6957, %v7061
        %v7151 = vadd.f32 %v6958, %v7093
        %v7152 = vadd.f32 %v6959, %v7062
        %v7153 = vadd.f32 %v6960, %v7094
        %v7154 = vadd.f32 %v6961, %v7063
        %v7155 = vadd.f32 %v6962, %v7095
        %v7156 = vadd.f32 %v6963, %v7064
        %v7157 = vadd.f32 %v6964, %v7096
        %v7158 = vadd.f32 %v6965, %v7065
        %v7159 = vadd.f32 %v6966, %v7097
        %v7160 = vadd.f32 %v6967, %v7066
        %v7161 = vadd.f32 %v6968, %v7098
        %v7162 = vadd.f32 %v6969, %v7067
        %v7163 = vadd.f32 %v6970, %v7099
        %vm7164 = vcmp.lt.s32.totalorder %v3675, 12
        %vm7165 = vcmp.lt.s32.totalorder %v3676, 12
        %v7166 = vsel %vm7164, %v7100, -inf
        %v7167 = vsel %vm7165, %v7101, -inf
        %v7168 = vsel %vm7164, %v7102, -inf
        %v7169 = vsel %vm7165, %v7103, -inf
        %v7170 = vsel %vm7164, %v7104, -inf
        %v7171 = vsel %vm7165, %v7105, -inf
        %v7172 = vsel %vm7164, %v7106, -inf
        %v7173 = vsel %vm7165, %v7107, -inf
        %v7174 = vsel %vm7164, %v7108, -inf
        %v7175 = vsel %vm7165, %v7109, -inf
        %v7176 = vsel %vm7164, %v7110, -inf
        %v7177 = vsel %vm7165, %v7111, -inf
        %v7178 = vsel %vm7164, %v7112, -inf
        %v7179 = vsel %vm7165, %v7113, -inf
        %v7180 = vsel %vm7164, %v7114, -inf
        %v7181 = vsel %vm7165, %v7115, -inf
        %v7182 = vsel %vm7164, %v7116, -inf
        %v7183 = vsel %vm7165, %v7117, -inf
        %v7184 = vsel %vm7164, %v7118, -inf
        %v7185 = vsel %vm7165, %v7119, -inf
        %v7186 = vsel %vm7164, %v7120, -inf
        %v7187 = vsel %vm7165, %v7121, -inf
        %v7188 = vsel %vm7164, %v7122, -inf
        %v7189 = vsel %vm7165, %v7123, -inf
        %v7190 = vsel %vm7164, %v7124, -inf
        %v7191 = vsel %vm7165, %v7125, -inf
        %v7192 = vsel %vm7164, %v7126, -inf
        %v7193 = vsel %vm7165, %v7127, -inf
        %v7194 = vsel %vm7164, %v7128, -inf
        %v7195 = vsel %vm7165, %v7129, -inf
        %v7196 = vsel %vm7164, %v7130, -inf
        %v7197 = vsel %vm7165, %v7131, -inf
        %v7198 = vsel %vm7164, %v7132, -inf
        %v7199 = vsel %vm7165, %v7133, -inf
        %v7200 = vsel %vm7164, %v7134, -inf
        %v7201 = vsel %vm7165, %v7135, -inf
        %v7202 = vsel %vm7164, %v7136, -inf
        %v7203 = vsel %vm7165, %v7137, -inf
        %v7204 = vsel %vm7164, %v7138, -inf
        %v7205 = vsel %vm7165, %v7139, -inf
        %v7206 = vsel %vm7164, %v7140, -inf
        %v7207 = vsel %vm7165, %v7141, -inf
        %v7208 = vsel %vm7164, %v7142, -inf
        %v7209 = vsel %vm7165, %v7143, -inf
        %v7210 = vsel %vm7164, %v7144, -inf
        %v7211 = vsel %vm7165, %v7145, -inf
        %v7212 = vsel %vm7164, %v7146, -inf
        %v7213 = vsel %vm7165, %v7147, -inf
        %v7214 = vsel %vm7164, %v7148, -inf
        %v7215 = vsel %vm7165, %v7149, -inf
        %v7216 = vsel %vm7164, %v7150, -inf
        %v7217 = vsel %vm7165, %v7151, -inf
        %v7218 = vsel %vm7164, %v7152, -inf
        %v7219 = vsel %vm7165, %v7153, -inf
        %v7220 = vsel %vm7164, %v7154, -inf
        %v7221 = vsel %vm7165, %v7155, -inf
        %v7222 = vsel %vm7164, %v7156, -inf
        %v7223 = vsel %vm7165, %v7157, -inf
        %v7224 = vsel %vm7164, %v7158, -inf
        %v7225 = vsel %vm7165, %v7159, -inf
        %v7226 = vsel %vm7164, %v7160, -inf
        %v7227 = vsel %vm7165, %v7161, -inf
        %v7228 = vsel %vm7164, %v7162, -inf
        %v7229 = vsel %vm7165, %v7163, -inf
        %v7230 = vmax.f32 %v7166, %v7167
        %v7231 = vrot.slane %v7230, 4
        %v7232 = vmax.f32 %v7230, %v7231
        %v7233 = vrot.slane %v7232, 2
        %v7234 = vmax.f32 %v7232, %v7233
        %v7235 = vrot.slane %v7234, 1
        %v7236 = vmax.f32 %v7234, %v7235
        %v7237 = vmax.f32 %v7168, %v7169
        %v7238 = vrot.slane %v7237, 4
        %v7239 = vmax.f32 %v7237, %v7238
        %v7240 = vrot.slane %v7239, 2
        %v7241 = vmax.f32 %v7239, %v7240
        %v7242 = vrot.slane %v7241, 1
        %v7243 = vmax.f32 %v7241, %v7242
        %v7244 = vmax.f32 %v7170, %v7171
        %v7245 = vrot.slane %v7244, 4
        %v7246 = vmax.f32 %v7244, %v7245
        %v7247 = vrot.slane %v7246, 2
        %v7248 = vmax.f32 %v7246, %v7247
        %v7249 = vrot.slane %v7248, 1
        %v7250 = vmax.f32 %v7248, %v7249
        %v7251 = vmax.f32 %v7172, %v7173
        %v7252 = vrot.slane %v7251, 4
        %v7253 = vmax.f32 %v7251, %v7252
        %v7254 = vrot.slane %v7253, 2
        %v7255 = vmax.f32 %v7253, %v7254
        %v7256 = vrot.slane %v7255, 1
        %v7257 = vmax.f32 %v7255, %v7256
        %v7258 = vmax.f32 %v7174, %v7175
        %v7259 = vrot.slane %v7258, 4
        %v7260 = vmax.f32 %v7258, %v7259
        %v7261 = vrot.slane %v7260, 2
        %v7262 = vmax.f32 %v7260, %v7261
        %v7263 = vrot.slane %v7262, 1
        %v7264 = vmax.f32 %v7262, %v7263
        %v7265 = vmax.f32 %v7176, %v7177
        %v7266 = vrot.slane %v7265, 4
        %v7267 = vmax.f32 %v7265, %v7266
        %v7268 = vrot.slane %v7267, 2
        %v7269 = vmax.f32 %v7267, %v7268
        %v7270 = vrot.slane %v7269, 1
        %v7271 = vmax.f32 %v7269, %v7270
        %v7272 = vmax.f32 %v7178, %v7179
        %v7273 = vrot.slane %v7272, 4
        %v7274 = vmax.f32 %v7272, %v7273
        %v7275 = vrot.slane %v7274, 2
        %v7276 = vmax.f32 %v7274, %v7275
        %v7277 = vrot.slane %v7276, 1
        %v7278 = vmax.f32 %v7276, %v7277
        %v7279 = vmax.f32 %v7180, %v7181
        %v7280 = vrot.slane %v7279, 4
        %v7281 = vmax.f32 %v7279, %v7280
        %v7282 = vrot.slane %v7281, 2
        %v7283 = vmax.f32 %v7281, %v7282
        %v7284 = vrot.slane %v7283, 1
        %v7285 = vmax.f32 %v7283, %v7284
        %v7286 = vmax.f32 %v7182, %v7183
        %v7287 = vrot.slane %v7286, 4
        %v7288 = vmax.f32 %v7286, %v7287
        %v7289 = vrot.slane %v7288, 2
        %v7290 = vmax.f32 %v7288, %v7289
        %v7291 = vrot.slane %v7290, 1
        %v7292 = vmax.f32 %v7290, %v7291
        %v7293 = vmax.f32 %v7184, %v7185
        %v7294 = vrot.slane %v7293, 4
        %v7295 = vmax.f32 %v7293, %v7294
        %v7296 = vrot.slane %v7295, 2
        %v7297 = vmax.f32 %v7295, %v7296
        %v7298 = vrot.slane %v7297, 1
        %v7299 = vmax.f32 %v7297, %v7298
        %v7300 = vmax.f32 %v7186, %v7187
        %v7301 = vrot.slane %v7300, 4
        %v7302 = vmax.f32 %v7300, %v7301
        %v7303 = vrot.slane %v7302, 2
        %v7304 = vmax.f32 %v7302, %v7303
        %v7305 = vrot.slane %v7304, 1
        %v7306 = vmax.f32 %v7304, %v7305
        %v7307 = vmax.f32 %v7188, %v7189
        %v7308 = vrot.slane %v7307, 4
        %v7309 = vmax.f32 %v7307, %v7308
        %v7310 = vrot.slane %v7309, 2
        %v7311 = vmax.f32 %v7309, %v7310
        %v7312 = vrot.slane %v7311, 1
        %v7313 = vmax.f32 %v7311, %v7312
        %v7314 = vmax.f32 %v7190, %v7191
        %v7315 = vrot.slane %v7314, 4
        %v7316 = vmax.f32 %v7314, %v7315
        %v7317 = vrot.slane %v7316, 2
        %v7318 = vmax.f32 %v7316, %v7317
        %v7319 = vrot.slane %v7318, 1
        %v7320 = vmax.f32 %v7318, %v7319
        %v7321 = vmax.f32 %v7192, %v7193
        %v7322 = vrot.slane %v7321, 4
        %v7323 = vmax.f32 %v7321, %v7322
        %v7324 = vrot.slane %v7323, 2
        %v7325 = vmax.f32 %v7323, %v7324
        %v7326 = vrot.slane %v7325, 1
        %v7327 = vmax.f32 %v7325, %v7326
        %v7328 = vmax.f32 %v7194, %v7195
        %v7329 = vrot.slane %v7328, 4
        %v7330 = vmax.f32 %v7328, %v7329
        %v7331 = vrot.slane %v7330, 2
        %v7332 = vmax.f32 %v7330, %v7331
        %v7333 = vrot.slane %v7332, 1
        %v7334 = vmax.f32 %v7332, %v7333
        %v7335 = vmax.f32 %v7196, %v7197
        %v7336 = vrot.slane %v7335, 4
        %v7337 = vmax.f32 %v7335, %v7336
        %v7338 = vrot.slane %v7337, 2
        %v7339 = vmax.f32 %v7337, %v7338
        %v7340 = vrot.slane %v7339, 1
        %v7341 = vmax.f32 %v7339, %v7340
        %v7342 = vmax.f32 %v7198, %v7199
        %v7343 = vrot.slane %v7342, 4
        %v7344 = vmax.f32 %v7342, %v7343
        %v7345 = vrot.slane %v7344, 2
        %v7346 = vmax.f32 %v7344, %v7345
        %v7347 = vrot.slane %v7346, 1
        %v7348 = vmax.f32 %v7346, %v7347
        %v7349 = vmax.f32 %v7200, %v7201
        %v7350 = vrot.slane %v7349, 4
        %v7351 = vmax.f32 %v7349, %v7350
        %v7352 = vrot.slane %v7351, 2
        %v7353 = vmax.f32 %v7351, %v7352
        %v7354 = vrot.slane %v7353, 1
        %v7355 = vmax.f32 %v7353, %v7354
        %v7356 = vmax.f32 %v7202, %v7203
        %v7357 = vrot.slane %v7356, 4
        %v7358 = vmax.f32 %v7356, %v7357
        %v7359 = vrot.slane %v7358, 2
        %v7360 = vmax.f32 %v7358, %v7359
        %v7361 = vrot.slane %v7360, 1
        %v7362 = vmax.f32 %v7360, %v7361
        %v7363 = vmax.f32 %v7204, %v7205
        %v7364 = vrot.slane %v7363, 4
        %v7365 = vmax.f32 %v7363, %v7364
        %v7366 = vrot.slane %v7365, 2
        %v7367 = vmax.f32 %v7365, %v7366
        %v7368 = vrot.slane %v7367, 1
        %v7369 = vmax.f32 %v7367, %v7368
        %v7370 = vmax.f32 %v7206, %v7207
        %v7371 = vrot.slane %v7370, 4
        %v7372 = vmax.f32 %v7370, %v7371
        %v7373 = vrot.slane %v7372, 2
        %v7374 = vmax.f32 %v7372, %v7373
        %v7375 = vrot.slane %v7374, 1
        %v7376 = vmax.f32 %v7374, %v7375
        %v7377 = vmax.f32 %v7208, %v7209
        %v7378 = vrot.slane %v7377, 4
        %v7379 = vmax.f32 %v7377, %v7378
        %v7380 = vrot.slane %v7379, 2
        %v7381 = vmax.f32 %v7379, %v7380
        %v7382 = vrot.slane %v7381, 1
        %v7383 = vmax.f32 %v7381, %v7382
        %v7384 = vmax.f32 %v7210, %v7211
        %v7385 = vrot.slane %v7384, 4
        %v7386 = vmax.f32 %v7384, %v7385
        %v7387 = vrot.slane %v7386, 2
        %v7388 = vmax.f32 %v7386, %v7387
        %v7389 = vrot.slane %v7388, 1
        %v7390 = vmax.f32 %v7388, %v7389
        %v7391 = vmax.f32 %v7212, %v7213
        %v7392 = vrot.slane %v7391, 4
        %v7393 = vmax.f32 %v7391, %v7392
        %v7394 = vrot.slane %v7393, 2
        %v7395 = vmax.f32 %v7393, %v7394
        %v7396 = vrot.slane %v7395, 1
        %v7397 = vmax.f32 %v7395, %v7396
        %v7398 = vmax.f32 %v7214, %v7215
        %v7399 = vrot.slane %v7398, 4
        %v7400 = vmax.f32 %v7398, %v7399
        %v7401 = vrot.slane %v7400, 2
        %v7402 = vmax.f32 %v7400, %v7401
        %v7403 = vrot.slane %v7402, 1
        %v7404 = vmax.f32 %v7402, %v7403
        %v7405 = vmax.f32 %v7216, %v7217
        %v7406 = vrot.slane %v7405, 4
        %v7407 = vmax.f32 %v7405, %v7406
        %v7408 = vrot.slane %v7407, 2
        %v7409 = vmax.f32 %v7407, %v7408
        %v7410 = vrot.slane %v7409, 1
        %v7411 = vmax.f32 %v7409, %v7410
        %v7412 = vmax.f32 %v7218, %v7219
        %v7413 = vrot.slane %v7412, 4
        %v7414 = vmax.f32 %v7412, %v7413
        %v7415 = vrot.slane %v7414, 2
        %v7416 = vmax.f32 %v7414, %v7415
        %v7417 = vrot.slane %v7416, 1
        %v7418 = vmax.f32 %v7416, %v7417
        %v7419 = vmax.f32 %v7220, %v7221
        %v7420 = vrot.slane %v7419, 4
        %v7421 = vmax.f32 %v7419, %v7420
        %v7422 = vrot.slane %v7421, 2
        %v7423 = vmax.f32 %v7421, %v7422
        %v7424 = vrot.slane %v7423, 1
        %v7425 = vmax.f32 %v7423, %v7424
        %v7426 = vmax.f32 %v7222, %v7223
        %v7427 = vrot.slane %v7426, 4
        %v7428 = vmax.f32 %v7426, %v7427
        %v7429 = vrot.slane %v7428, 2
        %v7430 = vmax.f32 %v7428, %v7429
        %v7431 = vrot.slane %v7430, 1
        %v7432 = vmax.f32 %v7430, %v7431
        %v7433 = vmax.f32 %v7224, %v7225
        %v7434 = vrot.slane %v7433, 4
        %v7435 = vmax.f32 %v7433, %v7434
        %v7436 = vrot.slane %v7435, 2
        %v7437 = vmax.f32 %v7435, %v7436
        %v7438 = vrot.slane %v7437, 1
        %v7439 = vmax.f32 %v7437, %v7438
        %v7440 = vmax.f32 %v7226, %v7227
        %v7441 = vrot.slane %v7440, 4
        %v7442 = vmax.f32 %v7440, %v7441
        %v7443 = vrot.slane %v7442, 2
        %v7444 = vmax.f32 %v7442, %v7443
        %v7445 = vrot.slane %v7444, 1
        %v7446 = vmax.f32 %v7444, %v7445
        %v7447 = vmax.f32 %v7228, %v7229
        %v7448 = vrot.slane %v7447, 4
        %v7449 = vmax.f32 %v7447, %v7448
        %v7450 = vrot.slane %v7449, 2
        %v7451 = vmax.f32 %v7449, %v7450
        %v7452 = vrot.slane %v7451, 1
        %v7453 = vmax.f32 %v7451, %v7452
        %v7454 = vld [vmem:[%s2 + $0x3] sm:$0x1]
        %v7456 = vlaneseq
        %v7457 = vshrl.u32 %v7456, 7
        %v7458 = vsub.s32 0, %v7457
        %v7459 = vrot.slane %v7454, %v7458
        %v7461 = vadd.f32 %v7236, %v7459
        %v7462 = vadd.f32 %v7243, %v7459
        %v7463 = vadd.f32 %v7250, %v7459
        %v7464 = vadd.f32 %v7257, %v7459
        %v7465 = vadd.f32 %v7264, %v7459
        %v7466 = vadd.f32 %v7271, %v7459
        %v7467 = vadd.f32 %v7278, %v7459
        %v7468 = vadd.f32 %v7285, %v7459
        %v7469 = vadd.f32 %v7292, %v7459
        %v7470 = vadd.f32 %v7299, %v7459
        %v7471 = vadd.f32 %v7306, %v7459
        %v7472 = vadd.f32 %v7313, %v7459
        %v7473 = vadd.f32 %v7320, %v7459
        %v7474 = vadd.f32 %v7327, %v7459
        %v7475 = vadd.f32 %v7334, %v7459
        %v7476 = vadd.f32 %v7341, %v7459
        %v7477 = vadd.f32 %v7348, %v7459
        %v7478 = vadd.f32 %v7355, %v7459
        %v7479 = vadd.f32 %v7362, %v7459
        %v7480 = vadd.f32 %v7369, %v7459
        %v7481 = vadd.f32 %v7376, %v7459
        %v7482 = vadd.f32 %v7383, %v7459
        %v7483 = vadd.f32 %v7390, %v7459
        %v7484 = vadd.f32 %v7397, %v7459
        %v7485 = vadd.f32 %v7404, %v7459
        %v7486 = vadd.f32 %v7411, %v7459
        %v7487 = vadd.f32 %v7418, %v7459
        %v7488 = vadd.f32 %v7425, %v7459
        %v7489 = vadd.f32 %v7432, %v7459
        %v7490 = vadd.f32 %v7439, %v7459
        %v7491 = vadd.f32 %v7446, %v7459
        %v7492 = vadd.f32 %v7453, %v7459
        %v7493 = vxor.u32 %v7461, 2147483648
        %v7494 = vxor.u32 %v7462, 2147483648
        %v7495 = vxor.u32 %v7463, 2147483648
        %v7496 = vxor.u32 %v7464, 2147483648
        %v7497 = vxor.u32 %v7465, 2147483648
        %v7498 = vxor.u32 %v7466, 2147483648
        %v7499 = vxor.u32 %v7467, 2147483648
        %v7500 = vxor.u32 %v7468, 2147483648
        %v7501 = vxor.u32 %v7469, 2147483648
        %v7502 = vxor.u32 %v7470, 2147483648
        %v7503 = vxor.u32 %v7471, 2147483648
        %v7504 = vxor.u32 %v7472, 2147483648
        %v7505 = vxor.u32 %v7473, 2147483648
        %v7506 = vxor.u32 %v7474, 2147483648
        %v7507 = vxor.u32 %v7475, 2147483648
        %v7508 = vxor.u32 %v7476, 2147483648
        %v7509 = vxor.u32 %v7477, 2147483648
        %v7510 = vxor.u32 %v7478, 2147483648
        %v7511 = vxor.u32 %v7479, 2147483648
        %v7512 = vxor.u32 %v7480, 2147483648
        %v7513 = vxor.u32 %v7481, 2147483648
        %v7514 = vxor.u32 %v7482, 2147483648
        %v7515 = vxor.u32 %v7483, 2147483648
        %v7516 = vxor.u32 %v7484, 2147483648
        %v7517 = vxor.u32 %v7485, 2147483648
        %v7518 = vxor.u32 %v7486, 2147483648
        %v7519 = vxor.u32 %v7487, 2147483648
        %v7520 = vxor.u32 %v7488, 2147483648
        %v7521 = vxor.u32 %v7489, 2147483648
        %v7522 = vxor.u32 %v7490, 2147483648
        %v7523 = vxor.u32 %v7491, 2147483648
        %v7524 = vxor.u32 %v7492, 2147483648
        %v7525 = vmul.f32 %v7493, 1.442695
        %v7526 = vpow.pop %v7525
        %v7527 = vmul.f32 %v7494, 1.442695
        %v7528 = vpow.pop %v7527
        %v7529 = vmul.f32 %v7495, 1.442695
        %v7530 = vpow.pop %v7529
        %v7531 = vmul.f32 %v7496, 1.442695
        %v7532 = vpow.pop %v7531
        %v7533 = vmul.f32 %v7497, 1.442695
        %v7534 = vpow.pop %v7533
        %v7535 = vmul.f32 %v7498, 1.442695
        %v7536 = vpow.pop %v7535
        %v7537 = vmul.f32 %v7499, 1.442695
        %v7538 = vpow.pop %v7537
        %v7539 = vmul.f32 %v7500, 1.442695
        %v7540 = vpow.pop %v7539
        %v7541 = vmul.f32 %v7501, 1.442695
        %v7542 = vpow.pop %v7541
        %v7543 = vmul.f32 %v7502, 1.442695
        %v7544 = vpow.pop %v7543
        %v7545 = vmul.f32 %v7503, 1.442695
        %v7546 = vpow.pop %v7545
        %v7547 = vmul.f32 %v7504, 1.442695
        %v7548 = vpow.pop %v7547
        %v7549 = vmul.f32 %v7505, 1.442695
        %v7550 = vpow.pop %v7549
        %v7551 = vmul.f32 %v7506, 1.442695
        %v7552 = vpow.pop %v7551
        %v7553 = vmul.f32 %v7507, 1.442695
        %v7554 = vpow.pop %v7553
        %v7555 = vmul.f32 %v7508, 1.442695
        %v7556 = vpow.pop %v7555
        %v7557 = vmul.f32 %v7509, 1.442695
        %v7558 = vpow.pop %v7557
        %v7559 = vmul.f32 %v7510, 1.442695
        %v7560 = vpow.pop %v7559
        %v7561 = vmul.f32 %v7511, 1.442695
        %v7562 = vpow.pop %v7561
        %v7563 = vmul.f32 %v7512, 1.442695
        %v7564 = vpow.pop %v7563
        %v7565 = vmul.f32 %v7513, 1.442695
        %v7566 = vpow.pop %v7565
        %v7567 = vmul.f32 %v7514, 1.442695
        %v7568 = vpow.pop %v7567
        %v7569 = vmul.f32 %v7515, 1.442695
        %v7570 = vpow.pop %v7569
        %v7571 = vmul.f32 %v7516, 1.442695
        %v7572 = vpow.pop %v7571
        %v7573 = vmul.f32 %v7517, 1.442695
        %v7574 = vpow.pop %v7573
        %v7575 = vmul.f32 %v7518, 1.442695
        %v7576 = vpow.pop %v7575
        %v7577 = vmul.f32 %v7519, 1.442695
        %v7578 = vpow.pop %v7577
        %v7579 = vmul.f32 %v7520, 1.442695
        %v7580 = vpow.pop %v7579
        %v7581 = vmul.f32 %v7521, 1.442695
        %v7582 = vpow.pop %v7581
        %v7583 = vmul.f32 %v7522, 1.442695
        %v7584 = vpow.pop %v7583
        %v7585 = vmul.f32 %v7523, 1.442695
        %v7586 = vpow.pop %v7585
        %v7587 = vmul.f32 %v7524, 1.442695
        %v7588 = vpow.pop %v7587
        %v7589 = vadd.f32 %v7526, 1.0
        %v7590 = vadd.f32 %v7528, 1.0
        %v7591 = vadd.f32 %v7530, 1.0
        %v7592 = vadd.f32 %v7532, 1.0
        %v7593 = vadd.f32 %v7534, 1.0
        %v7594 = vadd.f32 %v7536, 1.0
        %v7595 = vadd.f32 %v7538, 1.0
        %v7596 = vadd.f32 %v7540, 1.0
        %v7597 = vadd.f32 %v7542, 1.0
        %v7598 = vadd.f32 %v7544, 1.0
        %v7599 = vadd.f32 %v7546, 1.0
        %v7600 = vadd.f32 %v7548, 1.0
        %v7601 = vadd.f32 %v7550, 1.0
        %v7602 = vadd.f32 %v7552, 1.0
        %v7603 = vadd.f32 %v7554, 1.0
        %v7604 = vadd.f32 %v7556, 1.0
        %v7605 = vadd.f32 %v7558, 1.0
        %v7606 = vadd.f32 %v7560, 1.0
        %v7607 = vadd.f32 %v7562, 1.0
        %v7608 = vadd.f32 %v7564, 1.0
        %v7609 = vadd.f32 %v7566, 1.0
        %v7610 = vadd.f32 %v7568, 1.0
        %v7611 = vadd.f32 %v7570, 1.0
        %v7612 = vadd.f32 %v7572, 1.0
        %v7613 = vadd.f32 %v7574, 1.0
        %v7614 = vadd.f32 %v7576, 1.0
        %v7615 = vadd.f32 %v7578, 1.0
        %v7616 = vadd.f32 %v7580, 1.0
        %v7617 = vadd.f32 %v7582, 1.0
        %v7618 = vadd.f32 %v7584, 1.0
        %v7619 = vadd.f32 %v7586, 1.0
        %v7620 = vadd.f32 %v7588, 1.0
        %v7621 = vrcp.pop %v7589
        %v7622 = vmul.f32 1.0, %v7621
        %v7623 = vrcp.pop %v7590
        %v7624 = vmul.f32 1.0, %v7623
        %v7625 = vrcp.pop %v7591
        %v7626 = vmul.f32 1.0, %v7625
        %v7627 = vrcp.pop %v7592
        %v7628 = vmul.f32 1.0, %v7627
        %v7629 = vrcp.pop %v7593
        %v7630 = vmul.f32 1.0, %v7629
        %v7631 = vrcp.pop %v7594
        %v7632 = vmul.f32 1.0, %v7631
        %v7633 = vrcp.pop %v7595
        %v7634 = vmul.f32 1.0, %v7633
        %v7635 = vrcp.pop %v7596
        %v7636 = vmul.f32 1.0, %v7635
        %v7637 = vrcp.pop %v7597
        %v7638 = vmul.f32 1.0, %v7637
        %v7639 = vrcp.pop %v7598
        %v7640 = vmul.f32 1.0, %v7639
        %v7641 = vrcp.pop %v7599
        %v7642 = vmul.f32 1.0, %v7641
        %v7643 = vrcp.pop %v7600
        %v7644 = vmul.f32 1.0, %v7643
        %v7645 = vrcp.pop %v7601
        %v7646 = vmul.f32 1.0, %v7645
        %v7647 = vrcp.pop %v7602
        %v7648 = vmul.f32 1.0, %v7647
        %v7649 = vrcp.pop %v7603
        %v7650 = vmul.f32 1.0, %v7649
        %v7651 = vrcp.pop %v7604
        %v7652 = vmul.f32 1.0, %v7651
        %v7653 = vrcp.pop %v7605
        %v7654 = vmul.f32 1.0, %v7653
        %v7655 = vrcp.pop %v7606
        %v7656 = vmul.f32 1.0, %v7655
        %v7657 = vrcp.pop %v7607
        %v7658 = vmul.f32 1.0, %v7657
        %v7659 = vrcp.pop %v7608
        %v7660 = vmul.f32 1.0, %v7659
        %v7661 = vrcp.pop %v7609
        %v7662 = vmul.f32 1.0, %v7661
        %v7663 = vrcp.pop %v7610
        %v7664 = vmul.f32 1.0, %v7663
        %v7665 = vrcp.pop %v7611
        %v7666 = vmul.f32 1.0, %v7665
        %v7667 = vrcp.pop %v7612
        %v7668 = vmul.f32 1.0, %v7667
        %v7669 = vrcp.pop %v7613
        %v7670 = vmul.f32 1.0, %v7669
        %v7671 = vrcp.pop %v7614
        %v7672 = vmul.f32 1.0, %v7671
        %v7673 = vrcp.pop %v7615
        %v7674 = vmul.f32 1.0, %v7673
        %v7675 = vrcp.pop %v7616
        %v7676 = vmul.f32 1.0, %v7675
        %v7677 = vrcp.pop %v7617
        %v7678 = vmul.f32 1.0, %v7677
        %v7679 = vrcp.pop %v7618
        %v7680 = vmul.f32 1.0, %v7679
        %v7681 = vrcp.pop %v7619
        %v7682 = vmul.f32 1.0, %v7681
        %v7683 = vrcp.pop %v7620
        %v7684 = vmul.f32 1.0, %v7683
        %v7717 = vrot.slane %v4330, 7
        %vm7718 = vcmask 1041409
        %v7719 = vsel %vm7718, %v7717, %v4328
        %v7720 = vrot.slane %v4332, 6
        %vm7721 = vcmask 1042434
        %v7722 = vsel %vm7721, %v7720, %v7719
        %v7723 = vrot.slane %v4334, 5
        %vm7724 = vcmask 1043459
        %v7725 = vsel %vm7724, %v7723, %v7722
        %v7726 = vrot.slane %v4336, 4
        %vm7727 = vcmask 1044484
        %v7728 = vsel %vm7727, %v7726, %v7725
        %v7729 = vrot.slane %v4338, 3
        %vm7730 = vcmask 1045509
        %v7731 = vsel %vm7730, %v7729, %v7728
        %v7732 = vrot.slane %v4340, 2
        %vm7733 = vcmask 1046534
        %v7734 = vsel %vm7733, %v7732, %v7731
        %v7735 = vrot.slane %v4342, 1
        %vm7736 = vcmask 1047559
        %v7737 = vsel %vm7736, %v7735, %v7734
        %v7738 = vrot.slane %v4346, 7
        %v7739 = vsel %vm7718, %v7738, %v4344
        %v7740 = vrot.slane %v4348, 6
        %v7741 = vsel %vm7721, %v7740, %v7739
        %v7742 = vrot.slane %v4350, 5
        %v7743 = vsel %vm7724, %v7742, %v7741
        %v7744 = vrot.slane %v4352, 4
        %v7745 = vsel %vm7727, %v7744, %v7743
        %v7746 = vrot.slane %v4354, 3
        %v7747 = vsel %vm7730, %v7746, %v7745
        %v7748 = vrot.slane %v4356, 2
        %v7749 = vsel %vm7733, %v7748, %v7747
        %v7750 = vrot.slane %v4358, 1
        %v7751 = vsel %vm7736, %v7750, %v7749
        %v7752 = vrot.slane %v4362, 7
        %v7753 = vsel %vm7718, %v7752, %v4360
        %v7754 = vrot.slane %v4364, 6
        %v7755 = vsel %vm7721, %v7754, %v7753
        %v7756 = vrot.slane %v4366, 5
        %v7757 = vsel %vm7724, %v7756, %v7755
        %v7758 = vrot.slane %v4368, 4
        %v7759 = vsel %vm7727, %v7758, %v7757
        %v7760 = vrot.slane %v4370, 3
        %v7761 = vsel %vm7730, %v7760, %v7759
        %v7762 = vrot.slane %v4372, 2
        %v7763 = vsel %vm7733, %v7762, %v7761
        %v7764 = vrot.slane %v4374, 1
        %v7765 = vsel %vm7736, %v7764, %v7763
        %v7766 = vrot.slane %v4378, 7
        %v7767 = vsel %vm7718, %v7766, %v4376
        %v7768 = vrot.slane %v4380, 6
        %v7769 = vsel %vm7721, %v7768, %v7767
        %v7770 = vrot.slane %v4382, 5
        %v7771 = vsel %vm7724, %v7770, %v7769
        %v7772 = vrot.slane %v4384, 4
        %v7773 = vsel %vm7727, %v7772, %v7771
        %v7774 = vrot.slane %v4386, 3
        %v7775 = vsel %vm7730, %v7774, %v7773
        %v7776 = vrot.slane %v4388, 2
        %v7777 = vsel %vm7733, %v7776, %v7775
        %v7778 = vrot.slane %v4390, 1
        %v7779 = vsel %vm7736, %v7778, %v7777
        %v7816 = vrot.slane %v5236, 7
        %v7817 = vsel %vm7718, %v7816, %v5234
        %v7818 = vrot.slane %v5238, 6
        %v7819 = vsel %vm7721, %v7818, %v7817
        %v7820 = vrot.slane %v5240, 5
        %v7821 = vsel %vm7724, %v7820, %v7819
        %v7822 = vrot.slane %v5242, 4
        %v7823 = vsel %vm7727, %v7822, %v7821
        %v7824 = vrot.slane %v5244, 3
        %v7825 = vsel %vm7730, %v7824, %v7823
        %v7826 = vrot.slane %v5246, 2
        %v7827 = vsel %vm7733, %v7826, %v7825
        %v7828 = vrot.slane %v5248, 1
        %v7829 = vsel %vm7736, %v7828, %v7827
        %v7830 = vrot.slane %v5252, 7
        %v7831 = vsel %vm7718, %v7830, %v5250
        %v7832 = vrot.slane %v5254, 6
        %v7833 = vsel %vm7721, %v7832, %v7831
        %v7834 = vrot.slane %v5256, 5
        %v7835 = vsel %vm7724, %v7834, %v7833
        %v7836 = vrot.slane %v5258, 4
        %v7837 = vsel %vm7727, %v7836, %v7835
        %v7838 = vrot.slane %v5260, 3
        %v7839 = vsel %vm7730, %v7838, %v7837
        %v7840 = vrot.slane %v5262, 2
        %v7841 = vsel %vm7733, %v7840, %v7839
        %v7842 = vrot.slane %v5264, 1
        %v7843 = vsel %vm7736, %v7842, %v7841
        %v7844 = vrot.slane %v5268, 7
        %v7845 = vsel %vm7718, %v7844, %v5266
        %v7846 = vrot.slane %v5270, 6
        %v7847 = vsel %vm7721, %v7846, %v7845
        %v7848 = vrot.slane %v5272, 5
        %v7849 = vsel %vm7724, %v7848, %v7847
        %v7850 = vrot.slane %v5274, 4
        %v7851 = vsel %vm7727, %v7850, %v7849
        %v7852 = vrot.slane %v5276, 3
        %v7853 = vsel %vm7730, %v7852, %v7851
        %v7854 = vrot.slane %v5278, 2
        %v7855 = vsel %vm7733, %v7854, %v7853
        %v7856 = vrot.slane %v5280, 1
        %v7857 = vsel %vm7736, %v7856, %v7855
        %v7858 = vrot.slane %v5284, 7
        %v7859 = vsel %vm7718, %v7858, %v5282
        %v7860 = vrot.slane %v5286, 6
        %v7861 = vsel %vm7721, %v7860, %v7859
        %v7862 = vrot.slane %v5288, 5
        %v7863 = vsel %vm7724, %v7862, %v7861
        %v7864 = vrot.slane %v5290, 4
        %v7865 = vsel %vm7727, %v7864, %v7863
        %v7866 = vrot.slane %v5292, 3
        %v7867 = vsel %vm7730, %v7866, %v7865
        %v7868 = vrot.slane %v5294, 2
        %v7869 = vsel %vm7733, %v7868, %v7867
        %v7870 = vrot.slane %v5296, 1
        %v7871 = vsel %vm7736, %v7870, %v7869
        %v7908 = vrot.slane %v6334, 7
        %v7909 = vsel %vm7718, %v7908, %v6332
        %v7910 = vrot.slane %v6336, 6
        %v7911 = vsel %vm7721, %v7910, %v7909
        %v7912 = vrot.slane %v6338, 5
        %v7913 = vsel %vm7724, %v7912, %v7911
        %v7914 = vrot.slane %v6340, 4
        %v7915 = vsel %vm7727, %v7914, %v7913
        %v7916 = vrot.slane %v6342, 3
        %v7917 = vsel %vm7730, %v7916, %v7915
        %v7918 = vrot.slane %v6344, 2
        %v7919 = vsel %vm7733, %v7918, %v7917
        %v7920 = vrot.slane %v6346, 1
        %v7921 = vsel %vm7736, %v7920, %v7919
        %v7922 = vrot.slane %v6350, 7
        %v7923 = vsel %vm7718, %v7922, %v6348
        %v7924 = vrot.slane %v6352, 6
        %v7925 = vsel %vm7721, %v7924, %v7923
        %v7926 = vrot.slane %v6354, 5
        %v7927 = vsel %vm7724, %v7926, %v7925
        %v7928 = vrot.slane %v6356, 4
        %v7929 = vsel %vm7727, %v7928, %v7927
        %v7930 = vrot.slane %v6358, 3
        %v7931 = vsel %vm7730, %v7930, %v7929
        %v7932 = vrot.slane %v6360, 2
        %v7933 = vsel %vm7733, %v7932, %v7931
        %v7934 = vrot.slane %v6362, 1
        %v7935 = vsel %vm7736, %v7934, %v7933
        %v7936 = vrot.slane %v6366, 7
        %v7937 = vsel %vm7718, %v7936, %v6364
        %v7938 = vrot.slane %v6368, 6
        %v7939 = vsel %vm7721, %v7938, %v7937
        %v7940 = vrot.slane %v6370, 5
        %v7941 = vsel %vm7724, %v7940, %v7939
        %v7942 = vrot.slane %v6372, 4
        %v7943 = vsel %vm7727, %v7942, %v7941
        %v7944 = vrot.slane %v6374, 3
        %v7945 = vsel %vm7730, %v7944, %v7943
        %v7946 = vrot.slane %v6376, 2
        %v7947 = vsel %vm7733, %v7946, %v7945
        %v7948 = vrot.slane %v6378, 1
        %v7949 = vsel %vm7736, %v7948, %v7947
        %v7950 = vrot.slane %v6382, 7
        %v7951 = vsel %vm7718, %v7950, %v6380
        %v7952 = vrot.slane %v6384, 6
        %v7953 = vsel %vm7721, %v7952, %v7951
        %v7954 = vrot.slane %v6386, 5
        %v7955 = vsel %vm7724, %v7954, %v7953
        %v7956 = vrot.slane %v6388, 4
        %v7957 = vsel %vm7727, %v7956, %v7955
        %v7958 = vrot.slane %v6390, 3
        %v7959 = vsel %vm7730, %v7958, %v7957
        %v7960 = vrot.slane %v6392, 2
        %v7961 = vsel %vm7733, %v7960, %v7959
        %v7962 = vrot.slane %v6394, 1
        %v7963 = vsel %vm7736, %v7962, %v7961
        %v8000 = vrot.slane %v7624, 7
        %v8001 = vsel %vm7718, %v8000, %v7622
        %v8002 = vrot.slane %v7626, 6
        %v8003 = vsel %vm7721, %v8002, %v8001
        %v8004 = vrot.slane %v7628, 5
        %v8005 = vsel %vm7724, %v8004, %v8003
        %v8006 = vrot.slane %v7630, 4
        %v8007 = vsel %vm7727, %v8006, %v8005
        %v8008 = vrot.slane %v7632, 3
        %v8009 = vsel %vm7730, %v8008, %v8007
        %v8010 = vrot.slane %v7634, 2
        %v8011 = vsel %vm7733, %v8010, %v8009
        %v8012 = vrot.slane %v7636, 1
        %v8013 = vsel %vm7736, %v8012, %v8011
        %v8014 = vrot.slane %v7640, 7
        %v8015 = vsel %vm7718, %v8014, %v7638
        %v8016 = vrot.slane %v7642, 6
        %v8017 = vsel %vm7721, %v8016, %v8015
        %v8018 = vrot.slane %v7644, 5
        %v8019 = vsel %vm7724, %v8018, %v8017
        %v8020 = vrot.slane %v7646, 4
        %v8021 = vsel %vm7727, %v8020, %v8019
        %v8022 = vrot.slane %v7648, 3
        %v8023 = vsel %vm7730, %v8022, %v8021
        %v8024 = vrot.slane %v7650, 2
        %v8025 = vsel %vm7733, %v8024, %v8023
        %v8026 = vrot.slane %v7652, 1
        %v8027 = vsel %vm7736, %v8026, %v8025
        %v8028 = vrot.slane %v7656, 7
        %v8029 = vsel %vm7718, %v8028, %v7654
        %v8030 = vrot.slane %v7658, 6
        %v8031 = vsel %vm7721, %v8030, %v8029
        %v8032 = vrot.slane %v7660, 5
        %v8033 = vsel %vm7724, %v8032, %v8031
        %v8034 = vrot.slane %v7662, 4
        %v8035 = vsel %vm7727, %v8034, %v8033
        %v8036 = vrot.slane %v7664, 3
        %v8037 = vsel %vm7730, %v8036, %v8035
        %v8038 = vrot.slane %v7666, 2
        %v8039 = vsel %vm7733, %v8038, %v8037
        %v8040 = vrot.slane %v7668, 1
        %v8041 = vsel %vm7736, %v8040, %v8039
        %v8042 = vrot.slane %v7672, 7
        %v8043 = vsel %vm7718, %v8042, %v7670
        %v8044 = vrot.slane %v7674, 6
        %v8045 = vsel %vm7721, %v8044, %v8043
        %v8046 = vrot.slane %v7676, 5
        %v8047 = vsel %vm7724, %v8046, %v8045
        %v8048 = vrot.slane %v7678, 4
        %v8049 = vsel %vm7727, %v8048, %v8047
        %v8050 = vrot.slane %v7680, 3
        %v8051 = vsel %vm7730, %v8050, %v8049
        %v8052 = vrot.slane %v7682, 2
        %v8053 = vsel %vm7733, %v8052, %v8051
        %v8054 = vrot.slane %v7684, 1
        %v8055 = vsel %vm7736, %v8054, %v8053
        %v8060 = vpack.c.bf16 %v7751, %v7737
        %v8061 = vpack.c.bf16 %v7843, %v7829
        %v8062 = vpack.c.bf16 %v7935, %v7921
        %v8063 = vpack.c.bf16 %v8027, %v8013
        %v8064 = vpack.c.bf16 %v7779, %v7765
        %v8065 = vpack.c.bf16 %v7871, %v7857
        %v8066 = vpack.c.bf16 %v7963, %v7949
        %v8067 = vpack.c.bf16 %v8055, %v8041
        %v8068 = vld [vmem:[#allocation7] sm:$0xf]
        %v8069 = vld [vmem:[#allocation7 + $0x4] sm:$0xf]
        %v8070 = vld [vmem:[#allocation7 + $0x8] sm:$0xf]
        %v8071 = vld [vmem:[#allocation7 + $0xc] sm:$0xf]
        %v8072 = vld [vmem:[#allocation7 + $0x10] sm:$0xf]
        %v8073 = vld [vmem:[#allocation7 + $0x14] sm:$0xf]
        %v8074 = vld [vmem:[#allocation7 + $0x18] sm:$0xf]
        %v8075 = vld [vmem:[#allocation7 + $0x1c] sm:$0xf]
        %v8076 = vld [vmem:[#allocation7 + $0x20] sm:$0xf]
        %v8077 = vld [vmem:[#allocation7 + $0x24] sm:$0xf]
        %v8078 = vld [vmem:[#allocation7 + $0x28] sm:$0xf]
        %v8079 = vld [vmem:[#allocation7 + $0x2c] sm:$0xf]
        %v8080 = vld [vmem:[#allocation7 + $0x30] sm:$0xf]
        %v8081 = vld [vmem:[#allocation7 + $0x34] sm:$0xf]
        %v8082 = vld [vmem:[#allocation7 + $0x38] sm:$0xf]
        %v8083 = vld [vmem:[#allocation7 + $0x3c] sm:$0xf]
        %v8084 = vld [vmem:[#allocation7 + $0x40] sm:$0xf]
        %v8085 = vld [vmem:[#allocation7 + $0x44] sm:$0xf]
        %v8086 = vld [vmem:[#allocation7 + $0x48] sm:$0xf]
        %v8087 = vld [vmem:[#allocation7 + $0x4c] sm:$0xf]
        %v8088 = vld [vmem:[#allocation7 + $0x50] sm:$0xf]
        %v8089 = vld [vmem:[#allocation7 + $0x54] sm:$0xf]
        %v8090 = vld [vmem:[#allocation7 + $0x58] sm:$0xf]
        %v8091 = vld [vmem:[#allocation7 + $0x5c] sm:$0xf]
        %v8092 = vld [vmem:[#allocation7 + $0x60] sm:$0xf]
        %v8093 = vld [vmem:[#allocation7 + $0x64] sm:$0xf]
        %v8094 = vld [vmem:[#allocation7 + $0x68] sm:$0xf]
        %v8095 = vld [vmem:[#allocation7 + $0x6c] sm:$0xf]
        %v8096 = vld [vmem:[#allocation7 + $0x70] sm:$0xf]
        %v8097 = vld [vmem:[#allocation7 + $0x74] sm:$0xf]
        %v8098 = vld [vmem:[#allocation7 + $0x78] sm:$0xf]
        %v8099 = vld [vmem:[#allocation7 + $0x7c] sm:$0xf]
        %v8100 = vld [vmem:[#allocation7 + $0x80] sm:$0xf]
        %v8101 = vld [vmem:[#allocation7 + $0x84] sm:$0xf]
        %v8102 = vld [vmem:[#allocation7 + $0x88] sm:$0xf]
        %v8103 = vld [vmem:[#allocation7 + $0x8c] sm:$0xf]
        %v8104 = vld [vmem:[#allocation7 + $0x90] sm:$0xf]
        %v8105 = vld [vmem:[#allocation7 + $0x94] sm:$0xf]
        %v8106 = vld [vmem:[#allocation7 + $0x98] sm:$0xf]
        %v8107 = vld [vmem:[#allocation7 + $0x9c] sm:$0xf]
        %v8108 = vld [vmem:[#allocation7 + $0xa0] sm:$0xf]
        %v8109 = vld [vmem:[#allocation7 + $0xa4] sm:$0xf]
        %v8110 = vld [vmem:[#allocation7 + $0xa8] sm:$0xf]
        %v8111 = vld [vmem:[#allocation7 + $0xac] sm:$0xf]
        %v8112 = vld [vmem:[#allocation7 + $0xb0] sm:$0xf]
        %v8113 = vld [vmem:[#allocation7 + $0xb4] sm:$0xf]
        %v8114 = vld [vmem:[#allocation7 + $0xb8] sm:$0xf]
        %v8115 = vld [vmem:[#allocation7 + $0xbc] sm:$0xf]
        %v8116 = vld [vmem:[#allocation7 + $0xc0] sm:$0xf]
        %v8117 = vld [vmem:[#allocation7 + $0xc4] sm:$0xf]
        %v8118 = vld [vmem:[#allocation7 + $0xc8] sm:$0xf]
        %v8119 = vld [vmem:[#allocation7 + $0xcc] sm:$0xf]
        %v8120 = vld [vmem:[#allocation7 + $0xd0] sm:$0xf]
        %v8121 = vld [vmem:[#allocation7 + $0xd4] sm:$0xf]
        %v8122 = vld [vmem:[#allocation7 + $0xd8] sm:$0xf]
        %v8123 = vld [vmem:[#allocation7 + $0xdc] sm:$0xf]
        %v8124 = vld [vmem:[#allocation7 + $0xe0] sm:$0xf]
        %v8125 = vld [vmem:[#allocation7 + $0xe4] sm:$0xf]
        %v8126 = vld [vmem:[#allocation7 + $0xe8] sm:$0xf]
        %v8127 = vld [vmem:[#allocation7 + $0xec] sm:$0xf]
        %v8128 = vld [vmem:[#allocation7 + $0xf0] sm:$0xf]
        %v8129 = vld [vmem:[#allocation7 + $0xf4] sm:$0xf]
        %v8130 = vld [vmem:[#allocation7 + $0xf8] sm:$0xf]
        %v8131 = vld [vmem:[#allocation7 + $0xfc] sm:$0xf]
        %v8132 = vld [vmem:[%s4] sm:$0x1]
        %v8134 = vlaneseq
        %v8135 = vshrl.u32 %v8134, 7
        %v8136 = vsub.s32 0, %v8135
        %v8137 = vrot.slane %v8132, %v8136
        %v8203 = vunpack.c.l.b16 %v8068
        %v8204 = vunpack.c.l.b16 %v8069
        %v8205 = vunpack.c.l.b16 %v8070
        %v8206 = vunpack.c.l.b16 %v8071
        %v8207 = vunpack.c.l.b16 %v8072
        %v8208 = vunpack.c.l.b16 %v8073
        %v8209 = vunpack.c.l.b16 %v8074
        %v8210 = vunpack.c.l.b16 %v8075
        %v8211 = vunpack.c.l.b16 %v8076
        %v8212 = vunpack.c.l.b16 %v8077
        %v8213 = vunpack.c.l.b16 %v8078
        %v8214 = vunpack.c.l.b16 %v8079
        %v8215 = vunpack.c.l.b16 %v8080
        %v8216 = vunpack.c.l.b16 %v8081
        %v8217 = vunpack.c.l.b16 %v8082
        %v8218 = vunpack.c.l.b16 %v8083
        %v8219 = vunpack.c.l.b16 %v8084
        %v8220 = vunpack.c.l.b16 %v8085
        %v8221 = vunpack.c.l.b16 %v8086
        %v8222 = vunpack.c.l.b16 %v8087
        %v8223 = vunpack.c.l.b16 %v8088
        %v8224 = vunpack.c.l.b16 %v8089
        %v8225 = vunpack.c.l.b16 %v8090
        %v8226 = vunpack.c.l.b16 %v8091
        %v8227 = vunpack.c.l.b16 %v8092
        %v8228 = vunpack.c.l.b16 %v8093
        %v8229 = vunpack.c.l.b16 %v8094
        %v8230 = vunpack.c.l.b16 %v8095
        %v8231 = vunpack.c.l.b16 %v8096
        %v8232 = vunpack.c.l.b16 %v8097
        %v8233 = vunpack.c.l.b16 %v8098
        %v8234 = vunpack.c.l.b16 %v8099
        %v8235 = vunpack.c.l.b16 %v8100
        %v8236 = vunpack.c.l.b16 %v8101
        %v8237 = vunpack.c.l.b16 %v8102
        %v8238 = vunpack.c.l.b16 %v8103
        %v8239 = vunpack.c.l.b16 %v8104
        %v8240 = vunpack.c.l.b16 %v8105
        %v8241 = vunpack.c.l.b16 %v8106
        %v8242 = vunpack.c.l.b16 %v8107
        %v8243 = vunpack.c.l.b16 %v8108
        %v8244 = vunpack.c.l.b16 %v8109
        %v8245 = vunpack.c.l.b16 %v8110
        %v8246 = vunpack.c.l.b16 %v8111
        %v8247 = vunpack.c.l.b16 %v8112
        %v8248 = vunpack.c.l.b16 %v8113
        %v8249 = vunpack.c.l.b16 %v8114
        %v8250 = vunpack.c.l.b16 %v8115
        %v8251 = vunpack.c.l.b16 %v8116
        %v8252 = vunpack.c.l.b16 %v8117
        %v8253 = vunpack.c.l.b16 %v8118
        %v8254 = vunpack.c.l.b16 %v8119
        %v8255 = vunpack.c.l.b16 %v8120
        %v8256 = vunpack.c.l.b16 %v8121
        %v8257 = vunpack.c.l.b16 %v8122
        %v8258 = vunpack.c.l.b16 %v8123
        %v8259 = vunpack.c.l.b16 %v8124
        %v8260 = vunpack.c.l.b16 %v8125
        %v8261 = vunpack.c.l.b16 %v8126
        %v8262 = vunpack.c.l.b16 %v8127
        %v8263 = vunpack.c.l.b16 %v8128
        %v8264 = vunpack.c.l.b16 %v8129
        %v8265 = vunpack.c.l.b16 %v8130
        %v8266 = vunpack.c.l.b16 %v8131
        %v8267 = vpack.c.b16 %v8204, %v8203
        %v8268 = vpack.c.b16 %v8206, %v8205
        %v8269 = vpack.c.b16 %v8208, %v8207
        %v8270 = vpack.c.b16 %v8210, %v8209
        %v8271 = vpack.c.b16 %v8212, %v8211
        %v8272 = vpack.c.b16 %v8214, %v8213
        %v8273 = vpack.c.b16 %v8216, %v8215
        %v8274 = vpack.c.b16 %v8218, %v8217
        %v8275 = vpack.c.b16 %v8220, %v8219
        %v8276 = vpack.c.b16 %v8222, %v8221
        %v8277 = vpack.c.b16 %v8224, %v8223
        %v8278 = vpack.c.b16 %v8226, %v8225
        %v8279 = vpack.c.b16 %v8228, %v8227
        %v8280 = vpack.c.b16 %v8230, %v8229
        %v8281 = vpack.c.b16 %v8232, %v8231
        %v8282 = vpack.c.b16 %v8234, %v8233
        %v8283 = vpack.c.b16 %v8236, %v8235
        %v8284 = vpack.c.b16 %v8238, %v8237
        %v8285 = vpack.c.b16 %v8240, %v8239
        %v8286 = vpack.c.b16 %v8242, %v8241
        %v8287 = vpack.c.b16 %v8244, %v8243
        %v8288 = vpack.c.b16 %v8246, %v8245
        %v8289 = vpack.c.b16 %v8248, %v8247
        %v8290 = vpack.c.b16 %v8250, %v8249
        %v8291 = vpack.c.b16 %v8252, %v8251
        %v8292 = vpack.c.b16 %v8254, %v8253
        %v8293 = vpack.c.b16 %v8256, %v8255
        %v8294 = vpack.c.b16 %v8258, %v8257
        %v8295 = vpack.c.b16 %v8260, %v8259
        %v8296 = vpack.c.b16 %v8262, %v8261
        %v8297 = vpack.c.b16 %v8264, %v8263
        %v8298 = vpack.c.b16 %v8266, %v8265
        %8331 = vmatprep.subr.bf16.mxu0 0
        %8332 = vmatpush1.bf16.msra.mxu0 %v8267
        %8333 = vmatprep.subr.bf16.mxu0 0
        %8334 = vmatpush1.bf16.msra.mxu0 %v8268
        %8335 = vmatprep.subr.bf16.mxu0 0
        %8336 = vmatpush1.bf16.msra.mxu0 %v8269
        %8337 = vmatprep.subr.bf16.mxu0 0
        %8338 = vmatpush1.bf16.msra.mxu0 %v8270
        %8339 = vmatprep.subr.bf16.mxu0 0
        %8340 = vmatpush1.bf16.msra.mxu0 %v8271
        %8341 = vmatprep.subr.bf16.mxu0 0
        %8342 = vmatpush1.bf16.msra.mxu0 %v8272
        %8343 = vmatprep.subr.bf16.mxu0 0
        %8344 = vmatpush1.bf16.msra.mxu0 %v8273
        %8345 = vmatprep.subr.bf16.mxu0 0
        %8346 = vmatpush1.bf16.msra.mxu0 %v8274
        %8347 = vmatprep.subr.bf16.mxu0 0
        %8348 = vmatpush1.bf16.msra.mxu0 %v8275
        %8349 = vmatprep.subr.bf16.mxu0 0
        %8350 = vmatpush1.bf16.msra.mxu0 %v8276
        %8351 = vmatprep.subr.bf16.mxu0 0
        %8352 = vmatpush1.bf16.msra.mxu0 %v8277
        %8353 = vmatprep.subr.bf16.mxu0 0
        %8354 = vmatpush1.bf16.msra.mxu0 %v8278
        %8355 = vmatprep.subr.bf16.mxu0 0
        %8356 = vmatpush1.bf16.msra.mxu0 %v8279
        %8357 = vmatprep.subr.bf16.mxu0 0
        %8358 = vmatpush1.bf16.msra.mxu0 %v8280
        %8359 = vmatprep.subr.bf16.mxu0 0
        %8360 = vmatpush1.bf16.msra.mxu0 %v8281
        %8361 = vmatprep.subr.bf16.mxu0 0
        %8362 = vmatpush1.bf16.msra.mxu0 %v8282
        %8363 = vmatprep.mubr.bf16.mxu0 %v8061
        %8364 = vmatmul.mubr.bf16.gmra.mrb[0].mxu0 %v8060
        %v8365 = vpop.f32.mrb[0].mxu0
        %v8366 = vadd.f32 %v8137, %v8365
        %v8367 = vpop.f32.mrb[0].mxu0
        %v8368 = vpop.f32.mrb[0].mxu0
        %v8369 = vadd.f32 %v8137, %v8368
        %v8370 = vpop.f32.mrb[0].mxu0
        %8371 = vmatprep.mubr.bf16.mxu0 %v8065
        %8372 = vmatmul.mubr.bf16.gmra.mrb[0].mxu0 %v8064
        %v8373 = vpop.f32.mrb[0].mxu0
        %v8374 = vadd.f32 %v8137, %v8373
        %v8375 = vpop.f32.mrb[0].mxu0
        %v8376 = vpop.f32.mrb[0].mxu0
        %v8377 = vadd.f32 %v8137, %v8376
        %v8378 = vpop.f32.mrb[0].mxu0
        %8379 = vdwg.mxu0
        %8380 = vmatprep.subr.bf16.mxu0 0
        %8381 = vmatpush1.bf16.msra.mxu0 %v8283
        %8382 = vmatprep.subr.bf16.mxu0 0
        %8383 = vmatpush1.bf16.msra.mxu0 %v8284
        %8384 = vmatprep.subr.bf16.mxu0 0
        %8385 = vmatpush1.bf16.msra.mxu0 %v8285
        %8386 = vmatprep.subr.bf16.mxu0 0
        %8387 = vmatpush1.bf16.msra.mxu0 %v8286
        %8388 = vmatprep.subr.bf16.mxu0 0
        %8389 = vmatpush1.bf16.msra.mxu0 %v8287
        %8390 = vmatprep.subr.bf16.mxu0 0
        %8391 = vmatpush1.bf16.msra.mxu0 %v8288
        %8392 = vmatprep.subr.bf16.mxu0 0
        %8393 = vmatpush1.bf16.msra.mxu0 %v8289
        %8394 = vmatprep.subr.bf16.mxu0 0
        %8395 = vmatpush1.bf16.msra.mxu0 %v8290
        %8396 = vmatprep.subr.bf16.mxu0 0
        %8397 = vmatpush1.bf16.msra.mxu0 %v8291
        %8398 = vmatprep.subr.bf16.mxu0 0
        %8399 = vmatpush1.bf16.msra.mxu0 %v8292
        %8400 = vmatprep.subr.bf16.mxu0 0
        %8401 = vmatpush1.bf16.msra.mxu0 %v8293
        %8402 = vmatprep.subr.bf16.mxu0 0
        %8403 = vmatpush1.bf16.msra.mxu0 %v8294
        %8404 = vmatprep.subr.bf16.mxu0 0
        %8405 = vmatpush1.bf16.msra.mxu0 %v8295
        %8406 = vmatprep.subr.bf16.mxu0 0
        %8407 = vmatpush1.bf16.msra.mxu0 %v8296
        %8408 = vmatprep.subr.bf16.mxu0 0
        %8409 = vmatpush1.bf16.msra.mxu0 %v8297
        %8410 = vmatprep.subr.bf16.mxu0 0
        %8411 = vmatpush1.bf16.msra.mxu0 %v8298
        %8412 = vmatprep.mubr.bf16.mxu0 %v8063
        %8413 = vmatmul.mubr.bf16.gmra.mrb[0].mxu0 %v8062
        %v8414 = vpop.f32.mrb[0].mxu0
        %v8415 = vadd.f32 %v8366, %v8414
        %v8416 = vpop.f32.mrb[0].mxu0
        %v8417 = vpop.f32.mrb[0].mxu0
        %v8418 = vadd.f32 %v8369, %v8417
        %v8419 = vpop.f32.mrb[0].mxu0
        %8420 = vmatprep.mubr.bf16.mxu0 %v8067
        %8421 = vmatmul.mubr.bf16.gmra.mrb[0].mxu0 %v8066
        %v8422 = vpop.f32.mrb[0].mxu0
        %v8423 = vadd.f32 %v8374, %v8422
        %v8424 = vpop.f32.mrb[0].mxu0
        %v8425 = vpop.f32.mrb[0].mxu0
        %v8426 = vadd.f32 %v8377, %v8425
        %v8427 = vpop.f32.mrb[0].mxu0
        %8428 = vdwg.mxu0
        %v8429 = vxor.u32 %v8415, 2147483648
        %v8430 = vxor.u32 %v8418, 2147483648
        %v8431 = vxor.u32 %v8423, 2147483648
        %v8432 = vxor.u32 %v8426, 2147483648
        %v8433 = vmul.f32 %v8429, 1.442695
        %v8434 = vpow.pop %v8433
        %v8435 = vmul.f32 %v8430, 1.442695
        %v8436 = vpow.pop %v8435
        %v8437 = vmul.f32 %v8431, 1.442695
        %v8438 = vpow.pop %v8437
        %v8439 = vmul.f32 %v8432, 1.442695
        %v8440 = vpow.pop %v8439
        %v8441 = vadd.f32 %v8434, 1.0
        %v8442 = vadd.f32 %v8436, 1.0
        %v8443 = vadd.f32 %v8438, 1.0
        %v8444 = vadd.f32 %v8440, 1.0
        %v8445 = vrcp.pop %v8441
        %v8446 = vmul.f32 1.0, %v8445
        %v8447 = vrcp.pop %v8442
        %v8448 = vmul.f32 1.0, %v8447
        %v8449 = vrcp.pop %v8443
        %v8450 = vmul.f32 1.0, %v8449
        %v8451 = vrcp.pop %v8444
        %v8452 = vmul.f32 1.0, %v8451
        %8453 = vst [vmem:[%s271] sm:$0xff] %v8446
        %8454 = vst [vmem:[%s271 + $0x8] sm:$0xff] %v8448
        %8455 = vst [vmem:[%s271 + $0x10] sm:$0xff] %v8450
        %8456 = vst [vmem:[%s271 + $0x18] sm:$0xff] %v8452
        %s8457 = sand.u32 %s141, 1
        %s8458 = scalar_lea.sflag [#allocation4], %s8457
        %s8459 = sand.u32 %s141, 1
        %s8460 = smul.addr %s8459, 32
        %s8461 = scalar_lea.vmem [#allocation8], %s8460
        // Predicated region
        $region53: #{tpu_custom_call.1} parent=39 // pred_check
          %p8462 = pneg %p151
        $region54: #{tpu_custom_call.1} parent=39 // pred_check_branch
          %8464 = sbr.rel (%p8462) target = $region56
        $region55: #{tpu_custom_call.1} parent=39 // pred_region
          %s8465 = smul.u32 4, %s23
          %s8467 = ssub.s32 512, 512
          %8468 = vsyncadd %s8458, %s8467
          %s8469 = smul.addr %s8465, 128
          %s8470 = scalar_lea.hbm %s5, %s8469
          %s8471 = sshll.u32 %s8461, 4
          %s8472 = int_to_ptr.vmem [resolvable:$true] %s8471
          %8477 = dma.vmem_to_hbm [thread:$0]  %s8472, 512, %s8470, %s8458, 128, 128, 8
        $region56: #{tpu_custom_call.1} parent=39 // pred_fallthru
          _
      $region40: #{tpu_custom_call.1} parent=5 // pred_fallthru
        _
      %p8478 = scmp.le.s32.totalorder 2, %s18
      // Predicated region
      $region57: #{tpu_custom_call.1} parent=5 // pred_check
        %p8479 = pneg %p8478
      $region58: #{tpu_custom_call.1} parent=5 // pred_check_branch
        %8481 = sbr.rel (%p8479) target = $region60
      $region59: #{tpu_custom_call.1} parent=5 // pred_region
        %s8482 = ssub.s32 %s18, 2
        // Predicated region
        $region61: #{tpu_custom_call.1} parent=59 // pred_check
          %p8483 = pneg %p157
        $region62: #{tpu_custom_call.1} parent=59 // pred_check_branch
          %8485 = sbr.rel (%p8483) target = $region64
        $region63: #{tpu_custom_call.1} parent=59 // pred_region
          %s8486 = sand.u32 %s142, 1
          %s8487 = scalar_lea.sflag [#allocation4], %s8486
          %s8488 = sand.u32 %s142, 1
          %s8489 = smul.addr %s8488, 32
          %s8490 = scalar_lea.vmem [#allocation8], %s8489
          %8491 = dma.done %s8487, 512
        $region64: #{tpu_custom_call.1} parent=59 // pred_fallthru
          _
      $region60: #{tpu_custom_call.1} parent=5 // pred_fallthru
        _
    $region6: #{tpu_custom_call.1} parent=1 // loop_footer
      %s22 = sadd.s32 1, %s18
    $region7: #{tpu_custom_call.1} parent=1 // loop_footer_branch
      %17 = sbr.rel target = $region3
    $region8: #{tpu_custom_call.1} parent=1 // loop_exit
      _
    %8492 = vsyncpa [#allocation3], 1
    %s8493 = scalar_lea.sflag [#allocation3], 1
    %8494 = vsyncpa %s8493, 1
    %8495 = vsyncpa [#allocation6], 1
    %8496 = vsyncpa [#allocation4], 1
    %s8497 = scalar_lea.sflag [#allocation4], 1
    %8498 = vsyncpa %s8497, 1

</llo_original>
